<compile_context>
chip_gen: v7x
topology: tpu7x:2x2x1
jax: 0.10.0
libtpu: 0.0.40
codegen_flags: <defaults>
</compile_context>

<pallas_src>
import functools

import jax
import jax.numpy as jnp
from jax.experimental import pallas as pl
from jax.experimental.pallas import tpu as pltpu

_C_PAD = 8  # xyz channels padded 3 -> 8 so every slab group is (8,128)-aligned


def _round_up(x, m):
    return ((x + m - 1) // m) * m


# ----------------------------------------------------------------------------
# Kernel
# ----------------------------------------------------------------------------
def _make_kernel(*, multires, n_rest_hidden, use_leaky_relu, anchor_every,
                 cdtype, hidden0_dim, n_parts, out_size, out_pad_rows):
    def act(h):
        if use_leaky_relu:
            return jnp.where(h > 0, h, 0.01 * h)     # F.leaky_relu default slope
        return jnp.maximum(h, 0.0)                   # F.relu

    def kernel(x_ref, w_emb_ref, b_in_ref, w01_ref, b01_ref, *rest):
        hidden_refs = rest[:2 * n_rest_hidden]
        w_occ_ref = rest[2 * n_rest_hidden]
        b_occ_ref = rest[2 * n_rest_hidden + 1]
        out_ref = rest[2 * n_rest_hidden + 2]
        emb_ref = rest[2 * n_rest_hidden + 3]        # (16*multires+16, TM) scratch

        x = x_ref[...]                               # (8, TM) f32; rows 3..7 zero pad
        zeros8 = jnp.zeros_like(x)

        # ---- build the positional-encoding slab ---------------------------------
        # sin/cos via the angle-doubling recurrence (re-anchored every
        # `anchor_every` octaves); each octave is stored as a 16-row,
        # 16-sublane-aligned group [sin_j; cos_j].  Pad rows (sin(0)=0, cos(0)=1)
        # hit zero weight columns so they contribute nothing.
        s = c = None
        for j in range(multires):
            if j % anchor_every == 0:
                xs = x * jnp.float32(2.0 ** j)
                s = jnp.sin(xs)
                c = jnp.cos(xs)
            else:
                # sin(2a) = 2sc, cos(2a) = 1 - 2s^2  (pure VPU FMAs)
                s, c = 2.0 * s * c, 1.0 - 2.0 * s * s
            emb_ref[pl.ds(16 * j, 16), :] = (
                jnp.concatenate([s, c], axis=0).astype(cdtype))
        emb_ref[pl.ds(16 * multires, 16), :] = (
            jnp.concatenate([x, zeros8], axis=0).astype(cdtype))

        # ---- fused part-guided input layer: ONE matmul over the slab -------------
        h0 = jnp.dot(w_emb_ref[...], emb_ref[...],
                     preferred_element_type=jnp.float32)
        h0 = act(h0 + b_in_ref[...])                 # == cat(part_features).T

        # ---- hidden layer 0 stacked with the block-diagonal class heads ----------
        st = jnp.dot(w01_ref[...], h0.astype(cdtype),
                     preferred_element_type=jnp.float32) + b01_ref[...]
        h = act(st[:hidden0_dim])                    # (hidden0_dim, TM)
        cls = st[hidden0_dim:hidden0_dim + n_parts]  # (n_parts, TM)

        # ---- remaining hidden layers (activation after each, as in torch) --------
        for li in range(n_rest_hidden):
            w = hidden_refs[2 * li][...]
            b = hidden_refs[2 * li + 1][...]
            h = act(jnp.dot(w, h.astype(cdtype),
                            preferred_element_type=jnp.float32) + b)

        # ---- occupancy head (tiny; kept f32 — no output activation in torch) -----
        occ = jnp.dot(w_occ_ref[...], h,
                      preferred_element_type=jnp.float32) + b_occ_ref[...]

        # ---- one merged, 8-sublane-aligned output block ---------------------------
        out_ref[pl.ds(0, out_size), :] = occ.astype(out_ref.dtype)
        out_ref[pl.ds(out_size, n_parts), :] = cls.astype(out_ref.dtype)
        if out_pad_rows > 0:
            out_ref[pl.ds(out_size + n_parts, out_pad_rows), :] = jnp.zeros(
                (out_pad_rows, x.shape[1]), out_ref.dtype)

    return kernel


# ----------------------------------------------------------------------------
# Parameter init (torch.nn.Linear default init, weights in (out, in) layout)
# ----------------------------------------------------------------------------
def _linear_init(key, fan_in, fan_out):
    kw, kb = jax.random.split(key)
    bound = 1.0 / (fan_in ** 0.5)
    w = jax.random.uniform(kw, (fan_out, fan_in), jnp.float32, -bound, bound)
    b = jax.random.uniform(kb, (fan_out,), jnp.float32, -bound, bound)
    return w, b


def init_mlp3d_partguided_params(key, n_of_parts=4, hidden_neurons=(64, 64, 64),
                                 out_size=1, multires=10):
    in_dim = 3 * (1 + 2 * multires)                  # embedder.out_dim (move=False)
    part_dim = hidden_neurons[0] // n_of_parts
    params = {'input_layers': [], 'class_heads': [], 'hidden_layers': [], 'occ_head': None}
    for _ in range(n_of_parts):
        key, k = jax.random.split(key)
        params['input_layers'].append(_linear_init(k, in_dim, part_dim))
    for i in range(len(hidden_neurons)):
        fan_in = hidden_neurons[0] if i == 0 else hidden_neurons[i - 1]
        key, k = jax.random.split(key)
        params['hidden_layers'].append(_linear_init(k, fan_in, hidden_neurons[i]))
    key, k = jax.random.split(key)
    params['occ_head'] = _linear_init(k, hidden_neurons[-1], out_size)
    for _ in range(n_of_parts):
        key, k = jax.random.split(key)
        params['class_heads'].append(_linear_init(k, part_dim, 1))
    return params


# ----------------------------------------------------------------------------
# One-time weight packing (hoisted out of the forward path)
# ----------------------------------------------------------------------------
def pack_mlp3d_partguided_params(params, *, multires=10, matmul_dtype=jnp.bfloat16):
    input_layers = params['input_layers']
    class_heads = params['class_heads']
    hidden_layers = params['hidden_layers']
    w_occ, b_occ = params['occ_head']

    n_parts = len(input_layers)
    part_dim = input_layers[0][0].shape[0]
    h0 = n_parts * part_dim
    in_dim = 3 * (1 + 2 * multires)
    assert input_layers[0][0].shape[1] == in_dim
    n_hidden = len(hidden_layers)
    assert n_hidden >= 1
    hidden0_dim = hidden_layers[0][0].shape[0]
    assert hidden_layers[0][0].shape[1] == h0, "hidden_neurons[0] must equal n_parts*part_dim"
    out_size = w_occ.shape[0]

    cdtype = jnp.dtype(matmul_dtype)

    # --- fuse the n_of_parts input Linears, remap columns onto the slab layout ---
    w_in = jnp.concatenate([w for w, _ in input_layers], axis=0)            # (h0, 63)
    b_in = jnp.concatenate([b for _, b in input_layers], axis=0)[:, None]   # (h0, 1)
    emb_rows = 16 * multires + 16
    w_emb = jnp.zeros((h0, emb_rows), jnp.float32)
    for j in range(multires):
        w_emb = w_emb.at[:, 16 * j: 16 * j + 3].set(w_in[:, 3 + 6 * j: 6 + 6 * j])       # sin_j
        w_emb = w_emb.at[:, 16 * j + 8: 16 * j + 11].set(w_in[:, 6 + 6 * j: 9 + 6 * j])  # cos_j
    w_emb = w_emb.at[:, 16 * multires: 16 * multires + 3].set(w_in[:, 0:3])              # x

    # --- hidden layer 0 stacked with the block-diagonal classification heads ---
    stack_rows = _round_up(hidden0_dim + n_parts, 16)
    w0, b0 = hidden_layers[0]
    w01 = jnp.zeros((stack_rows, h0), jnp.float32)
    w01 = w01.at[:hidden0_dim].set(w0)
    b01 = jnp.zeros((stack_rows, 1), jnp.float32)
    b01 = b01.at[:hidden0_dim, 0].set(b0)
    for i, (wc, bc) in enumerate(class_heads):
        w01 = w01.at[hidden0_dim + i, i * part_dim:(i + 1) * part_dim].set(wc[0])
        b01 = b01.at[hidden0_dim + i, 0].set(bc[0])

    hidden_rest = [(w.astype(cdtype), b[:, None].astype(jnp.float32))
                   for w, b in hidden_layers[1:]]

    return {
        'w_emb': w_emb.astype(cdtype),
        'b_in': b_in.astype(jnp.float32),
        'w01': w01.astype(cdtype),
        'b01': b01,
        'hidden_rest': hidden_rest,
        'w_occ': w_occ.astype(jnp.float32),        # tiny head; keep f32
        'b_occ': b_occ[:, None].astype(jnp.float32),
        # Static metadata (plain python values) — close over this dict when
        # jitting; do not pass it as a traced jit argument.
        'static': dict(multires=multires, n_parts=n_parts, out_size=out_size,
                       hidden0_dim=hidden0_dim, emb_rows=emb_rows,
                       stack_rows=stack_rows, matmul_dtype=cdtype),
    }


# ----------------------------------------------------------------------------
# Forward
# ----------------------------------------------------------------------------
def mlp3d_partguided_forward(coords, packed_params, *, use_leaky_relu=False,
                             tile_m=8192, anchor_every=4, lane_major_output=False):
    if isinstance(coords, dict):
        coords = coords['coords']
    B, N, D = coords.shape
    assert D == 3, "input_dims=3 (move=False)"
    M = B * N

    st = packed_params['static']
    multires = st['multires']
    n_parts = st['n_parts']
    out_size = st['out_size']
    hidden0_dim = st['hidden0_dim']
    emb_rows = st['emb_rows']
    cdtype = st['matmul_dtype']
    hidden_rest = packed_params['hidden_rest']
    n_rest_hidden = len(hidden_rest)

    # ---- tile selection: large lane-dense tiles; ensure >=2 grid steps when
    #      possible so the 'parallel' axis can shard across v7x's two TCs.
    tile_m = int(max(512, min(int(tile_m), _round_up(M, 512))))
    if M > 512 and _round_up(M, tile_m) // tile_m < 2:
        tile_m = _round_up(-(-M // 2), 512)
    m_pad = _round_up(M, tile_m)

    x = coords.reshape(M, 3).astype(jnp.float32)
    x = jnp.pad(x, ((0, m_pad - M), (0, _C_PAD - 3))).T                     # (8, m_pad)

    out_rows = out_size + n_parts
    out_rows_pad = _round_up(out_rows, 8)
    out_pad_rows = out_rows_pad - out_rows

    hid_flat = []
    for w, b in hidden_rest:
        hid_flat += [w, b]
    inputs = [x, packed_params['w_emb'], packed_params['b_in'],
              packed_params['w01'], packed_params['b01'],
              *hid_flat, packed_params['w_occ'], packed_params['b_occ']]

    def const_spec(a):
        nd = a.ndim
        return pl.BlockSpec(a.shape, lambda i, _nd=nd: (0,) * _nd)

    in_specs = [pl.BlockSpec((_C_PAD, tile_m), lambda i: (0, i))]
    in_specs += [const_spec(a) for a in inputs[1:]]

    out_specs = pl.BlockSpec((out_rows_pad, tile_m), lambda i: (0, i))
    out_shape = jax.ShapeDtypeStruct((out_rows_pad, m_pad), jnp.float32)

    # ---- advisory cost estimate for the XLA scheduler ----
    n_anchor = -(-multires // anchor_every)
    w_elems = (int(packed_params['w_emb'].size) + int(packed_params['w01'].size)
               + sum(int(w.size) for w, _ in hidden_rest)
               + int(packed_params['w_occ'].size))
    n_param_bytes = sum(int(a.size) * a.dtype.itemsize for a in inputs[1:])
    cost = pl.CostEstimate(
        flops=2 * m_pad * w_elems,
        transcendentals=m_pad * _C_PAD * 2 * n_anchor,
        bytes_accessed=4 * m_pad * (_C_PAD + out_rows_pad) + n_param_bytes,
    )

    kernel = _make_kernel(multires=multires, n_rest_hidden=n_rest_hidden,
                          use_leaky_relu=use_leaky_relu, anchor_every=anchor_every,
                          cdtype=cdtype, hidden0_dim=hidden0_dim, n_parts=n_parts,
                          out_size=out_size, out_pad_rows=out_pad_rows)

    out = pl.pallas_call(
        kernel,
        out_shape=out_shape,
        grid_spec=pltpu.PrefetchScalarGridSpec(
            num_scalar_prefetch=0,
            grid=(m_pad // tile_m,),
            in_specs=in_specs,
            out_specs=out_specs,
            scratch_shapes=[pltpu.VMEM((emb_rows, tile_m), cdtype)],
        ),
        compiler_params=pltpu.CompilerParams(
            dimension_semantics=("parallel",),
            vmem_limit_bytes=48 * 1024 * 1024,
        ),
        cost_estimate=cost,
    )(*inputs)

    occ_t = out[:out_size]
    cls_t = out[out_size:out_size + n_parts]

    if lane_major_output:
        # Lane-dense (feat, M) layout — avoids the post-kernel transpose when the
        # consumer can accept it (review item 11).
        return {'model_in': coords,
                'model_out': occ_t[:, :M],
                'part_classification': jnp.squeeze(cls_t[:, :M])}

    occ = occ_t[:, :M].T.reshape(B, N, out_size)
    cls = cls_t[:, :M].T.reshape(B, N, n_parts)
    return {'model_in': coords,
            'model_out': occ,
            'part_classification': jnp.squeeze(cls)}


# ----------------------------------------------------------------------------
# Pure-JAX reference (matches the torch module semantics exactly)
# ----------------------------------------------------------------------------
def _reference_forward(coords, params, multires, use_leaky_relu):
    B, N, _ = coords.shape
    x = coords.reshape(B * N, 3).astype(jnp.float32)
    feats = [x]
    for j in range(multires):
        f = jnp.float32(2.0 ** j)
        feats.append(jnp.sin(x * f))
        feats.append(jnp.cos(x * f))
    emb = jnp.concatenate(feats, axis=-1)

    def act(t):
        return jnp.where(t > 0, t, 0.01 * t) if use_leaky_relu else jnp.maximum(t, 0.0)

    part_feats, cls_outs = [], []
    for (w, b), (wc, bc) in zip(params['input_layers'], params['class_heads']):
        pf = act(emb @ w.T + b)
        part_feats.append(pf)
        cls_outs.append(pf @ wc.T + bc)
    h = jnp.concatenate(part_feats, axis=-1)
    for w, b in params['hidden_layers']:
        h = act(h @ w.T + b)
    w, b = params['occ_head']
    occ = h @ w.T + b
    cls = jnp.concatenate(cls_outs, axis=-1)
    return occ.reshape(B, N, -1), cls.reshape(B, N, -1)


if __name__ == "__main__":
    key = jax.random.PRNGKey(0)
    k_coords, k_params = jax.random.split(key)

    # Module defaults: n_of_parts=4, hidden_neurons=[64,64,64], out_size=1, multires=10.
    n_of_parts = 4
    hidden_neurons = [64, 64, 64]
    out_size = 1
    multires = 10
    use_leaky_relu = False

    # Small test: M = 2000 points (padded to 2048, two grid steps).
    B, N = 2, 1000
    coords = jax.random.uniform(k_coords, (B, N, 3), jnp.float32, -1.0, 1.0)
    params = init_mlp3d_partguided_params(
        k_params, n_of_parts=n_of_parts, hidden_neurons=hidden_neurons,
        out_size=out_size, multires=multires)

    ref_occ, ref_cls = _reference_forward(coords, params, multires, use_leaky_relu)
    ref_cls = jnp.squeeze(ref_cls)

    # --- exact path: f32 matmuls, tight tolerance (angle-doubling only) ----------
    packed_f32 = pack_mlp3d_partguided_params(params, multires=multires,
                                              matmul_dtype=jnp.float32)
    fwd_f32 = jax.jit(functools.partial(mlp3d_partguided_forward,
                                        packed_params=packed_f32,
                                        use_leaky_relu=use_leaky_relu, tile_m=1024))
    res = fwd_f32(coords)
    occ = jax.block_until_ready(res['model_out'])
    cls = jax.block_until_ready(res['part_classification'])
    assert occ.shape == (B, N, out_size), occ.shape
    assert cls.shape == (B, N, n_of_parts), cls.shape
    assert jnp.allclose(occ, ref_occ, atol=2e-4, rtol=2e-4), \
        float(jnp.max(jnp.abs(occ - ref_occ)))
    assert jnp.allclose(cls, ref_cls, atol=2e-4, rtol=2e-4), \
        float(jnp.max(jnp.abs(cls - ref_cls)))

    # --- fast path: bf16 matmul operands (f32 accumulation), default tiling ------
    # Tolerance reflects bf16 operand rounding; accumulation stays f32.
    packed_bf16 = pack_mlp3d_partguided_params(params, multires=multires,
                                               matmul_dtype=jnp.bfloat16)
    fwd_bf16 = jax.jit(functools.partial(mlp3d_partguided_forward,
                                         packed_params=packed_bf16,
                                         use_leaky_relu=use_leaky_relu))
    res_b = fwd_bf16(coords)
    occ_b = jax.block_until_ready(res_b['model_out'])
    cls_b = jax.block_until_ready(res_b['part_classification'])
    assert occ_b.shape == (B, N, out_size), occ_b.shape
    assert cls_b.shape == (B, N, n_of_parts), cls_b.shape
    assert jnp.allclose(occ_b, ref_occ, atol=3e-2, rtol=3e-2), \
        float(jnp.max(jnp.abs(occ_b - ref_occ)))
    assert jnp.allclose(cls_b, ref_cls, atol=3e-2, rtol=3e-2), \
        float(jnp.max(jnp.abs(cls_b - ref_cls)))

    print("KERNEL_OK")
</pallas_src>

<mosaic_0001>
module attributes {stable_mosaic.version = 11 : i64} {
  func.func @kernel(%arg0: i32, %arg1: memref<8x1024xf32, #tpu.memory_space<vmem>>, %arg2: memref<64x176xf32, #tpu.memory_space<vmem>>, %arg3: memref<64x1xf32, #tpu.memory_space<vmem>>, %arg4: memref<80x64xf32, #tpu.memory_space<vmem>>, %arg5: memref<80x1xf32, #tpu.memory_space<vmem>>, %arg6: memref<64x64xf32, #tpu.memory_space<vmem>>, %arg7: memref<64x1xf32, #tpu.memory_space<vmem>>, %arg8: memref<64x64xf32, #tpu.memory_space<vmem>>, %arg9: memref<64x1xf32, #tpu.memory_space<vmem>>, %arg10: memref<1x64xf32, #tpu.memory_space<vmem>>, %arg11: memref<1x1xf32, #tpu.memory_space<vmem>>, %arg12: memref<8x1024xf32, #tpu.memory_space<vmem>>, %arg13: memref<176x1024xf32, #tpu.memory_space<vmem>>) attributes {dimension_semantics = [#tpu.dimension_semantics<parallel>], iteration_bounds = array<i64: 2>, scalar_prefetch = 0 : i64, scratch_operands = 1 : i64, tpu.core_type = #tpu.core_type<tc>, window_params = [{transform_indices = @transform_0, window_bounds = array<i64: 8, 1024>}, {pipeline_mode = #tpu.pipeline_mode<synchronous>, transform_indices = @transform_1, window_bounds = array<i64: 64, 176>}, {pipeline_mode = #tpu.pipeline_mode<synchronous>, transform_indices = @transform_2, window_bounds = array<i64: 64, 1>}, {pipeline_mode = #tpu.pipeline_mode<synchronous>, transform_indices = @transform_3, window_bounds = array<i64: 80, 64>}, {pipeline_mode = #tpu.pipeline_mode<synchronous>, transform_indices = @transform_4, window_bounds = array<i64: 80, 1>}, {pipeline_mode = #tpu.pipeline_mode<synchronous>, transform_indices = @transform_5, window_bounds = array<i64: 64, 64>}, {pipeline_mode = #tpu.pipeline_mode<synchronous>, transform_indices = @transform_6, window_bounds = array<i64: 64, 1>}, {pipeline_mode = #tpu.pipeline_mode<synchronous>, transform_indices = @transform_7, window_bounds = array<i64: 64, 64>}, {pipeline_mode = #tpu.pipeline_mode<synchronous>, transform_indices = @transform_8, window_bounds = array<i64: 64, 1>}, {pipeline_mode = #tpu.pipeline_mode<synchronous>, transform_indices = @transform_9, window_bounds = array<i64: 1, 64>}, {pipeline_mode = #tpu.pipeline_mode<synchronous>, transform_indices = @transform_10, window_bounds = array<i64: 1, 1>}, {transform_indices = @transform_11, window_bounds = array<i64: 8, 1024>}]} {
    %c0 = arith.constant 0 : index
    %c0_0 = arith.constant 0 : index
    %0 = vector.load %arg1[%c0, %c0_0] : memref<8x1024xf32, #tpu.memory_space<vmem>>, vector<8x1024xf32>
    %cst = arith.constant 0.000000e+00 : f32
    %1 = vector.broadcast %cst : f32 to vector<8x1024xf32>
    %cst_1 = arith.constant 1.000000e+00 : f32
    %2 = vector.broadcast %cst_1 : f32 to vector<8x1024xf32>
    %3 = arith.mulf %0, %2 : vector<8x1024xf32>
    %4 = math.sin %3 : vector<8x1024xf32>
    %5 = math.cos %3 : vector<8x1024xf32>
    %6 = tpu.concatenate %4, %5 in 0 : vector<8x1024xf32>, vector<8x1024xf32> -> vector<16x1024xf32>
    %c0_2 = arith.constant 0 : index
    %c0_3 = arith.constant 0 : index
    %7 = vector.load %arg13[%c0_2, %c0_3] : memref<176x1024xf32, #tpu.memory_space<vmem>>, vector<16x1024xf32>
    tpu.vector_store %arg13[%c0_2, %c0_3], %6 {strides = array<i32>} : memref<176x1024xf32, #tpu.memory_space<vmem>>, vector<16x1024xf32>,
    %cst_4 = arith.constant 2.000000e+00 : f32
    %8 = vector.broadcast %cst_4 : f32 to vector<8x1024xf32>
    %9 = arith.mulf %8, %4 : vector<8x1024xf32>
    %10 = arith.mulf %9, %5 : vector<8x1024xf32>
    %cst_5 = arith.constant 2.000000e+00 : f32
    %11 = vector.broadcast %cst_5 : f32 to vector<8x1024xf32>
    %12 = arith.mulf %11, %4 : vector<8x1024xf32>
    %13 = arith.mulf %12, %4 : vector<8x1024xf32>
    %cst_6 = arith.constant 1.000000e+00 : f32
    %14 = vector.broadcast %cst_6 : f32 to vector<8x1024xf32>
    %15 = arith.subf %14, %13 : vector<8x1024xf32>
    %16 = tpu.concatenate %10, %15 in 0 : vector<8x1024xf32>, vector<8x1024xf32> -> vector<16x1024xf32>
    %c16 = arith.constant 16 : index
    %c0_7 = arith.constant 0 : index
    %17 = vector.load %arg13[%c16, %c0_7] : memref<176x1024xf32, #tpu.memory_space<vmem>>, vector<16x1024xf32>
    tpu.vector_store %arg13[%c16, %c0_7], %16 {strides = array<i32>} : memref<176x1024xf32, #tpu.memory_space<vmem>>, vector<16x1024xf32>,
    %cst_8 = arith.constant 2.000000e+00 : f32
    %18 = vector.broadcast %cst_8 : f32 to vector<8x1024xf32>
    %19 = arith.mulf %18, %10 : vector<8x1024xf32>
    %20 = arith.mulf %19, %15 : vector<8x1024xf32>
    %cst_9 = arith.constant 2.000000e+00 : f32
    %21 = vector.broadcast %cst_9 : f32 to vector<8x1024xf32>
    %22 = arith.mulf %21, %10 : vector<8x1024xf32>
    %23 = arith.mulf %22, %10 : vector<8x1024xf32>
    %cst_10 = arith.constant 1.000000e+00 : f32
    %24 = vector.broadcast %cst_10 : f32 to vector<8x1024xf32>
    %25 = arith.subf %24, %23 : vector<8x1024xf32>
    %26 = tpu.concatenate %20, %25 in 0 : vector<8x1024xf32>, vector<8x1024xf32> -> vector<16x1024xf32>
    %c32 = arith.constant 32 : index
    %c0_11 = arith.constant 0 : index
    %27 = vector.load %arg13[%c32, %c0_11] : memref<176x1024xf32, #tpu.memory_space<vmem>>, vector<16x1024xf32>
    tpu.vector_store %arg13[%c32, %c0_11], %26 {strides = array<i32>} : memref<176x1024xf32, #tpu.memory_space<vmem>>, vector<16x1024xf32>,
    %cst_12 = arith.constant 2.000000e+00 : f32
    %28 = vector.broadcast %cst_12 : f32 to vector<8x1024xf32>
    %29 = arith.mulf %28, %20 : vector<8x1024xf32>
    %30 = arith.mulf %29, %25 : vector<8x1024xf32>
    %cst_13 = arith.constant 2.000000e+00 : f32
    %31 = vector.broadcast %cst_13 : f32 to vector<8x1024xf32>
    %32 = arith.mulf %31, %20 : vector<8x1024xf32>
    %33 = arith.mulf %32, %20 : vector<8x1024xf32>
    %cst_14 = arith.constant 1.000000e+00 : f32
    %34 = vector.broadcast %cst_14 : f32 to vector<8x1024xf32>
    %35 = arith.subf %34, %33 : vector<8x1024xf32>
    %36 = tpu.concatenate %30, %35 in 0 : vector<8x1024xf32>, vector<8x1024xf32> -> vector<16x1024xf32>
    %c48 = arith.constant 48 : index
    %c0_15 = arith.constant 0 : index
    %37 = vector.load %arg13[%c48, %c0_15] : memref<176x1024xf32, #tpu.memory_space<vmem>>, vector<16x1024xf32>
    tpu.vector_store %arg13[%c48, %c0_15], %36 {strides = array<i32>} : memref<176x1024xf32, #tpu.memory_space<vmem>>, vector<16x1024xf32>,
    %cst_16 = arith.constant 1.600000e+01 : f32
    %38 = vector.broadcast %cst_16 : f32 to vector<8x1024xf32>
    %39 = arith.mulf %0, %38 : vector<8x1024xf32>
    %40 = math.sin %39 : vector<8x1024xf32>
    %41 = math.cos %39 : vector<8x1024xf32>
    %42 = tpu.concatenate %40, %41 in 0 : vector<8x1024xf32>, vector<8x1024xf32> -> vector<16x1024xf32>
    %c64 = arith.constant 64 : index
    %c0_17 = arith.constant 0 : index
    %43 = vector.load %arg13[%c64, %c0_17] : memref<176x1024xf32, #tpu.memory_space<vmem>>, vector<16x1024xf32>
    tpu.vector_store %arg13[%c64, %c0_17], %42 {strides = array<i32>} : memref<176x1024xf32, #tpu.memory_space<vmem>>, vector<16x1024xf32>,
    %cst_18 = arith.constant 2.000000e+00 : f32
    %44 = vector.broadcast %cst_18 : f32 to vector<8x1024xf32>
    %45 = arith.mulf %44, %40 : vector<8x1024xf32>
    %46 = arith.mulf %45, %41 : vector<8x1024xf32>
    %cst_19 = arith.constant 2.000000e+00 : f32
    %47 = vector.broadcast %cst_19 : f32 to vector<8x1024xf32>
    %48 = arith.mulf %47, %40 : vector<8x1024xf32>
    %49 = arith.mulf %48, %40 : vector<8x1024xf32>
    %cst_20 = arith.constant 1.000000e+00 : f32
    %50 = vector.broadcast %cst_20 : f32 to vector<8x1024xf32>
    %51 = arith.subf %50, %49 : vector<8x1024xf32>
    %52 = tpu.concatenate %46, %51 in 0 : vector<8x1024xf32>, vector<8x1024xf32> -> vector<16x1024xf32>
    %c80 = arith.constant 80 : index
    %c0_21 = arith.constant 0 : index
    %53 = vector.load %arg13[%c80, %c0_21] : memref<176x1024xf32, #tpu.memory_space<vmem>>, vector<16x1024xf32>
    tpu.vector_store %arg13[%c80, %c0_21], %52 {strides = array<i32>} : memref<176x1024xf32, #tpu.memory_space<vmem>>, vector<16x1024xf32>,
    %cst_22 = arith.constant 2.000000e+00 : f32
    %54 = vector.broadcast %cst_22 : f32 to vector<8x1024xf32>
    %55 = arith.mulf %54, %46 : vector<8x1024xf32>
    %56 = arith.mulf %55, %51 : vector<8x1024xf32>
    %cst_23 = arith.constant 2.000000e+00 : f32
    %57 = vector.broadcast %cst_23 : f32 to vector<8x1024xf32>
    %58 = arith.mulf %57, %46 : vector<8x1024xf32>
    %59 = arith.mulf %58, %46 : vector<8x1024xf32>
    %cst_24 = arith.constant 1.000000e+00 : f32
    %60 = vector.broadcast %cst_24 : f32 to vector<8x1024xf32>
    %61 = arith.subf %60, %59 : vector<8x1024xf32>
    %62 = tpu.concatenate %56, %61 in 0 : vector<8x1024xf32>, vector<8x1024xf32> -> vector<16x1024xf32>
    %c96 = arith.constant 96 : index
    %c0_25 = arith.constant 0 : index
    %63 = vector.load %arg13[%c96, %c0_25] : memref<176x1024xf32, #tpu.memory_space<vmem>>, vector<16x1024xf32>
    tpu.vector_store %arg13[%c96, %c0_25], %62 {strides = array<i32>} : memref<176x1024xf32, #tpu.memory_space<vmem>>, vector<16x1024xf32>,
    %cst_26 = arith.constant 2.000000e+00 : f32
    %64 = vector.broadcast %cst_26 : f32 to vector<8x1024xf32>
    %65 = arith.mulf %64, %56 : vector<8x1024xf32>
    %66 = arith.mulf %65, %61 : vector<8x1024xf32>
    %cst_27 = arith.constant 2.000000e+00 : f32
    %67 = vector.broadcast %cst_27 : f32 to vector<8x1024xf32>
    %68 = arith.mulf %67, %56 : vector<8x1024xf32>
    %69 = arith.mulf %68, %56 : vector<8x1024xf32>
    %cst_28 = arith.constant 1.000000e+00 : f32
    %70 = vector.broadcast %cst_28 : f32 to vector<8x1024xf32>
    %71 = arith.subf %70, %69 : vector<8x1024xf32>
    %72 = tpu.concatenate %66, %71 in 0 : vector<8x1024xf32>, vector<8x1024xf32> -> vector<16x1024xf32>
    %c112 = arith.constant 112 : index
    %c0_29 = arith.constant 0 : index
    %73 = vector.load %arg13[%c112, %c0_29] : memref<176x1024xf32, #tpu.memory_space<vmem>>, vector<16x1024xf32>
    tpu.vector_store %arg13[%c112, %c0_29], %72 {strides = array<i32>} : memref<176x1024xf32, #tpu.memory_space<vmem>>, vector<16x1024xf32>,
    %cst_30 = arith.constant 2.560000e+02 : f32
    %74 = vector.broadcast %cst_30 : f32 to vector<8x1024xf32>
    %75 = arith.mulf %0, %74 : vector<8x1024xf32>
    %76 = math.sin %75 : vector<8x1024xf32>
    %77 = math.cos %75 : vector<8x1024xf32>
    %78 = tpu.concatenate %76, %77 in 0 : vector<8x1024xf32>, vector<8x1024xf32> -> vector<16x1024xf32>
    %c128 = arith.constant 128 : index
    %c0_31 = arith.constant 0 : index
    %79 = vector.load %arg13[%c128, %c0_31] : memref<176x1024xf32, #tpu.memory_space<vmem>>, vector<16x1024xf32>
    tpu.vector_store %arg13[%c128, %c0_31], %78 {strides = array<i32>} : memref<176x1024xf32, #tpu.memory_space<vmem>>, vector<16x1024xf32>,
    %cst_32 = arith.constant 2.000000e+00 : f32
    %80 = vector.broadcast %cst_32 : f32 to vector<8x1024xf32>
    %81 = arith.mulf %80, %76 : vector<8x1024xf32>
    %82 = arith.mulf %81, %77 : vector<8x1024xf32>
    %cst_33 = arith.constant 2.000000e+00 : f32
    %83 = vector.broadcast %cst_33 : f32 to vector<8x1024xf32>
    %84 = arith.mulf %83, %76 : vector<8x1024xf32>
    %85 = arith.mulf %84, %76 : vector<8x1024xf32>
    %cst_34 = arith.constant 1.000000e+00 : f32
    %86 = vector.broadcast %cst_34 : f32 to vector<8x1024xf32>
    %87 = arith.subf %86, %85 : vector<8x1024xf32>
    %88 = tpu.concatenate %82, %87 in 0 : vector<8x1024xf32>, vector<8x1024xf32> -> vector<16x1024xf32>
    %c144 = arith.constant 144 : index
    %c0_35 = arith.constant 0 : index
    %89 = vector.load %arg13[%c144, %c0_35] : memref<176x1024xf32, #tpu.memory_space<vmem>>, vector<16x1024xf32>
    tpu.vector_store %arg13[%c144, %c0_35], %88 {strides = array<i32>} : memref<176x1024xf32, #tpu.memory_space<vmem>>, vector<16x1024xf32>,
    %90 = tpu.concatenate %0, %1 in 0 : vector<8x1024xf32>, vector<8x1024xf32> -> vector<16x1024xf32>
    %c160 = arith.constant 160 : index
    %c0_36 = arith.constant 0 : index
    %91 = vector.load %arg13[%c160, %c0_36] : memref<176x1024xf32, #tpu.memory_space<vmem>>, vector<16x1024xf32>
    tpu.vector_store %arg13[%c160, %c0_36], %90 {strides = array<i32>} : memref<176x1024xf32, #tpu.memory_space<vmem>>, vector<16x1024xf32>,
    %c0_37 = arith.constant 0 : index
    %c0_38 = arith.constant 0 : index
    %92 = vector.load %arg2[%c0_37, %c0_38] : memref<64x176xf32, #tpu.memory_space<vmem>>, vector<64x176xf32>
    %c0_39 = arith.constant 0 : index
    %c0_40 = arith.constant 0 : index
    %93 = vector.load %arg13[%c0_39, %c0_40] : memref<176x1024xf32, #tpu.memory_space<vmem>>, vector<176x1024xf32>
    %cst_41 = arith.constant dense<0.000000e+00> : vector<64x1024xf32>
    %94 = tpu.matmul %92, %93, %cst_41 {dimension_numbers = #tpu.dot_dimension_numbers<[1], [0], [0], [1], [0, 0, 1, 1], [], []>} : vector<64x176xf32>, vector<176x1024xf32>, vector<64x1024xf32> -> vector<64x1024xf32>
    %c0_42 = arith.constant 0 : index
    %c0_43 = arith.constant 0 : index
    %95 = vector.load %arg3[%c0_42, %c0_43] : memref<64x1xf32, #tpu.memory_space<vmem>>, vector<64x1xf32>
    %96 = vector.broadcast %95 : vector<64x1xf32> to vector<64x1024xf32>
    %97 = arith.addf %94, %96 : vector<64x1024xf32>
    %cst_44 = arith.constant 0.000000e+00 : f32
    %98 = vector.broadcast %cst_44 : f32 to vector<64x1024xf32>
    %99 = arith.maximumf %97, %98 : vector<64x1024xf32>
    %c0_45 = arith.constant 0 : index
    %c0_46 = arith.constant 0 : index
    %100 = vector.load %arg4[%c0_45, %c0_46] : memref<80x64xf32, #tpu.memory_space<vmem>>, vector<80x64xf32>
    %cst_47 = arith.constant dense<0.000000e+00> : vector<80x1024xf32>
    %101 = tpu.matmul %100, %99, %cst_47 {dimension_numbers = #tpu.dot_dimension_numbers<[1], [0], [0], [1], [0, 0, 1, 1], [], []>} : vector<80x64xf32>, vector<64x1024xf32>, vector<80x1024xf32> -> vector<80x1024xf32>
    %c0_48 = arith.constant 0 : index
    %c0_49 = arith.constant 0 : index
    %102 = vector.load %arg5[%c0_48, %c0_49] : memref<80x1xf32, #tpu.memory_space<vmem>>, vector<80x1xf32>
    %103 = vector.broadcast %102 : vector<80x1xf32> to vector<80x1024xf32>
    %104 = arith.addf %101, %103 : vector<80x1024xf32>
    %105 = vector.extract_strided_slice %104 {offsets = [0, 0], sizes = [64, 1024], strides = [1, 1]} : vector<80x1024xf32> to vector<64x1024xf32>
    %cst_50 = arith.constant 0.000000e+00 : f32
    %106 = vector.broadcast %cst_50 : f32 to vector<64x1024xf32>
    %107 = arith.maximumf %105, %106 : vector<64x1024xf32>
    %108 = vector.extract_strided_slice %104 {offsets = [64, 0], sizes = [4, 1024], strides = [1, 1]} : vector<80x1024xf32> to vector<4x1024xf32>
    %c0_51 = arith.constant 0 : index
    %c0_52 = arith.constant 0 : index
    %109 = vector.load %arg6[%c0_51, %c0_52] : memref<64x64xf32, #tpu.memory_space<vmem>>, vector<64x64xf32>
    %c0_53 = arith.constant 0 : index
    %c0_54 = arith.constant 0 : index
    %110 = vector.load %arg7[%c0_53, %c0_54] : memref<64x1xf32, #tpu.memory_space<vmem>>, vector<64x1xf32>
    %cst_55 = arith.constant dense<0.000000e+00> : vector<64x1024xf32>
    %111 = tpu.matmul %109, %107, %cst_55 {dimension_numbers = #tpu.dot_dimension_numbers<[1], [0], [0], [1], [0, 0, 1, 1], [], []>} : vector<64x64xf32>, vector<64x1024xf32>, vector<64x1024xf32> -> vector<64x1024xf32>
    %112 = vector.broadcast %110 : vector<64x1xf32> to vector<64x1024xf32>
    %113 = arith.addf %111, %112 : vector<64x1024xf32>
    %cst_56 = arith.constant 0.000000e+00 : f32
    %114 = vector.broadcast %cst_56 : f32 to vector<64x1024xf32>
    %115 = arith.maximumf %113, %114 : vector<64x1024xf32>
    %c0_57 = arith.constant 0 : index
    %c0_58 = arith.constant 0 : index
    %116 = vector.load %arg8[%c0_57, %c0_58] : memref<64x64xf32, #tpu.memory_space<vmem>>, vector<64x64xf32>
    %c0_59 = arith.constant 0 : index
    %c0_60 = arith.constant 0 : index
    %117 = vector.load %arg9[%c0_59, %c0_60] : memref<64x1xf32, #tpu.memory_space<vmem>>, vector<64x1xf32>
    %cst_61 = arith.constant dense<0.000000e+00> : vector<64x1024xf32>
    %118 = tpu.matmul %116, %115, %cst_61 {dimension_numbers = #tpu.dot_dimension_numbers<[1], [0], [0], [1], [0, 0, 1, 1], [], []>} : vector<64x64xf32>, vector<64x1024xf32>, vector<64x1024xf32> -> vector<64x1024xf32>
    %119 = vector.broadcast %117 : vector<64x1xf32> to vector<64x1024xf32>
    %120 = arith.addf %118, %119 : vector<64x1024xf32>
    %cst_62 = arith.constant 0.000000e+00 : f32
    %121 = vector.broadcast %cst_62 : f32 to vector<64x1024xf32>
    %122 = arith.maximumf %120, %121 : vector<64x1024xf32>
    %c0_63 = arith.constant 0 : index
    %c0_64 = arith.constant 0 : index
    %123 = vector.load %arg10[%c0_63, %c0_64] : memref<1x64xf32, #tpu.memory_space<vmem>>, vector<1x64xf32>
    %cst_65 = arith.constant dense<0.000000e+00> : vector<1x1024xf32>
    %124 = tpu.matmul %123, %122, %cst_65 {dimension_numbers = #tpu.dot_dimension_numbers<[1], [0], [0], [1], [0, 0, 1, 1], [], []>} : vector<1x64xf32>, vector<64x1024xf32>, vector<1x1024xf32> -> vector<1x1024xf32>
    %c0_66 = arith.constant 0 : index
    %c0_67 = arith.constant 0 : index
    %125 = vector.load %arg11[%c0_66, %c0_67] : memref<1x1xf32, #tpu.memory_space<vmem>>, vector<1x1xf32>
    %126 = vector.broadcast %125 : vector<1x1xf32> to vector<1x1024xf32>
    %127 = arith.addf %124, %126 : vector<1x1024xf32>
    %c0_68 = arith.constant 0 : index
    %c0_69 = arith.constant 0 : index
    %128 = vector.load %arg12[%c0_68, %c0_69] : memref<8x1024xf32, #tpu.memory_space<vmem>>, vector<1x1024xf32>
    tpu.vector_store %arg12[%c0_68, %c0_69], %127 {strides = array<i32>} : memref<8x1024xf32, #tpu.memory_space<vmem>>, vector<1x1024xf32>,
    %c1 = arith.constant 1 : index
    %c0_70 = arith.constant 0 : index
    %129 = vector.load %arg12[%c1, %c0_70] : memref<8x1024xf32, #tpu.memory_space<vmem>>, vector<4x1024xf32>
    tpu.vector_store %arg12[%c1, %c0_70], %108 {strides = array<i32>} : memref<8x1024xf32, #tpu.memory_space<vmem>>, vector<4x1024xf32>,
    %cst_71 = arith.constant 0.000000e+00 : f32
    %130 = vector.broadcast %cst_71 : f32 to vector<3x1024xf32>
    %c5 = arith.constant 5 : index
    %c0_72 = arith.constant 0 : index
    %131 = vector.load %arg12[%c5, %c0_72] : memref<8x1024xf32, #tpu.memory_space<vmem>>, vector<3x1024xf32>
    tpu.vector_store %arg12[%c5, %c0_72], %130 {strides = array<i32>} : memref<8x1024xf32, #tpu.memory_space<vmem>>, vector<3x1024xf32>,
    return
  }
  func.func @transform_0(%arg0: i32) -> (i32, i32) {
    %c0_i32 = arith.constant 0 : i32
    %c0_i32_0 = arith.constant 0 : i32
    return %c0_i32, %arg0 : i32, i32
  }
  func.func @transform_1(%arg0: i32) -> (i32, i32) {
    %c0_i32 = arith.constant 0 : i32
    %c0_i32_0 = arith.constant 0 : i32
    %c0_i32_1 = arith.constant 0 : i32
    return %c0_i32, %c0_i32_0 : i32, i32
  }
  func.func @transform_2(%arg0: i32) -> (i32, i32) {
    %c0_i32 = arith.constant 0 : i32
    %c0_i32_0 = arith.constant 0 : i32
    %c0_i32_1 = arith.constant 0 : i32
    return %c0_i32, %c0_i32_0 : i32, i32
  }
  func.func @transform_3(%arg0: i32) -> (i32, i32) {
    %c0_i32 = arith.constant 0 : i32
    %c0_i32_0 = arith.constant 0 : i32
    %c0_i32_1 = arith.constant 0 : i32
    return %c0_i32, %c0_i32_0 : i32, i32
  }
  func.func @transform_4(%arg0: i32) -> (i32, i32) {
    %c0_i32 = arith.constant 0 : i32
    %c0_i32_0 = arith.constant 0 : i32
    %c0_i32_1 = arith.constant 0 : i32
    return %c0_i32, %c0_i32_0 : i32, i32
  }
  func.func @transform_5(%arg0: i32) -> (i32, i32) {
    %c0_i32 = arith.constant 0 : i32
    %c0_i32_0 = arith.constant 0 : i32
    %c0_i32_1 = arith.constant 0 : i32
    return %c0_i32, %c0_i32_0 : i32, i32
  }
  func.func @transform_6(%arg0: i32) -> (i32, i32) {
    %c0_i32 = arith.constant 0 : i32
    %c0_i32_0 = arith.constant 0 : i32
    %c0_i32_1 = arith.constant 0 : i32
    return %c0_i32, %c0_i32_0 : i32, i32
  }
  func.func @transform_7(%arg0: i32) -> (i32, i32) {
    %c0_i32 = arith.constant 0 : i32
    %c0_i32_0 = arith.constant 0 : i32
    %c0_i32_1 = arith.constant 0 : i32
    return %c0_i32, %c0_i32_0 : i32, i32
  }
  func.func @transform_8(%arg0: i32) -> (i32, i32) {
    %c0_i32 = arith.constant 0 : i32
    %c0_i32_0 = arith.constant 0 : i32
    %c0_i32_1 = arith.constant 0 : i32
    return %c0_i32, %c0_i32_0 : i32, i32
  }
  func.func @transform_9(%arg0: i32) -> (i32, i32) {
    %c0_i32 = arith.constant 0 : i32
    %c0_i32_0 = arith.constant 0 : i32
    %c0_i32_1 = arith.constant 0 : i32
    return %c0_i32, %c0_i32_0 : i32, i32
  }
  func.func @transform_10(%arg0: i32) -> (i32, i32) {
    %c0_i32 = arith.constant 0 : i32
    %c0_i32_0 = arith.constant 0 : i32
    %c0_i32_1 = arith.constant 0 : i32
    return %c0_i32, %c0_i32_0 : i32, i32
  }
  func.func @transform_11(%arg0: i32) -> (i32, i32) {
    %c0_i32 = arith.constant 0 : i32
    %c0_i32_0 = arith.constant 0 : i32
    return %c0_i32, %arg0 : i32, i32
  }
}

</mosaic_0001>

<llo_original>
// kernel: mlp3d_partguided_forward.1
$region0: #{mlp3d_partguided_forward.1}
  #allocation0 [shape = 'u32[]', space=smem, size = 0x4, offset = 0x4, fixed_abs, tag = 'smem constant byte address 0x4 - core index']
  #allocation1 [shape = 'u32[144,128]{1,0:T(1,128)}', space=vmem, size = 0x12000, scoped, tag = 'internal scratch']
  #allocation2 [shape = 'f32[176,1024]{1,0:T(8,128)}', space=vmem, size = 0xb0000, scoped, tag = 'scratch operand']
  #allocation3 [shape = 'f32[1,1]{1,0:T(1,128)S(1)}', space=vmem, size = 0x200, scoped, tag = 'scoped memory for mlp3d_partguided_forward.1']
  %s0 = inlined_call_operand.vmem [shape: f32[8,2048], index: 0, kind: input, shape index: {}]
  %s1 = inlined_call_operand.vmem [shape: f32[64,176], index: 1, kind: input, shape index: {}]
  %s2 = inlined_call_operand.hbm [shape: f32[64,1], index: 2, kind: input, shape index: {}]
  %s3 = inlined_call_operand.vmem [shape: f32[80,64], index: 3, kind: input, shape index: {}]
  %s4 = inlined_call_operand.vmem [shape: f32[80,1], index: 4, kind: input, shape index: {}]
  %s5 = inlined_call_operand.hbm [shape: f32[64,64], index: 5, kind: input, shape index: {}]
  %s6 = inlined_call_operand.hbm [shape: f32[64,1], index: 6, kind: input, shape index: {}]
  %s7 = inlined_call_operand.hbm [shape: f32[64,64], index: 7, kind: input, shape index: {}]
  %s8 = inlined_call_operand.hbm [shape: f32[64,1], index: 8, kind: input, shape index: {}]
  %s9 = inlined_call_operand.vmem [shape: f32[1,64], index: 9, kind: input, shape index: {}]
  %s10 = inlined_call_operand.<no memory space> [shape: f32[1,1], index: 10, kind: input, shape index: {}]
  %s11 = inlined_call_operand.vmem [shape: f32[8,2048], index: 11, kind: output, shape index: {}]
  %s12 = sld [smem:[#allocation0]]
  $region97: #{mlp3d_partguided_forward.1} parent=0
    _
  %s14 = ssub.s32 1, %s12
  %s15 = scalar_select 0, %s14, %s12
  %v16 = vstv %s10
  %17 = vst [vmem:[#allocation3] sm:$0x1] %v16
  $region1: #{mlp3d_partguided_forward.1} parent=0
    #allocation4 [shape = 'u8[32768]{0}', space=vmem, size = 0x8000, scoped, tag = 'input window, operand 2, single buffered']
    #allocation5 [shape = 's32[2]{0}', space=sflag, size = 0x8, scoped, tag = 'scoped memory for mlp3d_partguided_forward.1']
    #allocation6 [shape = 'u8[32768]{0}', space=vmem, size = 0x8000, scoped, tag = 'input window, operand 5, single buffered']
    #allocation7 [shape = 's32[1]{0}', space=sflag, size = 0x4, scoped, tag = 'scoped memory for mlp3d_partguided_forward.1']
    #allocation8 [shape = 'u8[32768]{0}', space=vmem, size = 0x8000, scoped, tag = 'input window, operand 6, single buffered']
    #allocation9 [shape = 'u8[32768]{0}', space=vmem, size = 0x8000, scoped, tag = 'input window, operand 7, single buffered']
    #allocation10 [shape = 's32[1]{0}', space=sflag, size = 0x4, scoped, tag = 'scoped memory for mlp3d_partguided_forward.1']
    #allocation11 [shape = 'u8[32768]{0}', space=vmem, size = 0x8000, scoped, tag = 'input window, operand 8, single buffered']
    %18 = vsyncpa [#allocation5], 0
    %19 = vsyncpa [#allocation7], 0
    %20 = vsyncpa [#allocation10], 0
    loop: start=0, step=1, limit=4
    $region2: #{mlp3d_partguided_forward.1} parent=1 // loop_pre_header
      _
    $region3: #{mlp3d_partguided_forward.1} parent=1 // loop_header
      %s22 = sphi 0, %s26
      %p23 = scmp.ge.s32.totalorder %s22, 4
      %s32 = sphi 0, %s34
      %s35 = sphi 0, %s32
      %s36 = sphi 0, %s35
      %s52 = sphi 0, %s36
      %s56 = sphi 0, %s56
      %s58 = sphi 0, %s56
      %s59 = sphi 0, %s58
      %s73 = sphi 0, %s59
      %s77 = sphi 0, %s77
      %s79 = sphi 0, %s77
      %s80 = sphi 0, %s79
      %s94 = sphi 0, %s80
      %s98 = sphi 0, %s98
      %s100 = sphi 0, %s98
      %s101 = sphi 0, %s100
      %s115 = sphi 0, %s101
      %s119 = sphi 0, %s119
      %s121 = sphi 0, %s119
      %s122 = sphi 0, %s121
      %s136 = sphi 0, %s122
      %s140 = sphi 0, %s140
      %s142 = sphi 0, %s140
      %s143 = sphi 0, %s142
      %s157 = sphi 0, %s143
      %s161 = sphi 0, %s161
      %s163 = sphi 0, %s161
      %s164 = sphi 0, %s163
      %s178 = sphi 0, %s164
      %s182 = sphi 0, %s182
      %s184 = sphi 0, %s182
      %s185 = sphi 0, %s184
      %s199 = sphi 0, %s185
      %s203 = sphi 0, %s203
      %s205 = sphi 0, %s203
      %s206 = sphi 0, %s205
      %s220 = sphi 0, %s206
      %s224 = sphi 0, %s224
      %s226 = sphi 0, %s224
      %s227 = sphi 0, %s226
      %s241 = sphi 0, %s227
      %s245 = sphi 0, %s245
      %s247 = sphi 0, %s245
      %s248 = sphi 0, %s247
      %s262 = sphi 0, %s248
      %s268 = sphi 0, %s270
      %s271 = sphi 0, %s268
      %s272 = sphi 0, %s271
      %s288 = sphi 0, %s272
    $region4: #{mlp3d_partguided_forward.1} parent=1 // loop_header_branch
      %25 = sbr.rel (%p23) target = $region8
    $region5: #{mlp3d_partguided_forward.1} parent=1 // loop_body
      %s27 = ssub.s32 %s22, 1
      %s28 = ssub.s32 %s22, 2
      %s29 = sadd.s32 %s22, 1
      %s30 = ssub.s32 %s22, %s29
      %p31 = scmp.eq.s32.totalorder %s30, 0
      %s33 = sadd.s32 %s32, 1
      %s34 = scalar_select %p31, %s32, %s33
      %p37 = pneg %p31
      %p38 = scmp.eq.s32.totalorder %s22, 1
      %p39 = por %p37, %p38
      %p40 = scmp.ne.s32.totalorder %s32, %s35
      %p41 = scmp.eq.s32.totalorder %s22, 0
      %p42 = por %p40, %p41
      %p43 = scmp.ne.s32.totalorder %s32, %s35
      %p44 = scmp.eq.s32.totalorder %s27, 1
      %p45 = por %p43, %p44
      %p46 = scmp.ne.s32.totalorder %s35, %s36
      %p47 = scmp.eq.s32.totalorder %s27, 0
      %p48 = por %p46, %p47
      %p49 = scmp.ne.s32.totalorder %s35, %s36
      %p50 = scmp.eq.s32.totalorder %s28, 1
      %p51 = por %p49, %p50
      %p53 = scmp.ne.s32.totalorder %s36, %s52
      %p54 = scmp.eq.s32.totalorder %s28, 0
      %p55 = por %p53, %p54
      %s57 = sadd.s32 %s56, 1
      %p60 = scmp.eq.s32.totalorder %s22, 1
      %p61 = scmp.ne.s32.totalorder %s56, %s58
      %p62 = scmp.eq.s32.totalorder %s22, 0
      %p63 = por %p61, %p62
      %p64 = scmp.ne.s32.totalorder %s56, %s58
      %p65 = scmp.eq.s32.totalorder %s27, 1
      %p66 = por %p64, %p65
      %p67 = scmp.ne.s32.totalorder %s58, %s59
      %p68 = scmp.eq.s32.totalorder %s27, 0
      %p69 = por %p67, %p68
      %p70 = scmp.ne.s32.totalorder %s58, %s59
      %p71 = scmp.eq.s32.totalorder %s28, 1
      %p72 = por %p70, %p71
      %p74 = scmp.ne.s32.totalorder %s59, %s73
      %p75 = scmp.eq.s32.totalorder %s28, 0
      %p76 = por %p74, %p75
      %s78 = sadd.s32 %s77, 1
      %p81 = scmp.eq.s32.totalorder %s22, 1
      %p82 = scmp.ne.s32.totalorder %s77, %s79
      %p83 = scmp.eq.s32.totalorder %s22, 0
      %p84 = por %p82, %p83
      %p85 = scmp.ne.s32.totalorder %s77, %s79
      %p86 = scmp.eq.s32.totalorder %s27, 1
      %p87 = por %p85, %p86
      %p88 = scmp.ne.s32.totalorder %s79, %s80
      %p89 = scmp.eq.s32.totalorder %s27, 0
      %p90 = por %p88, %p89
      %p91 = scmp.ne.s32.totalorder %s79, %s80
      %p92 = scmp.eq.s32.totalorder %s28, 1
      %p93 = por %p91, %p92
      %p95 = scmp.ne.s32.totalorder %s80, %s94
      %p96 = scmp.eq.s32.totalorder %s28, 0
      %p97 = por %p95, %p96
      %s99 = sadd.s32 %s98, 1
      %p102 = scmp.eq.s32.totalorder %s22, 1
      %p103 = scmp.ne.s32.totalorder %s98, %s100
      %p104 = scmp.eq.s32.totalorder %s22, 0
      %p105 = por %p103, %p104
      %p106 = scmp.ne.s32.totalorder %s98, %s100
      %p107 = scmp.eq.s32.totalorder %s27, 1
      %p108 = por %p106, %p107
      %p109 = scmp.ne.s32.totalorder %s100, %s101
      %p110 = scmp.eq.s32.totalorder %s27, 0
      %p111 = por %p109, %p110
      %p112 = scmp.ne.s32.totalorder %s100, %s101
      %p113 = scmp.eq.s32.totalorder %s28, 1
      %p114 = por %p112, %p113
      %p116 = scmp.ne.s32.totalorder %s101, %s115
      %p117 = scmp.eq.s32.totalorder %s28, 0
      %p118 = por %p116, %p117
      %s120 = sadd.s32 %s119, 1
      %p123 = scmp.eq.s32.totalorder %s22, 1
      %p124 = scmp.ne.s32.totalorder %s119, %s121
      %p125 = scmp.eq.s32.totalorder %s22, 0
      %p126 = por %p124, %p125
      %p127 = scmp.ne.s32.totalorder %s119, %s121
      %p128 = scmp.eq.s32.totalorder %s27, 1
      %p129 = por %p127, %p128
      %p130 = scmp.ne.s32.totalorder %s121, %s122
      %p131 = scmp.eq.s32.totalorder %s27, 0
      %p132 = por %p130, %p131
      %p133 = scmp.ne.s32.totalorder %s121, %s122
      %p134 = scmp.eq.s32.totalorder %s28, 1
      %p135 = por %p133, %p134
      %p137 = scmp.ne.s32.totalorder %s122, %s136
      %p138 = scmp.eq.s32.totalorder %s28, 0
      %p139 = por %p137, %p138
      %s141 = sadd.s32 %s140, 1
      %p144 = scmp.eq.s32.totalorder %s22, 1
      %p145 = scmp.ne.s32.totalorder %s140, %s142
      %p146 = scmp.eq.s32.totalorder %s22, 0
      %p147 = por %p145, %p146
      %p148 = scmp.ne.s32.totalorder %s140, %s142
      %p149 = scmp.eq.s32.totalorder %s27, 1
      %p150 = por %p148, %p149
      %p151 = scmp.ne.s32.totalorder %s142, %s143
      %p152 = scmp.eq.s32.totalorder %s27, 0
      %p153 = por %p151, %p152
      %p154 = scmp.ne.s32.totalorder %s142, %s143
      %p155 = scmp.eq.s32.totalorder %s28, 1
      %p156 = por %p154, %p155
      %p158 = scmp.ne.s32.totalorder %s143, %s157
      %p159 = scmp.eq.s32.totalorder %s28, 0
      %p160 = por %p158, %p159
      %s162 = sadd.s32 %s161, 1
      %p165 = scmp.eq.s32.totalorder %s22, 1
      %p166 = scmp.ne.s32.totalorder %s161, %s163
      %p167 = scmp.eq.s32.totalorder %s22, 0
      %p168 = por %p166, %p167
      %p169 = scmp.ne.s32.totalorder %s161, %s163
      %p170 = scmp.eq.s32.totalorder %s27, 1
      %p171 = por %p169, %p170
      %p172 = scmp.ne.s32.totalorder %s163, %s164
      %p173 = scmp.eq.s32.totalorder %s27, 0
      %p174 = por %p172, %p173
      %p175 = scmp.ne.s32.totalorder %s163, %s164
      %p176 = scmp.eq.s32.totalorder %s28, 1
      %p177 = por %p175, %p176
      %p179 = scmp.ne.s32.totalorder %s164, %s178
      %p180 = scmp.eq.s32.totalorder %s28, 0
      %p181 = por %p179, %p180
      %s183 = sadd.s32 %s182, 1
      %p186 = scmp.eq.s32.totalorder %s22, 1
      %p187 = scmp.ne.s32.totalorder %s182, %s184
      %p188 = scmp.eq.s32.totalorder %s22, 0
      %p189 = por %p187, %p188
      %p190 = scmp.ne.s32.totalorder %s182, %s184
      %p191 = scmp.eq.s32.totalorder %s27, 1
      %p192 = por %p190, %p191
      %p193 = scmp.ne.s32.totalorder %s184, %s185
      %p194 = scmp.eq.s32.totalorder %s27, 0
      %p195 = por %p193, %p194
      %p196 = scmp.ne.s32.totalorder %s184, %s185
      %p197 = scmp.eq.s32.totalorder %s28, 1
      %p198 = por %p196, %p197
      %p200 = scmp.ne.s32.totalorder %s185, %s199
      %p201 = scmp.eq.s32.totalorder %s28, 0
      %p202 = por %p200, %p201
      %s204 = sadd.s32 %s203, 1
      %p207 = scmp.eq.s32.totalorder %s22, 1
      %p208 = scmp.ne.s32.totalorder %s203, %s205
      %p209 = scmp.eq.s32.totalorder %s22, 0
      %p210 = por %p208, %p209
      %p211 = scmp.ne.s32.totalorder %s203, %s205
      %p212 = scmp.eq.s32.totalorder %s27, 1
      %p213 = por %p211, %p212
      %p214 = scmp.ne.s32.totalorder %s205, %s206
      %p215 = scmp.eq.s32.totalorder %s27, 0
      %p216 = por %p214, %p215
      %p217 = scmp.ne.s32.totalorder %s205, %s206
      %p218 = scmp.eq.s32.totalorder %s28, 1
      %p219 = por %p217, %p218
      %p221 = scmp.ne.s32.totalorder %s206, %s220
      %p222 = scmp.eq.s32.totalorder %s28, 0
      %p223 = por %p221, %p222
      %s225 = sadd.s32 %s224, 1
      %p228 = scmp.eq.s32.totalorder %s22, 1
      %p229 = scmp.ne.s32.totalorder %s224, %s226
      %p230 = scmp.eq.s32.totalorder %s22, 0
      %p231 = por %p229, %p230
      %p232 = scmp.ne.s32.totalorder %s224, %s226
      %p233 = scmp.eq.s32.totalorder %s27, 1
      %p234 = por %p232, %p233
      %p235 = scmp.ne.s32.totalorder %s226, %s227
      %p236 = scmp.eq.s32.totalorder %s27, 0
      %p237 = por %p235, %p236
      %p238 = scmp.ne.s32.totalorder %s226, %s227
      %p239 = scmp.eq.s32.totalorder %s28, 1
      %p240 = por %p238, %p239
      %p242 = scmp.ne.s32.totalorder %s227, %s241
      %p243 = scmp.eq.s32.totalorder %s28, 0
      %p244 = por %p242, %p243
      %s246 = sadd.s32 %s245, 1
      %p249 = scmp.eq.s32.totalorder %s22, 1
      %p250 = scmp.ne.s32.totalorder %s245, %s247
      %p251 = scmp.eq.s32.totalorder %s22, 0
      %p252 = por %p250, %p251
      %p253 = scmp.ne.s32.totalorder %s245, %s247
      %p254 = scmp.eq.s32.totalorder %s27, 1
      %p255 = por %p253, %p254
      %p256 = scmp.ne.s32.totalorder %s247, %s248
      %p257 = scmp.eq.s32.totalorder %s27, 0
      %p258 = por %p256, %p257
      %p259 = scmp.ne.s32.totalorder %s247, %s248
      %p260 = scmp.eq.s32.totalorder %s28, 1
      %p261 = por %p259, %p260
      %p263 = scmp.ne.s32.totalorder %s248, %s262
      %p264 = scmp.eq.s32.totalorder %s28, 0
      %p265 = por %p263, %p264
      %s266 = ssub.s32 %s22, %s29
      %p267 = scmp.eq.s32.totalorder %s266, 0
      %s269 = sadd.s32 %s268, 1
      %s270 = scalar_select %p267, %s268, %s269
      %p273 = pneg %p267
      %p274 = scmp.eq.s32.totalorder %s22, 1
      %p275 = por %p273, %p274
      %p276 = scmp.ne.s32.totalorder %s268, %s271
      %p277 = scmp.eq.s32.totalorder %s22, 0
      %p278 = por %p276, %p277
      %p279 = scmp.ne.s32.totalorder %s268, %s271
      %p280 = scmp.eq.s32.totalorder %s27, 1
      %p281 = por %p279, %p280
      %p282 = scmp.ne.s32.totalorder %s271, %s272
      %p283 = scmp.eq.s32.totalorder %s27, 0
      %p284 = por %p282, %p283
      %p285 = scmp.ne.s32.totalorder %s271, %s272
      %p286 = scmp.eq.s32.totalorder %s28, 1
      %p287 = por %p285, %p286
      %p289 = scmp.ne.s32.totalorder %s272, %s288
      %p290 = scmp.eq.s32.totalorder %s28, 0
      %p291 = por %p289, %p290
      %p292 = scmp.le.s32.totalorder 1, %s22
      %p293 = scmp.lt.s32.totalorder %s22, 3
      %p294 = pnand %p292, %p293
      %p295 = pneg %p294
      // Predicated region
      $region9: #{mlp3d_partguided_forward.1} parent=5 // pred_check
        _
      $region10: #{mlp3d_partguided_forward.1} parent=5 // pred_check_branch
        %297 = sbr.rel (%p294) target = $region12
      $region11: #{mlp3d_partguided_forward.1} parent=5 // pred_region
        %s298 = ssub.s32 %s22, 1
        // Predicated region
        $region13: #{mlp3d_partguided_forward.1} parent=11 // pred_check
          %p299 = pneg %p69
        $region14: #{mlp3d_partguided_forward.1} parent=11 // pred_check_branch
          %301 = sbr.rel (%p299) target = $region16
        $region15: #{mlp3d_partguided_forward.1} parent=11 // pred_region
          _
        $region16: #{mlp3d_partguided_forward.1} parent=11 // pred_fallthru
          _
        // Predicated region
        $region17: #{mlp3d_partguided_forward.1} parent=11 // pred_check
          %p302 = pneg %p90
        $region18: #{mlp3d_partguided_forward.1} parent=11 // pred_check_branch
          %304 = sbr.rel (%p302) target = $region20
        $region19: #{mlp3d_partguided_forward.1} parent=11 // pred_region
          %s306 = ssub.s32 1024, 1024
          %307 = vsyncadd [#allocation5], %s306
          %s308 = sshll.u32 [#allocation4], 4
          %s309 = int_to_ptr.vmem [resolvable:$true] %s308
          %314 = dma.hbm_to_vmem [thread:$0]  %s2, 1024, %s309, [#allocation5], 128, 128, 8
        $region20: #{mlp3d_partguided_forward.1} parent=11 // pred_fallthru
          _
        // Predicated region
        $region21: #{mlp3d_partguided_forward.1} parent=11 // pred_check
          %p315 = pneg %p111
        $region22: #{mlp3d_partguided_forward.1} parent=11 // pred_check_branch
          %317 = sbr.rel (%p315) target = $region24
        $region23: #{mlp3d_partguided_forward.1} parent=11 // pred_region
          _
        $region24: #{mlp3d_partguided_forward.1} parent=11 // pred_fallthru
          _
        // Predicated region
        $region25: #{mlp3d_partguided_forward.1} parent=11 // pred_check
          %p318 = pneg %p132
        $region26: #{mlp3d_partguided_forward.1} parent=11 // pred_check_branch
          %320 = sbr.rel (%p318) target = $region28
        $region27: #{mlp3d_partguided_forward.1} parent=11 // pred_region
          _
        $region28: #{mlp3d_partguided_forward.1} parent=11 // pred_fallthru
          _
        // Predicated region
        $region29: #{mlp3d_partguided_forward.1} parent=11 // pred_check
          %p321 = pneg %p153
        $region30: #{mlp3d_partguided_forward.1} parent=11 // pred_check_branch
          %323 = sbr.rel (%p321) target = $region32
        $region31: #{mlp3d_partguided_forward.1} parent=11 // pred_region
          %s325 = ssub.s32 1024, 1024
          %326 = vsyncadd [#allocation7], %s325
          %s327 = sshll.u32 [#allocation6], 4
          %s328 = int_to_ptr.vmem [resolvable:$true] %s327
          %333 = dma.hbm_to_vmem [thread:$0]  %s5, 1024, %s328, [#allocation7], 128, 128, 8
        $region32: #{mlp3d_partguided_forward.1} parent=11 // pred_fallthru
          _
        // Predicated region
        $region33: #{mlp3d_partguided_forward.1} parent=11 // pred_check
          %p334 = pneg %p174
        $region34: #{mlp3d_partguided_forward.1} parent=11 // pred_check_branch
          %336 = sbr.rel (%p334) target = $region36
        $region35: #{mlp3d_partguided_forward.1} parent=11 // pred_region
          %s338 = ssub.s32 1024, 1024
          %339 = vsyncadd [#allocation7], %s338
          %s340 = sshll.u32 [#allocation8], 4
          %s341 = int_to_ptr.vmem [resolvable:$true] %s340
          %346 = dma.hbm_to_vmem [thread:$0]  %s6, 1024, %s341, [#allocation7], 128, 128, 8
        $region36: #{mlp3d_partguided_forward.1} parent=11 // pred_fallthru
          _
        // Predicated region
        $region37: #{mlp3d_partguided_forward.1} parent=11 // pred_check
          %p347 = pneg %p195
        $region38: #{mlp3d_partguided_forward.1} parent=11 // pred_check_branch
          %349 = sbr.rel (%p347) target = $region40
        $region39: #{mlp3d_partguided_forward.1} parent=11 // pred_region
          %s351 = ssub.s32 1024, 1024
          %352 = vsyncadd [#allocation10], %s351
          %s353 = sshll.u32 [#allocation9], 4
          %s354 = int_to_ptr.vmem [resolvable:$true] %s353
          %359 = dma.hbm_to_vmem [thread:$0]  %s7, 1024, %s354, [#allocation10], 128, 128, 8
        $region40: #{mlp3d_partguided_forward.1} parent=11 // pred_fallthru
          _
        // Predicated region
        $region41: #{mlp3d_partguided_forward.1} parent=11 // pred_check
          %p360 = pneg %p216
        $region42: #{mlp3d_partguided_forward.1} parent=11 // pred_check_branch
          %362 = sbr.rel (%p360) target = $region44
        $region43: #{mlp3d_partguided_forward.1} parent=11 // pred_region
          %s364 = ssub.s32 1024, 1024
          %365 = vsyncadd [#allocation10], %s364
          %s366 = sshll.u32 [#allocation11], 4
          %s367 = int_to_ptr.vmem [resolvable:$true] %s366
          %372 = dma.hbm_to_vmem [thread:$0]  %s8, 1024, %s367, [#allocation10], 128, 128, 8
        $region44: #{mlp3d_partguided_forward.1} parent=11 // pred_fallthru
          _
        // Predicated region
        $region45: #{mlp3d_partguided_forward.1} parent=11 // pred_check
          %p373 = pneg %p237
        $region46: #{mlp3d_partguided_forward.1} parent=11 // pred_check_branch
          %375 = sbr.rel (%p373) target = $region48
        $region47: #{mlp3d_partguided_forward.1} parent=11 // pred_region
          _
        $region48: #{mlp3d_partguided_forward.1} parent=11 // pred_fallthru
          _
        // Predicated region
        $region49: #{mlp3d_partguided_forward.1} parent=11 // pred_check
          %p376 = pneg %p258
        $region50: #{mlp3d_partguided_forward.1} parent=11 // pred_check_branch
          %378 = sbr.rel (%p376) target = $region52
        $region51: #{mlp3d_partguided_forward.1} parent=11 // pred_region
          _
        $region52: #{mlp3d_partguided_forward.1} parent=11 // pred_fallthru
          _
      $region12: #{mlp3d_partguided_forward.1} parent=5 // pred_fallthru
        _
      %p379 = scmp.lt.s32.totalorder %s22, 2
      // Predicated region
      $region53: #{mlp3d_partguided_forward.1} parent=5 // pred_check
        %p380 = pneg %p379
      $region54: #{mlp3d_partguided_forward.1} parent=5 // pred_check_branch
        %382 = sbr.rel (%p380) target = $region56
      $region55: #{mlp3d_partguided_forward.1} parent=5 // pred_region
        // Predicated region
        $region57: #{mlp3d_partguided_forward.1} parent=55 // pred_check
          %p383 = pneg %p42
        $region58: #{mlp3d_partguided_forward.1} parent=55 // pred_check_branch
          %385 = sbr.rel (%p383) target = $region60
        $region59: #{mlp3d_partguided_forward.1} parent=55 // pred_region
          %s386 = smul.u32 8, %s22
          %p387 = scmp.lt.s32.totalorder %s386, 15
          %s388 = scalar_select %p387, %s386, 15
          %s389 = smul.addr %s388, 8
          %s390 = scalar_lea.vmem %s0, %s389
          %s391 = smul.u32 8, %s22
        $region60: #{mlp3d_partguided_forward.1} parent=55 // pred_fallthru
          _
      $region56: #{mlp3d_partguided_forward.1} parent=5 // pred_fallthru
        _
      %p392 = scmp.le.s32.totalorder 1, %s22
      %p393 = scmp.lt.s32.totalorder %s22, 3
      %p394 = pnand %p392, %p393
      %p395 = pneg %p394
      // Predicated region
      $region61: #{mlp3d_partguided_forward.1} parent=5 // pred_check
        _
      $region62: #{mlp3d_partguided_forward.1} parent=5 // pred_check_branch
        %397 = sbr.rel (%p394) target = $region64
      $region63: #{mlp3d_partguided_forward.1} parent=5 // pred_region
        %s398 = ssub.s32 %s22, 1
        // Predicated region
        $region65: #{mlp3d_partguided_forward.1} parent=63 // pred_check
          %p399 = pneg %p90
        $region66: #{mlp3d_partguided_forward.1} parent=63 // pred_check_branch
          %401 = sbr.rel (%p399) target = $region68
        $region67: #{mlp3d_partguided_forward.1} parent=63 // pred_region
          %402 = dma.done [#allocation5], 1024
        $region68: #{mlp3d_partguided_forward.1} parent=63 // pred_fallthru
          _
        // Predicated region
        $region69: #{mlp3d_partguided_forward.1} parent=63 // pred_check
          %p403 = pneg %p153
        $region70: #{mlp3d_partguided_forward.1} parent=63 // pred_check_branch
          %405 = sbr.rel (%p403) target = $region72
        $region71: #{mlp3d_partguided_forward.1} parent=63 // pred_region
          %406 = dma.done [#allocation7], 1024
        $region72: #{mlp3d_partguided_forward.1} parent=63 // pred_fallthru
          _
        // Predicated region
        $region73: #{mlp3d_partguided_forward.1} parent=63 // pred_check
          %p407 = pneg %p174
        $region74: #{mlp3d_partguided_forward.1} parent=63 // pred_check_branch
          %409 = sbr.rel (%p407) target = $region76
        $region75: #{mlp3d_partguided_forward.1} parent=63 // pred_region
          %410 = dma.done [#allocation7], 1024
        $region76: #{mlp3d_partguided_forward.1} parent=63 // pred_fallthru
          _
        // Predicated region
        $region77: #{mlp3d_partguided_forward.1} parent=63 // pred_check
          %p411 = pneg %p195
        $region78: #{mlp3d_partguided_forward.1} parent=63 // pred_check_branch
          %413 = sbr.rel (%p411) target = $region80
        $region79: #{mlp3d_partguided_forward.1} parent=63 // pred_region
          %414 = dma.done [#allocation10], 1024
        $region80: #{mlp3d_partguided_forward.1} parent=63 // pred_fallthru
          _
        // Predicated region
        $region81: #{mlp3d_partguided_forward.1} parent=63 // pred_check
          %p415 = pneg %p216
        $region82: #{mlp3d_partguided_forward.1} parent=63 // pred_check_branch
          %417 = sbr.rel (%p415) target = $region84
        $region83: #{mlp3d_partguided_forward.1} parent=63 // pred_region
          %418 = dma.done [#allocation10], 1024
        $region84: #{mlp3d_partguided_forward.1} parent=63 // pred_fallthru
          _
        %s419 = smul.u32 8, %s27
        %p420 = scmp.lt.s32.totalorder %s419, 15
        %s421 = scalar_select %p420, %s419, 15
        %s422 = smul.addr %s421, 8
        %s423 = scalar_lea.vmem %s0, %s422
        %p424 = pneg %p48
        %p425 = pneg %p45
        %p426 = pneg %p69
        %p427 = pneg %p66
        %p428 = pneg %p90
        %p429 = pneg %p87
        %p430 = pneg %p111
        %p431 = pneg %p108
        %p432 = pneg %p132
        %p433 = pneg %p129
        %p434 = pneg %p153
        %p435 = pneg %p150
        %p436 = pneg %p174
        %p437 = pneg %p171
        %p438 = pneg %p195
        %p439 = pneg %p192
        %p440 = pneg %p216
        %p441 = pneg %p213
        %p442 = pneg %p237
        %p443 = pneg %p234
        %p444 = pneg %p258
        %p445 = pneg %p255
        %p446 = pneg %p284
        %p447 = pneg %p281
        %s448 = smul.u32 8, %s27
        %p449 = scmp.lt.s32.totalorder %s448, 15
        %s450 = scalar_select %p449, %s448, 15
        %s451 = smul.addr %s450, 8
        %s452 = scalar_lea.vmem %s11, %s451
        %s453 = smul.u32 8, %s27
        %p454 = scmp.lt.s32.totalorder %s453, 15
        %s455 = scalar_select %p454, %s453, 15
        %s456 = smul.addr %s455, 8
        %s457 = scalar_lea.vmem %s0, %s456
        %s458 = smul.u32 8, %s27
        %s459 = smul.u32 8, %s27
        %p460 = scmp.lt.s32.totalorder %s459, 15
        %s461 = scalar_select %p460, %s459, 15
        %s462 = smul.addr %s461, 8
        %s463 = scalar_lea.vmem %s11, %s462
        %s464 = smul.u32 8, %s27
        %v465 = vld [vmem:[%s457] sm:$0xff]
        %v466 = vld [vmem:[%s457 + $0x8] sm:$0xff]
        %v467 = vld [vmem:[%s457 + $0x10] sm:$0xff]
        %v468 = vld [vmem:[%s457 + $0x18] sm:$0xff]
        %v469 = vld [vmem:[%s457 + $0x20] sm:$0xff]
        %v470 = vld [vmem:[%s457 + $0x28] sm:$0xff]
        %v471 = vld [vmem:[%s457 + $0x30] sm:$0xff]
        %v472 = vld [vmem:[%s457 + $0x38] sm:$0xff]
        %v473 = vand.u32 2147483647, %v465
        %vm474 = vcmp.le.f32.partialorder %v473, 0.7853982
        %vm475 = vcmp.lt.s32.totalorder %v465, 0
        %v476 = vand.u32 %v465, 2139095040
        %v477 = vshrl.u32 %v476, 23
        %v478 = vsub.s32 %v477, 127
        %v479 = vand.u32 2147483647, %v465
        %v480 = vand.u32 %v479, 8388607
        %v481 = vor.u32 %v480, 8388608
        %v482 = vsub.s32 0, %v481
        %v483 = vadd.s32 %v478, 1
        %vm484 = vcmp.gt.s32.totalorder %v483, 0
        %v485 = vsel %vm484, %v483, 0
        %v486 = vshrl.u32 %v485, 5
        %v487 = vand.u32 %v485, 31
        %v488 = vsub.s32 32, %v487
        %v489 = vshrl.u32 683565275, %v488
        %v490 = vshll.u32 683565275, %v487
        %v491 = vshrl.u32 2475754826, %v488
        %v492 = vor.u32 %v490, %v491
        %v493 = vshll.u32 2475754826, %v487
        %v494 = vshrl.u32 2131351028, %v488
        %v495 = vor.u32 %v493, %v494
        %v496 = vshll.u32 2131351028, %v487
        %v497 = vshrl.u32 2102212464, %v488
        %v498 = vor.u32 %v496, %v497
        %v499 = vshll.u32 2102212464, %v487
        %v500 = vshrl.u32 920167782, %v488
        %v501 = vor.u32 %v499, %v500
        %v502 = vshll.u32 920167782, %v487
        %v503 = vshrl.u32 1326507024, %v488
        %v504 = vor.u32 %v502, %v503
        %vm505 = vcmp.lt.s32.totalorder %v486, 1
        %vm506 = vcmp.lt.s32.totalorder %v486, 2
        %vm507 = vcmp.lt.s32.totalorder %v486, 3
        %vm508 = vcmp.lt.s32.totalorder %v486, 4
        %v509 = vsel %vm505, %v489, %v492
        %v510 = vsel %vm508, %v498, 2102212464
        %v511 = vsel %vm507, %v495, %v510
        %v512 = vsel %vm506, %v509, %v511
        %v513 = vsel %vm505, %v492, %v495
        %v514 = vsel %vm508, %v501, 920167782
        %v515 = vsel %vm507, %v498, %v514
        %v516 = vsel %vm506, %v513, %v515
        %v517 = vsel %vm505, %v495, %v498
        %v518 = vsel %vm508, %v504, 1326507024
        %v519 = vsel %vm507, %v501, %v518
        %v520 = vsel %vm506, %v517, %v519
        %v521 = vshll.u32 %v481, 8
        %v522 = vmul.u32.u64.compose %v521, %v520
        %v523 = vextract.low.u32 %v522
        %v524 = vextract.high.u32 %v522
        %v525 = vmul.u32.u64.compose %v521, %v516
        %v526 = vextract.low.u32 %v525
        %v527 = vextract.high.u32 %v525
        %v528 = vmul.u32 %v521, %v512
        %v529 = vadd.s32 %v524, %v526
        %vm530 = vc.u32 %v524, %v526
        %v531 = vadd.s32 %v527, 1
        %v532 = vsel %vm530, %v531, %v527
        %v533 = vadd.s32 %v528, %v532
        %v534 = vadd.s32 %v533, 536870912
        %v535 = vshrl.u32 %v534, 30
        %v536 = vshll.u32 %v535, 30
        %v537 = vsub.s32 %v533, %v536
        %vm538 = vcmp.lt.s32.totalorder %v537, 0
        %v539 = vsub.s32 0, %v537
        %v540 = vsel %vm538, %v539, %v537
        %v541 = vclz %v540
        %v542 = vsub.s32 %v541, 2
        %vm543 = vcmp.gt.s32.totalorder 0, %v542
        %v544 = vsel %vm543, 0, %v542
        %v545 = vsub.s32 32, %v544
        %v546 = vshll.u32 %v537, %v544
        %v547 = vshrl.u32 %v529, %v545
        %v548 = vor.u32 %v546, %v547
        %v549 = vsub.s32 4294967266, %v544
        %v550 = vadd.s32 %v549, 127
        %v551 = vshll.u32 %v550, 23
        %v552 = vor.u32 4788187, %v551
        %v553 = vand.u32 2147483647, %v552
        %v555 = vcvt.s32.f32 %v548
        %v556 = vmul.f32 %v555, %v553
        %v557 = vxor.u32 %v556, 2147483648
        %v558 = vsel %vm475, %v557, %v556
        %v559 = vsub.s32 4, %v535
        %v560 = vsel %vm475, %v559, %v535
        %v561 = vsel %vm474, %v465, %v558
        %v562 = vsel %vm474, 0, %v560
        %v563 = vcosq.f32.pop %v561
        %v564 = vsinq.f32.pop %v561
        %vm565 = vweird.f32 %v465
        %v566 = vadd.s32 %v562, 3
        %v567 = vand.u32 %v566, 3
        %vm568 = vcmp.lt.s32.totalorder %v567, 2
        %vm569 = vcmp.eq.s32.totalorder %v567, 0
        %v570 = vxor.u32 %v564, 2147483648
        %v571 = vsel %vm569, %v563, %v570
        %vm572 = vcmp.eq.s32.totalorder %v567, 2
        %v573 = vxor.u32 %v563, 2147483648
        %v574 = vsel %vm572, %v573, %v564
        %v575 = vsel %vm568, %v571, %v574
        %v576 = vsel %vm565, nan, %v575
        %v577 = vand.u32 2147483647, %v466
        %vm578 = vcmp.le.f32.partialorder %v577, 0.7853982
        %vm579 = vcmp.lt.s32.totalorder %v466, 0
        %v580 = vand.u32 %v466, 2139095040
        %v581 = vshrl.u32 %v580, 23
        %v582 = vsub.s32 %v581, 127
        %v583 = vand.u32 2147483647, %v466
        %v584 = vand.u32 %v583, 8388607
        %v585 = vor.u32 %v584, 8388608
        %v586 = vsub.s32 0, %v585
        %v587 = vadd.s32 %v582, 1
        %vm588 = vcmp.gt.s32.totalorder %v587, 0
        %v589 = vsel %vm588, %v587, 0
        %v590 = vshrl.u32 %v589, 5
        %v591 = vand.u32 %v589, 31
        %v592 = vsub.s32 32, %v591
        %v593 = vshrl.u32 683565275, %v592
        %v594 = vshll.u32 683565275, %v591
        %v595 = vshrl.u32 2475754826, %v592
        %v596 = vor.u32 %v594, %v595
        %v597 = vshll.u32 2475754826, %v591
        %v598 = vshrl.u32 2131351028, %v592
        %v599 = vor.u32 %v597, %v598
        %v600 = vshll.u32 2131351028, %v591
        %v601 = vshrl.u32 2102212464, %v592
        %v602 = vor.u32 %v600, %v601
        %v603 = vshll.u32 2102212464, %v591
        %v604 = vshrl.u32 920167782, %v592
        %v605 = vor.u32 %v603, %v604
        %v606 = vshll.u32 920167782, %v591
        %v607 = vshrl.u32 1326507024, %v592
        %v608 = vor.u32 %v606, %v607
        %vm609 = vcmp.lt.s32.totalorder %v590, 1
        %vm610 = vcmp.lt.s32.totalorder %v590, 2
        %vm611 = vcmp.lt.s32.totalorder %v590, 3
        %vm612 = vcmp.lt.s32.totalorder %v590, 4
        %v613 = vsel %vm609, %v593, %v596
        %v614 = vsel %vm612, %v602, 2102212464
        %v615 = vsel %vm611, %v599, %v614
        %v616 = vsel %vm610, %v613, %v615
        %v617 = vsel %vm609, %v596, %v599
        %v618 = vsel %vm612, %v605, 920167782
        %v619 = vsel %vm611, %v602, %v618
        %v620 = vsel %vm610, %v617, %v619
        %v621 = vsel %vm609, %v599, %v602
        %v622 = vsel %vm612, %v608, 1326507024
        %v623 = vsel %vm611, %v605, %v622
        %v624 = vsel %vm610, %v621, %v623
        %v625 = vshll.u32 %v585, 8
        %v626 = vmul.u32.u64.compose %v625, %v624
        %v627 = vextract.low.u32 %v626
        %v628 = vextract.high.u32 %v626
        %v629 = vmul.u32.u64.compose %v625, %v620
        %v630 = vextract.low.u32 %v629
        %v631 = vextract.high.u32 %v629
        %v632 = vmul.u32 %v625, %v616
        %v633 = vadd.s32 %v628, %v630
        %vm634 = vc.u32 %v628, %v630
        %v635 = vadd.s32 %v631, 1
        %v636 = vsel %vm634, %v635, %v631
        %v637 = vadd.s32 %v632, %v636
        %v638 = vadd.s32 %v637, 536870912
        %v639 = vshrl.u32 %v638, 30
        %v640 = vshll.u32 %v639, 30
        %v641 = vsub.s32 %v637, %v640
        %vm642 = vcmp.lt.s32.totalorder %v641, 0
        %v643 = vsub.s32 0, %v641
        %v644 = vsel %vm642, %v643, %v641
        %v645 = vclz %v644
        %v646 = vsub.s32 %v645, 2
        %vm647 = vcmp.gt.s32.totalorder 0, %v646
        %v648 = vsel %vm647, 0, %v646
        %v649 = vsub.s32 32, %v648
        %v650 = vshll.u32 %v641, %v648
        %v651 = vshrl.u32 %v633, %v649
        %v652 = vor.u32 %v650, %v651
        %v653 = vsub.s32 4294967266, %v648
        %v654 = vadd.s32 %v653, 127
        %v655 = vshll.u32 %v654, 23
        %v656 = vor.u32 4788187, %v655
        %v657 = vand.u32 2147483647, %v656
        %v659 = vcvt.s32.f32 %v652
        %v660 = vmul.f32 %v659, %v657
        %v661 = vxor.u32 %v660, 2147483648
        %v662 = vsel %vm579, %v661, %v660
        %v663 = vsub.s32 4, %v639
        %v664 = vsel %vm579, %v663, %v639
        %v665 = vsel %vm578, %v466, %v662
        %v666 = vsel %vm578, 0, %v664
        %v667 = vcosq.f32.pop %v665
        %v668 = vsinq.f32.pop %v665
        %vm669 = vweird.f32 %v466
        %v670 = vadd.s32 %v666, 3
        %v671 = vand.u32 %v670, 3
        %vm672 = vcmp.lt.s32.totalorder %v671, 2
        %vm673 = vcmp.eq.s32.totalorder %v671, 0
        %v674 = vxor.u32 %v668, 2147483648
        %v675 = vsel %vm673, %v667, %v674
        %vm676 = vcmp.eq.s32.totalorder %v671, 2
        %v677 = vxor.u32 %v667, 2147483648
        %v678 = vsel %vm676, %v677, %v668
        %v679 = vsel %vm672, %v675, %v678
        %v680 = vsel %vm669, nan, %v679
        %v681 = vand.u32 2147483647, %v467
        %vm682 = vcmp.le.f32.partialorder %v681, 0.7853982
        %vm683 = vcmp.lt.s32.totalorder %v467, 0
        %v684 = vand.u32 %v467, 2139095040
        %v685 = vshrl.u32 %v684, 23
        %v686 = vsub.s32 %v685, 127
        %v687 = vand.u32 2147483647, %v467
        %v688 = vand.u32 %v687, 8388607
        %v689 = vor.u32 %v688, 8388608
        %v690 = vsub.s32 0, %v689
        %v691 = vadd.s32 %v686, 1
        %vm692 = vcmp.gt.s32.totalorder %v691, 0
        %v693 = vsel %vm692, %v691, 0
        %v694 = vshrl.u32 %v693, 5
        %v695 = vand.u32 %v693, 31
        %v696 = vsub.s32 32, %v695
        %v697 = vshrl.u32 683565275, %v696
        %v698 = vshll.u32 683565275, %v695
        %v699 = vshrl.u32 2475754826, %v696
        %v700 = vor.u32 %v698, %v699
        %v701 = vshll.u32 2475754826, %v695
        %v702 = vshrl.u32 2131351028, %v696
        %v703 = vor.u32 %v701, %v702
        %v704 = vshll.u32 2131351028, %v695
        %v705 = vshrl.u32 2102212464, %v696
        %v706 = vor.u32 %v704, %v705
        %v707 = vshll.u32 2102212464, %v695
        %v708 = vshrl.u32 920167782, %v696
        %v709 = vor.u32 %v707, %v708
        %v710 = vshll.u32 920167782, %v695
        %v711 = vshrl.u32 1326507024, %v696
        %v712 = vor.u32 %v710, %v711
        %vm713 = vcmp.lt.s32.totalorder %v694, 1
        %vm714 = vcmp.lt.s32.totalorder %v694, 2
        %vm715 = vcmp.lt.s32.totalorder %v694, 3
        %vm716 = vcmp.lt.s32.totalorder %v694, 4
        %v717 = vsel %vm713, %v697, %v700
        %v718 = vsel %vm716, %v706, 2102212464
        %v719 = vsel %vm715, %v703, %v718
        %v720 = vsel %vm714, %v717, %v719
        %v721 = vsel %vm713, %v700, %v703
        %v722 = vsel %vm716, %v709, 920167782
        %v723 = vsel %vm715, %v706, %v722
        %v724 = vsel %vm714, %v721, %v723
        %v725 = vsel %vm713, %v703, %v706
        %v726 = vsel %vm716, %v712, 1326507024
        %v727 = vsel %vm715, %v709, %v726
        %v728 = vsel %vm714, %v725, %v727
        %v729 = vshll.u32 %v689, 8
        %v730 = vmul.u32.u64.compose %v729, %v728
        %v731 = vextract.low.u32 %v730
        %v732 = vextract.high.u32 %v730
        %v733 = vmul.u32.u64.compose %v729, %v724
        %v734 = vextract.low.u32 %v733
        %v735 = vextract.high.u32 %v733
        %v736 = vmul.u32 %v729, %v720
        %v737 = vadd.s32 %v732, %v734
        %vm738 = vc.u32 %v732, %v734
        %v739 = vadd.s32 %v735, 1
        %v740 = vsel %vm738, %v739, %v735
        %v741 = vadd.s32 %v736, %v740
        %v742 = vadd.s32 %v741, 536870912
        %v743 = vshrl.u32 %v742, 30
        %v744 = vshll.u32 %v743, 30
        %v745 = vsub.s32 %v741, %v744
        %vm746 = vcmp.lt.s32.totalorder %v745, 0
        %v747 = vsub.s32 0, %v745
        %v748 = vsel %vm746, %v747, %v745
        %v749 = vclz %v748
        %v750 = vsub.s32 %v749, 2
        %vm751 = vcmp.gt.s32.totalorder 0, %v750
        %v752 = vsel %vm751, 0, %v750
        %v753 = vsub.s32 32, %v752
        %v754 = vshll.u32 %v745, %v752
        %v755 = vshrl.u32 %v737, %v753
        %v756 = vor.u32 %v754, %v755
        %v757 = vsub.s32 4294967266, %v752
        %v758 = vadd.s32 %v757, 127
        %v759 = vshll.u32 %v758, 23
        %v760 = vor.u32 4788187, %v759
        %v761 = vand.u32 2147483647, %v760
        %v763 = vcvt.s32.f32 %v756
        %v764 = vmul.f32 %v763, %v761
        %v765 = vxor.u32 %v764, 2147483648
        %v766 = vsel %vm683, %v765, %v764
        %v767 = vsub.s32 4, %v743
        %v768 = vsel %vm683, %v767, %v743
        %v769 = vsel %vm682, %v467, %v766
        %v770 = vsel %vm682, 0, %v768
        %v771 = vcosq.f32.pop %v769
        %v772 = vsinq.f32.pop %v769
        %vm773 = vweird.f32 %v467
        %v774 = vadd.s32 %v770, 3
        %v775 = vand.u32 %v774, 3
        %vm776 = vcmp.lt.s32.totalorder %v775, 2
        %vm777 = vcmp.eq.s32.totalorder %v775, 0
        %v778 = vxor.u32 %v772, 2147483648
        %v779 = vsel %vm777, %v771, %v778
        %vm780 = vcmp.eq.s32.totalorder %v775, 2
        %v781 = vxor.u32 %v771, 2147483648
        %v782 = vsel %vm780, %v781, %v772
        %v783 = vsel %vm776, %v779, %v782
        %v784 = vsel %vm773, nan, %v783
        %v785 = vand.u32 2147483647, %v468
        %vm786 = vcmp.le.f32.partialorder %v785, 0.7853982
        %vm787 = vcmp.lt.s32.totalorder %v468, 0
        %v788 = vand.u32 %v468, 2139095040
        %v789 = vshrl.u32 %v788, 23
        %v790 = vsub.s32 %v789, 127
        %v791 = vand.u32 2147483647, %v468
        %v792 = vand.u32 %v791, 8388607
        %v793 = vor.u32 %v792, 8388608
        %v794 = vsub.s32 0, %v793
        %v795 = vadd.s32 %v790, 1
        %vm796 = vcmp.gt.s32.totalorder %v795, 0
        %v797 = vsel %vm796, %v795, 0
        %v798 = vshrl.u32 %v797, 5
        %v799 = vand.u32 %v797, 31
        %v800 = vsub.s32 32, %v799
        %v801 = vshrl.u32 683565275, %v800
        %v802 = vshll.u32 683565275, %v799
        %v803 = vshrl.u32 2475754826, %v800
        %v804 = vor.u32 %v802, %v803
        %v805 = vshll.u32 2475754826, %v799
        %v806 = vshrl.u32 2131351028, %v800
        %v807 = vor.u32 %v805, %v806
        %v808 = vshll.u32 2131351028, %v799
        %v809 = vshrl.u32 2102212464, %v800
        %v810 = vor.u32 %v808, %v809
        %v811 = vshll.u32 2102212464, %v799
        %v812 = vshrl.u32 920167782, %v800
        %v813 = vor.u32 %v811, %v812
        %v814 = vshll.u32 920167782, %v799
        %v815 = vshrl.u32 1326507024, %v800
        %v816 = vor.u32 %v814, %v815
        %vm817 = vcmp.lt.s32.totalorder %v798, 1
        %vm818 = vcmp.lt.s32.totalorder %v798, 2
        %vm819 = vcmp.lt.s32.totalorder %v798, 3
        %vm820 = vcmp.lt.s32.totalorder %v798, 4
        %v821 = vsel %vm817, %v801, %v804
        %v822 = vsel %vm820, %v810, 2102212464
        %v823 = vsel %vm819, %v807, %v822
        %v824 = vsel %vm818, %v821, %v823
        %v825 = vsel %vm817, %v804, %v807
        %v826 = vsel %vm820, %v813, 920167782
        %v827 = vsel %vm819, %v810, %v826
        %v828 = vsel %vm818, %v825, %v827
        %v829 = vsel %vm817, %v807, %v810
        %v830 = vsel %vm820, %v816, 1326507024
        %v831 = vsel %vm819, %v813, %v830
        %v832 = vsel %vm818, %v829, %v831
        %v833 = vshll.u32 %v793, 8
        %v834 = vmul.u32.u64.compose %v833, %v832
        %v835 = vextract.low.u32 %v834
        %v836 = vextract.high.u32 %v834
        %v837 = vmul.u32.u64.compose %v833, %v828
        %v838 = vextract.low.u32 %v837
        %v839 = vextract.high.u32 %v837
        %v840 = vmul.u32 %v833, %v824
        %v841 = vadd.s32 %v836, %v838
        %vm842 = vc.u32 %v836, %v838
        %v843 = vadd.s32 %v839, 1
        %v844 = vsel %vm842, %v843, %v839
        %v845 = vadd.s32 %v840, %v844
        %v846 = vadd.s32 %v845, 536870912
        %v847 = vshrl.u32 %v846, 30
        %v848 = vshll.u32 %v847, 30
        %v849 = vsub.s32 %v845, %v848
        %vm850 = vcmp.lt.s32.totalorder %v849, 0
        %v851 = vsub.s32 0, %v849
        %v852 = vsel %vm850, %v851, %v849
        %v853 = vclz %v852
        %v854 = vsub.s32 %v853, 2
        %vm855 = vcmp.gt.s32.totalorder 0, %v854
        %v856 = vsel %vm855, 0, %v854
        %v857 = vsub.s32 32, %v856
        %v858 = vshll.u32 %v849, %v856
        %v859 = vshrl.u32 %v841, %v857
        %v860 = vor.u32 %v858, %v859
        %v861 = vsub.s32 4294967266, %v856
        %v862 = vadd.s32 %v861, 127
        %v863 = vshll.u32 %v862, 23
        %v864 = vor.u32 4788187, %v863
        %v865 = vand.u32 2147483647, %v864
        %v867 = vcvt.s32.f32 %v860
        %v868 = vmul.f32 %v867, %v865
        %v869 = vxor.u32 %v868, 2147483648
        %v870 = vsel %vm787, %v869, %v868
        %v871 = vsub.s32 4, %v847
        %v872 = vsel %vm787, %v871, %v847
        %v873 = vsel %vm786, %v468, %v870
        %v874 = vsel %vm786, 0, %v872
        %v875 = vcosq.f32.pop %v873
        %v876 = vsinq.f32.pop %v873
        %vm877 = vweird.f32 %v468
        %v878 = vadd.s32 %v874, 3
        %v879 = vand.u32 %v878, 3
        %vm880 = vcmp.lt.s32.totalorder %v879, 2
        %vm881 = vcmp.eq.s32.totalorder %v879, 0
        %v882 = vxor.u32 %v876, 2147483648
        %v883 = vsel %vm881, %v875, %v882
        %vm884 = vcmp.eq.s32.totalorder %v879, 2
        %v885 = vxor.u32 %v875, 2147483648
        %v886 = vsel %vm884, %v885, %v876
        %v887 = vsel %vm880, %v883, %v886
        %v888 = vsel %vm877, nan, %v887
        %v889 = vand.u32 2147483647, %v469
        %vm890 = vcmp.le.f32.partialorder %v889, 0.7853982
        %vm891 = vcmp.lt.s32.totalorder %v469, 0
        %v892 = vand.u32 %v469, 2139095040
        %v893 = vshrl.u32 %v892, 23
        %v894 = vsub.s32 %v893, 127
        %v895 = vand.u32 2147483647, %v469
        %v896 = vand.u32 %v895, 8388607
        %v897 = vor.u32 %v896, 8388608
        %v898 = vsub.s32 0, %v897
        %v899 = vadd.s32 %v894, 1
        %vm900 = vcmp.gt.s32.totalorder %v899, 0
        %v901 = vsel %vm900, %v899, 0
        %v902 = vshrl.u32 %v901, 5
        %v903 = vand.u32 %v901, 31
        %v904 = vsub.s32 32, %v903
        %v905 = vshrl.u32 683565275, %v904
        %v906 = vshll.u32 683565275, %v903
        %v907 = vshrl.u32 2475754826, %v904
        %v908 = vor.u32 %v906, %v907
        %v909 = vshll.u32 2475754826, %v903
        %v910 = vshrl.u32 2131351028, %v904
        %v911 = vor.u32 %v909, %v910
        %v912 = vshll.u32 2131351028, %v903
        %v913 = vshrl.u32 2102212464, %v904
        %v914 = vor.u32 %v912, %v913
        %v915 = vshll.u32 2102212464, %v903
        %v916 = vshrl.u32 920167782, %v904
        %v917 = vor.u32 %v915, %v916
        %v918 = vshll.u32 920167782, %v903
        %v919 = vshrl.u32 1326507024, %v904
        %v920 = vor.u32 %v918, %v919
        %vm921 = vcmp.lt.s32.totalorder %v902, 1
        %vm922 = vcmp.lt.s32.totalorder %v902, 2
        %vm923 = vcmp.lt.s32.totalorder %v902, 3
        %vm924 = vcmp.lt.s32.totalorder %v902, 4
        %v925 = vsel %vm921, %v905, %v908
        %v926 = vsel %vm924, %v914, 2102212464
        %v927 = vsel %vm923, %v911, %v926
        %v928 = vsel %vm922, %v925, %v927
        %v929 = vsel %vm921, %v908, %v911
        %v930 = vsel %vm924, %v917, 920167782
        %v931 = vsel %vm923, %v914, %v930
        %v932 = vsel %vm922, %v929, %v931
        %v933 = vsel %vm921, %v911, %v914
        %v934 = vsel %vm924, %v920, 1326507024
        %v935 = vsel %vm923, %v917, %v934
        %v936 = vsel %vm922, %v933, %v935
        %v937 = vshll.u32 %v897, 8
        %v938 = vmul.u32.u64.compose %v937, %v936
        %v939 = vextract.low.u32 %v938
        %v940 = vextract.high.u32 %v938
        %v941 = vmul.u32.u64.compose %v937, %v932
        %v942 = vextract.low.u32 %v941
        %v943 = vextract.high.u32 %v941
        %v944 = vmul.u32 %v937, %v928
        %v945 = vadd.s32 %v940, %v942
        %vm946 = vc.u32 %v940, %v942
        %v947 = vadd.s32 %v943, 1
        %v948 = vsel %vm946, %v947, %v943
        %v949 = vadd.s32 %v944, %v948
        %v950 = vadd.s32 %v949, 536870912
        %v951 = vshrl.u32 %v950, 30
        %v952 = vshll.u32 %v951, 30
        %v953 = vsub.s32 %v949, %v952
        %vm954 = vcmp.lt.s32.totalorder %v953, 0
        %v955 = vsub.s32 0, %v953
        %v956 = vsel %vm954, %v955, %v953
        %v957 = vclz %v956
        %v958 = vsub.s32 %v957, 2
        %vm959 = vcmp.gt.s32.totalorder 0, %v958
        %v960 = vsel %vm959, 0, %v958
        %v961 = vsub.s32 32, %v960
        %v962 = vshll.u32 %v953, %v960
        %v963 = vshrl.u32 %v945, %v961
        %v964 = vor.u32 %v962, %v963
        %v965 = vsub.s32 4294967266, %v960
        %v966 = vadd.s32 %v965, 127
        %v967 = vshll.u32 %v966, 23
        %v968 = vor.u32 4788187, %v967
        %v969 = vand.u32 2147483647, %v968
        %v971 = vcvt.s32.f32 %v964
        %v972 = vmul.f32 %v971, %v969
        %v973 = vxor.u32 %v972, 2147483648
        %v974 = vsel %vm891, %v973, %v972
        %v975 = vsub.s32 4, %v951
        %v976 = vsel %vm891, %v975, %v951
        %v977 = vsel %vm890, %v469, %v974
        %v978 = vsel %vm890, 0, %v976
        %v979 = vcosq.f32.pop %v977
        %v980 = vsinq.f32.pop %v977
        %vm981 = vweird.f32 %v469
        %v982 = vadd.s32 %v978, 3
        %v983 = vand.u32 %v982, 3
        %vm984 = vcmp.lt.s32.totalorder %v983, 2
        %vm985 = vcmp.eq.s32.totalorder %v983, 0
        %v986 = vxor.u32 %v980, 2147483648
        %v987 = vsel %vm985, %v979, %v986
        %vm988 = vcmp.eq.s32.totalorder %v983, 2
        %v989 = vxor.u32 %v979, 2147483648
        %v990 = vsel %vm988, %v989, %v980
        %v991 = vsel %vm984, %v987, %v990
        %v992 = vsel %vm981, nan, %v991
        %v993 = vand.u32 2147483647, %v470
        %vm994 = vcmp.le.f32.partialorder %v993, 0.7853982
        %vm995 = vcmp.lt.s32.totalorder %v470, 0
        %v996 = vand.u32 %v470, 2139095040
        %v997 = vshrl.u32 %v996, 23
        %v998 = vsub.s32 %v997, 127
        %v999 = vand.u32 2147483647, %v470
        %v1000 = vand.u32 %v999, 8388607
        %v1001 = vor.u32 %v1000, 8388608
        %v1002 = vsub.s32 0, %v1001
        %v1003 = vadd.s32 %v998, 1
        %vm1004 = vcmp.gt.s32.totalorder %v1003, 0
        %v1005 = vsel %vm1004, %v1003, 0
        %v1006 = vshrl.u32 %v1005, 5
        %v1007 = vand.u32 %v1005, 31
        %v1008 = vsub.s32 32, %v1007
        %v1009 = vshrl.u32 683565275, %v1008
        %v1010 = vshll.u32 683565275, %v1007
        %v1011 = vshrl.u32 2475754826, %v1008
        %v1012 = vor.u32 %v1010, %v1011
        %v1013 = vshll.u32 2475754826, %v1007
        %v1014 = vshrl.u32 2131351028, %v1008
        %v1015 = vor.u32 %v1013, %v1014
        %v1016 = vshll.u32 2131351028, %v1007
        %v1017 = vshrl.u32 2102212464, %v1008
        %v1018 = vor.u32 %v1016, %v1017
        %v1019 = vshll.u32 2102212464, %v1007
        %v1020 = vshrl.u32 920167782, %v1008
        %v1021 = vor.u32 %v1019, %v1020
        %v1022 = vshll.u32 920167782, %v1007
        %v1023 = vshrl.u32 1326507024, %v1008
        %v1024 = vor.u32 %v1022, %v1023
        %vm1025 = vcmp.lt.s32.totalorder %v1006, 1
        %vm1026 = vcmp.lt.s32.totalorder %v1006, 2
        %vm1027 = vcmp.lt.s32.totalorder %v1006, 3
        %vm1028 = vcmp.lt.s32.totalorder %v1006, 4
        %v1029 = vsel %vm1025, %v1009, %v1012
        %v1030 = vsel %vm1028, %v1018, 2102212464
        %v1031 = vsel %vm1027, %v1015, %v1030
        %v1032 = vsel %vm1026, %v1029, %v1031
        %v1033 = vsel %vm1025, %v1012, %v1015
        %v1034 = vsel %vm1028, %v1021, 920167782
        %v1035 = vsel %vm1027, %v1018, %v1034
        %v1036 = vsel %vm1026, %v1033, %v1035
        %v1037 = vsel %vm1025, %v1015, %v1018
        %v1038 = vsel %vm1028, %v1024, 1326507024
        %v1039 = vsel %vm1027, %v1021, %v1038
        %v1040 = vsel %vm1026, %v1037, %v1039
        %v1041 = vshll.u32 %v1001, 8
        %v1042 = vmul.u32.u64.compose %v1041, %v1040
        %v1043 = vextract.low.u32 %v1042
        %v1044 = vextract.high.u32 %v1042
        %v1045 = vmul.u32.u64.compose %v1041, %v1036
        %v1046 = vextract.low.u32 %v1045
        %v1047 = vextract.high.u32 %v1045
        %v1048 = vmul.u32 %v1041, %v1032
        %v1049 = vadd.s32 %v1044, %v1046
        %vm1050 = vc.u32 %v1044, %v1046
        %v1051 = vadd.s32 %v1047, 1
        %v1052 = vsel %vm1050, %v1051, %v1047
        %v1053 = vadd.s32 %v1048, %v1052
        %v1054 = vadd.s32 %v1053, 536870912
        %v1055 = vshrl.u32 %v1054, 30
        %v1056 = vshll.u32 %v1055, 30
        %v1057 = vsub.s32 %v1053, %v1056
        %vm1058 = vcmp.lt.s32.totalorder %v1057, 0
        %v1059 = vsub.s32 0, %v1057
        %v1060 = vsel %vm1058, %v1059, %v1057
        %v1061 = vclz %v1060
        %v1062 = vsub.s32 %v1061, 2
        %vm1063 = vcmp.gt.s32.totalorder 0, %v1062
        %v1064 = vsel %vm1063, 0, %v1062
        %v1065 = vsub.s32 32, %v1064
        %v1066 = vshll.u32 %v1057, %v1064
        %v1067 = vshrl.u32 %v1049, %v1065
        %v1068 = vor.u32 %v1066, %v1067
        %v1069 = vsub.s32 4294967266, %v1064
        %v1070 = vadd.s32 %v1069, 127
        %v1071 = vshll.u32 %v1070, 23
        %v1072 = vor.u32 4788187, %v1071
        %v1073 = vand.u32 2147483647, %v1072
        %v1075 = vcvt.s32.f32 %v1068
        %v1076 = vmul.f32 %v1075, %v1073
        %v1077 = vxor.u32 %v1076, 2147483648
        %v1078 = vsel %vm995, %v1077, %v1076
        %v1079 = vsub.s32 4, %v1055
        %v1080 = vsel %vm995, %v1079, %v1055
        %v1081 = vsel %vm994, %v470, %v1078
        %v1082 = vsel %vm994, 0, %v1080
        %v1083 = vcosq.f32.pop %v1081
        %v1084 = vsinq.f32.pop %v1081
        %vm1085 = vweird.f32 %v470
        %v1086 = vadd.s32 %v1082, 3
        %v1087 = vand.u32 %v1086, 3
        %vm1088 = vcmp.lt.s32.totalorder %v1087, 2
        %vm1089 = vcmp.eq.s32.totalorder %v1087, 0
        %v1090 = vxor.u32 %v1084, 2147483648
        %v1091 = vsel %vm1089, %v1083, %v1090
        %vm1092 = vcmp.eq.s32.totalorder %v1087, 2
        %v1093 = vxor.u32 %v1083, 2147483648
        %v1094 = vsel %vm1092, %v1093, %v1084
        %v1095 = vsel %vm1088, %v1091, %v1094
        %v1096 = vsel %vm1085, nan, %v1095
        %v1097 = vand.u32 2147483647, %v471
        %vm1098 = vcmp.le.f32.partialorder %v1097, 0.7853982
        %vm1099 = vcmp.lt.s32.totalorder %v471, 0
        %v1100 = vand.u32 %v471, 2139095040
        %v1101 = vshrl.u32 %v1100, 23
        %v1102 = vsub.s32 %v1101, 127
        %v1103 = vand.u32 2147483647, %v471
        %v1104 = vand.u32 %v1103, 8388607
        %v1105 = vor.u32 %v1104, 8388608
        %v1106 = vsub.s32 0, %v1105
        %v1107 = vadd.s32 %v1102, 1
        %vm1108 = vcmp.gt.s32.totalorder %v1107, 0
        %v1109 = vsel %vm1108, %v1107, 0
        %v1110 = vshrl.u32 %v1109, 5
        %v1111 = vand.u32 %v1109, 31
        %v1112 = vsub.s32 32, %v1111
        %v1113 = vshrl.u32 683565275, %v1112
        %v1114 = vshll.u32 683565275, %v1111
        %v1115 = vshrl.u32 2475754826, %v1112
        %v1116 = vor.u32 %v1114, %v1115
        %v1117 = vshll.u32 2475754826, %v1111
        %v1118 = vshrl.u32 2131351028, %v1112
        %v1119 = vor.u32 %v1117, %v1118
        %v1120 = vshll.u32 2131351028, %v1111
        %v1121 = vshrl.u32 2102212464, %v1112
        %v1122 = vor.u32 %v1120, %v1121
        %v1123 = vshll.u32 2102212464, %v1111
        %v1124 = vshrl.u32 920167782, %v1112
        %v1125 = vor.u32 %v1123, %v1124
        %v1126 = vshll.u32 920167782, %v1111
        %v1127 = vshrl.u32 1326507024, %v1112
        %v1128 = vor.u32 %v1126, %v1127
        %vm1129 = vcmp.lt.s32.totalorder %v1110, 1
        %vm1130 = vcmp.lt.s32.totalorder %v1110, 2
        %vm1131 = vcmp.lt.s32.totalorder %v1110, 3
        %vm1132 = vcmp.lt.s32.totalorder %v1110, 4
        %v1133 = vsel %vm1129, %v1113, %v1116
        %v1134 = vsel %vm1132, %v1122, 2102212464
        %v1135 = vsel %vm1131, %v1119, %v1134
        %v1136 = vsel %vm1130, %v1133, %v1135
        %v1137 = vsel %vm1129, %v1116, %v1119
        %v1138 = vsel %vm1132, %v1125, 920167782
        %v1139 = vsel %vm1131, %v1122, %v1138
        %v1140 = vsel %vm1130, %v1137, %v1139
        %v1141 = vsel %vm1129, %v1119, %v1122
        %v1142 = vsel %vm1132, %v1128, 1326507024
        %v1143 = vsel %vm1131, %v1125, %v1142
        %v1144 = vsel %vm1130, %v1141, %v1143
        %v1145 = vshll.u32 %v1105, 8
        %v1146 = vmul.u32.u64.compose %v1145, %v1144
        %v1147 = vextract.low.u32 %v1146
        %v1148 = vextract.high.u32 %v1146
        %v1149 = vmul.u32.u64.compose %v1145, %v1140
        %v1150 = vextract.low.u32 %v1149
        %v1151 = vextract.high.u32 %v1149
        %v1152 = vmul.u32 %v1145, %v1136
        %v1153 = vadd.s32 %v1148, %v1150
        %vm1154 = vc.u32 %v1148, %v1150
        %v1155 = vadd.s32 %v1151, 1
        %v1156 = vsel %vm1154, %v1155, %v1151
        %v1157 = vadd.s32 %v1152, %v1156
        %v1158 = vadd.s32 %v1157, 536870912
        %v1159 = vshrl.u32 %v1158, 30
        %v1160 = vshll.u32 %v1159, 30
        %v1161 = vsub.s32 %v1157, %v1160
        %vm1162 = vcmp.lt.s32.totalorder %v1161, 0
        %v1163 = vsub.s32 0, %v1161
        %v1164 = vsel %vm1162, %v1163, %v1161
        %v1165 = vclz %v1164
        %v1166 = vsub.s32 %v1165, 2
        %vm1167 = vcmp.gt.s32.totalorder 0, %v1166
        %v1168 = vsel %vm1167, 0, %v1166
        %v1169 = vsub.s32 32, %v1168
        %v1170 = vshll.u32 %v1161, %v1168
        %v1171 = vshrl.u32 %v1153, %v1169
        %v1172 = vor.u32 %v1170, %v1171
        %v1173 = vsub.s32 4294967266, %v1168
        %v1174 = vadd.s32 %v1173, 127
        %v1175 = vshll.u32 %v1174, 23
        %v1176 = vor.u32 4788187, %v1175
        %v1177 = vand.u32 2147483647, %v1176
        %v1179 = vcvt.s32.f32 %v1172
        %v1180 = vmul.f32 %v1179, %v1177
        %v1181 = vxor.u32 %v1180, 2147483648
        %v1182 = vsel %vm1099, %v1181, %v1180
        %v1183 = vsub.s32 4, %v1159
        %v1184 = vsel %vm1099, %v1183, %v1159
        %v1185 = vsel %vm1098, %v471, %v1182
        %v1186 = vsel %vm1098, 0, %v1184
        %v1187 = vcosq.f32.pop %v1185
        %v1188 = vsinq.f32.pop %v1185
        %vm1189 = vweird.f32 %v471
        %v1190 = vadd.s32 %v1186, 3
        %v1191 = vand.u32 %v1190, 3
        %vm1192 = vcmp.lt.s32.totalorder %v1191, 2
        %vm1193 = vcmp.eq.s32.totalorder %v1191, 0
        %v1194 = vxor.u32 %v1188, 2147483648
        %v1195 = vsel %vm1193, %v1187, %v1194
        %vm1196 = vcmp.eq.s32.totalorder %v1191, 2
        %v1197 = vxor.u32 %v1187, 2147483648
        %v1198 = vsel %vm1196, %v1197, %v1188
        %v1199 = vsel %vm1192, %v1195, %v1198
        %v1200 = vsel %vm1189, nan, %v1199
        %v1201 = vand.u32 2147483647, %v472
        %vm1202 = vcmp.le.f32.partialorder %v1201, 0.7853982
        %vm1203 = vcmp.lt.s32.totalorder %v472, 0
        %v1204 = vand.u32 %v472, 2139095040
        %v1205 = vshrl.u32 %v1204, 23
        %v1206 = vsub.s32 %v1205, 127
        %v1207 = vand.u32 2147483647, %v472
        %v1208 = vand.u32 %v1207, 8388607
        %v1209 = vor.u32 %v1208, 8388608
        %v1210 = vsub.s32 0, %v1209
        %v1211 = vadd.s32 %v1206, 1
        %vm1212 = vcmp.gt.s32.totalorder %v1211, 0
        %v1213 = vsel %vm1212, %v1211, 0
        %v1214 = vshrl.u32 %v1213, 5
        %v1215 = vand.u32 %v1213, 31
        %v1216 = vsub.s32 32, %v1215
        %v1217 = vshrl.u32 683565275, %v1216
        %v1218 = vshll.u32 683565275, %v1215
        %v1219 = vshrl.u32 2475754826, %v1216
        %v1220 = vor.u32 %v1218, %v1219
        %v1221 = vshll.u32 2475754826, %v1215
        %v1222 = vshrl.u32 2131351028, %v1216
        %v1223 = vor.u32 %v1221, %v1222
        %v1224 = vshll.u32 2131351028, %v1215
        %v1225 = vshrl.u32 2102212464, %v1216
        %v1226 = vor.u32 %v1224, %v1225
        %v1227 = vshll.u32 2102212464, %v1215
        %v1228 = vshrl.u32 920167782, %v1216
        %v1229 = vor.u32 %v1227, %v1228
        %v1230 = vshll.u32 920167782, %v1215
        %v1231 = vshrl.u32 1326507024, %v1216
        %v1232 = vor.u32 %v1230, %v1231
        %vm1233 = vcmp.lt.s32.totalorder %v1214, 1
        %vm1234 = vcmp.lt.s32.totalorder %v1214, 2
        %vm1235 = vcmp.lt.s32.totalorder %v1214, 3
        %vm1236 = vcmp.lt.s32.totalorder %v1214, 4
        %v1237 = vsel %vm1233, %v1217, %v1220
        %v1238 = vsel %vm1236, %v1226, 2102212464
        %v1239 = vsel %vm1235, %v1223, %v1238
        %v1240 = vsel %vm1234, %v1237, %v1239
        %v1241 = vsel %vm1233, %v1220, %v1223
        %v1242 = vsel %vm1236, %v1229, 920167782
        %v1243 = vsel %vm1235, %v1226, %v1242
        %v1244 = vsel %vm1234, %v1241, %v1243
        %v1245 = vsel %vm1233, %v1223, %v1226
        %v1246 = vsel %vm1236, %v1232, 1326507024
        %v1247 = vsel %vm1235, %v1229, %v1246
        %v1248 = vsel %vm1234, %v1245, %v1247
        %v1249 = vshll.u32 %v1209, 8
        %v1250 = vmul.u32.u64.compose %v1249, %v1248
        %v1251 = vextract.low.u32 %v1250
        %v1252 = vextract.high.u32 %v1250
        %v1253 = vmul.u32.u64.compose %v1249, %v1244
        %v1254 = vextract.low.u32 %v1253
        %v1255 = vextract.high.u32 %v1253
        %v1256 = vmul.u32 %v1249, %v1240
        %v1257 = vadd.s32 %v1252, %v1254
        %vm1258 = vc.u32 %v1252, %v1254
        %v1259 = vadd.s32 %v1255, 1
        %v1260 = vsel %vm1258, %v1259, %v1255
        %v1261 = vadd.s32 %v1256, %v1260
        %v1262 = vadd.s32 %v1261, 536870912
        %v1263 = vshrl.u32 %v1262, 30
        %v1264 = vshll.u32 %v1263, 30
        %v1265 = vsub.s32 %v1261, %v1264
        %vm1266 = vcmp.lt.s32.totalorder %v1265, 0
        %v1267 = vsub.s32 0, %v1265
        %v1268 = vsel %vm1266, %v1267, %v1265
        %v1269 = vclz %v1268
        %v1270 = vsub.s32 %v1269, 2
        %vm1271 = vcmp.gt.s32.totalorder 0, %v1270
        %v1272 = vsel %vm1271, 0, %v1270
        %v1273 = vsub.s32 32, %v1272
        %v1274 = vshll.u32 %v1265, %v1272
        %v1275 = vshrl.u32 %v1257, %v1273
        %v1276 = vor.u32 %v1274, %v1275
        %v1277 = vsub.s32 4294967266, %v1272
        %v1278 = vadd.s32 %v1277, 127
        %v1279 = vshll.u32 %v1278, 23
        %v1280 = vor.u32 4788187, %v1279
        %v1281 = vand.u32 2147483647, %v1280
        %v1283 = vcvt.s32.f32 %v1276
        %v1284 = vmul.f32 %v1283, %v1281
        %v1285 = vxor.u32 %v1284, 2147483648
        %v1286 = vsel %vm1203, %v1285, %v1284
        %v1287 = vsub.s32 4, %v1263
        %v1288 = vsel %vm1203, %v1287, %v1263
        %v1289 = vsel %vm1202, %v472, %v1286
        %v1290 = vsel %vm1202, 0, %v1288
        %v1291 = vcosq.f32.pop %v1289
        %v1292 = vsinq.f32.pop %v1289
        %vm1293 = vweird.f32 %v472
        %v1294 = vadd.s32 %v1290, 3
        %v1295 = vand.u32 %v1294, 3
        %vm1296 = vcmp.lt.s32.totalorder %v1295, 2
        %vm1297 = vcmp.eq.s32.totalorder %v1295, 0
        %v1298 = vxor.u32 %v1292, 2147483648
        %v1299 = vsel %vm1297, %v1291, %v1298
        %vm1300 = vcmp.eq.s32.totalorder %v1295, 2
        %v1301 = vxor.u32 %v1291, 2147483648
        %v1302 = vsel %vm1300, %v1301, %v1292
        %v1303 = vsel %vm1296, %v1299, %v1302
        %v1304 = vsel %vm1293, nan, %v1303
        %v1305 = vand.u32 2147483647, %v465
        %vm1306 = vcmp.le.f32.partialorder %v1305, 0.7853982
        %vm1307 = vcmp.lt.s32.totalorder %v465, 0
        %v1308 = vand.u32 %v465, 2139095040
        %v1309 = vshrl.u32 %v1308, 23
        %v1310 = vsub.s32 %v1309, 127
        %v1311 = vand.u32 2147483647, %v465
        %v1312 = vand.u32 %v1311, 8388607
        %v1313 = vor.u32 %v1312, 8388608
        %v1314 = vsub.s32 0, %v1313
        %v1315 = vadd.s32 %v1310, 1
        %vm1316 = vcmp.gt.s32.totalorder %v1315, 0
        %v1317 = vsel %vm1316, %v1315, 0
        %v1318 = vshrl.u32 %v1317, 5
        %v1319 = vand.u32 %v1317, 31
        %v1320 = vsub.s32 32, %v1319
        %v1321 = vshrl.u32 683565275, %v1320
        %v1322 = vshll.u32 683565275, %v1319
        %v1323 = vshrl.u32 2475754826, %v1320
        %v1324 = vor.u32 %v1322, %v1323
        %v1325 = vshll.u32 2475754826, %v1319
        %v1326 = vshrl.u32 2131351028, %v1320
        %v1327 = vor.u32 %v1325, %v1326
        %v1328 = vshll.u32 2131351028, %v1319
        %v1329 = vshrl.u32 2102212464, %v1320
        %v1330 = vor.u32 %v1328, %v1329
        %v1331 = vshll.u32 2102212464, %v1319
        %v1332 = vshrl.u32 920167782, %v1320
        %v1333 = vor.u32 %v1331, %v1332
        %v1334 = vshll.u32 920167782, %v1319
        %v1335 = vshrl.u32 1326507024, %v1320
        %v1336 = vor.u32 %v1334, %v1335
        %vm1337 = vcmp.lt.s32.totalorder %v1318, 1
        %vm1338 = vcmp.lt.s32.totalorder %v1318, 2
        %vm1339 = vcmp.lt.s32.totalorder %v1318, 3
        %vm1340 = vcmp.lt.s32.totalorder %v1318, 4
        %v1341 = vsel %vm1337, %v1321, %v1324
        %v1342 = vsel %vm1340, %v1330, 2102212464
        %v1343 = vsel %vm1339, %v1327, %v1342
        %v1344 = vsel %vm1338, %v1341, %v1343
        %v1345 = vsel %vm1337, %v1324, %v1327
        %v1346 = vsel %vm1340, %v1333, 920167782
        %v1347 = vsel %vm1339, %v1330, %v1346
        %v1348 = vsel %vm1338, %v1345, %v1347
        %v1349 = vsel %vm1337, %v1327, %v1330
        %v1350 = vsel %vm1340, %v1336, 1326507024
        %v1351 = vsel %vm1339, %v1333, %v1350
        %v1352 = vsel %vm1338, %v1349, %v1351
        %v1353 = vshll.u32 %v1313, 8
        %v1354 = vmul.u32.u64.compose %v1353, %v1352
        %v1355 = vextract.low.u32 %v1354
        %v1356 = vextract.high.u32 %v1354
        %v1357 = vmul.u32.u64.compose %v1353, %v1348
        %v1358 = vextract.low.u32 %v1357
        %v1359 = vextract.high.u32 %v1357
        %v1360 = vmul.u32 %v1353, %v1344
        %v1361 = vadd.s32 %v1356, %v1358
        %vm1362 = vc.u32 %v1356, %v1358
        %v1363 = vadd.s32 %v1359, 1
        %v1364 = vsel %vm1362, %v1363, %v1359
        %v1365 = vadd.s32 %v1360, %v1364
        %v1366 = vadd.s32 %v1365, 536870912
        %v1367 = vshrl.u32 %v1366, 30
        %v1368 = vshll.u32 %v1367, 30
        %v1369 = vsub.s32 %v1365, %v1368
        %vm1370 = vcmp.lt.s32.totalorder %v1369, 0
        %v1371 = vsub.s32 0, %v1369
        %v1372 = vsel %vm1370, %v1371, %v1369
        %v1373 = vclz %v1372
        %v1374 = vsub.s32 %v1373, 2
        %vm1375 = vcmp.gt.s32.totalorder 0, %v1374
        %v1376 = vsel %vm1375, 0, %v1374
        %v1377 = vsub.s32 32, %v1376
        %v1378 = vshll.u32 %v1369, %v1376
        %v1379 = vshrl.u32 %v1361, %v1377
        %v1380 = vor.u32 %v1378, %v1379
        %v1381 = vsub.s32 4294967266, %v1376
        %v1382 = vadd.s32 %v1381, 127
        %v1383 = vshll.u32 %v1382, 23
        %v1384 = vor.u32 4788187, %v1383
        %v1385 = vand.u32 2147483647, %v1384
        %v1387 = vcvt.s32.f32 %v1380
        %v1388 = vmul.f32 %v1387, %v1385
        %v1389 = vxor.u32 %v1388, 2147483648
        %v1390 = vsel %vm1307, %v1389, %v1388
        %v1391 = vsub.s32 4, %v1367
        %v1392 = vsel %vm1307, %v1391, %v1367
        %v1393 = vsel %vm1306, %v465, %v1390
        %v1394 = vsel %vm1306, 0, %v1392
        %v1395 = vcosq.f32.pop %v1393
        %v1396 = vsinq.f32.pop %v1393
        %vm1397 = vweird.f32 %v465
        %v1398 = vand.u32 %v1394, 3
        %vm1399 = vcmp.lt.s32.totalorder %v1398, 2
        %vm1400 = vcmp.eq.s32.totalorder %v1398, 0
        %v1401 = vxor.u32 %v1396, 2147483648
        %v1402 = vsel %vm1400, %v1395, %v1401
        %vm1403 = vcmp.eq.s32.totalorder %v1398, 2
        %v1404 = vxor.u32 %v1395, 2147483648
        %v1405 = vsel %vm1403, %v1404, %v1396
        %v1406 = vsel %vm1399, %v1402, %v1405
        %v1407 = vsel %vm1397, nan, %v1406
        %v1408 = vand.u32 2147483647, %v466
        %vm1409 = vcmp.le.f32.partialorder %v1408, 0.7853982
        %vm1410 = vcmp.lt.s32.totalorder %v466, 0
        %v1411 = vand.u32 %v466, 2139095040
        %v1412 = vshrl.u32 %v1411, 23
        %v1413 = vsub.s32 %v1412, 127
        %v1414 = vand.u32 2147483647, %v466
        %v1415 = vand.u32 %v1414, 8388607
        %v1416 = vor.u32 %v1415, 8388608
        %v1417 = vsub.s32 0, %v1416
        %v1418 = vadd.s32 %v1413, 1
        %vm1419 = vcmp.gt.s32.totalorder %v1418, 0
        %v1420 = vsel %vm1419, %v1418, 0
        %v1421 = vshrl.u32 %v1420, 5
        %v1422 = vand.u32 %v1420, 31
        %v1423 = vsub.s32 32, %v1422
        %v1424 = vshrl.u32 683565275, %v1423
        %v1425 = vshll.u32 683565275, %v1422
        %v1426 = vshrl.u32 2475754826, %v1423
        %v1427 = vor.u32 %v1425, %v1426
        %v1428 = vshll.u32 2475754826, %v1422
        %v1429 = vshrl.u32 2131351028, %v1423
        %v1430 = vor.u32 %v1428, %v1429
        %v1431 = vshll.u32 2131351028, %v1422
        %v1432 = vshrl.u32 2102212464, %v1423
        %v1433 = vor.u32 %v1431, %v1432
        %v1434 = vshll.u32 2102212464, %v1422
        %v1435 = vshrl.u32 920167782, %v1423
        %v1436 = vor.u32 %v1434, %v1435
        %v1437 = vshll.u32 920167782, %v1422
        %v1438 = vshrl.u32 1326507024, %v1423
        %v1439 = vor.u32 %v1437, %v1438
        %vm1440 = vcmp.lt.s32.totalorder %v1421, 1
        %vm1441 = vcmp.lt.s32.totalorder %v1421, 2
        %vm1442 = vcmp.lt.s32.totalorder %v1421, 3
        %vm1443 = vcmp.lt.s32.totalorder %v1421, 4
        %v1444 = vsel %vm1440, %v1424, %v1427
        %v1445 = vsel %vm1443, %v1433, 2102212464
        %v1446 = vsel %vm1442, %v1430, %v1445
        %v1447 = vsel %vm1441, %v1444, %v1446
        %v1448 = vsel %vm1440, %v1427, %v1430
        %v1449 = vsel %vm1443, %v1436, 920167782
        %v1450 = vsel %vm1442, %v1433, %v1449
        %v1451 = vsel %vm1441, %v1448, %v1450
        %v1452 = vsel %vm1440, %v1430, %v1433
        %v1453 = vsel %vm1443, %v1439, 1326507024
        %v1454 = vsel %vm1442, %v1436, %v1453
        %v1455 = vsel %vm1441, %v1452, %v1454
        %v1456 = vshll.u32 %v1416, 8
        %v1457 = vmul.u32.u64.compose %v1456, %v1455
        %v1458 = vextract.low.u32 %v1457
        %v1459 = vextract.high.u32 %v1457
        %v1460 = vmul.u32.u64.compose %v1456, %v1451
        %v1461 = vextract.low.u32 %v1460
        %v1462 = vextract.high.u32 %v1460
        %v1463 = vmul.u32 %v1456, %v1447
        %v1464 = vadd.s32 %v1459, %v1461
        %vm1465 = vc.u32 %v1459, %v1461
        %v1466 = vadd.s32 %v1462, 1
        %v1467 = vsel %vm1465, %v1466, %v1462
        %v1468 = vadd.s32 %v1463, %v1467
        %v1469 = vadd.s32 %v1468, 536870912
        %v1470 = vshrl.u32 %v1469, 30
        %v1471 = vshll.u32 %v1470, 30
        %v1472 = vsub.s32 %v1468, %v1471
        %vm1473 = vcmp.lt.s32.totalorder %v1472, 0
        %v1474 = vsub.s32 0, %v1472
        %v1475 = vsel %vm1473, %v1474, %v1472
        %v1476 = vclz %v1475
        %v1477 = vsub.s32 %v1476, 2
        %vm1478 = vcmp.gt.s32.totalorder 0, %v1477
        %v1479 = vsel %vm1478, 0, %v1477
        %v1480 = vsub.s32 32, %v1479
        %v1481 = vshll.u32 %v1472, %v1479
        %v1482 = vshrl.u32 %v1464, %v1480
        %v1483 = vor.u32 %v1481, %v1482
        %v1484 = vsub.s32 4294967266, %v1479
        %v1485 = vadd.s32 %v1484, 127
        %v1486 = vshll.u32 %v1485, 23
        %v1487 = vor.u32 4788187, %v1486
        %v1488 = vand.u32 2147483647, %v1487
        %v1490 = vcvt.s32.f32 %v1483
        %v1491 = vmul.f32 %v1490, %v1488
        %v1492 = vxor.u32 %v1491, 2147483648
        %v1493 = vsel %vm1410, %v1492, %v1491
        %v1494 = vsub.s32 4, %v1470
        %v1495 = vsel %vm1410, %v1494, %v1470
        %v1496 = vsel %vm1409, %v466, %v1493
        %v1497 = vsel %vm1409, 0, %v1495
        %v1498 = vcosq.f32.pop %v1496
        %v1499 = vsinq.f32.pop %v1496
        %vm1500 = vweird.f32 %v466
        %v1501 = vand.u32 %v1497, 3
        %vm1502 = vcmp.lt.s32.totalorder %v1501, 2
        %vm1503 = vcmp.eq.s32.totalorder %v1501, 0
        %v1504 = vxor.u32 %v1499, 2147483648
        %v1505 = vsel %vm1503, %v1498, %v1504
        %vm1506 = vcmp.eq.s32.totalorder %v1501, 2
        %v1507 = vxor.u32 %v1498, 2147483648
        %v1508 = vsel %vm1506, %v1507, %v1499
        %v1509 = vsel %vm1502, %v1505, %v1508
        %v1510 = vsel %vm1500, nan, %v1509
        %v1511 = vand.u32 2147483647, %v467
        %vm1512 = vcmp.le.f32.partialorder %v1511, 0.7853982
        %vm1513 = vcmp.lt.s32.totalorder %v467, 0
        %v1514 = vand.u32 %v467, 2139095040
        %v1515 = vshrl.u32 %v1514, 23
        %v1516 = vsub.s32 %v1515, 127
        %v1517 = vand.u32 2147483647, %v467
        %v1518 = vand.u32 %v1517, 8388607
        %v1519 = vor.u32 %v1518, 8388608
        %v1520 = vsub.s32 0, %v1519
        %v1521 = vadd.s32 %v1516, 1
        %vm1522 = vcmp.gt.s32.totalorder %v1521, 0
        %v1523 = vsel %vm1522, %v1521, 0
        %v1524 = vshrl.u32 %v1523, 5
        %v1525 = vand.u32 %v1523, 31
        %v1526 = vsub.s32 32, %v1525
        %v1527 = vshrl.u32 683565275, %v1526
        %v1528 = vshll.u32 683565275, %v1525
        %v1529 = vshrl.u32 2475754826, %v1526
        %v1530 = vor.u32 %v1528, %v1529
        %v1531 = vshll.u32 2475754826, %v1525
        %v1532 = vshrl.u32 2131351028, %v1526
        %v1533 = vor.u32 %v1531, %v1532
        %v1534 = vshll.u32 2131351028, %v1525
        %v1535 = vshrl.u32 2102212464, %v1526
        %v1536 = vor.u32 %v1534, %v1535
        %v1537 = vshll.u32 2102212464, %v1525
        %v1538 = vshrl.u32 920167782, %v1526
        %v1539 = vor.u32 %v1537, %v1538
        %v1540 = vshll.u32 920167782, %v1525
        %v1541 = vshrl.u32 1326507024, %v1526
        %v1542 = vor.u32 %v1540, %v1541
        %vm1543 = vcmp.lt.s32.totalorder %v1524, 1
        %vm1544 = vcmp.lt.s32.totalorder %v1524, 2
        %vm1545 = vcmp.lt.s32.totalorder %v1524, 3
        %vm1546 = vcmp.lt.s32.totalorder %v1524, 4
        %v1547 = vsel %vm1543, %v1527, %v1530
        %v1548 = vsel %vm1546, %v1536, 2102212464
        %v1549 = vsel %vm1545, %v1533, %v1548
        %v1550 = vsel %vm1544, %v1547, %v1549
        %v1551 = vsel %vm1543, %v1530, %v1533
        %v1552 = vsel %vm1546, %v1539, 920167782
        %v1553 = vsel %vm1545, %v1536, %v1552
        %v1554 = vsel %vm1544, %v1551, %v1553
        %v1555 = vsel %vm1543, %v1533, %v1536
        %v1556 = vsel %vm1546, %v1542, 1326507024
        %v1557 = vsel %vm1545, %v1539, %v1556
        %v1558 = vsel %vm1544, %v1555, %v1557
        %v1559 = vshll.u32 %v1519, 8
        %v1560 = vmul.u32.u64.compose %v1559, %v1558
        %v1561 = vextract.low.u32 %v1560
        %v1562 = vextract.high.u32 %v1560
        %v1563 = vmul.u32.u64.compose %v1559, %v1554
        %v1564 = vextract.low.u32 %v1563
        %v1565 = vextract.high.u32 %v1563
        %v1566 = vmul.u32 %v1559, %v1550
        %v1567 = vadd.s32 %v1562, %v1564
        %vm1568 = vc.u32 %v1562, %v1564
        %v1569 = vadd.s32 %v1565, 1
        %v1570 = vsel %vm1568, %v1569, %v1565
        %v1571 = vadd.s32 %v1566, %v1570
        %v1572 = vadd.s32 %v1571, 536870912
        %v1573 = vshrl.u32 %v1572, 30
        %v1574 = vshll.u32 %v1573, 30
        %v1575 = vsub.s32 %v1571, %v1574
        %vm1576 = vcmp.lt.s32.totalorder %v1575, 0
        %v1577 = vsub.s32 0, %v1575
        %v1578 = vsel %vm1576, %v1577, %v1575
        %v1579 = vclz %v1578
        %v1580 = vsub.s32 %v1579, 2
        %vm1581 = vcmp.gt.s32.totalorder 0, %v1580
        %v1582 = vsel %vm1581, 0, %v1580
        %v1583 = vsub.s32 32, %v1582
        %v1584 = vshll.u32 %v1575, %v1582
        %v1585 = vshrl.u32 %v1567, %v1583
        %v1586 = vor.u32 %v1584, %v1585
        %v1587 = vsub.s32 4294967266, %v1582
        %v1588 = vadd.s32 %v1587, 127
        %v1589 = vshll.u32 %v1588, 23
        %v1590 = vor.u32 4788187, %v1589
        %v1591 = vand.u32 2147483647, %v1590
        %v1593 = vcvt.s32.f32 %v1586
        %v1594 = vmul.f32 %v1593, %v1591
        %v1595 = vxor.u32 %v1594, 2147483648
        %v1596 = vsel %vm1513, %v1595, %v1594
        %v1597 = vsub.s32 4, %v1573
        %v1598 = vsel %vm1513, %v1597, %v1573
        %v1599 = vsel %vm1512, %v467, %v1596
        %v1600 = vsel %vm1512, 0, %v1598
        %v1601 = vcosq.f32.pop %v1599
        %v1602 = vsinq.f32.pop %v1599
        %vm1603 = vweird.f32 %v467
        %v1604 = vand.u32 %v1600, 3
        %vm1605 = vcmp.lt.s32.totalorder %v1604, 2
        %vm1606 = vcmp.eq.s32.totalorder %v1604, 0
        %v1607 = vxor.u32 %v1602, 2147483648
        %v1608 = vsel %vm1606, %v1601, %v1607
        %vm1609 = vcmp.eq.s32.totalorder %v1604, 2
        %v1610 = vxor.u32 %v1601, 2147483648
        %v1611 = vsel %vm1609, %v1610, %v1602
        %v1612 = vsel %vm1605, %v1608, %v1611
        %v1613 = vsel %vm1603, nan, %v1612
        %v1614 = vand.u32 2147483647, %v468
        %vm1615 = vcmp.le.f32.partialorder %v1614, 0.7853982
        %vm1616 = vcmp.lt.s32.totalorder %v468, 0
        %v1617 = vand.u32 %v468, 2139095040
        %v1618 = vshrl.u32 %v1617, 23
        %v1619 = vsub.s32 %v1618, 127
        %v1620 = vand.u32 2147483647, %v468
        %v1621 = vand.u32 %v1620, 8388607
        %v1622 = vor.u32 %v1621, 8388608
        %v1623 = vsub.s32 0, %v1622
        %v1624 = vadd.s32 %v1619, 1
        %vm1625 = vcmp.gt.s32.totalorder %v1624, 0
        %v1626 = vsel %vm1625, %v1624, 0
        %v1627 = vshrl.u32 %v1626, 5
        %v1628 = vand.u32 %v1626, 31
        %v1629 = vsub.s32 32, %v1628
        %v1630 = vshrl.u32 683565275, %v1629
        %v1631 = vshll.u32 683565275, %v1628
        %v1632 = vshrl.u32 2475754826, %v1629
        %v1633 = vor.u32 %v1631, %v1632
        %v1634 = vshll.u32 2475754826, %v1628
        %v1635 = vshrl.u32 2131351028, %v1629
        %v1636 = vor.u32 %v1634, %v1635
        %v1637 = vshll.u32 2131351028, %v1628
        %v1638 = vshrl.u32 2102212464, %v1629
        %v1639 = vor.u32 %v1637, %v1638
        %v1640 = vshll.u32 2102212464, %v1628
        %v1641 = vshrl.u32 920167782, %v1629
        %v1642 = vor.u32 %v1640, %v1641
        %v1643 = vshll.u32 920167782, %v1628
        %v1644 = vshrl.u32 1326507024, %v1629
        %v1645 = vor.u32 %v1643, %v1644
        %vm1646 = vcmp.lt.s32.totalorder %v1627, 1
        %vm1647 = vcmp.lt.s32.totalorder %v1627, 2
        %vm1648 = vcmp.lt.s32.totalorder %v1627, 3
        %vm1649 = vcmp.lt.s32.totalorder %v1627, 4
        %v1650 = vsel %vm1646, %v1630, %v1633
        %v1651 = vsel %vm1649, %v1639, 2102212464
        %v1652 = vsel %vm1648, %v1636, %v1651
        %v1653 = vsel %vm1647, %v1650, %v1652
        %v1654 = vsel %vm1646, %v1633, %v1636
        %v1655 = vsel %vm1649, %v1642, 920167782
        %v1656 = vsel %vm1648, %v1639, %v1655
        %v1657 = vsel %vm1647, %v1654, %v1656
        %v1658 = vsel %vm1646, %v1636, %v1639
        %v1659 = vsel %vm1649, %v1645, 1326507024
        %v1660 = vsel %vm1648, %v1642, %v1659
        %v1661 = vsel %vm1647, %v1658, %v1660
        %v1662 = vshll.u32 %v1622, 8
        %v1663 = vmul.u32.u64.compose %v1662, %v1661
        %v1664 = vextract.low.u32 %v1663
        %v1665 = vextract.high.u32 %v1663
        %v1666 = vmul.u32.u64.compose %v1662, %v1657
        %v1667 = vextract.low.u32 %v1666
        %v1668 = vextract.high.u32 %v1666
        %v1669 = vmul.u32 %v1662, %v1653
        %v1670 = vadd.s32 %v1665, %v1667
        %vm1671 = vc.u32 %v1665, %v1667
        %v1672 = vadd.s32 %v1668, 1
        %v1673 = vsel %vm1671, %v1672, %v1668
        %v1674 = vadd.s32 %v1669, %v1673
        %v1675 = vadd.s32 %v1674, 536870912
        %v1676 = vshrl.u32 %v1675, 30
        %v1677 = vshll.u32 %v1676, 30
        %v1678 = vsub.s32 %v1674, %v1677
        %vm1679 = vcmp.lt.s32.totalorder %v1678, 0
        %v1680 = vsub.s32 0, %v1678
        %v1681 = vsel %vm1679, %v1680, %v1678
        %v1682 = vclz %v1681
        %v1683 = vsub.s32 %v1682, 2
        %vm1684 = vcmp.gt.s32.totalorder 0, %v1683
        %v1685 = vsel %vm1684, 0, %v1683
        %v1686 = vsub.s32 32, %v1685
        %v1687 = vshll.u32 %v1678, %v1685
        %v1688 = vshrl.u32 %v1670, %v1686
        %v1689 = vor.u32 %v1687, %v1688
        %v1690 = vsub.s32 4294967266, %v1685
        %v1691 = vadd.s32 %v1690, 127
        %v1692 = vshll.u32 %v1691, 23
        %v1693 = vor.u32 4788187, %v1692
        %v1694 = vand.u32 2147483647, %v1693
        %v1696 = vcvt.s32.f32 %v1689
        %v1697 = vmul.f32 %v1696, %v1694
        %v1698 = vxor.u32 %v1697, 2147483648
        %v1699 = vsel %vm1616, %v1698, %v1697
        %v1700 = vsub.s32 4, %v1676
        %v1701 = vsel %vm1616, %v1700, %v1676
        %v1702 = vsel %vm1615, %v468, %v1699
        %v1703 = vsel %vm1615, 0, %v1701
        %v1704 = vcosq.f32.pop %v1702
        %v1705 = vsinq.f32.pop %v1702
        %vm1706 = vweird.f32 %v468
        %v1707 = vand.u32 %v1703, 3
        %vm1708 = vcmp.lt.s32.totalorder %v1707, 2
        %vm1709 = vcmp.eq.s32.totalorder %v1707, 0
        %v1710 = vxor.u32 %v1705, 2147483648
        %v1711 = vsel %vm1709, %v1704, %v1710
        %vm1712 = vcmp.eq.s32.totalorder %v1707, 2
        %v1713 = vxor.u32 %v1704, 2147483648
        %v1714 = vsel %vm1712, %v1713, %v1705
        %v1715 = vsel %vm1708, %v1711, %v1714
        %v1716 = vsel %vm1706, nan, %v1715
        %v1717 = vand.u32 2147483647, %v469
        %vm1718 = vcmp.le.f32.partialorder %v1717, 0.7853982
        %vm1719 = vcmp.lt.s32.totalorder %v469, 0
        %v1720 = vand.u32 %v469, 2139095040
        %v1721 = vshrl.u32 %v1720, 23
        %v1722 = vsub.s32 %v1721, 127
        %v1723 = vand.u32 2147483647, %v469
        %v1724 = vand.u32 %v1723, 8388607
        %v1725 = vor.u32 %v1724, 8388608
        %v1726 = vsub.s32 0, %v1725
        %v1727 = vadd.s32 %v1722, 1
        %vm1728 = vcmp.gt.s32.totalorder %v1727, 0
        %v1729 = vsel %vm1728, %v1727, 0
        %v1730 = vshrl.u32 %v1729, 5
        %v1731 = vand.u32 %v1729, 31
        %v1732 = vsub.s32 32, %v1731
        %v1733 = vshrl.u32 683565275, %v1732
        %v1734 = vshll.u32 683565275, %v1731
        %v1735 = vshrl.u32 2475754826, %v1732
        %v1736 = vor.u32 %v1734, %v1735
        %v1737 = vshll.u32 2475754826, %v1731
        %v1738 = vshrl.u32 2131351028, %v1732
        %v1739 = vor.u32 %v1737, %v1738
        %v1740 = vshll.u32 2131351028, %v1731
        %v1741 = vshrl.u32 2102212464, %v1732
        %v1742 = vor.u32 %v1740, %v1741
        %v1743 = vshll.u32 2102212464, %v1731
        %v1744 = vshrl.u32 920167782, %v1732
        %v1745 = vor.u32 %v1743, %v1744
        %v1746 = vshll.u32 920167782, %v1731
        %v1747 = vshrl.u32 1326507024, %v1732
        %v1748 = vor.u32 %v1746, %v1747
        %vm1749 = vcmp.lt.s32.totalorder %v1730, 1
        %vm1750 = vcmp.lt.s32.totalorder %v1730, 2
        %vm1751 = vcmp.lt.s32.totalorder %v1730, 3
        %vm1752 = vcmp.lt.s32.totalorder %v1730, 4
        %v1753 = vsel %vm1749, %v1733, %v1736
        %v1754 = vsel %vm1752, %v1742, 2102212464
        %v1755 = vsel %vm1751, %v1739, %v1754
        %v1756 = vsel %vm1750, %v1753, %v1755
        %v1757 = vsel %vm1749, %v1736, %v1739
        %v1758 = vsel %vm1752, %v1745, 920167782
        %v1759 = vsel %vm1751, %v1742, %v1758
        %v1760 = vsel %vm1750, %v1757, %v1759
        %v1761 = vsel %vm1749, %v1739, %v1742
        %v1762 = vsel %vm1752, %v1748, 1326507024
        %v1763 = vsel %vm1751, %v1745, %v1762
        %v1764 = vsel %vm1750, %v1761, %v1763
        %v1765 = vshll.u32 %v1725, 8
        %v1766 = vmul.u32.u64.compose %v1765, %v1764
        %v1767 = vextract.low.u32 %v1766
        %v1768 = vextract.high.u32 %v1766
        %v1769 = vmul.u32.u64.compose %v1765, %v1760
        %v1770 = vextract.low.u32 %v1769
        %v1771 = vextract.high.u32 %v1769
        %v1772 = vmul.u32 %v1765, %v1756
        %v1773 = vadd.s32 %v1768, %v1770
        %vm1774 = vc.u32 %v1768, %v1770
        %v1775 = vadd.s32 %v1771, 1
        %v1776 = vsel %vm1774, %v1775, %v1771
        %v1777 = vadd.s32 %v1772, %v1776
        %v1778 = vadd.s32 %v1777, 536870912
        %v1779 = vshrl.u32 %v1778, 30
        %v1780 = vshll.u32 %v1779, 30
        %v1781 = vsub.s32 %v1777, %v1780
        %vm1782 = vcmp.lt.s32.totalorder %v1781, 0
        %v1783 = vsub.s32 0, %v1781
        %v1784 = vsel %vm1782, %v1783, %v1781
        %v1785 = vclz %v1784
        %v1786 = vsub.s32 %v1785, 2
        %vm1787 = vcmp.gt.s32.totalorder 0, %v1786
        %v1788 = vsel %vm1787, 0, %v1786
        %v1789 = vsub.s32 32, %v1788
        %v1790 = vshll.u32 %v1781, %v1788
        %v1791 = vshrl.u32 %v1773, %v1789
        %v1792 = vor.u32 %v1790, %v1791
        %v1793 = vsub.s32 4294967266, %v1788
        %v1794 = vadd.s32 %v1793, 127
        %v1795 = vshll.u32 %v1794, 23
        %v1796 = vor.u32 4788187, %v1795
        %v1797 = vand.u32 2147483647, %v1796
        %v1799 = vcvt.s32.f32 %v1792
        %v1800 = vmul.f32 %v1799, %v1797
        %v1801 = vxor.u32 %v1800, 2147483648
        %v1802 = vsel %vm1719, %v1801, %v1800
        %v1803 = vsub.s32 4, %v1779
        %v1804 = vsel %vm1719, %v1803, %v1779
        %v1805 = vsel %vm1718, %v469, %v1802
        %v1806 = vsel %vm1718, 0, %v1804
        %v1807 = vcosq.f32.pop %v1805
        %v1808 = vsinq.f32.pop %v1805
        %vm1809 = vweird.f32 %v469
        %v1810 = vand.u32 %v1806, 3
        %vm1811 = vcmp.lt.s32.totalorder %v1810, 2
        %vm1812 = vcmp.eq.s32.totalorder %v1810, 0
        %v1813 = vxor.u32 %v1808, 2147483648
        %v1814 = vsel %vm1812, %v1807, %v1813
        %vm1815 = vcmp.eq.s32.totalorder %v1810, 2
        %v1816 = vxor.u32 %v1807, 2147483648
        %v1817 = vsel %vm1815, %v1816, %v1808
        %v1818 = vsel %vm1811, %v1814, %v1817
        %v1819 = vsel %vm1809, nan, %v1818
        %v1820 = vand.u32 2147483647, %v470
        %vm1821 = vcmp.le.f32.partialorder %v1820, 0.7853982
        %vm1822 = vcmp.lt.s32.totalorder %v470, 0
        %v1823 = vand.u32 %v470, 2139095040
        %v1824 = vshrl.u32 %v1823, 23
        %v1825 = vsub.s32 %v1824, 127
        %v1826 = vand.u32 2147483647, %v470
        %v1827 = vand.u32 %v1826, 8388607
        %v1828 = vor.u32 %v1827, 8388608
        %v1829 = vsub.s32 0, %v1828
        %v1830 = vadd.s32 %v1825, 1
        %vm1831 = vcmp.gt.s32.totalorder %v1830, 0
        %v1832 = vsel %vm1831, %v1830, 0
        %v1833 = vshrl.u32 %v1832, 5
        %v1834 = vand.u32 %v1832, 31
        %v1835 = vsub.s32 32, %v1834
        %v1836 = vshrl.u32 683565275, %v1835
        %v1837 = vshll.u32 683565275, %v1834
        %v1838 = vshrl.u32 2475754826, %v1835
        %v1839 = vor.u32 %v1837, %v1838
        %v1840 = vshll.u32 2475754826, %v1834
        %v1841 = vshrl.u32 2131351028, %v1835
        %v1842 = vor.u32 %v1840, %v1841
        %v1843 = vshll.u32 2131351028, %v1834
        %v1844 = vshrl.u32 2102212464, %v1835
        %v1845 = vor.u32 %v1843, %v1844
        %v1846 = vshll.u32 2102212464, %v1834
        %v1847 = vshrl.u32 920167782, %v1835
        %v1848 = vor.u32 %v1846, %v1847
        %v1849 = vshll.u32 920167782, %v1834
        %v1850 = vshrl.u32 1326507024, %v1835
        %v1851 = vor.u32 %v1849, %v1850
        %vm1852 = vcmp.lt.s32.totalorder %v1833, 1
        %vm1853 = vcmp.lt.s32.totalorder %v1833, 2
        %vm1854 = vcmp.lt.s32.totalorder %v1833, 3
        %vm1855 = vcmp.lt.s32.totalorder %v1833, 4
        %v1856 = vsel %vm1852, %v1836, %v1839
        %v1857 = vsel %vm1855, %v1845, 2102212464
        %v1858 = vsel %vm1854, %v1842, %v1857
        %v1859 = vsel %vm1853, %v1856, %v1858
        %v1860 = vsel %vm1852, %v1839, %v1842
        %v1861 = vsel %vm1855, %v1848, 920167782
        %v1862 = vsel %vm1854, %v1845, %v1861
        %v1863 = vsel %vm1853, %v1860, %v1862
        %v1864 = vsel %vm1852, %v1842, %v1845
        %v1865 = vsel %vm1855, %v1851, 1326507024
        %v1866 = vsel %vm1854, %v1848, %v1865
        %v1867 = vsel %vm1853, %v1864, %v1866
        %v1868 = vshll.u32 %v1828, 8
        %v1869 = vmul.u32.u64.compose %v1868, %v1867
        %v1870 = vextract.low.u32 %v1869
        %v1871 = vextract.high.u32 %v1869
        %v1872 = vmul.u32.u64.compose %v1868, %v1863
        %v1873 = vextract.low.u32 %v1872
        %v1874 = vextract.high.u32 %v1872
        %v1875 = vmul.u32 %v1868, %v1859
        %v1876 = vadd.s32 %v1871, %v1873
        %vm1877 = vc.u32 %v1871, %v1873
        %v1878 = vadd.s32 %v1874, 1
        %v1879 = vsel %vm1877, %v1878, %v1874
        %v1880 = vadd.s32 %v1875, %v1879
        %v1881 = vadd.s32 %v1880, 536870912
        %v1882 = vshrl.u32 %v1881, 30
        %v1883 = vshll.u32 %v1882, 30
        %v1884 = vsub.s32 %v1880, %v1883
        %vm1885 = vcmp.lt.s32.totalorder %v1884, 0
        %v1886 = vsub.s32 0, %v1884
        %v1887 = vsel %vm1885, %v1886, %v1884
        %v1888 = vclz %v1887
        %v1889 = vsub.s32 %v1888, 2
        %vm1890 = vcmp.gt.s32.totalorder 0, %v1889
        %v1891 = vsel %vm1890, 0, %v1889
        %v1892 = vsub.s32 32, %v1891
        %v1893 = vshll.u32 %v1884, %v1891
        %v1894 = vshrl.u32 %v1876, %v1892
        %v1895 = vor.u32 %v1893, %v1894
        %v1896 = vsub.s32 4294967266, %v1891
        %v1897 = vadd.s32 %v1896, 127
        %v1898 = vshll.u32 %v1897, 23
        %v1899 = vor.u32 4788187, %v1898
        %v1900 = vand.u32 2147483647, %v1899
        %v1902 = vcvt.s32.f32 %v1895
        %v1903 = vmul.f32 %v1902, %v1900
        %v1904 = vxor.u32 %v1903, 2147483648
        %v1905 = vsel %vm1822, %v1904, %v1903
        %v1906 = vsub.s32 4, %v1882
        %v1907 = vsel %vm1822, %v1906, %v1882
        %v1908 = vsel %vm1821, %v470, %v1905
        %v1909 = vsel %vm1821, 0, %v1907
        %v1910 = vcosq.f32.pop %v1908
        %v1911 = vsinq.f32.pop %v1908
        %vm1912 = vweird.f32 %v470
        %v1913 = vand.u32 %v1909, 3
        %vm1914 = vcmp.lt.s32.totalorder %v1913, 2
        %vm1915 = vcmp.eq.s32.totalorder %v1913, 0
        %v1916 = vxor.u32 %v1911, 2147483648
        %v1917 = vsel %vm1915, %v1910, %v1916
        %vm1918 = vcmp.eq.s32.totalorder %v1913, 2
        %v1919 = vxor.u32 %v1910, 2147483648
        %v1920 = vsel %vm1918, %v1919, %v1911
        %v1921 = vsel %vm1914, %v1917, %v1920
        %v1922 = vsel %vm1912, nan, %v1921
        %v1923 = vand.u32 2147483647, %v471
        %vm1924 = vcmp.le.f32.partialorder %v1923, 0.7853982
        %vm1925 = vcmp.lt.s32.totalorder %v471, 0
        %v1926 = vand.u32 %v471, 2139095040
        %v1927 = vshrl.u32 %v1926, 23
        %v1928 = vsub.s32 %v1927, 127
        %v1929 = vand.u32 2147483647, %v471
        %v1930 = vand.u32 %v1929, 8388607
        %v1931 = vor.u32 %v1930, 8388608
        %v1932 = vsub.s32 0, %v1931
        %v1933 = vadd.s32 %v1928, 1
        %vm1934 = vcmp.gt.s32.totalorder %v1933, 0
        %v1935 = vsel %vm1934, %v1933, 0
        %v1936 = vshrl.u32 %v1935, 5
        %v1937 = vand.u32 %v1935, 31
        %v1938 = vsub.s32 32, %v1937
        %v1939 = vshrl.u32 683565275, %v1938
        %v1940 = vshll.u32 683565275, %v1937
        %v1941 = vshrl.u32 2475754826, %v1938
        %v1942 = vor.u32 %v1940, %v1941
        %v1943 = vshll.u32 2475754826, %v1937
        %v1944 = vshrl.u32 2131351028, %v1938
        %v1945 = vor.u32 %v1943, %v1944
        %v1946 = vshll.u32 2131351028, %v1937
        %v1947 = vshrl.u32 2102212464, %v1938
        %v1948 = vor.u32 %v1946, %v1947
        %v1949 = vshll.u32 2102212464, %v1937
        %v1950 = vshrl.u32 920167782, %v1938
        %v1951 = vor.u32 %v1949, %v1950
        %v1952 = vshll.u32 920167782, %v1937
        %v1953 = vshrl.u32 1326507024, %v1938
        %v1954 = vor.u32 %v1952, %v1953
        %vm1955 = vcmp.lt.s32.totalorder %v1936, 1
        %vm1956 = vcmp.lt.s32.totalorder %v1936, 2
        %vm1957 = vcmp.lt.s32.totalorder %v1936, 3
        %vm1958 = vcmp.lt.s32.totalorder %v1936, 4
        %v1959 = vsel %vm1955, %v1939, %v1942
        %v1960 = vsel %vm1958, %v1948, 2102212464
        %v1961 = vsel %vm1957, %v1945, %v1960
        %v1962 = vsel %vm1956, %v1959, %v1961
        %v1963 = vsel %vm1955, %v1942, %v1945
        %v1964 = vsel %vm1958, %v1951, 920167782
        %v1965 = vsel %vm1957, %v1948, %v1964
        %v1966 = vsel %vm1956, %v1963, %v1965
        %v1967 = vsel %vm1955, %v1945, %v1948
        %v1968 = vsel %vm1958, %v1954, 1326507024
        %v1969 = vsel %vm1957, %v1951, %v1968
        %v1970 = vsel %vm1956, %v1967, %v1969
        %v1971 = vshll.u32 %v1931, 8
        %v1972 = vmul.u32.u64.compose %v1971, %v1970
        %v1973 = vextract.low.u32 %v1972
        %v1974 = vextract.high.u32 %v1972
        %v1975 = vmul.u32.u64.compose %v1971, %v1966
        %v1976 = vextract.low.u32 %v1975
        %v1977 = vextract.high.u32 %v1975
        %v1978 = vmul.u32 %v1971, %v1962
        %v1979 = vadd.s32 %v1974, %v1976
        %vm1980 = vc.u32 %v1974, %v1976
        %v1981 = vadd.s32 %v1977, 1
        %v1982 = vsel %vm1980, %v1981, %v1977
        %v1983 = vadd.s32 %v1978, %v1982
        %v1984 = vadd.s32 %v1983, 536870912
        %v1985 = vshrl.u32 %v1984, 30
        %v1986 = vshll.u32 %v1985, 30
        %v1987 = vsub.s32 %v1983, %v1986
        %vm1988 = vcmp.lt.s32.totalorder %v1987, 0
        %v1989 = vsub.s32 0, %v1987
        %v1990 = vsel %vm1988, %v1989, %v1987
        %v1991 = vclz %v1990
        %v1992 = vsub.s32 %v1991, 2
        %vm1993 = vcmp.gt.s32.totalorder 0, %v1992
        %v1994 = vsel %vm1993, 0, %v1992
        %v1995 = vsub.s32 32, %v1994
        %v1996 = vshll.u32 %v1987, %v1994
        %v1997 = vshrl.u32 %v1979, %v1995
        %v1998 = vor.u32 %v1996, %v1997
        %v1999 = vsub.s32 4294967266, %v1994
        %v2000 = vadd.s32 %v1999, 127
        %v2001 = vshll.u32 %v2000, 23
        %v2002 = vor.u32 4788187, %v2001
        %v2003 = vand.u32 2147483647, %v2002
        %v2005 = vcvt.s32.f32 %v1998
        %v2006 = vmul.f32 %v2005, %v2003
        %v2007 = vxor.u32 %v2006, 2147483648
        %v2008 = vsel %vm1925, %v2007, %v2006
        %v2009 = vsub.s32 4, %v1985
        %v2010 = vsel %vm1925, %v2009, %v1985
        %v2011 = vsel %vm1924, %v471, %v2008
        %v2012 = vsel %vm1924, 0, %v2010
        %v2013 = vcosq.f32.pop %v2011
        %v2014 = vsinq.f32.pop %v2011
        %vm2015 = vweird.f32 %v471
        %v2016 = vand.u32 %v2012, 3
        %vm2017 = vcmp.lt.s32.totalorder %v2016, 2
        %vm2018 = vcmp.eq.s32.totalorder %v2016, 0
        %v2019 = vxor.u32 %v2014, 2147483648
        %v2020 = vsel %vm2018, %v2013, %v2019
        %vm2021 = vcmp.eq.s32.totalorder %v2016, 2
        %v2022 = vxor.u32 %v2013, 2147483648
        %v2023 = vsel %vm2021, %v2022, %v2014
        %v2024 = vsel %vm2017, %v2020, %v2023
        %v2025 = vsel %vm2015, nan, %v2024
        %v2026 = vand.u32 2147483647, %v472
        %vm2027 = vcmp.le.f32.partialorder %v2026, 0.7853982
        %vm2028 = vcmp.lt.s32.totalorder %v472, 0
        %v2029 = vand.u32 %v472, 2139095040
        %v2030 = vshrl.u32 %v2029, 23
        %v2031 = vsub.s32 %v2030, 127
        %v2032 = vand.u32 2147483647, %v472
        %v2033 = vand.u32 %v2032, 8388607
        %v2034 = vor.u32 %v2033, 8388608
        %v2035 = vsub.s32 0, %v2034
        %v2036 = vadd.s32 %v2031, 1
        %vm2037 = vcmp.gt.s32.totalorder %v2036, 0
        %v2038 = vsel %vm2037, %v2036, 0
        %v2039 = vshrl.u32 %v2038, 5
        %v2040 = vand.u32 %v2038, 31
        %v2041 = vsub.s32 32, %v2040
        %v2042 = vshrl.u32 683565275, %v2041
        %v2043 = vshll.u32 683565275, %v2040
        %v2044 = vshrl.u32 2475754826, %v2041
        %v2045 = vor.u32 %v2043, %v2044
        %v2046 = vshll.u32 2475754826, %v2040
        %v2047 = vshrl.u32 2131351028, %v2041
        %v2048 = vor.u32 %v2046, %v2047
        %v2049 = vshll.u32 2131351028, %v2040
        %v2050 = vshrl.u32 2102212464, %v2041
        %v2051 = vor.u32 %v2049, %v2050
        %v2052 = vshll.u32 2102212464, %v2040
        %v2053 = vshrl.u32 920167782, %v2041
        %v2054 = vor.u32 %v2052, %v2053
        %v2055 = vshll.u32 920167782, %v2040
        %v2056 = vshrl.u32 1326507024, %v2041
        %v2057 = vor.u32 %v2055, %v2056
        %vm2058 = vcmp.lt.s32.totalorder %v2039, 1
        %vm2059 = vcmp.lt.s32.totalorder %v2039, 2
        %vm2060 = vcmp.lt.s32.totalorder %v2039, 3
        %vm2061 = vcmp.lt.s32.totalorder %v2039, 4
        %v2062 = vsel %vm2058, %v2042, %v2045
        %v2063 = vsel %vm2061, %v2051, 2102212464
        %v2064 = vsel %vm2060, %v2048, %v2063
        %v2065 = vsel %vm2059, %v2062, %v2064
        %v2066 = vsel %vm2058, %v2045, %v2048
        %v2067 = vsel %vm2061, %v2054, 920167782
        %v2068 = vsel %vm2060, %v2051, %v2067
        %v2069 = vsel %vm2059, %v2066, %v2068
        %v2070 = vsel %vm2058, %v2048, %v2051
        %v2071 = vsel %vm2061, %v2057, 1326507024
        %v2072 = vsel %vm2060, %v2054, %v2071
        %v2073 = vsel %vm2059, %v2070, %v2072
        %v2074 = vshll.u32 %v2034, 8
        %v2075 = vmul.u32.u64.compose %v2074, %v2073
        %v2076 = vextract.low.u32 %v2075
        %v2077 = vextract.high.u32 %v2075
        %v2078 = vmul.u32.u64.compose %v2074, %v2069
        %v2079 = vextract.low.u32 %v2078
        %v2080 = vextract.high.u32 %v2078
        %v2081 = vmul.u32 %v2074, %v2065
        %v2082 = vadd.s32 %v2077, %v2079
        %vm2083 = vc.u32 %v2077, %v2079
        %v2084 = vadd.s32 %v2080, 1
        %v2085 = vsel %vm2083, %v2084, %v2080
        %v2086 = vadd.s32 %v2081, %v2085
        %v2087 = vadd.s32 %v2086, 536870912
        %v2088 = vshrl.u32 %v2087, 30
        %v2089 = vshll.u32 %v2088, 30
        %v2090 = vsub.s32 %v2086, %v2089
        %vm2091 = vcmp.lt.s32.totalorder %v2090, 0
        %v2092 = vsub.s32 0, %v2090
        %v2093 = vsel %vm2091, %v2092, %v2090
        %v2094 = vclz %v2093
        %v2095 = vsub.s32 %v2094, 2
        %vm2096 = vcmp.gt.s32.totalorder 0, %v2095
        %v2097 = vsel %vm2096, 0, %v2095
        %v2098 = vsub.s32 32, %v2097
        %v2099 = vshll.u32 %v2090, %v2097
        %v2100 = vshrl.u32 %v2082, %v2098
        %v2101 = vor.u32 %v2099, %v2100
        %v2102 = vsub.s32 4294967266, %v2097
        %v2103 = vadd.s32 %v2102, 127
        %v2104 = vshll.u32 %v2103, 23
        %v2105 = vor.u32 4788187, %v2104
        %v2106 = vand.u32 2147483647, %v2105
        %v2108 = vcvt.s32.f32 %v2101
        %v2109 = vmul.f32 %v2108, %v2106
        %v2110 = vxor.u32 %v2109, 2147483648
        %v2111 = vsel %vm2028, %v2110, %v2109
        %v2112 = vsub.s32 4, %v2088
        %v2113 = vsel %vm2028, %v2112, %v2088
        %v2114 = vsel %vm2027, %v472, %v2111
        %v2115 = vsel %vm2027, 0, %v2113
        %v2116 = vcosq.f32.pop %v2114
        %v2117 = vsinq.f32.pop %v2114
        %vm2118 = vweird.f32 %v472
        %v2119 = vand.u32 %v2115, 3
        %vm2120 = vcmp.lt.s32.totalorder %v2119, 2
        %vm2121 = vcmp.eq.s32.totalorder %v2119, 0
        %v2122 = vxor.u32 %v2117, 2147483648
        %v2123 = vsel %vm2121, %v2116, %v2122
        %vm2124 = vcmp.eq.s32.totalorder %v2119, 2
        %v2125 = vxor.u32 %v2116, 2147483648
        %v2126 = vsel %vm2124, %v2125, %v2117
        %v2127 = vsel %vm2120, %v2123, %v2126
        %v2128 = vsel %vm2118, nan, %v2127
        %2129 = vst [vmem:[#allocation2] sm:$0xff] %v576
        %2130 = vst [vmem:[#allocation2 + $0x8] sm:$0xff] %v680
        %2131 = vst [vmem:[#allocation2 + $0x10] sm:$0xff] %v784
        %2132 = vst [vmem:[#allocation2 + $0x18] sm:$0xff] %v888
        %2133 = vst [vmem:[#allocation2 + $0x20] sm:$0xff] %v992
        %2134 = vst [vmem:[#allocation2 + $0x28] sm:$0xff] %v1096
        %2135 = vst [vmem:[#allocation2 + $0x30] sm:$0xff] %v1200
        %2136 = vst [vmem:[#allocation2 + $0x38] sm:$0xff] %v1304
        %2137 = vst [vmem:[#allocation2 + $0x40] sm:$0xff] %v1407
        %2138 = vst [vmem:[#allocation2 + $0x48] sm:$0xff] %v1510
        %2139 = vst [vmem:[#allocation2 + $0x50] sm:$0xff] %v1613
        %2140 = vst [vmem:[#allocation2 + $0x58] sm:$0xff] %v1716
        %2141 = vst [vmem:[#allocation2 + $0x60] sm:$0xff] %v1819
        %2142 = vst [vmem:[#allocation2 + $0x68] sm:$0xff] %v1922
        %2143 = vst [vmem:[#allocation2 + $0x70] sm:$0xff] %v2025
        %2144 = vst [vmem:[#allocation2 + $0x78] sm:$0xff] %v2128
        %v2145 = vmul.f32 %v576, 2.0
        %v2146 = vmul.f32 %v680, 2.0
        %v2147 = vmul.f32 %v784, 2.0
        %v2148 = vmul.f32 %v888, 2.0
        %v2149 = vmul.f32 %v992, 2.0
        %v2150 = vmul.f32 %v1096, 2.0
        %v2151 = vmul.f32 %v1200, 2.0
        %v2152 = vmul.f32 %v1304, 2.0
        %v2153 = vmul.f32 %v2145, %v1407
        %v2154 = vmul.f32 %v2146, %v1510
        %v2155 = vmul.f32 %v2147, %v1613
        %v2156 = vmul.f32 %v2148, %v1716
        %v2157 = vmul.f32 %v2149, %v1819
        %v2158 = vmul.f32 %v2150, %v1922
        %v2159 = vmul.f32 %v2151, %v2025
        %v2160 = vmul.f32 %v2152, %v2128
        %v2161 = vmul.f32 %v2145, %v576
        %v2162 = vmul.f32 %v2146, %v680
        %v2163 = vmul.f32 %v2147, %v784
        %v2164 = vmul.f32 %v2148, %v888
        %v2165 = vmul.f32 %v2149, %v992
        %v2166 = vmul.f32 %v2150, %v1096
        %v2167 = vmul.f32 %v2151, %v1200
        %v2168 = vmul.f32 %v2152, %v1304
        %v2169 = vsub.f32 1.0, %v2161
        %v2170 = vsub.f32 1.0, %v2162
        %v2171 = vsub.f32 1.0, %v2163
        %v2172 = vsub.f32 1.0, %v2164
        %v2173 = vsub.f32 1.0, %v2165
        %v2174 = vsub.f32 1.0, %v2166
        %v2175 = vsub.f32 1.0, %v2167
        %v2176 = vsub.f32 1.0, %v2168
        %2177 = vst [vmem:[#allocation2 + $0x80] sm:$0xff] %v2153
        %2178 = vst [vmem:[#allocation2 + $0x88] sm:$0xff] %v2154
        %2179 = vst [vmem:[#allocation2 + $0x90] sm:$0xff] %v2155
        %2180 = vst [vmem:[#allocation2 + $0x98] sm:$0xff] %v2156
        %2181 = vst [vmem:[#allocation2 + $0xa0] sm:$0xff] %v2157
        %2182 = vst [vmem:[#allocation2 + $0xa8] sm:$0xff] %v2158
        %2183 = vst [vmem:[#allocation2 + $0xb0] sm:$0xff] %v2159
        %2184 = vst [vmem:[#allocation2 + $0xb8] sm:$0xff] %v2160
        %2185 = vst [vmem:[#allocation2 + $0xc0] sm:$0xff] %v2169
        %2186 = vst [vmem:[#allocation2 + $0xc8] sm:$0xff] %v2170
        %2187 = vst [vmem:[#allocation2 + $0xd0] sm:$0xff] %v2171
        %2188 = vst [vmem:[#allocation2 + $0xd8] sm:$0xff] %v2172
        %2189 = vst [vmem:[#allocation2 + $0xe0] sm:$0xff] %v2173
        %2190 = vst [vmem:[#allocation2 + $0xe8] sm:$0xff] %v2174
        %2191 = vst [vmem:[#allocation2 + $0xf0] sm:$0xff] %v2175
        %2192 = vst [vmem:[#allocation2 + $0xf8] sm:$0xff] %v2176
        %v2193 = vmul.f32 %v2153, 2.0
        %v2194 = vmul.f32 %v2154, 2.0
        %v2195 = vmul.f32 %v2155, 2.0
        %v2196 = vmul.f32 %v2156, 2.0
        %v2197 = vmul.f32 %v2157, 2.0
        %v2198 = vmul.f32 %v2158, 2.0
        %v2199 = vmul.f32 %v2159, 2.0
        %v2200 = vmul.f32 %v2160, 2.0
        %v2201 = vmul.f32 %v2193, %v2169
        %v2202 = vmul.f32 %v2194, %v2170
        %v2203 = vmul.f32 %v2195, %v2171
        %v2204 = vmul.f32 %v2196, %v2172
        %v2205 = vmul.f32 %v2197, %v2173
        %v2206 = vmul.f32 %v2198, %v2174
        %v2207 = vmul.f32 %v2199, %v2175
        %v2208 = vmul.f32 %v2200, %v2176
        %v2209 = vmul.f32 %v2193, %v2153
        %v2210 = vmul.f32 %v2194, %v2154
        %v2211 = vmul.f32 %v2195, %v2155
        %v2212 = vmul.f32 %v2196, %v2156
        %v2213 = vmul.f32 %v2197, %v2157
        %v2214 = vmul.f32 %v2198, %v2158
        %v2215 = vmul.f32 %v2199, %v2159
        %v2216 = vmul.f32 %v2200, %v2160
        %v2217 = vsub.f32 1.0, %v2209
        %v2218 = vsub.f32 1.0, %v2210
        %v2219 = vsub.f32 1.0, %v2211
        %v2220 = vsub.f32 1.0, %v2212
        %v2221 = vsub.f32 1.0, %v2213
        %v2222 = vsub.f32 1.0, %v2214
        %v2223 = vsub.f32 1.0, %v2215
        %v2224 = vsub.f32 1.0, %v2216
        %2225 = vst [vmem:[#allocation2 + $0x100] sm:$0xff] %v2201
        %2226 = vst [vmem:[#allocation2 + $0x108] sm:$0xff] %v2202
        %2227 = vst [vmem:[#allocation2 + $0x110] sm:$0xff] %v2203
        %2228 = vst [vmem:[#allocation2 + $0x118] sm:$0xff] %v2204
        %2229 = vst [vmem:[#allocation2 + $0x120] sm:$0xff] %v2205
        %2230 = vst [vmem:[#allocation2 + $0x128] sm:$0xff] %v2206
        %2231 = vst [vmem:[#allocation2 + $0x130] sm:$0xff] %v2207
        %2232 = vst [vmem:[#allocation2 + $0x138] sm:$0xff] %v2208
        %2233 = vst [vmem:[#allocation2 + $0x140] sm:$0xff] %v2217
        %2234 = vst [vmem:[#allocation2 + $0x148] sm:$0xff] %v2218
        %2235 = vst [vmem:[#allocation2 + $0x150] sm:$0xff] %v2219
        %2236 = vst [vmem:[#allocation2 + $0x158] sm:$0xff] %v2220
        %2237 = vst [vmem:[#allocation2 + $0x160] sm:$0xff] %v2221
        %2238 = vst [vmem:[#allocation2 + $0x168] sm:$0xff] %v2222
        %2239 = vst [vmem:[#allocation2 + $0x170] sm:$0xff] %v2223
        %2240 = vst [vmem:[#allocation2 + $0x178] sm:$0xff] %v2224
        %v2241 = vmul.f32 %v2201, 2.0
        %v2242 = vmul.f32 %v2202, 2.0
        %v2243 = vmul.f32 %v2203, 2.0
        %v2244 = vmul.f32 %v2204, 2.0
        %v2245 = vmul.f32 %v2205, 2.0
        %v2246 = vmul.f32 %v2206, 2.0
        %v2247 = vmul.f32 %v2207, 2.0
        %v2248 = vmul.f32 %v2208, 2.0
        %v2249 = vmul.f32 %v2241, %v2217
        %v2250 = vmul.f32 %v2242, %v2218
        %v2251 = vmul.f32 %v2243, %v2219
        %v2252 = vmul.f32 %v2244, %v2220
        %v2253 = vmul.f32 %v2245, %v2221
        %v2254 = vmul.f32 %v2246, %v2222
        %v2255 = vmul.f32 %v2247, %v2223
        %v2256 = vmul.f32 %v2248, %v2224
        %v2257 = vmul.f32 %v2241, %v2201
        %v2258 = vmul.f32 %v2242, %v2202
        %v2259 = vmul.f32 %v2243, %v2203
        %v2260 = vmul.f32 %v2244, %v2204
        %v2261 = vmul.f32 %v2245, %v2205
        %v2262 = vmul.f32 %v2246, %v2206
        %v2263 = vmul.f32 %v2247, %v2207
        %v2264 = vmul.f32 %v2248, %v2208
        %v2265 = vsub.f32 1.0, %v2257
        %v2266 = vsub.f32 1.0, %v2258
        %v2267 = vsub.f32 1.0, %v2259
        %v2268 = vsub.f32 1.0, %v2260
        %v2269 = vsub.f32 1.0, %v2261
        %v2270 = vsub.f32 1.0, %v2262
        %v2271 = vsub.f32 1.0, %v2263
        %v2272 = vsub.f32 1.0, %v2264
        %2273 = vst [vmem:[#allocation2 + $0x180] sm:$0xff] %v2249
        %2274 = vst [vmem:[#allocation2 + $0x188] sm:$0xff] %v2250
        %2275 = vst [vmem:[#allocation2 + $0x190] sm:$0xff] %v2251
        %2276 = vst [vmem:[#allocation2 + $0x198] sm:$0xff] %v2252
        %2277 = vst [vmem:[#allocation2 + $0x1a0] sm:$0xff] %v2253
        %2278 = vst [vmem:[#allocation2 + $0x1a8] sm:$0xff] %v2254
        %2279 = vst [vmem:[#allocation2 + $0x1b0] sm:$0xff] %v2255
        %2280 = vst [vmem:[#allocation2 + $0x1b8] sm:$0xff] %v2256
        %2281 = vst [vmem:[#allocation2 + $0x1c0] sm:$0xff] %v2265
        %2282 = vst [vmem:[#allocation2 + $0x1c8] sm:$0xff] %v2266
        %2283 = vst [vmem:[#allocation2 + $0x1d0] sm:$0xff] %v2267
        %2284 = vst [vmem:[#allocation2 + $0x1d8] sm:$0xff] %v2268
        %2285 = vst [vmem:[#allocation2 + $0x1e0] sm:$0xff] %v2269
        %2286 = vst [vmem:[#allocation2 + $0x1e8] sm:$0xff] %v2270
        %2287 = vst [vmem:[#allocation2 + $0x1f0] sm:$0xff] %v2271
        %2288 = vst [vmem:[#allocation2 + $0x1f8] sm:$0xff] %v2272
        %v2289 = vmul.f32 %v465, 16.0
        %v2290 = vmul.f32 %v466, 16.0
        %v2291 = vmul.f32 %v467, 16.0
        %v2292 = vmul.f32 %v468, 16.0
        %v2293 = vmul.f32 %v469, 16.0
        %v2294 = vmul.f32 %v470, 16.0
        %v2295 = vmul.f32 %v471, 16.0
        %v2296 = vmul.f32 %v472, 16.0
        %v2297 = vand.u32 2147483647, %v2289
        %vm2298 = vcmp.le.f32.partialorder %v2297, 0.7853982
        %vm2299 = vcmp.lt.s32.totalorder %v2289, 0
        %v2300 = vand.u32 %v2289, 2139095040
        %v2301 = vshrl.u32 %v2300, 23
        %v2302 = vsub.s32 %v2301, 127
        %v2303 = vand.u32 2147483647, %v2289
        %v2304 = vand.u32 %v2303, 8388607
        %v2305 = vor.u32 %v2304, 8388608
        %v2306 = vsub.s32 0, %v2305
        %v2307 = vadd.s32 %v2302, 1
        %vm2308 = vcmp.gt.s32.totalorder %v2307, 0
        %v2309 = vsel %vm2308, %v2307, 0
        %v2310 = vshrl.u32 %v2309, 5
        %v2311 = vand.u32 %v2309, 31
        %v2312 = vsub.s32 32, %v2311
        %v2313 = vshrl.u32 683565275, %v2312
        %v2314 = vshll.u32 683565275, %v2311
        %v2315 = vshrl.u32 2475754826, %v2312
        %v2316 = vor.u32 %v2314, %v2315
        %v2317 = vshll.u32 2475754826, %v2311
        %v2318 = vshrl.u32 2131351028, %v2312
        %v2319 = vor.u32 %v2317, %v2318
        %v2320 = vshll.u32 2131351028, %v2311
        %v2321 = vshrl.u32 2102212464, %v2312
        %v2322 = vor.u32 %v2320, %v2321
        %v2323 = vshll.u32 2102212464, %v2311
        %v2324 = vshrl.u32 920167782, %v2312
        %v2325 = vor.u32 %v2323, %v2324
        %v2326 = vshll.u32 920167782, %v2311
        %v2327 = vshrl.u32 1326507024, %v2312
        %v2328 = vor.u32 %v2326, %v2327
        %vm2329 = vcmp.lt.s32.totalorder %v2310, 1
        %vm2330 = vcmp.lt.s32.totalorder %v2310, 2
        %vm2331 = vcmp.lt.s32.totalorder %v2310, 3
        %vm2332 = vcmp.lt.s32.totalorder %v2310, 4
        %v2333 = vsel %vm2329, %v2313, %v2316
        %v2334 = vsel %vm2332, %v2322, 2102212464
        %v2335 = vsel %vm2331, %v2319, %v2334
        %v2336 = vsel %vm2330, %v2333, %v2335
        %v2337 = vsel %vm2329, %v2316, %v2319
        %v2338 = vsel %vm2332, %v2325, 920167782
        %v2339 = vsel %vm2331, %v2322, %v2338
        %v2340 = vsel %vm2330, %v2337, %v2339
        %v2341 = vsel %vm2329, %v2319, %v2322
        %v2342 = vsel %vm2332, %v2328, 1326507024
        %v2343 = vsel %vm2331, %v2325, %v2342
        %v2344 = vsel %vm2330, %v2341, %v2343
        %v2345 = vshll.u32 %v2305, 8
        %v2346 = vmul.u32.u64.compose %v2345, %v2344
        %v2347 = vextract.low.u32 %v2346
        %v2348 = vextract.high.u32 %v2346
        %v2349 = vmul.u32.u64.compose %v2345, %v2340
        %v2350 = vextract.low.u32 %v2349
        %v2351 = vextract.high.u32 %v2349
        %v2352 = vmul.u32 %v2345, %v2336
        %v2353 = vadd.s32 %v2348, %v2350
        %vm2354 = vc.u32 %v2348, %v2350
        %v2355 = vadd.s32 %v2351, 1
        %v2356 = vsel %vm2354, %v2355, %v2351
        %v2357 = vadd.s32 %v2352, %v2356
        %v2358 = vadd.s32 %v2357, 536870912
        %v2359 = vshrl.u32 %v2358, 30
        %v2360 = vshll.u32 %v2359, 30
        %v2361 = vsub.s32 %v2357, %v2360
        %vm2362 = vcmp.lt.s32.totalorder %v2361, 0
        %v2363 = vsub.s32 0, %v2361
        %v2364 = vsel %vm2362, %v2363, %v2361
        %v2365 = vclz %v2364
        %v2366 = vsub.s32 %v2365, 2
        %vm2367 = vcmp.gt.s32.totalorder 0, %v2366
        %v2368 = vsel %vm2367, 0, %v2366
        %v2369 = vsub.s32 32, %v2368
        %v2370 = vshll.u32 %v2361, %v2368
        %v2371 = vshrl.u32 %v2353, %v2369
        %v2372 = vor.u32 %v2370, %v2371
        %v2373 = vsub.s32 4294967266, %v2368
        %v2374 = vadd.s32 %v2373, 127
        %v2375 = vshll.u32 %v2374, 23
        %v2376 = vor.u32 4788187, %v2375
        %v2377 = vand.u32 2147483647, %v2376
        %v2379 = vcvt.s32.f32 %v2372
        %v2380 = vmul.f32 %v2379, %v2377
        %v2381 = vxor.u32 %v2380, 2147483648
        %v2382 = vsel %vm2299, %v2381, %v2380
        %v2383 = vsub.s32 4, %v2359
        %v2384 = vsel %vm2299, %v2383, %v2359
        %v2385 = vsel %vm2298, %v2289, %v2382
        %v2386 = vsel %vm2298, 0, %v2384
        %v2387 = vcosq.f32.pop %v2385
        %v2388 = vsinq.f32.pop %v2385
        %vm2389 = vweird.f32 %v2289
        %v2390 = vadd.s32 %v2386, 3
        %v2391 = vand.u32 %v2390, 3
        %vm2392 = vcmp.lt.s32.totalorder %v2391, 2
        %vm2393 = vcmp.eq.s32.totalorder %v2391, 0
        %v2394 = vxor.u32 %v2388, 2147483648
        %v2395 = vsel %vm2393, %v2387, %v2394
        %vm2396 = vcmp.eq.s32.totalorder %v2391, 2
        %v2397 = vxor.u32 %v2387, 2147483648
        %v2398 = vsel %vm2396, %v2397, %v2388
        %v2399 = vsel %vm2392, %v2395, %v2398
        %v2400 = vsel %vm2389, nan, %v2399
        %v2401 = vand.u32 2147483647, %v2290
        %vm2402 = vcmp.le.f32.partialorder %v2401, 0.7853982
        %vm2403 = vcmp.lt.s32.totalorder %v2290, 0
        %v2404 = vand.u32 %v2290, 2139095040
        %v2405 = vshrl.u32 %v2404, 23
        %v2406 = vsub.s32 %v2405, 127
        %v2407 = vand.u32 2147483647, %v2290
        %v2408 = vand.u32 %v2407, 8388607
        %v2409 = vor.u32 %v2408, 8388608
        %v2410 = vsub.s32 0, %v2409
        %v2411 = vadd.s32 %v2406, 1
        %vm2412 = vcmp.gt.s32.totalorder %v2411, 0
        %v2413 = vsel %vm2412, %v2411, 0
        %v2414 = vshrl.u32 %v2413, 5
        %v2415 = vand.u32 %v2413, 31
        %v2416 = vsub.s32 32, %v2415
        %v2417 = vshrl.u32 683565275, %v2416
        %v2418 = vshll.u32 683565275, %v2415
        %v2419 = vshrl.u32 2475754826, %v2416
        %v2420 = vor.u32 %v2418, %v2419
        %v2421 = vshll.u32 2475754826, %v2415
        %v2422 = vshrl.u32 2131351028, %v2416
        %v2423 = vor.u32 %v2421, %v2422
        %v2424 = vshll.u32 2131351028, %v2415
        %v2425 = vshrl.u32 2102212464, %v2416
        %v2426 = vor.u32 %v2424, %v2425
        %v2427 = vshll.u32 2102212464, %v2415
        %v2428 = vshrl.u32 920167782, %v2416
        %v2429 = vor.u32 %v2427, %v2428
        %v2430 = vshll.u32 920167782, %v2415
        %v2431 = vshrl.u32 1326507024, %v2416
        %v2432 = vor.u32 %v2430, %v2431
        %vm2433 = vcmp.lt.s32.totalorder %v2414, 1
        %vm2434 = vcmp.lt.s32.totalorder %v2414, 2
        %vm2435 = vcmp.lt.s32.totalorder %v2414, 3
        %vm2436 = vcmp.lt.s32.totalorder %v2414, 4
        %v2437 = vsel %vm2433, %v2417, %v2420
        %v2438 = vsel %vm2436, %v2426, 2102212464
        %v2439 = vsel %vm2435, %v2423, %v2438
        %v2440 = vsel %vm2434, %v2437, %v2439
        %v2441 = vsel %vm2433, %v2420, %v2423
        %v2442 = vsel %vm2436, %v2429, 920167782
        %v2443 = vsel %vm2435, %v2426, %v2442
        %v2444 = vsel %vm2434, %v2441, %v2443
        %v2445 = vsel %vm2433, %v2423, %v2426
        %v2446 = vsel %vm2436, %v2432, 1326507024
        %v2447 = vsel %vm2435, %v2429, %v2446
        %v2448 = vsel %vm2434, %v2445, %v2447
        %v2449 = vshll.u32 %v2409, 8
        %v2450 = vmul.u32.u64.compose %v2449, %v2448
        %v2451 = vextract.low.u32 %v2450
        %v2452 = vextract.high.u32 %v2450
        %v2453 = vmul.u32.u64.compose %v2449, %v2444
        %v2454 = vextract.low.u32 %v2453
        %v2455 = vextract.high.u32 %v2453
        %v2456 = vmul.u32 %v2449, %v2440
        %v2457 = vadd.s32 %v2452, %v2454
        %vm2458 = vc.u32 %v2452, %v2454
        %v2459 = vadd.s32 %v2455, 1
        %v2460 = vsel %vm2458, %v2459, %v2455
        %v2461 = vadd.s32 %v2456, %v2460
        %v2462 = vadd.s32 %v2461, 536870912
        %v2463 = vshrl.u32 %v2462, 30
        %v2464 = vshll.u32 %v2463, 30
        %v2465 = vsub.s32 %v2461, %v2464
        %vm2466 = vcmp.lt.s32.totalorder %v2465, 0
        %v2467 = vsub.s32 0, %v2465
        %v2468 = vsel %vm2466, %v2467, %v2465
        %v2469 = vclz %v2468
        %v2470 = vsub.s32 %v2469, 2
        %vm2471 = vcmp.gt.s32.totalorder 0, %v2470
        %v2472 = vsel %vm2471, 0, %v2470
        %v2473 = vsub.s32 32, %v2472
        %v2474 = vshll.u32 %v2465, %v2472
        %v2475 = vshrl.u32 %v2457, %v2473
        %v2476 = vor.u32 %v2474, %v2475
        %v2477 = vsub.s32 4294967266, %v2472
        %v2478 = vadd.s32 %v2477, 127
        %v2479 = vshll.u32 %v2478, 23
        %v2480 = vor.u32 4788187, %v2479
        %v2481 = vand.u32 2147483647, %v2480
        %v2483 = vcvt.s32.f32 %v2476
        %v2484 = vmul.f32 %v2483, %v2481
        %v2485 = vxor.u32 %v2484, 2147483648
        %v2486 = vsel %vm2403, %v2485, %v2484
        %v2487 = vsub.s32 4, %v2463
        %v2488 = vsel %vm2403, %v2487, %v2463
        %v2489 = vsel %vm2402, %v2290, %v2486
        %v2490 = vsel %vm2402, 0, %v2488
        %v2491 = vcosq.f32.pop %v2489
        %v2492 = vsinq.f32.pop %v2489
        %vm2493 = vweird.f32 %v2290
        %v2494 = vadd.s32 %v2490, 3
        %v2495 = vand.u32 %v2494, 3
        %vm2496 = vcmp.lt.s32.totalorder %v2495, 2
        %vm2497 = vcmp.eq.s32.totalorder %v2495, 0
        %v2498 = vxor.u32 %v2492, 2147483648
        %v2499 = vsel %vm2497, %v2491, %v2498
        %vm2500 = vcmp.eq.s32.totalorder %v2495, 2
        %v2501 = vxor.u32 %v2491, 2147483648
        %v2502 = vsel %vm2500, %v2501, %v2492
        %v2503 = vsel %vm2496, %v2499, %v2502
        %v2504 = vsel %vm2493, nan, %v2503
        %v2505 = vand.u32 2147483647, %v2291
        %vm2506 = vcmp.le.f32.partialorder %v2505, 0.7853982
        %vm2507 = vcmp.lt.s32.totalorder %v2291, 0
        %v2508 = vand.u32 %v2291, 2139095040
        %v2509 = vshrl.u32 %v2508, 23
        %v2510 = vsub.s32 %v2509, 127
        %v2511 = vand.u32 2147483647, %v2291
        %v2512 = vand.u32 %v2511, 8388607
        %v2513 = vor.u32 %v2512, 8388608
        %v2514 = vsub.s32 0, %v2513
        %v2515 = vadd.s32 %v2510, 1
        %vm2516 = vcmp.gt.s32.totalorder %v2515, 0
        %v2517 = vsel %vm2516, %v2515, 0
        %v2518 = vshrl.u32 %v2517, 5
        %v2519 = vand.u32 %v2517, 31
        %v2520 = vsub.s32 32, %v2519
        %v2521 = vshrl.u32 683565275, %v2520
        %v2522 = vshll.u32 683565275, %v2519
        %v2523 = vshrl.u32 2475754826, %v2520
        %v2524 = vor.u32 %v2522, %v2523
        %v2525 = vshll.u32 2475754826, %v2519
        %v2526 = vshrl.u32 2131351028, %v2520
        %v2527 = vor.u32 %v2525, %v2526
        %v2528 = vshll.u32 2131351028, %v2519
        %v2529 = vshrl.u32 2102212464, %v2520
        %v2530 = vor.u32 %v2528, %v2529
        %v2531 = vshll.u32 2102212464, %v2519
        %v2532 = vshrl.u32 920167782, %v2520
        %v2533 = vor.u32 %v2531, %v2532
        %v2534 = vshll.u32 920167782, %v2519
        %v2535 = vshrl.u32 1326507024, %v2520
        %v2536 = vor.u32 %v2534, %v2535
        %vm2537 = vcmp.lt.s32.totalorder %v2518, 1
        %vm2538 = vcmp.lt.s32.totalorder %v2518, 2
        %vm2539 = vcmp.lt.s32.totalorder %v2518, 3
        %vm2540 = vcmp.lt.s32.totalorder %v2518, 4
        %v2541 = vsel %vm2537, %v2521, %v2524
        %v2542 = vsel %vm2540, %v2530, 2102212464
        %v2543 = vsel %vm2539, %v2527, %v2542
        %v2544 = vsel %vm2538, %v2541, %v2543
        %v2545 = vsel %vm2537, %v2524, %v2527
        %v2546 = vsel %vm2540, %v2533, 920167782
        %v2547 = vsel %vm2539, %v2530, %v2546
        %v2548 = vsel %vm2538, %v2545, %v2547
        %v2549 = vsel %vm2537, %v2527, %v2530
        %v2550 = vsel %vm2540, %v2536, 1326507024
        %v2551 = vsel %vm2539, %v2533, %v2550
        %v2552 = vsel %vm2538, %v2549, %v2551
        %v2553 = vshll.u32 %v2513, 8
        %v2554 = vmul.u32.u64.compose %v2553, %v2552
        %v2555 = vextract.low.u32 %v2554
        %v2556 = vextract.high.u32 %v2554
        %v2557 = vmul.u32.u64.compose %v2553, %v2548
        %v2558 = vextract.low.u32 %v2557
        %v2559 = vextract.high.u32 %v2557
        %v2560 = vmul.u32 %v2553, %v2544
        %v2561 = vadd.s32 %v2556, %v2558
        %vm2562 = vc.u32 %v2556, %v2558
        %v2563 = vadd.s32 %v2559, 1
        %v2564 = vsel %vm2562, %v2563, %v2559
        %v2565 = vadd.s32 %v2560, %v2564
        %v2566 = vadd.s32 %v2565, 536870912
        %v2567 = vshrl.u32 %v2566, 30
        %v2568 = vshll.u32 %v2567, 30
        %v2569 = vsub.s32 %v2565, %v2568
        %vm2570 = vcmp.lt.s32.totalorder %v2569, 0
        %v2571 = vsub.s32 0, %v2569
        %v2572 = vsel %vm2570, %v2571, %v2569
        %v2573 = vclz %v2572
        %v2574 = vsub.s32 %v2573, 2
        %vm2575 = vcmp.gt.s32.totalorder 0, %v2574
        %v2576 = vsel %vm2575, 0, %v2574
        %v2577 = vsub.s32 32, %v2576
        %v2578 = vshll.u32 %v2569, %v2576
        %v2579 = vshrl.u32 %v2561, %v2577
        %v2580 = vor.u32 %v2578, %v2579
        %v2581 = vsub.s32 4294967266, %v2576
        %v2582 = vadd.s32 %v2581, 127
        %v2583 = vshll.u32 %v2582, 23
        %v2584 = vor.u32 4788187, %v2583
        %v2585 = vand.u32 2147483647, %v2584
        %v2587 = vcvt.s32.f32 %v2580
        %v2588 = vmul.f32 %v2587, %v2585
        %v2589 = vxor.u32 %v2588, 2147483648
        %v2590 = vsel %vm2507, %v2589, %v2588
        %v2591 = vsub.s32 4, %v2567
        %v2592 = vsel %vm2507, %v2591, %v2567
        %v2593 = vsel %vm2506, %v2291, %v2590
        %v2594 = vsel %vm2506, 0, %v2592
        %v2595 = vcosq.f32.pop %v2593
        %v2596 = vsinq.f32.pop %v2593
        %vm2597 = vweird.f32 %v2291
        %v2598 = vadd.s32 %v2594, 3
        %v2599 = vand.u32 %v2598, 3
        %vm2600 = vcmp.lt.s32.totalorder %v2599, 2
        %vm2601 = vcmp.eq.s32.totalorder %v2599, 0
        %v2602 = vxor.u32 %v2596, 2147483648
        %v2603 = vsel %vm2601, %v2595, %v2602
        %vm2604 = vcmp.eq.s32.totalorder %v2599, 2
        %v2605 = vxor.u32 %v2595, 2147483648
        %v2606 = vsel %vm2604, %v2605, %v2596
        %v2607 = vsel %vm2600, %v2603, %v2606
        %v2608 = vsel %vm2597, nan, %v2607
        %v2609 = vand.u32 2147483647, %v2292
        %vm2610 = vcmp.le.f32.partialorder %v2609, 0.7853982
        %vm2611 = vcmp.lt.s32.totalorder %v2292, 0
        %v2612 = vand.u32 %v2292, 2139095040
        %v2613 = vshrl.u32 %v2612, 23
        %v2614 = vsub.s32 %v2613, 127
        %v2615 = vand.u32 2147483647, %v2292
        %v2616 = vand.u32 %v2615, 8388607
        %v2617 = vor.u32 %v2616, 8388608
        %v2618 = vsub.s32 0, %v2617
        %v2619 = vadd.s32 %v2614, 1
        %vm2620 = vcmp.gt.s32.totalorder %v2619, 0
        %v2621 = vsel %vm2620, %v2619, 0
        %v2622 = vshrl.u32 %v2621, 5
        %v2623 = vand.u32 %v2621, 31
        %v2624 = vsub.s32 32, %v2623
        %v2625 = vshrl.u32 683565275, %v2624
        %v2626 = vshll.u32 683565275, %v2623
        %v2627 = vshrl.u32 2475754826, %v2624
        %v2628 = vor.u32 %v2626, %v2627
        %v2629 = vshll.u32 2475754826, %v2623
        %v2630 = vshrl.u32 2131351028, %v2624
        %v2631 = vor.u32 %v2629, %v2630
        %v2632 = vshll.u32 2131351028, %v2623
        %v2633 = vshrl.u32 2102212464, %v2624
        %v2634 = vor.u32 %v2632, %v2633
        %v2635 = vshll.u32 2102212464, %v2623
        %v2636 = vshrl.u32 920167782, %v2624
        %v2637 = vor.u32 %v2635, %v2636
        %v2638 = vshll.u32 920167782, %v2623
        %v2639 = vshrl.u32 1326507024, %v2624
        %v2640 = vor.u32 %v2638, %v2639
        %vm2641 = vcmp.lt.s32.totalorder %v2622, 1
        %vm2642 = vcmp.lt.s32.totalorder %v2622, 2
        %vm2643 = vcmp.lt.s32.totalorder %v2622, 3
        %vm2644 = vcmp.lt.s32.totalorder %v2622, 4
        %v2645 = vsel %vm2641, %v2625, %v2628
        %v2646 = vsel %vm2644, %v2634, 2102212464
        %v2647 = vsel %vm2643, %v2631, %v2646
        %v2648 = vsel %vm2642, %v2645, %v2647
        %v2649 = vsel %vm2641, %v2628, %v2631
        %v2650 = vsel %vm2644, %v2637, 920167782
        %v2651 = vsel %vm2643, %v2634, %v2650
        %v2652 = vsel %vm2642, %v2649, %v2651
        %v2653 = vsel %vm2641, %v2631, %v2634
        %v2654 = vsel %vm2644, %v2640, 1326507024
        %v2655 = vsel %vm2643, %v2637, %v2654
        %v2656 = vsel %vm2642, %v2653, %v2655
        %v2657 = vshll.u32 %v2617, 8
        %v2658 = vmul.u32.u64.compose %v2657, %v2656
        %v2659 = vextract.low.u32 %v2658
        %v2660 = vextract.high.u32 %v2658
        %v2661 = vmul.u32.u64.compose %v2657, %v2652
        %v2662 = vextract.low.u32 %v2661
        %v2663 = vextract.high.u32 %v2661
        %v2664 = vmul.u32 %v2657, %v2648
        %v2665 = vadd.s32 %v2660, %v2662
        %vm2666 = vc.u32 %v2660, %v2662
        %v2667 = vadd.s32 %v2663, 1
        %v2668 = vsel %vm2666, %v2667, %v2663
        %v2669 = vadd.s32 %v2664, %v2668
        %v2670 = vadd.s32 %v2669, 536870912
        %v2671 = vshrl.u32 %v2670, 30
        %v2672 = vshll.u32 %v2671, 30
        %v2673 = vsub.s32 %v2669, %v2672
        %vm2674 = vcmp.lt.s32.totalorder %v2673, 0
        %v2675 = vsub.s32 0, %v2673
        %v2676 = vsel %vm2674, %v2675, %v2673
        %v2677 = vclz %v2676
        %v2678 = vsub.s32 %v2677, 2
        %vm2679 = vcmp.gt.s32.totalorder 0, %v2678
        %v2680 = vsel %vm2679, 0, %v2678
        %v2681 = vsub.s32 32, %v2680
        %v2682 = vshll.u32 %v2673, %v2680
        %v2683 = vshrl.u32 %v2665, %v2681
        %v2684 = vor.u32 %v2682, %v2683
        %v2685 = vsub.s32 4294967266, %v2680
        %v2686 = vadd.s32 %v2685, 127
        %v2687 = vshll.u32 %v2686, 23
        %v2688 = vor.u32 4788187, %v2687
        %v2689 = vand.u32 2147483647, %v2688
        %v2691 = vcvt.s32.f32 %v2684
        %v2692 = vmul.f32 %v2691, %v2689
        %v2693 = vxor.u32 %v2692, 2147483648
        %v2694 = vsel %vm2611, %v2693, %v2692
        %v2695 = vsub.s32 4, %v2671
        %v2696 = vsel %vm2611, %v2695, %v2671
        %v2697 = vsel %vm2610, %v2292, %v2694
        %v2698 = vsel %vm2610, 0, %v2696
        %v2699 = vcosq.f32.pop %v2697
        %v2700 = vsinq.f32.pop %v2697
        %vm2701 = vweird.f32 %v2292
        %v2702 = vadd.s32 %v2698, 3
        %v2703 = vand.u32 %v2702, 3
        %vm2704 = vcmp.lt.s32.totalorder %v2703, 2
        %vm2705 = vcmp.eq.s32.totalorder %v2703, 0
        %v2706 = vxor.u32 %v2700, 2147483648
        %v2707 = vsel %vm2705, %v2699, %v2706
        %vm2708 = vcmp.eq.s32.totalorder %v2703, 2
        %v2709 = vxor.u32 %v2699, 2147483648
        %v2710 = vsel %vm2708, %v2709, %v2700
        %v2711 = vsel %vm2704, %v2707, %v2710
        %v2712 = vsel %vm2701, nan, %v2711
        %v2713 = vand.u32 2147483647, %v2293
        %vm2714 = vcmp.le.f32.partialorder %v2713, 0.7853982
        %vm2715 = vcmp.lt.s32.totalorder %v2293, 0
        %v2716 = vand.u32 %v2293, 2139095040
        %v2717 = vshrl.u32 %v2716, 23
        %v2718 = vsub.s32 %v2717, 127
        %v2719 = vand.u32 2147483647, %v2293
        %v2720 = vand.u32 %v2719, 8388607
        %v2721 = vor.u32 %v2720, 8388608
        %v2722 = vsub.s32 0, %v2721
        %v2723 = vadd.s32 %v2718, 1
        %vm2724 = vcmp.gt.s32.totalorder %v2723, 0
        %v2725 = vsel %vm2724, %v2723, 0
        %v2726 = vshrl.u32 %v2725, 5
        %v2727 = vand.u32 %v2725, 31
        %v2728 = vsub.s32 32, %v2727
        %v2729 = vshrl.u32 683565275, %v2728
        %v2730 = vshll.u32 683565275, %v2727
        %v2731 = vshrl.u32 2475754826, %v2728
        %v2732 = vor.u32 %v2730, %v2731
        %v2733 = vshll.u32 2475754826, %v2727
        %v2734 = vshrl.u32 2131351028, %v2728
        %v2735 = vor.u32 %v2733, %v2734
        %v2736 = vshll.u32 2131351028, %v2727
        %v2737 = vshrl.u32 2102212464, %v2728
        %v2738 = vor.u32 %v2736, %v2737
        %v2739 = vshll.u32 2102212464, %v2727
        %v2740 = vshrl.u32 920167782, %v2728
        %v2741 = vor.u32 %v2739, %v2740
        %v2742 = vshll.u32 920167782, %v2727
        %v2743 = vshrl.u32 1326507024, %v2728
        %v2744 = vor.u32 %v2742, %v2743
        %vm2745 = vcmp.lt.s32.totalorder %v2726, 1
        %vm2746 = vcmp.lt.s32.totalorder %v2726, 2
        %vm2747 = vcmp.lt.s32.totalorder %v2726, 3
        %vm2748 = vcmp.lt.s32.totalorder %v2726, 4
        %v2749 = vsel %vm2745, %v2729, %v2732
        %v2750 = vsel %vm2748, %v2738, 2102212464
        %v2751 = vsel %vm2747, %v2735, %v2750
        %v2752 = vsel %vm2746, %v2749, %v2751
        %v2753 = vsel %vm2745, %v2732, %v2735
        %v2754 = vsel %vm2748, %v2741, 920167782
        %v2755 = vsel %vm2747, %v2738, %v2754
        %v2756 = vsel %vm2746, %v2753, %v2755
        %v2757 = vsel %vm2745, %v2735, %v2738
        %v2758 = vsel %vm2748, %v2744, 1326507024
        %v2759 = vsel %vm2747, %v2741, %v2758
        %v2760 = vsel %vm2746, %v2757, %v2759
        %v2761 = vshll.u32 %v2721, 8
        %v2762 = vmul.u32.u64.compose %v2761, %v2760
        %v2763 = vextract.low.u32 %v2762
        %v2764 = vextract.high.u32 %v2762
        %v2765 = vmul.u32.u64.compose %v2761, %v2756
        %v2766 = vextract.low.u32 %v2765
        %v2767 = vextract.high.u32 %v2765
        %v2768 = vmul.u32 %v2761, %v2752
        %v2769 = vadd.s32 %v2764, %v2766
        %vm2770 = vc.u32 %v2764, %v2766
        %v2771 = vadd.s32 %v2767, 1
        %v2772 = vsel %vm2770, %v2771, %v2767
        %v2773 = vadd.s32 %v2768, %v2772
        %v2774 = vadd.s32 %v2773, 536870912
        %v2775 = vshrl.u32 %v2774, 30
        %v2776 = vshll.u32 %v2775, 30
        %v2777 = vsub.s32 %v2773, %v2776
        %vm2778 = vcmp.lt.s32.totalorder %v2777, 0
        %v2779 = vsub.s32 0, %v2777
        %v2780 = vsel %vm2778, %v2779, %v2777
        %v2781 = vclz %v2780
        %v2782 = vsub.s32 %v2781, 2
        %vm2783 = vcmp.gt.s32.totalorder 0, %v2782
        %v2784 = vsel %vm2783, 0, %v2782
        %v2785 = vsub.s32 32, %v2784
        %v2786 = vshll.u32 %v2777, %v2784
        %v2787 = vshrl.u32 %v2769, %v2785
        %v2788 = vor.u32 %v2786, %v2787
        %v2789 = vsub.s32 4294967266, %v2784
        %v2790 = vadd.s32 %v2789, 127
        %v2791 = vshll.u32 %v2790, 23
        %v2792 = vor.u32 4788187, %v2791
        %v2793 = vand.u32 2147483647, %v2792
        %v2795 = vcvt.s32.f32 %v2788
        %v2796 = vmul.f32 %v2795, %v2793
        %v2797 = vxor.u32 %v2796, 2147483648
        %v2798 = vsel %vm2715, %v2797, %v2796
        %v2799 = vsub.s32 4, %v2775
        %v2800 = vsel %vm2715, %v2799, %v2775
        %v2801 = vsel %vm2714, %v2293, %v2798
        %v2802 = vsel %vm2714, 0, %v2800
        %v2803 = vcosq.f32.pop %v2801
        %v2804 = vsinq.f32.pop %v2801
        %vm2805 = vweird.f32 %v2293
        %v2806 = vadd.s32 %v2802, 3
        %v2807 = vand.u32 %v2806, 3
        %vm2808 = vcmp.lt.s32.totalorder %v2807, 2
        %vm2809 = vcmp.eq.s32.totalorder %v2807, 0
        %v2810 = vxor.u32 %v2804, 2147483648
        %v2811 = vsel %vm2809, %v2803, %v2810
        %vm2812 = vcmp.eq.s32.totalorder %v2807, 2
        %v2813 = vxor.u32 %v2803, 2147483648
        %v2814 = vsel %vm2812, %v2813, %v2804
        %v2815 = vsel %vm2808, %v2811, %v2814
        %v2816 = vsel %vm2805, nan, %v2815
        %v2817 = vand.u32 2147483647, %v2294
        %vm2818 = vcmp.le.f32.partialorder %v2817, 0.7853982
        %vm2819 = vcmp.lt.s32.totalorder %v2294, 0
        %v2820 = vand.u32 %v2294, 2139095040
        %v2821 = vshrl.u32 %v2820, 23
        %v2822 = vsub.s32 %v2821, 127
        %v2823 = vand.u32 2147483647, %v2294
        %v2824 = vand.u32 %v2823, 8388607
        %v2825 = vor.u32 %v2824, 8388608
        %v2826 = vsub.s32 0, %v2825
        %v2827 = vadd.s32 %v2822, 1
        %vm2828 = vcmp.gt.s32.totalorder %v2827, 0
        %v2829 = vsel %vm2828, %v2827, 0
        %v2830 = vshrl.u32 %v2829, 5
        %v2831 = vand.u32 %v2829, 31
        %v2832 = vsub.s32 32, %v2831
        %v2833 = vshrl.u32 683565275, %v2832
        %v2834 = vshll.u32 683565275, %v2831
        %v2835 = vshrl.u32 2475754826, %v2832
        %v2836 = vor.u32 %v2834, %v2835
        %v2837 = vshll.u32 2475754826, %v2831
        %v2838 = vshrl.u32 2131351028, %v2832
        %v2839 = vor.u32 %v2837, %v2838
        %v2840 = vshll.u32 2131351028, %v2831
        %v2841 = vshrl.u32 2102212464, %v2832
        %v2842 = vor.u32 %v2840, %v2841
        %v2843 = vshll.u32 2102212464, %v2831
        %v2844 = vshrl.u32 920167782, %v2832
        %v2845 = vor.u32 %v2843, %v2844
        %v2846 = vshll.u32 920167782, %v2831
        %v2847 = vshrl.u32 1326507024, %v2832
        %v2848 = vor.u32 %v2846, %v2847
        %vm2849 = vcmp.lt.s32.totalorder %v2830, 1
        %vm2850 = vcmp.lt.s32.totalorder %v2830, 2
        %vm2851 = vcmp.lt.s32.totalorder %v2830, 3
        %vm2852 = vcmp.lt.s32.totalorder %v2830, 4
        %v2853 = vsel %vm2849, %v2833, %v2836
        %v2854 = vsel %vm2852, %v2842, 2102212464
        %v2855 = vsel %vm2851, %v2839, %v2854
        %v2856 = vsel %vm2850, %v2853, %v2855
        %v2857 = vsel %vm2849, %v2836, %v2839
        %v2858 = vsel %vm2852, %v2845, 920167782
        %v2859 = vsel %vm2851, %v2842, %v2858
        %v2860 = vsel %vm2850, %v2857, %v2859
        %v2861 = vsel %vm2849, %v2839, %v2842
        %v2862 = vsel %vm2852, %v2848, 1326507024
        %v2863 = vsel %vm2851, %v2845, %v2862
        %v2864 = vsel %vm2850, %v2861, %v2863
        %v2865 = vshll.u32 %v2825, 8
        %v2866 = vmul.u32.u64.compose %v2865, %v2864
        %v2867 = vextract.low.u32 %v2866
        %v2868 = vextract.high.u32 %v2866
        %v2869 = vmul.u32.u64.compose %v2865, %v2860
        %v2870 = vextract.low.u32 %v2869
        %v2871 = vextract.high.u32 %v2869
        %v2872 = vmul.u32 %v2865, %v2856
        %v2873 = vadd.s32 %v2868, %v2870
        %vm2874 = vc.u32 %v2868, %v2870
        %v2875 = vadd.s32 %v2871, 1
        %v2876 = vsel %vm2874, %v2875, %v2871
        %v2877 = vadd.s32 %v2872, %v2876
        %v2878 = vadd.s32 %v2877, 536870912
        %v2879 = vshrl.u32 %v2878, 30
        %v2880 = vshll.u32 %v2879, 30
        %v2881 = vsub.s32 %v2877, %v2880
        %vm2882 = vcmp.lt.s32.totalorder %v2881, 0
        %v2883 = vsub.s32 0, %v2881
        %v2884 = vsel %vm2882, %v2883, %v2881
        %v2885 = vclz %v2884
        %v2886 = vsub.s32 %v2885, 2
        %vm2887 = vcmp.gt.s32.totalorder 0, %v2886
        %v2888 = vsel %vm2887, 0, %v2886
        %v2889 = vsub.s32 32, %v2888
        %v2890 = vshll.u32 %v2881, %v2888
        %v2891 = vshrl.u32 %v2873, %v2889
        %v2892 = vor.u32 %v2890, %v2891
        %v2893 = vsub.s32 4294967266, %v2888
        %v2894 = vadd.s32 %v2893, 127
        %v2895 = vshll.u32 %v2894, 23
        %v2896 = vor.u32 4788187, %v2895
        %v2897 = vand.u32 2147483647, %v2896
        %v2899 = vcvt.s32.f32 %v2892
        %v2900 = vmul.f32 %v2899, %v2897
        %v2901 = vxor.u32 %v2900, 2147483648
        %v2902 = vsel %vm2819, %v2901, %v2900
        %v2903 = vsub.s32 4, %v2879
        %v2904 = vsel %vm2819, %v2903, %v2879
        %v2905 = vsel %vm2818, %v2294, %v2902
        %v2906 = vsel %vm2818, 0, %v2904
        %v2907 = vcosq.f32.pop %v2905
        %v2908 = vsinq.f32.pop %v2905
        %vm2909 = vweird.f32 %v2294
        %v2910 = vadd.s32 %v2906, 3
        %v2911 = vand.u32 %v2910, 3
        %vm2912 = vcmp.lt.s32.totalorder %v2911, 2
        %vm2913 = vcmp.eq.s32.totalorder %v2911, 0
        %v2914 = vxor.u32 %v2908, 2147483648
        %v2915 = vsel %vm2913, %v2907, %v2914
        %vm2916 = vcmp.eq.s32.totalorder %v2911, 2
        %v2917 = vxor.u32 %v2907, 2147483648
        %v2918 = vsel %vm2916, %v2917, %v2908
        %v2919 = vsel %vm2912, %v2915, %v2918
        %v2920 = vsel %vm2909, nan, %v2919
        %v2921 = vand.u32 2147483647, %v2295
        %vm2922 = vcmp.le.f32.partialorder %v2921, 0.7853982
        %vm2923 = vcmp.lt.s32.totalorder %v2295, 0
        %v2924 = vand.u32 %v2295, 2139095040
        %v2925 = vshrl.u32 %v2924, 23
        %v2926 = vsub.s32 %v2925, 127
        %v2927 = vand.u32 2147483647, %v2295
        %v2928 = vand.u32 %v2927, 8388607
        %v2929 = vor.u32 %v2928, 8388608
        %v2930 = vsub.s32 0, %v2929
        %v2931 = vadd.s32 %v2926, 1
        %vm2932 = vcmp.gt.s32.totalorder %v2931, 0
        %v2933 = vsel %vm2932, %v2931, 0
        %v2934 = vshrl.u32 %v2933, 5
        %v2935 = vand.u32 %v2933, 31
        %v2936 = vsub.s32 32, %v2935
        %v2937 = vshrl.u32 683565275, %v2936
        %v2938 = vshll.u32 683565275, %v2935
        %v2939 = vshrl.u32 2475754826, %v2936
        %v2940 = vor.u32 %v2938, %v2939
        %v2941 = vshll.u32 2475754826, %v2935
        %v2942 = vshrl.u32 2131351028, %v2936
        %v2943 = vor.u32 %v2941, %v2942
        %v2944 = vshll.u32 2131351028, %v2935
        %v2945 = vshrl.u32 2102212464, %v2936
        %v2946 = vor.u32 %v2944, %v2945
        %v2947 = vshll.u32 2102212464, %v2935
        %v2948 = vshrl.u32 920167782, %v2936
        %v2949 = vor.u32 %v2947, %v2948
        %v2950 = vshll.u32 920167782, %v2935
        %v2951 = vshrl.u32 1326507024, %v2936
        %v2952 = vor.u32 %v2950, %v2951
        %vm2953 = vcmp.lt.s32.totalorder %v2934, 1
        %vm2954 = vcmp.lt.s32.totalorder %v2934, 2
        %vm2955 = vcmp.lt.s32.totalorder %v2934, 3
        %vm2956 = vcmp.lt.s32.totalorder %v2934, 4
        %v2957 = vsel %vm2953, %v2937, %v2940
        %v2958 = vsel %vm2956, %v2946, 2102212464
        %v2959 = vsel %vm2955, %v2943, %v2958
        %v2960 = vsel %vm2954, %v2957, %v2959
        %v2961 = vsel %vm2953, %v2940, %v2943
        %v2962 = vsel %vm2956, %v2949, 920167782
        %v2963 = vsel %vm2955, %v2946, %v2962
        %v2964 = vsel %vm2954, %v2961, %v2963
        %v2965 = vsel %vm2953, %v2943, %v2946
        %v2966 = vsel %vm2956, %v2952, 1326507024
        %v2967 = vsel %vm2955, %v2949, %v2966
        %v2968 = vsel %vm2954, %v2965, %v2967
        %v2969 = vshll.u32 %v2929, 8
        %v2970 = vmul.u32.u64.compose %v2969, %v2968
        %v2971 = vextract.low.u32 %v2970
        %v2972 = vextract.high.u32 %v2970
        %v2973 = vmul.u32.u64.compose %v2969, %v2964
        %v2974 = vextract.low.u32 %v2973
        %v2975 = vextract.high.u32 %v2973
        %v2976 = vmul.u32 %v2969, %v2960
        %v2977 = vadd.s32 %v2972, %v2974
        %vm2978 = vc.u32 %v2972, %v2974
        %v2979 = vadd.s32 %v2975, 1
        %v2980 = vsel %vm2978, %v2979, %v2975
        %v2981 = vadd.s32 %v2976, %v2980
        %v2982 = vadd.s32 %v2981, 536870912
        %v2983 = vshrl.u32 %v2982, 30
        %v2984 = vshll.u32 %v2983, 30
        %v2985 = vsub.s32 %v2981, %v2984
        %vm2986 = vcmp.lt.s32.totalorder %v2985, 0
        %v2987 = vsub.s32 0, %v2985
        %v2988 = vsel %vm2986, %v2987, %v2985
        %v2989 = vclz %v2988
        %v2990 = vsub.s32 %v2989, 2
        %vm2991 = vcmp.gt.s32.totalorder 0, %v2990
        %v2992 = vsel %vm2991, 0, %v2990
        %v2993 = vsub.s32 32, %v2992
        %v2994 = vshll.u32 %v2985, %v2992
        %v2995 = vshrl.u32 %v2977, %v2993
        %v2996 = vor.u32 %v2994, %v2995
        %v2997 = vsub.s32 4294967266, %v2992
        %v2998 = vadd.s32 %v2997, 127
        %v2999 = vshll.u32 %v2998, 23
        %v3000 = vor.u32 4788187, %v2999
        %v3001 = vand.u32 2147483647, %v3000
        %v3003 = vcvt.s32.f32 %v2996
        %v3004 = vmul.f32 %v3003, %v3001
        %v3005 = vxor.u32 %v3004, 2147483648
        %v3006 = vsel %vm2923, %v3005, %v3004
        %v3007 = vsub.s32 4, %v2983
        %v3008 = vsel %vm2923, %v3007, %v2983
        %v3009 = vsel %vm2922, %v2295, %v3006
        %v3010 = vsel %vm2922, 0, %v3008
        %v3011 = vcosq.f32.pop %v3009
        %v3012 = vsinq.f32.pop %v3009
        %vm3013 = vweird.f32 %v2295
        %v3014 = vadd.s32 %v3010, 3
        %v3015 = vand.u32 %v3014, 3
        %vm3016 = vcmp.lt.s32.totalorder %v3015, 2
        %vm3017 = vcmp.eq.s32.totalorder %v3015, 0
        %v3018 = vxor.u32 %v3012, 2147483648
        %v3019 = vsel %vm3017, %v3011, %v3018
        %vm3020 = vcmp.eq.s32.totalorder %v3015, 2
        %v3021 = vxor.u32 %v3011, 2147483648
        %v3022 = vsel %vm3020, %v3021, %v3012
        %v3023 = vsel %vm3016, %v3019, %v3022
        %v3024 = vsel %vm3013, nan, %v3023
        %v3025 = vand.u32 2147483647, %v2296
        %vm3026 = vcmp.le.f32.partialorder %v3025, 0.7853982
        %vm3027 = vcmp.lt.s32.totalorder %v2296, 0
        %v3028 = vand.u32 %v2296, 2139095040
        %v3029 = vshrl.u32 %v3028, 23
        %v3030 = vsub.s32 %v3029, 127
        %v3031 = vand.u32 2147483647, %v2296
        %v3032 = vand.u32 %v3031, 8388607
        %v3033 = vor.u32 %v3032, 8388608
        %v3034 = vsub.s32 0, %v3033
        %v3035 = vadd.s32 %v3030, 1
        %vm3036 = vcmp.gt.s32.totalorder %v3035, 0
        %v3037 = vsel %vm3036, %v3035, 0
        %v3038 = vshrl.u32 %v3037, 5
        %v3039 = vand.u32 %v3037, 31
        %v3040 = vsub.s32 32, %v3039
        %v3041 = vshrl.u32 683565275, %v3040
        %v3042 = vshll.u32 683565275, %v3039
        %v3043 = vshrl.u32 2475754826, %v3040
        %v3044 = vor.u32 %v3042, %v3043
        %v3045 = vshll.u32 2475754826, %v3039
        %v3046 = vshrl.u32 2131351028, %v3040
        %v3047 = vor.u32 %v3045, %v3046
        %v3048 = vshll.u32 2131351028, %v3039
        %v3049 = vshrl.u32 2102212464, %v3040
        %v3050 = vor.u32 %v3048, %v3049
        %v3051 = vshll.u32 2102212464, %v3039
        %v3052 = vshrl.u32 920167782, %v3040
        %v3053 = vor.u32 %v3051, %v3052
        %v3054 = vshll.u32 920167782, %v3039
        %v3055 = vshrl.u32 1326507024, %v3040
        %v3056 = vor.u32 %v3054, %v3055
        %vm3057 = vcmp.lt.s32.totalorder %v3038, 1
        %vm3058 = vcmp.lt.s32.totalorder %v3038, 2
        %vm3059 = vcmp.lt.s32.totalorder %v3038, 3
        %vm3060 = vcmp.lt.s32.totalorder %v3038, 4
        %v3061 = vsel %vm3057, %v3041, %v3044
        %v3062 = vsel %vm3060, %v3050, 2102212464
        %v3063 = vsel %vm3059, %v3047, %v3062
        %v3064 = vsel %vm3058, %v3061, %v3063
        %v3065 = vsel %vm3057, %v3044, %v3047
        %v3066 = vsel %vm3060, %v3053, 920167782
        %v3067 = vsel %vm3059, %v3050, %v3066
        %v3068 = vsel %vm3058, %v3065, %v3067
        %v3069 = vsel %vm3057, %v3047, %v3050
        %v3070 = vsel %vm3060, %v3056, 1326507024
        %v3071 = vsel %vm3059, %v3053, %v3070
        %v3072 = vsel %vm3058, %v3069, %v3071
        %v3073 = vshll.u32 %v3033, 8
        %v3074 = vmul.u32.u64.compose %v3073, %v3072
        %v3075 = vextract.low.u32 %v3074
        %v3076 = vextract.high.u32 %v3074
        %v3077 = vmul.u32.u64.compose %v3073, %v3068
        %v3078 = vextract.low.u32 %v3077
        %v3079 = vextract.high.u32 %v3077
        %v3080 = vmul.u32 %v3073, %v3064
        %v3081 = vadd.s32 %v3076, %v3078
        %vm3082 = vc.u32 %v3076, %v3078
        %v3083 = vadd.s32 %v3079, 1
        %v3084 = vsel %vm3082, %v3083, %v3079
        %v3085 = vadd.s32 %v3080, %v3084
        %v3086 = vadd.s32 %v3085, 536870912
        %v3087 = vshrl.u32 %v3086, 30
        %v3088 = vshll.u32 %v3087, 30
        %v3089 = vsub.s32 %v3085, %v3088
        %vm3090 = vcmp.lt.s32.totalorder %v3089, 0
        %v3091 = vsub.s32 0, %v3089
        %v3092 = vsel %vm3090, %v3091, %v3089
        %v3093 = vclz %v3092
        %v3094 = vsub.s32 %v3093, 2
        %vm3095 = vcmp.gt.s32.totalorder 0, %v3094
        %v3096 = vsel %vm3095, 0, %v3094
        %v3097 = vsub.s32 32, %v3096
        %v3098 = vshll.u32 %v3089, %v3096
        %v3099 = vshrl.u32 %v3081, %v3097
        %v3100 = vor.u32 %v3098, %v3099
        %v3101 = vsub.s32 4294967266, %v3096
        %v3102 = vadd.s32 %v3101, 127
        %v3103 = vshll.u32 %v3102, 23
        %v3104 = vor.u32 4788187, %v3103
        %v3105 = vand.u32 2147483647, %v3104
        %v3107 = vcvt.s32.f32 %v3100
        %v3108 = vmul.f32 %v3107, %v3105
        %v3109 = vxor.u32 %v3108, 2147483648
        %v3110 = vsel %vm3027, %v3109, %v3108
        %v3111 = vsub.s32 4, %v3087
        %v3112 = vsel %vm3027, %v3111, %v3087
        %v3113 = vsel %vm3026, %v2296, %v3110
        %v3114 = vsel %vm3026, 0, %v3112
        %v3115 = vcosq.f32.pop %v3113
        %v3116 = vsinq.f32.pop %v3113
        %vm3117 = vweird.f32 %v2296
        %v3118 = vadd.s32 %v3114, 3
        %v3119 = vand.u32 %v3118, 3
        %vm3120 = vcmp.lt.s32.totalorder %v3119, 2
        %vm3121 = vcmp.eq.s32.totalorder %v3119, 0
        %v3122 = vxor.u32 %v3116, 2147483648
        %v3123 = vsel %vm3121, %v3115, %v3122
        %vm3124 = vcmp.eq.s32.totalorder %v3119, 2
        %v3125 = vxor.u32 %v3115, 2147483648
        %v3126 = vsel %vm3124, %v3125, %v3116
        %v3127 = vsel %vm3120, %v3123, %v3126
        %v3128 = vsel %vm3117, nan, %v3127
        %v3129 = vand.u32 2147483647, %v2289
        %vm3130 = vcmp.le.f32.partialorder %v3129, 0.7853982
        %vm3131 = vcmp.lt.s32.totalorder %v2289, 0
        %v3132 = vand.u32 %v2289, 2139095040
        %v3133 = vshrl.u32 %v3132, 23
        %v3134 = vsub.s32 %v3133, 127
        %v3135 = vand.u32 2147483647, %v2289
        %v3136 = vand.u32 %v3135, 8388607
        %v3137 = vor.u32 %v3136, 8388608
        %v3138 = vsub.s32 0, %v3137
        %v3139 = vadd.s32 %v3134, 1
        %vm3140 = vcmp.gt.s32.totalorder %v3139, 0
        %v3141 = vsel %vm3140, %v3139, 0
        %v3142 = vshrl.u32 %v3141, 5
        %v3143 = vand.u32 %v3141, 31
        %v3144 = vsub.s32 32, %v3143
        %v3145 = vshrl.u32 683565275, %v3144
        %v3146 = vshll.u32 683565275, %v3143
        %v3147 = vshrl.u32 2475754826, %v3144
        %v3148 = vor.u32 %v3146, %v3147
        %v3149 = vshll.u32 2475754826, %v3143
        %v3150 = vshrl.u32 2131351028, %v3144
        %v3151 = vor.u32 %v3149, %v3150
        %v3152 = vshll.u32 2131351028, %v3143
        %v3153 = vshrl.u32 2102212464, %v3144
        %v3154 = vor.u32 %v3152, %v3153
        %v3155 = vshll.u32 2102212464, %v3143
        %v3156 = vshrl.u32 920167782, %v3144
        %v3157 = vor.u32 %v3155, %v3156
        %v3158 = vshll.u32 920167782, %v3143
        %v3159 = vshrl.u32 1326507024, %v3144
        %v3160 = vor.u32 %v3158, %v3159
        %vm3161 = vcmp.lt.s32.totalorder %v3142, 1
        %vm3162 = vcmp.lt.s32.totalorder %v3142, 2
        %vm3163 = vcmp.lt.s32.totalorder %v3142, 3
        %vm3164 = vcmp.lt.s32.totalorder %v3142, 4
        %v3165 = vsel %vm3161, %v3145, %v3148
        %v3166 = vsel %vm3164, %v3154, 2102212464
        %v3167 = vsel %vm3163, %v3151, %v3166
        %v3168 = vsel %vm3162, %v3165, %v3167
        %v3169 = vsel %vm3161, %v3148, %v3151
        %v3170 = vsel %vm3164, %v3157, 920167782
        %v3171 = vsel %vm3163, %v3154, %v3170
        %v3172 = vsel %vm3162, %v3169, %v3171
        %v3173 = vsel %vm3161, %v3151, %v3154
        %v3174 = vsel %vm3164, %v3160, 1326507024
        %v3175 = vsel %vm3163, %v3157, %v3174
        %v3176 = vsel %vm3162, %v3173, %v3175
        %v3177 = vshll.u32 %v3137, 8
        %v3178 = vmul.u32.u64.compose %v3177, %v3176
        %v3179 = vextract.low.u32 %v3178
        %v3180 = vextract.high.u32 %v3178
        %v3181 = vmul.u32.u64.compose %v3177, %v3172
        %v3182 = vextract.low.u32 %v3181
        %v3183 = vextract.high.u32 %v3181
        %v3184 = vmul.u32 %v3177, %v3168
        %v3185 = vadd.s32 %v3180, %v3182
        %vm3186 = vc.u32 %v3180, %v3182
        %v3187 = vadd.s32 %v3183, 1
        %v3188 = vsel %vm3186, %v3187, %v3183
        %v3189 = vadd.s32 %v3184, %v3188
        %v3190 = vadd.s32 %v3189, 536870912
        %v3191 = vshrl.u32 %v3190, 30
        %v3192 = vshll.u32 %v3191, 30
        %v3193 = vsub.s32 %v3189, %v3192
        %vm3194 = vcmp.lt.s32.totalorder %v3193, 0
        %v3195 = vsub.s32 0, %v3193
        %v3196 = vsel %vm3194, %v3195, %v3193
        %v3197 = vclz %v3196
        %v3198 = vsub.s32 %v3197, 2
        %vm3199 = vcmp.gt.s32.totalorder 0, %v3198
        %v3200 = vsel %vm3199, 0, %v3198
        %v3201 = vsub.s32 32, %v3200
        %v3202 = vshll.u32 %v3193, %v3200
        %v3203 = vshrl.u32 %v3185, %v3201
        %v3204 = vor.u32 %v3202, %v3203
        %v3205 = vsub.s32 4294967266, %v3200
        %v3206 = vadd.s32 %v3205, 127
        %v3207 = vshll.u32 %v3206, 23
        %v3208 = vor.u32 4788187, %v3207
        %v3209 = vand.u32 2147483647, %v3208
        %v3211 = vcvt.s32.f32 %v3204
        %v3212 = vmul.f32 %v3211, %v3209
        %v3213 = vxor.u32 %v3212, 2147483648
        %v3214 = vsel %vm3131, %v3213, %v3212
        %v3215 = vsub.s32 4, %v3191
        %v3216 = vsel %vm3131, %v3215, %v3191
        %v3217 = vsel %vm3130, %v2289, %v3214
        %v3218 = vsel %vm3130, 0, %v3216
        %v3219 = vcosq.f32.pop %v3217
        %v3220 = vsinq.f32.pop %v3217
        %vm3221 = vweird.f32 %v2289
        %v3222 = vand.u32 %v3218, 3
        %vm3223 = vcmp.lt.s32.totalorder %v3222, 2
        %vm3224 = vcmp.eq.s32.totalorder %v3222, 0
        %v3225 = vxor.u32 %v3220, 2147483648
        %v3226 = vsel %vm3224, %v3219, %v3225
        %vm3227 = vcmp.eq.s32.totalorder %v3222, 2
        %v3228 = vxor.u32 %v3219, 2147483648
        %v3229 = vsel %vm3227, %v3228, %v3220
        %v3230 = vsel %vm3223, %v3226, %v3229
        %v3231 = vsel %vm3221, nan, %v3230
        %v3232 = vand.u32 2147483647, %v2290
        %vm3233 = vcmp.le.f32.partialorder %v3232, 0.7853982
        %vm3234 = vcmp.lt.s32.totalorder %v2290, 0
        %v3235 = vand.u32 %v2290, 2139095040
        %v3236 = vshrl.u32 %v3235, 23
        %v3237 = vsub.s32 %v3236, 127
        %v3238 = vand.u32 2147483647, %v2290
        %v3239 = vand.u32 %v3238, 8388607
        %v3240 = vor.u32 %v3239, 8388608
        %v3241 = vsub.s32 0, %v3240
        %v3242 = vadd.s32 %v3237, 1
        %vm3243 = vcmp.gt.s32.totalorder %v3242, 0
        %v3244 = vsel %vm3243, %v3242, 0
        %v3245 = vshrl.u32 %v3244, 5
        %v3246 = vand.u32 %v3244, 31
        %v3247 = vsub.s32 32, %v3246
        %v3248 = vshrl.u32 683565275, %v3247
        %v3249 = vshll.u32 683565275, %v3246
        %v3250 = vshrl.u32 2475754826, %v3247
        %v3251 = vor.u32 %v3249, %v3250
        %v3252 = vshll.u32 2475754826, %v3246
        %v3253 = vshrl.u32 2131351028, %v3247
        %v3254 = vor.u32 %v3252, %v3253
        %v3255 = vshll.u32 2131351028, %v3246
        %v3256 = vshrl.u32 2102212464, %v3247
        %v3257 = vor.u32 %v3255, %v3256
        %v3258 = vshll.u32 2102212464, %v3246
        %v3259 = vshrl.u32 920167782, %v3247
        %v3260 = vor.u32 %v3258, %v3259
        %v3261 = vshll.u32 920167782, %v3246
        %v3262 = vshrl.u32 1326507024, %v3247
        %v3263 = vor.u32 %v3261, %v3262
        %vm3264 = vcmp.lt.s32.totalorder %v3245, 1
        %vm3265 = vcmp.lt.s32.totalorder %v3245, 2
        %vm3266 = vcmp.lt.s32.totalorder %v3245, 3
        %vm3267 = vcmp.lt.s32.totalorder %v3245, 4
        %v3268 = vsel %vm3264, %v3248, %v3251
        %v3269 = vsel %vm3267, %v3257, 2102212464
        %v3270 = vsel %vm3266, %v3254, %v3269
        %v3271 = vsel %vm3265, %v3268, %v3270
        %v3272 = vsel %vm3264, %v3251, %v3254
        %v3273 = vsel %vm3267, %v3260, 920167782
        %v3274 = vsel %vm3266, %v3257, %v3273
        %v3275 = vsel %vm3265, %v3272, %v3274
        %v3276 = vsel %vm3264, %v3254, %v3257
        %v3277 = vsel %vm3267, %v3263, 1326507024
        %v3278 = vsel %vm3266, %v3260, %v3277
        %v3279 = vsel %vm3265, %v3276, %v3278
        %v3280 = vshll.u32 %v3240, 8
        %v3281 = vmul.u32.u64.compose %v3280, %v3279
        %v3282 = vextract.low.u32 %v3281
        %v3283 = vextract.high.u32 %v3281
        %v3284 = vmul.u32.u64.compose %v3280, %v3275
        %v3285 = vextract.low.u32 %v3284
        %v3286 = vextract.high.u32 %v3284
        %v3287 = vmul.u32 %v3280, %v3271
        %v3288 = vadd.s32 %v3283, %v3285
        %vm3289 = vc.u32 %v3283, %v3285
        %v3290 = vadd.s32 %v3286, 1
        %v3291 = vsel %vm3289, %v3290, %v3286
        %v3292 = vadd.s32 %v3287, %v3291
        %v3293 = vadd.s32 %v3292, 536870912
        %v3294 = vshrl.u32 %v3293, 30
        %v3295 = vshll.u32 %v3294, 30
        %v3296 = vsub.s32 %v3292, %v3295
        %vm3297 = vcmp.lt.s32.totalorder %v3296, 0
        %v3298 = vsub.s32 0, %v3296
        %v3299 = vsel %vm3297, %v3298, %v3296
        %v3300 = vclz %v3299
        %v3301 = vsub.s32 %v3300, 2
        %vm3302 = vcmp.gt.s32.totalorder 0, %v3301
        %v3303 = vsel %vm3302, 0, %v3301
        %v3304 = vsub.s32 32, %v3303
        %v3305 = vshll.u32 %v3296, %v3303
        %v3306 = vshrl.u32 %v3288, %v3304
        %v3307 = vor.u32 %v3305, %v3306
        %v3308 = vsub.s32 4294967266, %v3303
        %v3309 = vadd.s32 %v3308, 127
        %v3310 = vshll.u32 %v3309, 23
        %v3311 = vor.u32 4788187, %v3310
        %v3312 = vand.u32 2147483647, %v3311
        %v3314 = vcvt.s32.f32 %v3307
        %v3315 = vmul.f32 %v3314, %v3312
        %v3316 = vxor.u32 %v3315, 2147483648
        %v3317 = vsel %vm3234, %v3316, %v3315
        %v3318 = vsub.s32 4, %v3294
        %v3319 = vsel %vm3234, %v3318, %v3294
        %v3320 = vsel %vm3233, %v2290, %v3317
        %v3321 = vsel %vm3233, 0, %v3319
        %v3322 = vcosq.f32.pop %v3320
        %v3323 = vsinq.f32.pop %v3320
        %vm3324 = vweird.f32 %v2290
        %v3325 = vand.u32 %v3321, 3
        %vm3326 = vcmp.lt.s32.totalorder %v3325, 2
        %vm3327 = vcmp.eq.s32.totalorder %v3325, 0
        %v3328 = vxor.u32 %v3323, 2147483648
        %v3329 = vsel %vm3327, %v3322, %v3328
        %vm3330 = vcmp.eq.s32.totalorder %v3325, 2
        %v3331 = vxor.u32 %v3322, 2147483648
        %v3332 = vsel %vm3330, %v3331, %v3323
        %v3333 = vsel %vm3326, %v3329, %v3332
        %v3334 = vsel %vm3324, nan, %v3333
        %v3335 = vand.u32 2147483647, %v2291
        %vm3336 = vcmp.le.f32.partialorder %v3335, 0.7853982
        %vm3337 = vcmp.lt.s32.totalorder %v2291, 0
        %v3338 = vand.u32 %v2291, 2139095040
        %v3339 = vshrl.u32 %v3338, 23
        %v3340 = vsub.s32 %v3339, 127
        %v3341 = vand.u32 2147483647, %v2291
        %v3342 = vand.u32 %v3341, 8388607
        %v3343 = vor.u32 %v3342, 8388608
        %v3344 = vsub.s32 0, %v3343
        %v3345 = vadd.s32 %v3340, 1
        %vm3346 = vcmp.gt.s32.totalorder %v3345, 0
        %v3347 = vsel %vm3346, %v3345, 0
        %v3348 = vshrl.u32 %v3347, 5
        %v3349 = vand.u32 %v3347, 31
        %v3350 = vsub.s32 32, %v3349
        %v3351 = vshrl.u32 683565275, %v3350
        %v3352 = vshll.u32 683565275, %v3349
        %v3353 = vshrl.u32 2475754826, %v3350
        %v3354 = vor.u32 %v3352, %v3353
        %v3355 = vshll.u32 2475754826, %v3349
        %v3356 = vshrl.u32 2131351028, %v3350
        %v3357 = vor.u32 %v3355, %v3356
        %v3358 = vshll.u32 2131351028, %v3349
        %v3359 = vshrl.u32 2102212464, %v3350
        %v3360 = vor.u32 %v3358, %v3359
        %v3361 = vshll.u32 2102212464, %v3349
        %v3362 = vshrl.u32 920167782, %v3350
        %v3363 = vor.u32 %v3361, %v3362
        %v3364 = vshll.u32 920167782, %v3349
        %v3365 = vshrl.u32 1326507024, %v3350
        %v3366 = vor.u32 %v3364, %v3365
        %vm3367 = vcmp.lt.s32.totalorder %v3348, 1
        %vm3368 = vcmp.lt.s32.totalorder %v3348, 2
        %vm3369 = vcmp.lt.s32.totalorder %v3348, 3
        %vm3370 = vcmp.lt.s32.totalorder %v3348, 4
        %v3371 = vsel %vm3367, %v3351, %v3354
        %v3372 = vsel %vm3370, %v3360, 2102212464
        %v3373 = vsel %vm3369, %v3357, %v3372
        %v3374 = vsel %vm3368, %v3371, %v3373
        %v3375 = vsel %vm3367, %v3354, %v3357
        %v3376 = vsel %vm3370, %v3363, 920167782
        %v3377 = vsel %vm3369, %v3360, %v3376
        %v3378 = vsel %vm3368, %v3375, %v3377
        %v3379 = vsel %vm3367, %v3357, %v3360
        %v3380 = vsel %vm3370, %v3366, 1326507024
        %v3381 = vsel %vm3369, %v3363, %v3380
        %v3382 = vsel %vm3368, %v3379, %v3381
        %v3383 = vshll.u32 %v3343, 8
        %v3384 = vmul.u32.u64.compose %v3383, %v3382
        %v3385 = vextract.low.u32 %v3384
        %v3386 = vextract.high.u32 %v3384
        %v3387 = vmul.u32.u64.compose %v3383, %v3378
        %v3388 = vextract.low.u32 %v3387
        %v3389 = vextract.high.u32 %v3387
        %v3390 = vmul.u32 %v3383, %v3374
        %v3391 = vadd.s32 %v3386, %v3388
        %vm3392 = vc.u32 %v3386, %v3388
        %v3393 = vadd.s32 %v3389, 1
        %v3394 = vsel %vm3392, %v3393, %v3389
        %v3395 = vadd.s32 %v3390, %v3394
        %v3396 = vadd.s32 %v3395, 536870912
        %v3397 = vshrl.u32 %v3396, 30
        %v3398 = vshll.u32 %v3397, 30
        %v3399 = vsub.s32 %v3395, %v3398
        %vm3400 = vcmp.lt.s32.totalorder %v3399, 0
        %v3401 = vsub.s32 0, %v3399
        %v3402 = vsel %vm3400, %v3401, %v3399
        %v3403 = vclz %v3402
        %v3404 = vsub.s32 %v3403, 2
        %vm3405 = vcmp.gt.s32.totalorder 0, %v3404
        %v3406 = vsel %vm3405, 0, %v3404
        %v3407 = vsub.s32 32, %v3406
        %v3408 = vshll.u32 %v3399, %v3406
        %v3409 = vshrl.u32 %v3391, %v3407
        %v3410 = vor.u32 %v3408, %v3409
        %v3411 = vsub.s32 4294967266, %v3406
        %v3412 = vadd.s32 %v3411, 127
        %v3413 = vshll.u32 %v3412, 23
        %v3414 = vor.u32 4788187, %v3413
        %v3415 = vand.u32 2147483647, %v3414
        %v3417 = vcvt.s32.f32 %v3410
        %v3418 = vmul.f32 %v3417, %v3415
        %v3419 = vxor.u32 %v3418, 2147483648
        %v3420 = vsel %vm3337, %v3419, %v3418
        %v3421 = vsub.s32 4, %v3397
        %v3422 = vsel %vm3337, %v3421, %v3397
        %v3423 = vsel %vm3336, %v2291, %v3420
        %v3424 = vsel %vm3336, 0, %v3422
        %v3425 = vcosq.f32.pop %v3423
        %v3426 = vsinq.f32.pop %v3423
        %vm3427 = vweird.f32 %v2291
        %v3428 = vand.u32 %v3424, 3
        %vm3429 = vcmp.lt.s32.totalorder %v3428, 2
        %vm3430 = vcmp.eq.s32.totalorder %v3428, 0
        %v3431 = vxor.u32 %v3426, 2147483648
        %v3432 = vsel %vm3430, %v3425, %v3431
        %vm3433 = vcmp.eq.s32.totalorder %v3428, 2
        %v3434 = vxor.u32 %v3425, 2147483648
        %v3435 = vsel %vm3433, %v3434, %v3426
        %v3436 = vsel %vm3429, %v3432, %v3435
        %v3437 = vsel %vm3427, nan, %v3436
        %v3438 = vand.u32 2147483647, %v2292
        %vm3439 = vcmp.le.f32.partialorder %v3438, 0.7853982
        %vm3440 = vcmp.lt.s32.totalorder %v2292, 0
        %v3441 = vand.u32 %v2292, 2139095040
        %v3442 = vshrl.u32 %v3441, 23
        %v3443 = vsub.s32 %v3442, 127
        %v3444 = vand.u32 2147483647, %v2292
        %v3445 = vand.u32 %v3444, 8388607
        %v3446 = vor.u32 %v3445, 8388608
        %v3447 = vsub.s32 0, %v3446
        %v3448 = vadd.s32 %v3443, 1
        %vm3449 = vcmp.gt.s32.totalorder %v3448, 0
        %v3450 = vsel %vm3449, %v3448, 0
        %v3451 = vshrl.u32 %v3450, 5
        %v3452 = vand.u32 %v3450, 31
        %v3453 = vsub.s32 32, %v3452
        %v3454 = vshrl.u32 683565275, %v3453
        %v3455 = vshll.u32 683565275, %v3452
        %v3456 = vshrl.u32 2475754826, %v3453
        %v3457 = vor.u32 %v3455, %v3456
        %v3458 = vshll.u32 2475754826, %v3452
        %v3459 = vshrl.u32 2131351028, %v3453
        %v3460 = vor.u32 %v3458, %v3459
        %v3461 = vshll.u32 2131351028, %v3452
        %v3462 = vshrl.u32 2102212464, %v3453
        %v3463 = vor.u32 %v3461, %v3462
        %v3464 = vshll.u32 2102212464, %v3452
        %v3465 = vshrl.u32 920167782, %v3453
        %v3466 = vor.u32 %v3464, %v3465
        %v3467 = vshll.u32 920167782, %v3452
        %v3468 = vshrl.u32 1326507024, %v3453
        %v3469 = vor.u32 %v3467, %v3468
        %vm3470 = vcmp.lt.s32.totalorder %v3451, 1
        %vm3471 = vcmp.lt.s32.totalorder %v3451, 2
        %vm3472 = vcmp.lt.s32.totalorder %v3451, 3
        %vm3473 = vcmp.lt.s32.totalorder %v3451, 4
        %v3474 = vsel %vm3470, %v3454, %v3457
        %v3475 = vsel %vm3473, %v3463, 2102212464
        %v3476 = vsel %vm3472, %v3460, %v3475
        %v3477 = vsel %vm3471, %v3474, %v3476
        %v3478 = vsel %vm3470, %v3457, %v3460
        %v3479 = vsel %vm3473, %v3466, 920167782
        %v3480 = vsel %vm3472, %v3463, %v3479
        %v3481 = vsel %vm3471, %v3478, %v3480
        %v3482 = vsel %vm3470, %v3460, %v3463
        %v3483 = vsel %vm3473, %v3469, 1326507024
        %v3484 = vsel %vm3472, %v3466, %v3483
        %v3485 = vsel %vm3471, %v3482, %v3484
        %v3486 = vshll.u32 %v3446, 8
        %v3487 = vmul.u32.u64.compose %v3486, %v3485
        %v3488 = vextract.low.u32 %v3487
        %v3489 = vextract.high.u32 %v3487
        %v3490 = vmul.u32.u64.compose %v3486, %v3481
        %v3491 = vextract.low.u32 %v3490
        %v3492 = vextract.high.u32 %v3490
        %v3493 = vmul.u32 %v3486, %v3477
        %v3494 = vadd.s32 %v3489, %v3491
        %vm3495 = vc.u32 %v3489, %v3491
        %v3496 = vadd.s32 %v3492, 1
        %v3497 = vsel %vm3495, %v3496, %v3492
        %v3498 = vadd.s32 %v3493, %v3497
        %v3499 = vadd.s32 %v3498, 536870912
        %v3500 = vshrl.u32 %v3499, 30
        %v3501 = vshll.u32 %v3500, 30
        %v3502 = vsub.s32 %v3498, %v3501
        %vm3503 = vcmp.lt.s32.totalorder %v3502, 0
        %v3504 = vsub.s32 0, %v3502
        %v3505 = vsel %vm3503, %v3504, %v3502
        %v3506 = vclz %v3505
        %v3507 = vsub.s32 %v3506, 2
        %vm3508 = vcmp.gt.s32.totalorder 0, %v3507
        %v3509 = vsel %vm3508, 0, %v3507
        %v3510 = vsub.s32 32, %v3509
        %v3511 = vshll.u32 %v3502, %v3509
        %v3512 = vshrl.u32 %v3494, %v3510
        %v3513 = vor.u32 %v3511, %v3512
        %v3514 = vsub.s32 4294967266, %v3509
        %v3515 = vadd.s32 %v3514, 127
        %v3516 = vshll.u32 %v3515, 23
        %v3517 = vor.u32 4788187, %v3516
        %v3518 = vand.u32 2147483647, %v3517
        %v3520 = vcvt.s32.f32 %v3513
        %v3521 = vmul.f32 %v3520, %v3518
        %v3522 = vxor.u32 %v3521, 2147483648
        %v3523 = vsel %vm3440, %v3522, %v3521
        %v3524 = vsub.s32 4, %v3500
        %v3525 = vsel %vm3440, %v3524, %v3500
        %v3526 = vsel %vm3439, %v2292, %v3523
        %v3527 = vsel %vm3439, 0, %v3525
        %v3528 = vcosq.f32.pop %v3526
        %v3529 = vsinq.f32.pop %v3526
        %vm3530 = vweird.f32 %v2292
        %v3531 = vand.u32 %v3527, 3
        %vm3532 = vcmp.lt.s32.totalorder %v3531, 2
        %vm3533 = vcmp.eq.s32.totalorder %v3531, 0
        %v3534 = vxor.u32 %v3529, 2147483648
        %v3535 = vsel %vm3533, %v3528, %v3534
        %vm3536 = vcmp.eq.s32.totalorder %v3531, 2
        %v3537 = vxor.u32 %v3528, 2147483648
        %v3538 = vsel %vm3536, %v3537, %v3529
        %v3539 = vsel %vm3532, %v3535, %v3538
        %v3540 = vsel %vm3530, nan, %v3539
        %v3541 = vand.u32 2147483647, %v2293
        %vm3542 = vcmp.le.f32.partialorder %v3541, 0.7853982
        %vm3543 = vcmp.lt.s32.totalorder %v2293, 0
        %v3544 = vand.u32 %v2293, 2139095040
        %v3545 = vshrl.u32 %v3544, 23
        %v3546 = vsub.s32 %v3545, 127
        %v3547 = vand.u32 2147483647, %v2293
        %v3548 = vand.u32 %v3547, 8388607
        %v3549 = vor.u32 %v3548, 8388608
        %v3550 = vsub.s32 0, %v3549
        %v3551 = vadd.s32 %v3546, 1
        %vm3552 = vcmp.gt.s32.totalorder %v3551, 0
        %v3553 = vsel %vm3552, %v3551, 0
        %v3554 = vshrl.u32 %v3553, 5
        %v3555 = vand.u32 %v3553, 31
        %v3556 = vsub.s32 32, %v3555
        %v3557 = vshrl.u32 683565275, %v3556
        %v3558 = vshll.u32 683565275, %v3555
        %v3559 = vshrl.u32 2475754826, %v3556
        %v3560 = vor.u32 %v3558, %v3559
        %v3561 = vshll.u32 2475754826, %v3555
        %v3562 = vshrl.u32 2131351028, %v3556
        %v3563 = vor.u32 %v3561, %v3562
        %v3564 = vshll.u32 2131351028, %v3555
        %v3565 = vshrl.u32 2102212464, %v3556
        %v3566 = vor.u32 %v3564, %v3565
        %v3567 = vshll.u32 2102212464, %v3555
        %v3568 = vshrl.u32 920167782, %v3556
        %v3569 = vor.u32 %v3567, %v3568
        %v3570 = vshll.u32 920167782, %v3555
        %v3571 = vshrl.u32 1326507024, %v3556
        %v3572 = vor.u32 %v3570, %v3571
        %vm3573 = vcmp.lt.s32.totalorder %v3554, 1
        %vm3574 = vcmp.lt.s32.totalorder %v3554, 2
        %vm3575 = vcmp.lt.s32.totalorder %v3554, 3
        %vm3576 = vcmp.lt.s32.totalorder %v3554, 4
        %v3577 = vsel %vm3573, %v3557, %v3560
        %v3578 = vsel %vm3576, %v3566, 2102212464
        %v3579 = vsel %vm3575, %v3563, %v3578
        %v3580 = vsel %vm3574, %v3577, %v3579
        %v3581 = vsel %vm3573, %v3560, %v3563
        %v3582 = vsel %vm3576, %v3569, 920167782
        %v3583 = vsel %vm3575, %v3566, %v3582
        %v3584 = vsel %vm3574, %v3581, %v3583
        %v3585 = vsel %vm3573, %v3563, %v3566
        %v3586 = vsel %vm3576, %v3572, 1326507024
        %v3587 = vsel %vm3575, %v3569, %v3586
        %v3588 = vsel %vm3574, %v3585, %v3587
        %v3589 = vshll.u32 %v3549, 8
        %v3590 = vmul.u32.u64.compose %v3589, %v3588
        %v3591 = vextract.low.u32 %v3590
        %v3592 = vextract.high.u32 %v3590
        %v3593 = vmul.u32.u64.compose %v3589, %v3584
        %v3594 = vextract.low.u32 %v3593
        %v3595 = vextract.high.u32 %v3593
        %v3596 = vmul.u32 %v3589, %v3580
        %v3597 = vadd.s32 %v3592, %v3594
        %vm3598 = vc.u32 %v3592, %v3594
        %v3599 = vadd.s32 %v3595, 1
        %v3600 = vsel %vm3598, %v3599, %v3595
        %v3601 = vadd.s32 %v3596, %v3600
        %v3602 = vadd.s32 %v3601, 536870912
        %v3603 = vshrl.u32 %v3602, 30
        %v3604 = vshll.u32 %v3603, 30
        %v3605 = vsub.s32 %v3601, %v3604
        %vm3606 = vcmp.lt.s32.totalorder %v3605, 0
        %v3607 = vsub.s32 0, %v3605
        %v3608 = vsel %vm3606, %v3607, %v3605
        %v3609 = vclz %v3608
        %v3610 = vsub.s32 %v3609, 2
        %vm3611 = vcmp.gt.s32.totalorder 0, %v3610
        %v3612 = vsel %vm3611, 0, %v3610
        %v3613 = vsub.s32 32, %v3612
        %v3614 = vshll.u32 %v3605, %v3612
        %v3615 = vshrl.u32 %v3597, %v3613
        %v3616 = vor.u32 %v3614, %v3615
        %v3617 = vsub.s32 4294967266, %v3612
        %v3618 = vadd.s32 %v3617, 127
        %v3619 = vshll.u32 %v3618, 23
        %v3620 = vor.u32 4788187, %v3619
        %v3621 = vand.u32 2147483647, %v3620
        %v3623 = vcvt.s32.f32 %v3616
        %v3624 = vmul.f32 %v3623, %v3621
        %v3625 = vxor.u32 %v3624, 2147483648
        %v3626 = vsel %vm3543, %v3625, %v3624
        %v3627 = vsub.s32 4, %v3603
        %v3628 = vsel %vm3543, %v3627, %v3603
        %v3629 = vsel %vm3542, %v2293, %v3626
        %v3630 = vsel %vm3542, 0, %v3628
        %v3631 = vcosq.f32.pop %v3629
        %v3632 = vsinq.f32.pop %v3629
        %vm3633 = vweird.f32 %v2293
        %v3634 = vand.u32 %v3630, 3
        %vm3635 = vcmp.lt.s32.totalorder %v3634, 2
        %vm3636 = vcmp.eq.s32.totalorder %v3634, 0
        %v3637 = vxor.u32 %v3632, 2147483648
        %v3638 = vsel %vm3636, %v3631, %v3637
        %vm3639 = vcmp.eq.s32.totalorder %v3634, 2
        %v3640 = vxor.u32 %v3631, 2147483648
        %v3641 = vsel %vm3639, %v3640, %v3632
        %v3642 = vsel %vm3635, %v3638, %v3641
        %v3643 = vsel %vm3633, nan, %v3642
        %v3644 = vand.u32 2147483647, %v2294
        %vm3645 = vcmp.le.f32.partialorder %v3644, 0.7853982
        %vm3646 = vcmp.lt.s32.totalorder %v2294, 0
        %v3647 = vand.u32 %v2294, 2139095040
        %v3648 = vshrl.u32 %v3647, 23
        %v3649 = vsub.s32 %v3648, 127
        %v3650 = vand.u32 2147483647, %v2294
        %v3651 = vand.u32 %v3650, 8388607
        %v3652 = vor.u32 %v3651, 8388608
        %v3653 = vsub.s32 0, %v3652
        %v3654 = vadd.s32 %v3649, 1
        %vm3655 = vcmp.gt.s32.totalorder %v3654, 0
        %v3656 = vsel %vm3655, %v3654, 0
        %v3657 = vshrl.u32 %v3656, 5
        %v3658 = vand.u32 %v3656, 31
        %v3659 = vsub.s32 32, %v3658
        %v3660 = vshrl.u32 683565275, %v3659
        %v3661 = vshll.u32 683565275, %v3658
        %v3662 = vshrl.u32 2475754826, %v3659
        %v3663 = vor.u32 %v3661, %v3662
        %v3664 = vshll.u32 2475754826, %v3658
        %v3665 = vshrl.u32 2131351028, %v3659
        %v3666 = vor.u32 %v3664, %v3665
        %v3667 = vshll.u32 2131351028, %v3658
        %v3668 = vshrl.u32 2102212464, %v3659
        %v3669 = vor.u32 %v3667, %v3668
        %v3670 = vshll.u32 2102212464, %v3658
        %v3671 = vshrl.u32 920167782, %v3659
        %v3672 = vor.u32 %v3670, %v3671
        %v3673 = vshll.u32 920167782, %v3658
        %v3674 = vshrl.u32 1326507024, %v3659
        %v3675 = vor.u32 %v3673, %v3674
        %vm3676 = vcmp.lt.s32.totalorder %v3657, 1
        %vm3677 = vcmp.lt.s32.totalorder %v3657, 2
        %vm3678 = vcmp.lt.s32.totalorder %v3657, 3
        %vm3679 = vcmp.lt.s32.totalorder %v3657, 4
        %v3680 = vsel %vm3676, %v3660, %v3663
        %v3681 = vsel %vm3679, %v3669, 2102212464
        %v3682 = vsel %vm3678, %v3666, %v3681
        %v3683 = vsel %vm3677, %v3680, %v3682
        %v3684 = vsel %vm3676, %v3663, %v3666
        %v3685 = vsel %vm3679, %v3672, 920167782
        %v3686 = vsel %vm3678, %v3669, %v3685
        %v3687 = vsel %vm3677, %v3684, %v3686
        %v3688 = vsel %vm3676, %v3666, %v3669
        %v3689 = vsel %vm3679, %v3675, 1326507024
        %v3690 = vsel %vm3678, %v3672, %v3689
        %v3691 = vsel %vm3677, %v3688, %v3690
        %v3692 = vshll.u32 %v3652, 8
        %v3693 = vmul.u32.u64.compose %v3692, %v3691
        %v3694 = vextract.low.u32 %v3693
        %v3695 = vextract.high.u32 %v3693
        %v3696 = vmul.u32.u64.compose %v3692, %v3687
        %v3697 = vextract.low.u32 %v3696
        %v3698 = vextract.high.u32 %v3696
        %v3699 = vmul.u32 %v3692, %v3683
        %v3700 = vadd.s32 %v3695, %v3697
        %vm3701 = vc.u32 %v3695, %v3697
        %v3702 = vadd.s32 %v3698, 1
        %v3703 = vsel %vm3701, %v3702, %v3698
        %v3704 = vadd.s32 %v3699, %v3703
        %v3705 = vadd.s32 %v3704, 536870912
        %v3706 = vshrl.u32 %v3705, 30
        %v3707 = vshll.u32 %v3706, 30
        %v3708 = vsub.s32 %v3704, %v3707
        %vm3709 = vcmp.lt.s32.totalorder %v3708, 0
        %v3710 = vsub.s32 0, %v3708
        %v3711 = vsel %vm3709, %v3710, %v3708
        %v3712 = vclz %v3711
        %v3713 = vsub.s32 %v3712, 2
        %vm3714 = vcmp.gt.s32.totalorder 0, %v3713
        %v3715 = vsel %vm3714, 0, %v3713
        %v3716 = vsub.s32 32, %v3715
        %v3717 = vshll.u32 %v3708, %v3715
        %v3718 = vshrl.u32 %v3700, %v3716
        %v3719 = vor.u32 %v3717, %v3718
        %v3720 = vsub.s32 4294967266, %v3715
        %v3721 = vadd.s32 %v3720, 127
        %v3722 = vshll.u32 %v3721, 23
        %v3723 = vor.u32 4788187, %v3722
        %v3724 = vand.u32 2147483647, %v3723
        %v3726 = vcvt.s32.f32 %v3719
        %v3727 = vmul.f32 %v3726, %v3724
        %v3728 = vxor.u32 %v3727, 2147483648
        %v3729 = vsel %vm3646, %v3728, %v3727
        %v3730 = vsub.s32 4, %v3706
        %v3731 = vsel %vm3646, %v3730, %v3706
        %v3732 = vsel %vm3645, %v2294, %v3729
        %v3733 = vsel %vm3645, 0, %v3731
        %v3734 = vcosq.f32.pop %v3732
        %v3735 = vsinq.f32.pop %v3732
        %vm3736 = vweird.f32 %v2294
        %v3737 = vand.u32 %v3733, 3
        %vm3738 = vcmp.lt.s32.totalorder %v3737, 2
        %vm3739 = vcmp.eq.s32.totalorder %v3737, 0
        %v3740 = vxor.u32 %v3735, 2147483648
        %v3741 = vsel %vm3739, %v3734, %v3740
        %vm3742 = vcmp.eq.s32.totalorder %v3737, 2
        %v3743 = vxor.u32 %v3734, 2147483648
        %v3744 = vsel %vm3742, %v3743, %v3735
        %v3745 = vsel %vm3738, %v3741, %v3744
        %v3746 = vsel %vm3736, nan, %v3745
        %v3747 = vand.u32 2147483647, %v2295
        %vm3748 = vcmp.le.f32.partialorder %v3747, 0.7853982
        %vm3749 = vcmp.lt.s32.totalorder %v2295, 0
        %v3750 = vand.u32 %v2295, 2139095040
        %v3751 = vshrl.u32 %v3750, 23
        %v3752 = vsub.s32 %v3751, 127
        %v3753 = vand.u32 2147483647, %v2295
        %v3754 = vand.u32 %v3753, 8388607
        %v3755 = vor.u32 %v3754, 8388608
        %v3756 = vsub.s32 0, %v3755
        %v3757 = vadd.s32 %v3752, 1
        %vm3758 = vcmp.gt.s32.totalorder %v3757, 0
        %v3759 = vsel %vm3758, %v3757, 0
        %v3760 = vshrl.u32 %v3759, 5
        %v3761 = vand.u32 %v3759, 31
        %v3762 = vsub.s32 32, %v3761
        %v3763 = vshrl.u32 683565275, %v3762
        %v3764 = vshll.u32 683565275, %v3761
        %v3765 = vshrl.u32 2475754826, %v3762
        %v3766 = vor.u32 %v3764, %v3765
        %v3767 = vshll.u32 2475754826, %v3761
        %v3768 = vshrl.u32 2131351028, %v3762
        %v3769 = vor.u32 %v3767, %v3768
        %v3770 = vshll.u32 2131351028, %v3761
        %v3771 = vshrl.u32 2102212464, %v3762
        %v3772 = vor.u32 %v3770, %v3771
        %v3773 = vshll.u32 2102212464, %v3761
        %v3774 = vshrl.u32 920167782, %v3762
        %v3775 = vor.u32 %v3773, %v3774
        %v3776 = vshll.u32 920167782, %v3761
        %v3777 = vshrl.u32 1326507024, %v3762
        %v3778 = vor.u32 %v3776, %v3777
        %vm3779 = vcmp.lt.s32.totalorder %v3760, 1
        %vm3780 = vcmp.lt.s32.totalorder %v3760, 2
        %vm3781 = vcmp.lt.s32.totalorder %v3760, 3
        %vm3782 = vcmp.lt.s32.totalorder %v3760, 4
        %v3783 = vsel %vm3779, %v3763, %v3766
        %v3784 = vsel %vm3782, %v3772, 2102212464
        %v3785 = vsel %vm3781, %v3769, %v3784
        %v3786 = vsel %vm3780, %v3783, %v3785
        %v3787 = vsel %vm3779, %v3766, %v3769
        %v3788 = vsel %vm3782, %v3775, 920167782
        %v3789 = vsel %vm3781, %v3772, %v3788
        %v3790 = vsel %vm3780, %v3787, %v3789
        %v3791 = vsel %vm3779, %v3769, %v3772
        %v3792 = vsel %vm3782, %v3778, 1326507024
        %v3793 = vsel %vm3781, %v3775, %v3792
        %v3794 = vsel %vm3780, %v3791, %v3793
        %v3795 = vshll.u32 %v3755, 8
        %v3796 = vmul.u32.u64.compose %v3795, %v3794
        %v3797 = vextract.low.u32 %v3796
        %v3798 = vextract.high.u32 %v3796
        %v3799 = vmul.u32.u64.compose %v3795, %v3790
        %v3800 = vextract.low.u32 %v3799
        %v3801 = vextract.high.u32 %v3799
        %v3802 = vmul.u32 %v3795, %v3786
        %v3803 = vadd.s32 %v3798, %v3800
        %vm3804 = vc.u32 %v3798, %v3800
        %v3805 = vadd.s32 %v3801, 1
        %v3806 = vsel %vm3804, %v3805, %v3801
        %v3807 = vadd.s32 %v3802, %v3806
        %v3808 = vadd.s32 %v3807, 536870912
        %v3809 = vshrl.u32 %v3808, 30
        %v3810 = vshll.u32 %v3809, 30
        %v3811 = vsub.s32 %v3807, %v3810
        %vm3812 = vcmp.lt.s32.totalorder %v3811, 0
        %v3813 = vsub.s32 0, %v3811
        %v3814 = vsel %vm3812, %v3813, %v3811
        %v3815 = vclz %v3814
        %v3816 = vsub.s32 %v3815, 2
        %vm3817 = vcmp.gt.s32.totalorder 0, %v3816
        %v3818 = vsel %vm3817, 0, %v3816
        %v3819 = vsub.s32 32, %v3818
        %v3820 = vshll.u32 %v3811, %v3818
        %v3821 = vshrl.u32 %v3803, %v3819
        %v3822 = vor.u32 %v3820, %v3821
        %v3823 = vsub.s32 4294967266, %v3818
        %v3824 = vadd.s32 %v3823, 127
        %v3825 = vshll.u32 %v3824, 23
        %v3826 = vor.u32 4788187, %v3825
        %v3827 = vand.u32 2147483647, %v3826
        %v3829 = vcvt.s32.f32 %v3822
        %v3830 = vmul.f32 %v3829, %v3827
        %v3831 = vxor.u32 %v3830, 2147483648
        %v3832 = vsel %vm3749, %v3831, %v3830
        %v3833 = vsub.s32 4, %v3809
        %v3834 = vsel %vm3749, %v3833, %v3809
        %v3835 = vsel %vm3748, %v2295, %v3832
        %v3836 = vsel %vm3748, 0, %v3834
        %v3837 = vcosq.f32.pop %v3835
        %v3838 = vsinq.f32.pop %v3835
        %vm3839 = vweird.f32 %v2295
        %v3840 = vand.u32 %v3836, 3
        %vm3841 = vcmp.lt.s32.totalorder %v3840, 2
        %vm3842 = vcmp.eq.s32.totalorder %v3840, 0
        %v3843 = vxor.u32 %v3838, 2147483648
        %v3844 = vsel %vm3842, %v3837, %v3843
        %vm3845 = vcmp.eq.s32.totalorder %v3840, 2
        %v3846 = vxor.u32 %v3837, 2147483648
        %v3847 = vsel %vm3845, %v3846, %v3838
        %v3848 = vsel %vm3841, %v3844, %v3847
        %v3849 = vsel %vm3839, nan, %v3848
        %v3850 = vand.u32 2147483647, %v2296
        %vm3851 = vcmp.le.f32.partialorder %v3850, 0.7853982
        %vm3852 = vcmp.lt.s32.totalorder %v2296, 0
        %v3853 = vand.u32 %v2296, 2139095040
        %v3854 = vshrl.u32 %v3853, 23
        %v3855 = vsub.s32 %v3854, 127
        %v3856 = vand.u32 2147483647, %v2296
        %v3857 = vand.u32 %v3856, 8388607
        %v3858 = vor.u32 %v3857, 8388608
        %v3859 = vsub.s32 0, %v3858
        %v3860 = vadd.s32 %v3855, 1
        %vm3861 = vcmp.gt.s32.totalorder %v3860, 0
        %v3862 = vsel %vm3861, %v3860, 0
        %v3863 = vshrl.u32 %v3862, 5
        %v3864 = vand.u32 %v3862, 31
        %v3865 = vsub.s32 32, %v3864
        %v3866 = vshrl.u32 683565275, %v3865
        %v3867 = vshll.u32 683565275, %v3864
        %v3868 = vshrl.u32 2475754826, %v3865
        %v3869 = vor.u32 %v3867, %v3868
        %v3870 = vshll.u32 2475754826, %v3864
        %v3871 = vshrl.u32 2131351028, %v3865
        %v3872 = vor.u32 %v3870, %v3871
        %v3873 = vshll.u32 2131351028, %v3864
        %v3874 = vshrl.u32 2102212464, %v3865
        %v3875 = vor.u32 %v3873, %v3874
        %v3876 = vshll.u32 2102212464, %v3864
        %v3877 = vshrl.u32 920167782, %v3865
        %v3878 = vor.u32 %v3876, %v3877
        %v3879 = vshll.u32 920167782, %v3864
        %v3880 = vshrl.u32 1326507024, %v3865
        %v3881 = vor.u32 %v3879, %v3880
        %vm3882 = vcmp.lt.s32.totalorder %v3863, 1
        %vm3883 = vcmp.lt.s32.totalorder %v3863, 2
        %vm3884 = vcmp.lt.s32.totalorder %v3863, 3
        %vm3885 = vcmp.lt.s32.totalorder %v3863, 4
        %v3886 = vsel %vm3882, %v3866, %v3869
        %v3887 = vsel %vm3885, %v3875, 2102212464
        %v3888 = vsel %vm3884, %v3872, %v3887
        %v3889 = vsel %vm3883, %v3886, %v3888
        %v3890 = vsel %vm3882, %v3869, %v3872
        %v3891 = vsel %vm3885, %v3878, 920167782
        %v3892 = vsel %vm3884, %v3875, %v3891
        %v3893 = vsel %vm3883, %v3890, %v3892
        %v3894 = vsel %vm3882, %v3872, %v3875
        %v3895 = vsel %vm3885, %v3881, 1326507024
        %v3896 = vsel %vm3884, %v3878, %v3895
        %v3897 = vsel %vm3883, %v3894, %v3896
        %v3898 = vshll.u32 %v3858, 8
        %v3899 = vmul.u32.u64.compose %v3898, %v3897
        %v3900 = vextract.low.u32 %v3899
        %v3901 = vextract.high.u32 %v3899
        %v3902 = vmul.u32.u64.compose %v3898, %v3893
        %v3903 = vextract.low.u32 %v3902
        %v3904 = vextract.high.u32 %v3902
        %v3905 = vmul.u32 %v3898, %v3889
        %v3906 = vadd.s32 %v3901, %v3903
        %vm3907 = vc.u32 %v3901, %v3903
        %v3908 = vadd.s32 %v3904, 1
        %v3909 = vsel %vm3907, %v3908, %v3904
        %v3910 = vadd.s32 %v3905, %v3909
        %v3911 = vadd.s32 %v3910, 536870912
        %v3912 = vshrl.u32 %v3911, 30
        %v3913 = vshll.u32 %v3912, 30
        %v3914 = vsub.s32 %v3910, %v3913
        %vm3915 = vcmp.lt.s32.totalorder %v3914, 0
        %v3916 = vsub.s32 0, %v3914
        %v3917 = vsel %vm3915, %v3916, %v3914
        %v3918 = vclz %v3917
        %v3919 = vsub.s32 %v3918, 2
        %vm3920 = vcmp.gt.s32.totalorder 0, %v3919
        %v3921 = vsel %vm3920, 0, %v3919
        %v3922 = vsub.s32 32, %v3921
        %v3923 = vshll.u32 %v3914, %v3921
        %v3924 = vshrl.u32 %v3906, %v3922
        %v3925 = vor.u32 %v3923, %v3924
        %v3926 = vsub.s32 4294967266, %v3921
        %v3927 = vadd.s32 %v3926, 127
        %v3928 = vshll.u32 %v3927, 23
        %v3929 = vor.u32 4788187, %v3928
        %v3930 = vand.u32 2147483647, %v3929
        %v3932 = vcvt.s32.f32 %v3925
        %v3933 = vmul.f32 %v3932, %v3930
        %v3934 = vxor.u32 %v3933, 2147483648
        %v3935 = vsel %vm3852, %v3934, %v3933
        %v3936 = vsub.s32 4, %v3912
        %v3937 = vsel %vm3852, %v3936, %v3912
        %v3938 = vsel %vm3851, %v2296, %v3935
        %v3939 = vsel %vm3851, 0, %v3937
        %v3940 = vcosq.f32.pop %v3938
        %v3941 = vsinq.f32.pop %v3938
        %vm3942 = vweird.f32 %v2296
        %v3943 = vand.u32 %v3939, 3
        %vm3944 = vcmp.lt.s32.totalorder %v3943, 2
        %vm3945 = vcmp.eq.s32.totalorder %v3943, 0
        %v3946 = vxor.u32 %v3941, 2147483648
        %v3947 = vsel %vm3945, %v3940, %v3946
        %vm3948 = vcmp.eq.s32.totalorder %v3943, 2
        %v3949 = vxor.u32 %v3940, 2147483648
        %v3950 = vsel %vm3948, %v3949, %v3941
        %v3951 = vsel %vm3944, %v3947, %v3950
        %v3952 = vsel %vm3942, nan, %v3951
        %3953 = vst [vmem:[#allocation2 + $0x200] sm:$0xff] %v2400
        %3954 = vst [vmem:[#allocation2 + $0x208] sm:$0xff] %v2504
        %3955 = vst [vmem:[#allocation2 + $0x210] sm:$0xff] %v2608
        %3956 = vst [vmem:[#allocation2 + $0x218] sm:$0xff] %v2712
        %3957 = vst [vmem:[#allocation2 + $0x220] sm:$0xff] %v2816
        %3958 = vst [vmem:[#allocation2 + $0x228] sm:$0xff] %v2920
        %3959 = vst [vmem:[#allocation2 + $0x230] sm:$0xff] %v3024
        %3960 = vst [vmem:[#allocation2 + $0x238] sm:$0xff] %v3128
        %3961 = vst [vmem:[#allocation2 + $0x240] sm:$0xff] %v3231
        %3962 = vst [vmem:[#allocation2 + $0x248] sm:$0xff] %v3334
        %3963 = vst [vmem:[#allocation2 + $0x250] sm:$0xff] %v3437
        %3964 = vst [vmem:[#allocation2 + $0x258] sm:$0xff] %v3540
        %3965 = vst [vmem:[#allocation2 + $0x260] sm:$0xff] %v3643
        %3966 = vst [vmem:[#allocation2 + $0x268] sm:$0xff] %v3746
        %3967 = vst [vmem:[#allocation2 + $0x270] sm:$0xff] %v3849
        %3968 = vst [vmem:[#allocation2 + $0x278] sm:$0xff] %v3952
        %v3969 = vmul.f32 %v2400, 2.0
        %v3970 = vmul.f32 %v2504, 2.0
        %v3971 = vmul.f32 %v2608, 2.0
        %v3972 = vmul.f32 %v2712, 2.0
        %v3973 = vmul.f32 %v2816, 2.0
        %v3974 = vmul.f32 %v2920, 2.0
        %v3975 = vmul.f32 %v3024, 2.0
        %v3976 = vmul.f32 %v3128, 2.0
        %v3977 = vmul.f32 %v3969, %v3231
        %v3978 = vmul.f32 %v3970, %v3334
        %v3979 = vmul.f32 %v3971, %v3437
        %v3980 = vmul.f32 %v3972, %v3540
        %v3981 = vmul.f32 %v3973, %v3643
        %v3982 = vmul.f32 %v3974, %v3746
        %v3983 = vmul.f32 %v3975, %v3849
        %v3984 = vmul.f32 %v3976, %v3952
        %v3985 = vmul.f32 %v3969, %v2400
        %v3986 = vmul.f32 %v3970, %v2504
        %v3987 = vmul.f32 %v3971, %v2608
        %v3988 = vmul.f32 %v3972, %v2712
        %v3989 = vmul.f32 %v3973, %v2816
        %v3990 = vmul.f32 %v3974, %v2920
        %v3991 = vmul.f32 %v3975, %v3024
        %v3992 = vmul.f32 %v3976, %v3128
        %v3993 = vsub.f32 1.0, %v3985
        %v3994 = vsub.f32 1.0, %v3986
        %v3995 = vsub.f32 1.0, %v3987
        %v3996 = vsub.f32 1.0, %v3988
        %v3997 = vsub.f32 1.0, %v3989
        %v3998 = vsub.f32 1.0, %v3990
        %v3999 = vsub.f32 1.0, %v3991
        %v4000 = vsub.f32 1.0, %v3992
        %4001 = vst [vmem:[#allocation2 + $0x280] sm:$0xff] %v3977
        %4002 = vst [vmem:[#allocation2 + $0x288] sm:$0xff] %v3978
        %4003 = vst [vmem:[#allocation2 + $0x290] sm:$0xff] %v3979
        %4004 = vst [vmem:[#allocation2 + $0x298] sm:$0xff] %v3980
        %4005 = vst [vmem:[#allocation2 + $0x2a0] sm:$0xff] %v3981
        %4006 = vst [vmem:[#allocation2 + $0x2a8] sm:$0xff] %v3982
        %4007 = vst [vmem:[#allocation2 + $0x2b0] sm:$0xff] %v3983
        %4008 = vst [vmem:[#allocation2 + $0x2b8] sm:$0xff] %v3984
        %4009 = vst [vmem:[#allocation2 + $0x2c0] sm:$0xff] %v3993
        %4010 = vst [vmem:[#allocation2 + $0x2c8] sm:$0xff] %v3994
        %4011 = vst [vmem:[#allocation2 + $0x2d0] sm:$0xff] %v3995
        %4012 = vst [vmem:[#allocation2 + $0x2d8] sm:$0xff] %v3996
        %4013 = vst [vmem:[#allocation2 + $0x2e0] sm:$0xff] %v3997
        %4014 = vst [vmem:[#allocation2 + $0x2e8] sm:$0xff] %v3998
        %4015 = vst [vmem:[#allocation2 + $0x2f0] sm:$0xff] %v3999
        %4016 = vst [vmem:[#allocation2 + $0x2f8] sm:$0xff] %v4000
        %v4017 = vmul.f32 %v3977, 2.0
        %v4018 = vmul.f32 %v3978, 2.0
        %v4019 = vmul.f32 %v3979, 2.0
        %v4020 = vmul.f32 %v3980, 2.0
        %v4021 = vmul.f32 %v3981, 2.0
        %v4022 = vmul.f32 %v3982, 2.0
        %v4023 = vmul.f32 %v3983, 2.0
        %v4024 = vmul.f32 %v3984, 2.0
        %v4025 = vmul.f32 %v4017, %v3993
        %v4026 = vmul.f32 %v4018, %v3994
        %v4027 = vmul.f32 %v4019, %v3995
        %v4028 = vmul.f32 %v4020, %v3996
        %v4029 = vmul.f32 %v4021, %v3997
        %v4030 = vmul.f32 %v4022, %v3998
        %v4031 = vmul.f32 %v4023, %v3999
        %v4032 = vmul.f32 %v4024, %v4000
        %v4033 = vmul.f32 %v4017, %v3977
        %v4034 = vmul.f32 %v4018, %v3978
        %v4035 = vmul.f32 %v4019, %v3979
        %v4036 = vmul.f32 %v4020, %v3980
        %v4037 = vmul.f32 %v4021, %v3981
        %v4038 = vmul.f32 %v4022, %v3982
        %v4039 = vmul.f32 %v4023, %v3983
        %v4040 = vmul.f32 %v4024, %v3984
        %v4041 = vsub.f32 1.0, %v4033
        %v4042 = vsub.f32 1.0, %v4034
        %v4043 = vsub.f32 1.0, %v4035
        %v4044 = vsub.f32 1.0, %v4036
        %v4045 = vsub.f32 1.0, %v4037
        %v4046 = vsub.f32 1.0, %v4038
        %v4047 = vsub.f32 1.0, %v4039
        %v4048 = vsub.f32 1.0, %v4040
        %4049 = vst [vmem:[#allocation2 + $0x300] sm:$0xff] %v4025
        %4050 = vst [vmem:[#allocation2 + $0x308] sm:$0xff] %v4026
        %4051 = vst [vmem:[#allocation2 + $0x310] sm:$0xff] %v4027
        %4052 = vst [vmem:[#allocation2 + $0x318] sm:$0xff] %v4028
        %4053 = vst [vmem:[#allocation2 + $0x320] sm:$0xff] %v4029
        %4054 = vst [vmem:[#allocation2 + $0x328] sm:$0xff] %v4030
        %4055 = vst [vmem:[#allocation2 + $0x330] sm:$0xff] %v4031
        %4056 = vst [vmem:[#allocation2 + $0x338] sm:$0xff] %v4032
        %4057 = vst [vmem:[#allocation2 + $0x340] sm:$0xff] %v4041
        %4058 = vst [vmem:[#allocation2 + $0x348] sm:$0xff] %v4042
        %4059 = vst [vmem:[#allocation2 + $0x350] sm:$0xff] %v4043
        %4060 = vst [vmem:[#allocation2 + $0x358] sm:$0xff] %v4044
        %4061 = vst [vmem:[#allocation2 + $0x360] sm:$0xff] %v4045
        %4062 = vst [vmem:[#allocation2 + $0x368] sm:$0xff] %v4046
        %4063 = vst [vmem:[#allocation2 + $0x370] sm:$0xff] %v4047
        %4064 = vst [vmem:[#allocation2 + $0x378] sm:$0xff] %v4048
        %v4065 = vmul.f32 %v4025, 2.0
        %v4066 = vmul.f32 %v4026, 2.0
        %v4067 = vmul.f32 %v4027, 2.0
        %v4068 = vmul.f32 %v4028, 2.0
        %v4069 = vmul.f32 %v4029, 2.0
        %v4070 = vmul.f32 %v4030, 2.0
        %v4071 = vmul.f32 %v4031, 2.0
        %v4072 = vmul.f32 %v4032, 2.0
        %v4073 = vmul.f32 %v4065, %v4041
        %v4074 = vmul.f32 %v4066, %v4042
        %v4075 = vmul.f32 %v4067, %v4043
        %v4076 = vmul.f32 %v4068, %v4044
        %v4077 = vmul.f32 %v4069, %v4045
        %v4078 = vmul.f32 %v4070, %v4046
        %v4079 = vmul.f32 %v4071, %v4047
        %v4080 = vmul.f32 %v4072, %v4048
        %v4081 = vmul.f32 %v4065, %v4025
        %v4082 = vmul.f32 %v4066, %v4026
        %v4083 = vmul.f32 %v4067, %v4027
        %v4084 = vmul.f32 %v4068, %v4028
        %v4085 = vmul.f32 %v4069, %v4029
        %v4086 = vmul.f32 %v4070, %v4030
        %v4087 = vmul.f32 %v4071, %v4031
        %v4088 = vmul.f32 %v4072, %v4032
        %v4089 = vsub.f32 1.0, %v4081
        %v4090 = vsub.f32 1.0, %v4082
        %v4091 = vsub.f32 1.0, %v4083
        %v4092 = vsub.f32 1.0, %v4084
        %v4093 = vsub.f32 1.0, %v4085
        %v4094 = vsub.f32 1.0, %v4086
        %v4095 = vsub.f32 1.0, %v4087
        %v4096 = vsub.f32 1.0, %v4088
        %4097 = vst [vmem:[#allocation2 + $0x380] sm:$0xff] %v4073
        %4098 = vst [vmem:[#allocation2 + $0x388] sm:$0xff] %v4074
        %4099 = vst [vmem:[#allocation2 + $0x390] sm:$0xff] %v4075
        %4100 = vst [vmem:[#allocation2 + $0x398] sm:$0xff] %v4076
        %4101 = vst [vmem:[#allocation2 + $0x3a0] sm:$0xff] %v4077
        %4102 = vst [vmem:[#allocation2 + $0x3a8] sm:$0xff] %v4078
        %4103 = vst [vmem:[#allocation2 + $0x3b0] sm:$0xff] %v4079
        %4104 = vst [vmem:[#allocation2 + $0x3b8] sm:$0xff] %v4080
        %4105 = vst [vmem:[#allocation2 + $0x3c0] sm:$0xff] %v4089
        %4106 = vst [vmem:[#allocation2 + $0x3c8] sm:$0xff] %v4090
        %4107 = vst [vmem:[#allocation2 + $0x3d0] sm:$0xff] %v4091
        %4108 = vst [vmem:[#allocation2 + $0x3d8] sm:$0xff] %v4092
        %4109 = vst [vmem:[#allocation2 + $0x3e0] sm:$0xff] %v4093
        %4110 = vst [vmem:[#allocation2 + $0x3e8] sm:$0xff] %v4094
        %4111 = vst [vmem:[#allocation2 + $0x3f0] sm:$0xff] %v4095
        %4112 = vst [vmem:[#allocation2 + $0x3f8] sm:$0xff] %v4096
        %v4113 = vmul.f32 %v465, 256.0
        %v4114 = vmul.f32 %v466, 256.0
        %v4115 = vmul.f32 %v467, 256.0
        %v4116 = vmul.f32 %v468, 256.0
        %v4117 = vmul.f32 %v469, 256.0
        %v4118 = vmul.f32 %v470, 256.0
        %v4119 = vmul.f32 %v471, 256.0
        %v4120 = vmul.f32 %v472, 256.0
        %v4121 = vand.u32 2147483647, %v4113
        %vm4122 = vcmp.le.f32.partialorder %v4121, 0.7853982
        %vm4123 = vcmp.lt.s32.totalorder %v4113, 0
        %v4124 = vand.u32 %v4113, 2139095040
        %v4125 = vshrl.u32 %v4124, 23
        %v4126 = vsub.s32 %v4125, 127
        %v4127 = vand.u32 2147483647, %v4113
        %v4128 = vand.u32 %v4127, 8388607
        %v4129 = vor.u32 %v4128, 8388608
        %v4130 = vsub.s32 0, %v4129
        %v4131 = vadd.s32 %v4126, 1
        %vm4132 = vcmp.gt.s32.totalorder %v4131, 0
        %v4133 = vsel %vm4132, %v4131, 0
        %v4134 = vshrl.u32 %v4133, 5
        %v4135 = vand.u32 %v4133, 31
        %v4136 = vsub.s32 32, %v4135
        %v4137 = vshrl.u32 683565275, %v4136
        %v4138 = vshll.u32 683565275, %v4135
        %v4139 = vshrl.u32 2475754826, %v4136
        %v4140 = vor.u32 %v4138, %v4139
        %v4141 = vshll.u32 2475754826, %v4135
        %v4142 = vshrl.u32 2131351028, %v4136
        %v4143 = vor.u32 %v4141, %v4142
        %v4144 = vshll.u32 2131351028, %v4135
        %v4145 = vshrl.u32 2102212464, %v4136
        %v4146 = vor.u32 %v4144, %v4145
        %v4147 = vshll.u32 2102212464, %v4135
        %v4148 = vshrl.u32 920167782, %v4136
        %v4149 = vor.u32 %v4147, %v4148
        %v4150 = vshll.u32 920167782, %v4135
        %v4151 = vshrl.u32 1326507024, %v4136
        %v4152 = vor.u32 %v4150, %v4151
        %vm4153 = vcmp.lt.s32.totalorder %v4134, 1
        %vm4154 = vcmp.lt.s32.totalorder %v4134, 2
        %vm4155 = vcmp.lt.s32.totalorder %v4134, 3
        %vm4156 = vcmp.lt.s32.totalorder %v4134, 4
        %v4157 = vsel %vm4153, %v4137, %v4140
        %v4158 = vsel %vm4156, %v4146, 2102212464
        %v4159 = vsel %vm4155, %v4143, %v4158
        %v4160 = vsel %vm4154, %v4157, %v4159
        %v4161 = vsel %vm4153, %v4140, %v4143
        %v4162 = vsel %vm4156, %v4149, 920167782
        %v4163 = vsel %vm4155, %v4146, %v4162
        %v4164 = vsel %vm4154, %v4161, %v4163
        %v4165 = vsel %vm4153, %v4143, %v4146
        %v4166 = vsel %vm4156, %v4152, 1326507024
        %v4167 = vsel %vm4155, %v4149, %v4166
        %v4168 = vsel %vm4154, %v4165, %v4167
        %v4169 = vshll.u32 %v4129, 8
        %v4170 = vmul.u32.u64.compose %v4169, %v4168
        %v4171 = vextract.low.u32 %v4170
        %v4172 = vextract.high.u32 %v4170
        %v4173 = vmul.u32.u64.compose %v4169, %v4164
        %v4174 = vextract.low.u32 %v4173
        %v4175 = vextract.high.u32 %v4173
        %v4176 = vmul.u32 %v4169, %v4160
        %v4177 = vadd.s32 %v4172, %v4174
        %vm4178 = vc.u32 %v4172, %v4174
        %v4179 = vadd.s32 %v4175, 1
        %v4180 = vsel %vm4178, %v4179, %v4175
        %v4181 = vadd.s32 %v4176, %v4180
        %v4182 = vadd.s32 %v4181, 536870912
        %v4183 = vshrl.u32 %v4182, 30
        %v4184 = vshll.u32 %v4183, 30
        %v4185 = vsub.s32 %v4181, %v4184
        %vm4186 = vcmp.lt.s32.totalorder %v4185, 0
        %v4187 = vsub.s32 0, %v4185
        %v4188 = vsel %vm4186, %v4187, %v4185
        %v4189 = vclz %v4188
        %v4190 = vsub.s32 %v4189, 2
        %vm4191 = vcmp.gt.s32.totalorder 0, %v4190
        %v4192 = vsel %vm4191, 0, %v4190
        %v4193 = vsub.s32 32, %v4192
        %v4194 = vshll.u32 %v4185, %v4192
        %v4195 = vshrl.u32 %v4177, %v4193
        %v4196 = vor.u32 %v4194, %v4195
        %v4197 = vsub.s32 4294967266, %v4192
        %v4198 = vadd.s32 %v4197, 127
        %v4199 = vshll.u32 %v4198, 23
        %v4200 = vor.u32 4788187, %v4199
        %v4201 = vand.u32 2147483647, %v4200
        %v4203 = vcvt.s32.f32 %v4196
        %v4204 = vmul.f32 %v4203, %v4201
        %v4205 = vxor.u32 %v4204, 2147483648
        %v4206 = vsel %vm4123, %v4205, %v4204
        %v4207 = vsub.s32 4, %v4183
        %v4208 = vsel %vm4123, %v4207, %v4183
        %v4209 = vsel %vm4122, %v4113, %v4206
        %v4210 = vsel %vm4122, 0, %v4208
        %v4211 = vcosq.f32.pop %v4209
        %v4212 = vsinq.f32.pop %v4209
        %vm4213 = vweird.f32 %v4113
        %v4214 = vadd.s32 %v4210, 3
        %v4215 = vand.u32 %v4214, 3
        %vm4216 = vcmp.lt.s32.totalorder %v4215, 2
        %vm4217 = vcmp.eq.s32.totalorder %v4215, 0
        %v4218 = vxor.u32 %v4212, 2147483648
        %v4219 = vsel %vm4217, %v4211, %v4218
        %vm4220 = vcmp.eq.s32.totalorder %v4215, 2
        %v4221 = vxor.u32 %v4211, 2147483648
        %v4222 = vsel %vm4220, %v4221, %v4212
        %v4223 = vsel %vm4216, %v4219, %v4222
        %v4224 = vsel %vm4213, nan, %v4223
        %v4225 = vand.u32 2147483647, %v4114
        %vm4226 = vcmp.le.f32.partialorder %v4225, 0.7853982
        %vm4227 = vcmp.lt.s32.totalorder %v4114, 0
        %v4228 = vand.u32 %v4114, 2139095040
        %v4229 = vshrl.u32 %v4228, 23
        %v4230 = vsub.s32 %v4229, 127
        %v4231 = vand.u32 2147483647, %v4114
        %v4232 = vand.u32 %v4231, 8388607
        %v4233 = vor.u32 %v4232, 8388608
        %v4234 = vsub.s32 0, %v4233
        %v4235 = vadd.s32 %v4230, 1
        %vm4236 = vcmp.gt.s32.totalorder %v4235, 0
        %v4237 = vsel %vm4236, %v4235, 0
        %v4238 = vshrl.u32 %v4237, 5
        %v4239 = vand.u32 %v4237, 31
        %v4240 = vsub.s32 32, %v4239
        %v4241 = vshrl.u32 683565275, %v4240
        %v4242 = vshll.u32 683565275, %v4239
        %v4243 = vshrl.u32 2475754826, %v4240
        %v4244 = vor.u32 %v4242, %v4243
        %v4245 = vshll.u32 2475754826, %v4239
        %v4246 = vshrl.u32 2131351028, %v4240
        %v4247 = vor.u32 %v4245, %v4246
        %v4248 = vshll.u32 2131351028, %v4239
        %v4249 = vshrl.u32 2102212464, %v4240
        %v4250 = vor.u32 %v4248, %v4249
        %v4251 = vshll.u32 2102212464, %v4239
        %v4252 = vshrl.u32 920167782, %v4240
        %v4253 = vor.u32 %v4251, %v4252
        %v4254 = vshll.u32 920167782, %v4239
        %v4255 = vshrl.u32 1326507024, %v4240
        %v4256 = vor.u32 %v4254, %v4255
        %vm4257 = vcmp.lt.s32.totalorder %v4238, 1
        %vm4258 = vcmp.lt.s32.totalorder %v4238, 2
        %vm4259 = vcmp.lt.s32.totalorder %v4238, 3
        %vm4260 = vcmp.lt.s32.totalorder %v4238, 4
        %v4261 = vsel %vm4257, %v4241, %v4244
        %v4262 = vsel %vm4260, %v4250, 2102212464
        %v4263 = vsel %vm4259, %v4247, %v4262
        %v4264 = vsel %vm4258, %v4261, %v4263
        %v4265 = vsel %vm4257, %v4244, %v4247
        %v4266 = vsel %vm4260, %v4253, 920167782
        %v4267 = vsel %vm4259, %v4250, %v4266
        %v4268 = vsel %vm4258, %v4265, %v4267
        %v4269 = vsel %vm4257, %v4247, %v4250
        %v4270 = vsel %vm4260, %v4256, 1326507024
        %v4271 = vsel %vm4259, %v4253, %v4270
        %v4272 = vsel %vm4258, %v4269, %v4271
        %v4273 = vshll.u32 %v4233, 8
        %v4274 = vmul.u32.u64.compose %v4273, %v4272
        %v4275 = vextract.low.u32 %v4274
        %v4276 = vextract.high.u32 %v4274
        %v4277 = vmul.u32.u64.compose %v4273, %v4268
        %v4278 = vextract.low.u32 %v4277
        %v4279 = vextract.high.u32 %v4277
        %v4280 = vmul.u32 %v4273, %v4264
        %v4281 = vadd.s32 %v4276, %v4278
        %vm4282 = vc.u32 %v4276, %v4278
        %v4283 = vadd.s32 %v4279, 1
        %v4284 = vsel %vm4282, %v4283, %v4279
        %v4285 = vadd.s32 %v4280, %v4284
        %v4286 = vadd.s32 %v4285, 536870912
        %v4287 = vshrl.u32 %v4286, 30
        %v4288 = vshll.u32 %v4287, 30
        %v4289 = vsub.s32 %v4285, %v4288
        %vm4290 = vcmp.lt.s32.totalorder %v4289, 0
        %v4291 = vsub.s32 0, %v4289
        %v4292 = vsel %vm4290, %v4291, %v4289
        %v4293 = vclz %v4292
        %v4294 = vsub.s32 %v4293, 2
        %vm4295 = vcmp.gt.s32.totalorder 0, %v4294
        %v4296 = vsel %vm4295, 0, %v4294
        %v4297 = vsub.s32 32, %v4296
        %v4298 = vshll.u32 %v4289, %v4296
        %v4299 = vshrl.u32 %v4281, %v4297
        %v4300 = vor.u32 %v4298, %v4299
        %v4301 = vsub.s32 4294967266, %v4296
        %v4302 = vadd.s32 %v4301, 127
        %v4303 = vshll.u32 %v4302, 23
        %v4304 = vor.u32 4788187, %v4303
        %v4305 = vand.u32 2147483647, %v4304
        %v4307 = vcvt.s32.f32 %v4300
        %v4308 = vmul.f32 %v4307, %v4305
        %v4309 = vxor.u32 %v4308, 2147483648
        %v4310 = vsel %vm4227, %v4309, %v4308
        %v4311 = vsub.s32 4, %v4287
        %v4312 = vsel %vm4227, %v4311, %v4287
        %v4313 = vsel %vm4226, %v4114, %v4310
        %v4314 = vsel %vm4226, 0, %v4312
        %v4315 = vcosq.f32.pop %v4313
        %v4316 = vsinq.f32.pop %v4313
        %vm4317 = vweird.f32 %v4114
        %v4318 = vadd.s32 %v4314, 3
        %v4319 = vand.u32 %v4318, 3
        %vm4320 = vcmp.lt.s32.totalorder %v4319, 2
        %vm4321 = vcmp.eq.s32.totalorder %v4319, 0
        %v4322 = vxor.u32 %v4316, 2147483648
        %v4323 = vsel %vm4321, %v4315, %v4322
        %vm4324 = vcmp.eq.s32.totalorder %v4319, 2
        %v4325 = vxor.u32 %v4315, 2147483648
        %v4326 = vsel %vm4324, %v4325, %v4316
        %v4327 = vsel %vm4320, %v4323, %v4326
        %v4328 = vsel %vm4317, nan, %v4327
        %v4329 = vand.u32 2147483647, %v4115
        %vm4330 = vcmp.le.f32.partialorder %v4329, 0.7853982
        %vm4331 = vcmp.lt.s32.totalorder %v4115, 0
        %v4332 = vand.u32 %v4115, 2139095040
        %v4333 = vshrl.u32 %v4332, 23
        %v4334 = vsub.s32 %v4333, 127
        %v4335 = vand.u32 2147483647, %v4115
        %v4336 = vand.u32 %v4335, 8388607
        %v4337 = vor.u32 %v4336, 8388608
        %v4338 = vsub.s32 0, %v4337
        %v4339 = vadd.s32 %v4334, 1
        %vm4340 = vcmp.gt.s32.totalorder %v4339, 0
        %v4341 = vsel %vm4340, %v4339, 0
        %v4342 = vshrl.u32 %v4341, 5
        %v4343 = vand.u32 %v4341, 31
        %v4344 = vsub.s32 32, %v4343
        %v4345 = vshrl.u32 683565275, %v4344
        %v4346 = vshll.u32 683565275, %v4343
        %v4347 = vshrl.u32 2475754826, %v4344
        %v4348 = vor.u32 %v4346, %v4347
        %v4349 = vshll.u32 2475754826, %v4343
        %v4350 = vshrl.u32 2131351028, %v4344
        %v4351 = vor.u32 %v4349, %v4350
        %v4352 = vshll.u32 2131351028, %v4343
        %v4353 = vshrl.u32 2102212464, %v4344
        %v4354 = vor.u32 %v4352, %v4353
        %v4355 = vshll.u32 2102212464, %v4343
        %v4356 = vshrl.u32 920167782, %v4344
        %v4357 = vor.u32 %v4355, %v4356
        %v4358 = vshll.u32 920167782, %v4343
        %v4359 = vshrl.u32 1326507024, %v4344
        %v4360 = vor.u32 %v4358, %v4359
        %vm4361 = vcmp.lt.s32.totalorder %v4342, 1
        %vm4362 = vcmp.lt.s32.totalorder %v4342, 2
        %vm4363 = vcmp.lt.s32.totalorder %v4342, 3
        %vm4364 = vcmp.lt.s32.totalorder %v4342, 4
        %v4365 = vsel %vm4361, %v4345, %v4348
        %v4366 = vsel %vm4364, %v4354, 2102212464
        %v4367 = vsel %vm4363, %v4351, %v4366
        %v4368 = vsel %vm4362, %v4365, %v4367
        %v4369 = vsel %vm4361, %v4348, %v4351
        %v4370 = vsel %vm4364, %v4357, 920167782
        %v4371 = vsel %vm4363, %v4354, %v4370
        %v4372 = vsel %vm4362, %v4369, %v4371
        %v4373 = vsel %vm4361, %v4351, %v4354
        %v4374 = vsel %vm4364, %v4360, 1326507024
        %v4375 = vsel %vm4363, %v4357, %v4374
        %v4376 = vsel %vm4362, %v4373, %v4375
        %v4377 = vshll.u32 %v4337, 8
        %v4378 = vmul.u32.u64.compose %v4377, %v4376
        %v4379 = vextract.low.u32 %v4378
        %v4380 = vextract.high.u32 %v4378
        %v4381 = vmul.u32.u64.compose %v4377, %v4372
        %v4382 = vextract.low.u32 %v4381
        %v4383 = vextract.high.u32 %v4381
        %v4384 = vmul.u32 %v4377, %v4368
        %v4385 = vadd.s32 %v4380, %v4382
        %vm4386 = vc.u32 %v4380, %v4382
        %v4387 = vadd.s32 %v4383, 1
        %v4388 = vsel %vm4386, %v4387, %v4383
        %v4389 = vadd.s32 %v4384, %v4388
        %v4390 = vadd.s32 %v4389, 536870912
        %v4391 = vshrl.u32 %v4390, 30
        %v4392 = vshll.u32 %v4391, 30
        %v4393 = vsub.s32 %v4389, %v4392
        %vm4394 = vcmp.lt.s32.totalorder %v4393, 0
        %v4395 = vsub.s32 0, %v4393
        %v4396 = vsel %vm4394, %v4395, %v4393
        %v4397 = vclz %v4396
        %v4398 = vsub.s32 %v4397, 2
        %vm4399 = vcmp.gt.s32.totalorder 0, %v4398
        %v4400 = vsel %vm4399, 0, %v4398
        %v4401 = vsub.s32 32, %v4400
        %v4402 = vshll.u32 %v4393, %v4400
        %v4403 = vshrl.u32 %v4385, %v4401
        %v4404 = vor.u32 %v4402, %v4403
        %v4405 = vsub.s32 4294967266, %v4400
        %v4406 = vadd.s32 %v4405, 127
        %v4407 = vshll.u32 %v4406, 23
        %v4408 = vor.u32 4788187, %v4407
        %v4409 = vand.u32 2147483647, %v4408
        %v4411 = vcvt.s32.f32 %v4404
        %v4412 = vmul.f32 %v4411, %v4409
        %v4413 = vxor.u32 %v4412, 2147483648
        %v4414 = vsel %vm4331, %v4413, %v4412
        %v4415 = vsub.s32 4, %v4391
        %v4416 = vsel %vm4331, %v4415, %v4391
        %v4417 = vsel %vm4330, %v4115, %v4414
        %v4418 = vsel %vm4330, 0, %v4416
        %v4419 = vcosq.f32.pop %v4417
        %v4420 = vsinq.f32.pop %v4417
        %vm4421 = vweird.f32 %v4115
        %v4422 = vadd.s32 %v4418, 3
        %v4423 = vand.u32 %v4422, 3
        %vm4424 = vcmp.lt.s32.totalorder %v4423, 2
        %vm4425 = vcmp.eq.s32.totalorder %v4423, 0
        %v4426 = vxor.u32 %v4420, 2147483648
        %v4427 = vsel %vm4425, %v4419, %v4426
        %vm4428 = vcmp.eq.s32.totalorder %v4423, 2
        %v4429 = vxor.u32 %v4419, 2147483648
        %v4430 = vsel %vm4428, %v4429, %v4420
        %v4431 = vsel %vm4424, %v4427, %v4430
        %v4432 = vsel %vm4421, nan, %v4431
        %v4433 = vand.u32 2147483647, %v4116
        %vm4434 = vcmp.le.f32.partialorder %v4433, 0.7853982
        %vm4435 = vcmp.lt.s32.totalorder %v4116, 0
        %v4436 = vand.u32 %v4116, 2139095040
        %v4437 = vshrl.u32 %v4436, 23
        %v4438 = vsub.s32 %v4437, 127
        %v4439 = vand.u32 2147483647, %v4116
        %v4440 = vand.u32 %v4439, 8388607
        %v4441 = vor.u32 %v4440, 8388608
        %v4442 = vsub.s32 0, %v4441
        %v4443 = vadd.s32 %v4438, 1
        %vm4444 = vcmp.gt.s32.totalorder %v4443, 0
        %v4445 = vsel %vm4444, %v4443, 0
        %v4446 = vshrl.u32 %v4445, 5
        %v4447 = vand.u32 %v4445, 31
        %v4448 = vsub.s32 32, %v4447
        %v4449 = vshrl.u32 683565275, %v4448
        %v4450 = vshll.u32 683565275, %v4447
        %v4451 = vshrl.u32 2475754826, %v4448
        %v4452 = vor.u32 %v4450, %v4451
        %v4453 = vshll.u32 2475754826, %v4447
        %v4454 = vshrl.u32 2131351028, %v4448
        %v4455 = vor.u32 %v4453, %v4454
        %v4456 = vshll.u32 2131351028, %v4447
        %v4457 = vshrl.u32 2102212464, %v4448
        %v4458 = vor.u32 %v4456, %v4457
        %v4459 = vshll.u32 2102212464, %v4447
        %v4460 = vshrl.u32 920167782, %v4448
        %v4461 = vor.u32 %v4459, %v4460
        %v4462 = vshll.u32 920167782, %v4447
        %v4463 = vshrl.u32 1326507024, %v4448
        %v4464 = vor.u32 %v4462, %v4463
        %vm4465 = vcmp.lt.s32.totalorder %v4446, 1
        %vm4466 = vcmp.lt.s32.totalorder %v4446, 2
        %vm4467 = vcmp.lt.s32.totalorder %v4446, 3
        %vm4468 = vcmp.lt.s32.totalorder %v4446, 4
        %v4469 = vsel %vm4465, %v4449, %v4452
        %v4470 = vsel %vm4468, %v4458, 2102212464
        %v4471 = vsel %vm4467, %v4455, %v4470
        %v4472 = vsel %vm4466, %v4469, %v4471
        %v4473 = vsel %vm4465, %v4452, %v4455
        %v4474 = vsel %vm4468, %v4461, 920167782
        %v4475 = vsel %vm4467, %v4458, %v4474
        %v4476 = vsel %vm4466, %v4473, %v4475
        %v4477 = vsel %vm4465, %v4455, %v4458
        %v4478 = vsel %vm4468, %v4464, 1326507024
        %v4479 = vsel %vm4467, %v4461, %v4478
        %v4480 = vsel %vm4466, %v4477, %v4479
        %v4481 = vshll.u32 %v4441, 8
        %v4482 = vmul.u32.u64.compose %v4481, %v4480
        %v4483 = vextract.low.u32 %v4482
        %v4484 = vextract.high.u32 %v4482
        %v4485 = vmul.u32.u64.compose %v4481, %v4476
        %v4486 = vextract.low.u32 %v4485
        %v4487 = vextract.high.u32 %v4485
        %v4488 = vmul.u32 %v4481, %v4472
        %v4489 = vadd.s32 %v4484, %v4486
        %vm4490 = vc.u32 %v4484, %v4486
        %v4491 = vadd.s32 %v4487, 1
        %v4492 = vsel %vm4490, %v4491, %v4487
        %v4493 = vadd.s32 %v4488, %v4492
        %v4494 = vadd.s32 %v4493, 536870912
        %v4495 = vshrl.u32 %v4494, 30
        %v4496 = vshll.u32 %v4495, 30
        %v4497 = vsub.s32 %v4493, %v4496
        %vm4498 = vcmp.lt.s32.totalorder %v4497, 0
        %v4499 = vsub.s32 0, %v4497
        %v4500 = vsel %vm4498, %v4499, %v4497
        %v4501 = vclz %v4500
        %v4502 = vsub.s32 %v4501, 2
        %vm4503 = vcmp.gt.s32.totalorder 0, %v4502
        %v4504 = vsel %vm4503, 0, %v4502
        %v4505 = vsub.s32 32, %v4504
        %v4506 = vshll.u32 %v4497, %v4504
        %v4507 = vshrl.u32 %v4489, %v4505
        %v4508 = vor.u32 %v4506, %v4507
        %v4509 = vsub.s32 4294967266, %v4504
        %v4510 = vadd.s32 %v4509, 127
        %v4511 = vshll.u32 %v4510, 23
        %v4512 = vor.u32 4788187, %v4511
        %v4513 = vand.u32 2147483647, %v4512
        %v4515 = vcvt.s32.f32 %v4508
        %v4516 = vmul.f32 %v4515, %v4513
        %v4517 = vxor.u32 %v4516, 2147483648
        %v4518 = vsel %vm4435, %v4517, %v4516
        %v4519 = vsub.s32 4, %v4495
        %v4520 = vsel %vm4435, %v4519, %v4495
        %v4521 = vsel %vm4434, %v4116, %v4518
        %v4522 = vsel %vm4434, 0, %v4520
        %v4523 = vcosq.f32.pop %v4521
        %v4524 = vsinq.f32.pop %v4521
        %vm4525 = vweird.f32 %v4116
        %v4526 = vadd.s32 %v4522, 3
        %v4527 = vand.u32 %v4526, 3
        %vm4528 = vcmp.lt.s32.totalorder %v4527, 2
        %vm4529 = vcmp.eq.s32.totalorder %v4527, 0
        %v4530 = vxor.u32 %v4524, 2147483648
        %v4531 = vsel %vm4529, %v4523, %v4530
        %vm4532 = vcmp.eq.s32.totalorder %v4527, 2
        %v4533 = vxor.u32 %v4523, 2147483648
        %v4534 = vsel %vm4532, %v4533, %v4524
        %v4535 = vsel %vm4528, %v4531, %v4534
        %v4536 = vsel %vm4525, nan, %v4535
        %v4537 = vand.u32 2147483647, %v4117
        %vm4538 = vcmp.le.f32.partialorder %v4537, 0.7853982
        %vm4539 = vcmp.lt.s32.totalorder %v4117, 0
        %v4540 = vand.u32 %v4117, 2139095040
        %v4541 = vshrl.u32 %v4540, 23
        %v4542 = vsub.s32 %v4541, 127
        %v4543 = vand.u32 2147483647, %v4117
        %v4544 = vand.u32 %v4543, 8388607
        %v4545 = vor.u32 %v4544, 8388608
        %v4546 = vsub.s32 0, %v4545
        %v4547 = vadd.s32 %v4542, 1
        %vm4548 = vcmp.gt.s32.totalorder %v4547, 0
        %v4549 = vsel %vm4548, %v4547, 0
        %v4550 = vshrl.u32 %v4549, 5
        %v4551 = vand.u32 %v4549, 31
        %v4552 = vsub.s32 32, %v4551
        %v4553 = vshrl.u32 683565275, %v4552
        %v4554 = vshll.u32 683565275, %v4551
        %v4555 = vshrl.u32 2475754826, %v4552
        %v4556 = vor.u32 %v4554, %v4555
        %v4557 = vshll.u32 2475754826, %v4551
        %v4558 = vshrl.u32 2131351028, %v4552
        %v4559 = vor.u32 %v4557, %v4558
        %v4560 = vshll.u32 2131351028, %v4551
        %v4561 = vshrl.u32 2102212464, %v4552
        %v4562 = vor.u32 %v4560, %v4561
        %v4563 = vshll.u32 2102212464, %v4551
        %v4564 = vshrl.u32 920167782, %v4552
        %v4565 = vor.u32 %v4563, %v4564
        %v4566 = vshll.u32 920167782, %v4551
        %v4567 = vshrl.u32 1326507024, %v4552
        %v4568 = vor.u32 %v4566, %v4567
        %vm4569 = vcmp.lt.s32.totalorder %v4550, 1
        %vm4570 = vcmp.lt.s32.totalorder %v4550, 2
        %vm4571 = vcmp.lt.s32.totalorder %v4550, 3
        %vm4572 = vcmp.lt.s32.totalorder %v4550, 4
        %v4573 = vsel %vm4569, %v4553, %v4556
        %v4574 = vsel %vm4572, %v4562, 2102212464
        %v4575 = vsel %vm4571, %v4559, %v4574
        %v4576 = vsel %vm4570, %v4573, %v4575
        %v4577 = vsel %vm4569, %v4556, %v4559
        %v4578 = vsel %vm4572, %v4565, 920167782
        %v4579 = vsel %vm4571, %v4562, %v4578
        %v4580 = vsel %vm4570, %v4577, %v4579
        %v4581 = vsel %vm4569, %v4559, %v4562
        %v4582 = vsel %vm4572, %v4568, 1326507024
        %v4583 = vsel %vm4571, %v4565, %v4582
        %v4584 = vsel %vm4570, %v4581, %v4583
        %v4585 = vshll.u32 %v4545, 8
        %v4586 = vmul.u32.u64.compose %v4585, %v4584
        %v4587 = vextract.low.u32 %v4586
        %v4588 = vextract.high.u32 %v4586
        %v4589 = vmul.u32.u64.compose %v4585, %v4580
        %v4590 = vextract.low.u32 %v4589
        %v4591 = vextract.high.u32 %v4589
        %v4592 = vmul.u32 %v4585, %v4576
        %v4593 = vadd.s32 %v4588, %v4590
        %vm4594 = vc.u32 %v4588, %v4590
        %v4595 = vadd.s32 %v4591, 1
        %v4596 = vsel %vm4594, %v4595, %v4591
        %v4597 = vadd.s32 %v4592, %v4596
        %v4598 = vadd.s32 %v4597, 536870912
        %v4599 = vshrl.u32 %v4598, 30
        %v4600 = vshll.u32 %v4599, 30
        %v4601 = vsub.s32 %v4597, %v4600
        %vm4602 = vcmp.lt.s32.totalorder %v4601, 0
        %v4603 = vsub.s32 0, %v4601
        %v4604 = vsel %vm4602, %v4603, %v4601
        %v4605 = vclz %v4604
        %v4606 = vsub.s32 %v4605, 2
        %vm4607 = vcmp.gt.s32.totalorder 0, %v4606
        %v4608 = vsel %vm4607, 0, %v4606
        %v4609 = vsub.s32 32, %v4608
        %v4610 = vshll.u32 %v4601, %v4608
        %v4611 = vshrl.u32 %v4593, %v4609
        %v4612 = vor.u32 %v4610, %v4611
        %v4613 = vsub.s32 4294967266, %v4608
        %v4614 = vadd.s32 %v4613, 127
        %v4615 = vshll.u32 %v4614, 23
        %v4616 = vor.u32 4788187, %v4615
        %v4617 = vand.u32 2147483647, %v4616
        %v4619 = vcvt.s32.f32 %v4612
        %v4620 = vmul.f32 %v4619, %v4617
        %v4621 = vxor.u32 %v4620, 2147483648
        %v4622 = vsel %vm4539, %v4621, %v4620
        %v4623 = vsub.s32 4, %v4599
        %v4624 = vsel %vm4539, %v4623, %v4599
        %v4625 = vsel %vm4538, %v4117, %v4622
        %v4626 = vsel %vm4538, 0, %v4624
        %v4627 = vcosq.f32.pop %v4625
        %v4628 = vsinq.f32.pop %v4625
        %vm4629 = vweird.f32 %v4117
        %v4630 = vadd.s32 %v4626, 3
        %v4631 = vand.u32 %v4630, 3
        %vm4632 = vcmp.lt.s32.totalorder %v4631, 2
        %vm4633 = vcmp.eq.s32.totalorder %v4631, 0
        %v4634 = vxor.u32 %v4628, 2147483648
        %v4635 = vsel %vm4633, %v4627, %v4634
        %vm4636 = vcmp.eq.s32.totalorder %v4631, 2
        %v4637 = vxor.u32 %v4627, 2147483648
        %v4638 = vsel %vm4636, %v4637, %v4628
        %v4639 = vsel %vm4632, %v4635, %v4638
        %v4640 = vsel %vm4629, nan, %v4639
        %v4641 = vand.u32 2147483647, %v4118
        %vm4642 = vcmp.le.f32.partialorder %v4641, 0.7853982
        %vm4643 = vcmp.lt.s32.totalorder %v4118, 0
        %v4644 = vand.u32 %v4118, 2139095040
        %v4645 = vshrl.u32 %v4644, 23
        %v4646 = vsub.s32 %v4645, 127
        %v4647 = vand.u32 2147483647, %v4118
        %v4648 = vand.u32 %v4647, 8388607
        %v4649 = vor.u32 %v4648, 8388608
        %v4650 = vsub.s32 0, %v4649
        %v4651 = vadd.s32 %v4646, 1
        %vm4652 = vcmp.gt.s32.totalorder %v4651, 0
        %v4653 = vsel %vm4652, %v4651, 0
        %v4654 = vshrl.u32 %v4653, 5
        %v4655 = vand.u32 %v4653, 31
        %v4656 = vsub.s32 32, %v4655
        %v4657 = vshrl.u32 683565275, %v4656
        %v4658 = vshll.u32 683565275, %v4655
        %v4659 = vshrl.u32 2475754826, %v4656
        %v4660 = vor.u32 %v4658, %v4659
        %v4661 = vshll.u32 2475754826, %v4655
        %v4662 = vshrl.u32 2131351028, %v4656
        %v4663 = vor.u32 %v4661, %v4662
        %v4664 = vshll.u32 2131351028, %v4655
        %v4665 = vshrl.u32 2102212464, %v4656
        %v4666 = vor.u32 %v4664, %v4665
        %v4667 = vshll.u32 2102212464, %v4655
        %v4668 = vshrl.u32 920167782, %v4656
        %v4669 = vor.u32 %v4667, %v4668
        %v4670 = vshll.u32 920167782, %v4655
        %v4671 = vshrl.u32 1326507024, %v4656
        %v4672 = vor.u32 %v4670, %v4671
        %vm4673 = vcmp.lt.s32.totalorder %v4654, 1
        %vm4674 = vcmp.lt.s32.totalorder %v4654, 2
        %vm4675 = vcmp.lt.s32.totalorder %v4654, 3
        %vm4676 = vcmp.lt.s32.totalorder %v4654, 4
        %v4677 = vsel %vm4673, %v4657, %v4660
        %v4678 = vsel %vm4676, %v4666, 2102212464
        %v4679 = vsel %vm4675, %v4663, %v4678
        %v4680 = vsel %vm4674, %v4677, %v4679
        %v4681 = vsel %vm4673, %v4660, %v4663
        %v4682 = vsel %vm4676, %v4669, 920167782
        %v4683 = vsel %vm4675, %v4666, %v4682
        %v4684 = vsel %vm4674, %v4681, %v4683
        %v4685 = vsel %vm4673, %v4663, %v4666
        %v4686 = vsel %vm4676, %v4672, 1326507024
        %v4687 = vsel %vm4675, %v4669, %v4686
        %v4688 = vsel %vm4674, %v4685, %v4687
        %v4689 = vshll.u32 %v4649, 8
        %v4690 = vmul.u32.u64.compose %v4689, %v4688
        %v4691 = vextract.low.u32 %v4690
        %v4692 = vextract.high.u32 %v4690
        %v4693 = vmul.u32.u64.compose %v4689, %v4684
        %v4694 = vextract.low.u32 %v4693
        %v4695 = vextract.high.u32 %v4693
        %v4696 = vmul.u32 %v4689, %v4680
        %v4697 = vadd.s32 %v4692, %v4694
        %vm4698 = vc.u32 %v4692, %v4694
        %v4699 = vadd.s32 %v4695, 1
        %v4700 = vsel %vm4698, %v4699, %v4695
        %v4701 = vadd.s32 %v4696, %v4700
        %v4702 = vadd.s32 %v4701, 536870912
        %v4703 = vshrl.u32 %v4702, 30
        %v4704 = vshll.u32 %v4703, 30
        %v4705 = vsub.s32 %v4701, %v4704
        %vm4706 = vcmp.lt.s32.totalorder %v4705, 0
        %v4707 = vsub.s32 0, %v4705
        %v4708 = vsel %vm4706, %v4707, %v4705
        %v4709 = vclz %v4708
        %v4710 = vsub.s32 %v4709, 2
        %vm4711 = vcmp.gt.s32.totalorder 0, %v4710
        %v4712 = vsel %vm4711, 0, %v4710
        %v4713 = vsub.s32 32, %v4712
        %v4714 = vshll.u32 %v4705, %v4712
        %v4715 = vshrl.u32 %v4697, %v4713
        %v4716 = vor.u32 %v4714, %v4715
        %v4717 = vsub.s32 4294967266, %v4712
        %v4718 = vadd.s32 %v4717, 127
        %v4719 = vshll.u32 %v4718, 23
        %v4720 = vor.u32 4788187, %v4719
        %v4721 = vand.u32 2147483647, %v4720
        %v4723 = vcvt.s32.f32 %v4716
        %v4724 = vmul.f32 %v4723, %v4721
        %v4725 = vxor.u32 %v4724, 2147483648
        %v4726 = vsel %vm4643, %v4725, %v4724
        %v4727 = vsub.s32 4, %v4703
        %v4728 = vsel %vm4643, %v4727, %v4703
        %v4729 = vsel %vm4642, %v4118, %v4726
        %v4730 = vsel %vm4642, 0, %v4728
        %v4731 = vcosq.f32.pop %v4729
        %v4732 = vsinq.f32.pop %v4729
        %vm4733 = vweird.f32 %v4118
        %v4734 = vadd.s32 %v4730, 3
        %v4735 = vand.u32 %v4734, 3
        %vm4736 = vcmp.lt.s32.totalorder %v4735, 2
        %vm4737 = vcmp.eq.s32.totalorder %v4735, 0
        %v4738 = vxor.u32 %v4732, 2147483648
        %v4739 = vsel %vm4737, %v4731, %v4738
        %vm4740 = vcmp.eq.s32.totalorder %v4735, 2
        %v4741 = vxor.u32 %v4731, 2147483648
        %v4742 = vsel %vm4740, %v4741, %v4732
        %v4743 = vsel %vm4736, %v4739, %v4742
        %v4744 = vsel %vm4733, nan, %v4743
        %v4745 = vand.u32 2147483647, %v4119
        %vm4746 = vcmp.le.f32.partialorder %v4745, 0.7853982
        %vm4747 = vcmp.lt.s32.totalorder %v4119, 0
        %v4748 = vand.u32 %v4119, 2139095040
        %v4749 = vshrl.u32 %v4748, 23
        %v4750 = vsub.s32 %v4749, 127
        %v4751 = vand.u32 2147483647, %v4119
        %v4752 = vand.u32 %v4751, 8388607
        %v4753 = vor.u32 %v4752, 8388608
        %v4754 = vsub.s32 0, %v4753
        %v4755 = vadd.s32 %v4750, 1
        %vm4756 = vcmp.gt.s32.totalorder %v4755, 0
        %v4757 = vsel %vm4756, %v4755, 0
        %v4758 = vshrl.u32 %v4757, 5
        %v4759 = vand.u32 %v4757, 31
        %v4760 = vsub.s32 32, %v4759
        %v4761 = vshrl.u32 683565275, %v4760
        %v4762 = vshll.u32 683565275, %v4759
        %v4763 = vshrl.u32 2475754826, %v4760
        %v4764 = vor.u32 %v4762, %v4763
        %v4765 = vshll.u32 2475754826, %v4759
        %v4766 = vshrl.u32 2131351028, %v4760
        %v4767 = vor.u32 %v4765, %v4766
        %v4768 = vshll.u32 2131351028, %v4759
        %v4769 = vshrl.u32 2102212464, %v4760
        %v4770 = vor.u32 %v4768, %v4769
        %v4771 = vshll.u32 2102212464, %v4759
        %v4772 = vshrl.u32 920167782, %v4760
        %v4773 = vor.u32 %v4771, %v4772
        %v4774 = vshll.u32 920167782, %v4759
        %v4775 = vshrl.u32 1326507024, %v4760
        %v4776 = vor.u32 %v4774, %v4775
        %vm4777 = vcmp.lt.s32.totalorder %v4758, 1
        %vm4778 = vcmp.lt.s32.totalorder %v4758, 2
        %vm4779 = vcmp.lt.s32.totalorder %v4758, 3
        %vm4780 = vcmp.lt.s32.totalorder %v4758, 4
        %v4781 = vsel %vm4777, %v4761, %v4764
        %v4782 = vsel %vm4780, %v4770, 2102212464
        %v4783 = vsel %vm4779, %v4767, %v4782
        %v4784 = vsel %vm4778, %v4781, %v4783
        %v4785 = vsel %vm4777, %v4764, %v4767
        %v4786 = vsel %vm4780, %v4773, 920167782
        %v4787 = vsel %vm4779, %v4770, %v4786
        %v4788 = vsel %vm4778, %v4785, %v4787
        %v4789 = vsel %vm4777, %v4767, %v4770
        %v4790 = vsel %vm4780, %v4776, 1326507024
        %v4791 = vsel %vm4779, %v4773, %v4790
        %v4792 = vsel %vm4778, %v4789, %v4791
        %v4793 = vshll.u32 %v4753, 8
        %v4794 = vmul.u32.u64.compose %v4793, %v4792
        %v4795 = vextract.low.u32 %v4794
        %v4796 = vextract.high.u32 %v4794
        %v4797 = vmul.u32.u64.compose %v4793, %v4788
        %v4798 = vextract.low.u32 %v4797
        %v4799 = vextract.high.u32 %v4797
        %v4800 = vmul.u32 %v4793, %v4784
        %v4801 = vadd.s32 %v4796, %v4798
        %vm4802 = vc.u32 %v4796, %v4798
        %v4803 = vadd.s32 %v4799, 1
        %v4804 = vsel %vm4802, %v4803, %v4799
        %v4805 = vadd.s32 %v4800, %v4804
        %v4806 = vadd.s32 %v4805, 536870912
        %v4807 = vshrl.u32 %v4806, 30
        %v4808 = vshll.u32 %v4807, 30
        %v4809 = vsub.s32 %v4805, %v4808
        %vm4810 = vcmp.lt.s32.totalorder %v4809, 0
        %v4811 = vsub.s32 0, %v4809
        %v4812 = vsel %vm4810, %v4811, %v4809
        %v4813 = vclz %v4812
        %v4814 = vsub.s32 %v4813, 2
        %vm4815 = vcmp.gt.s32.totalorder 0, %v4814
        %v4816 = vsel %vm4815, 0, %v4814
        %v4817 = vsub.s32 32, %v4816
        %v4818 = vshll.u32 %v4809, %v4816
        %v4819 = vshrl.u32 %v4801, %v4817
        %v4820 = vor.u32 %v4818, %v4819
        %v4821 = vsub.s32 4294967266, %v4816
        %v4822 = vadd.s32 %v4821, 127
        %v4823 = vshll.u32 %v4822, 23
        %v4824 = vor.u32 4788187, %v4823
        %v4825 = vand.u32 2147483647, %v4824
        %v4827 = vcvt.s32.f32 %v4820
        %v4828 = vmul.f32 %v4827, %v4825
        %v4829 = vxor.u32 %v4828, 2147483648
        %v4830 = vsel %vm4747, %v4829, %v4828
        %v4831 = vsub.s32 4, %v4807
        %v4832 = vsel %vm4747, %v4831, %v4807
        %v4833 = vsel %vm4746, %v4119, %v4830
        %v4834 = vsel %vm4746, 0, %v4832
        %v4835 = vcosq.f32.pop %v4833
        %v4836 = vsinq.f32.pop %v4833
        %vm4837 = vweird.f32 %v4119
        %v4838 = vadd.s32 %v4834, 3
        %v4839 = vand.u32 %v4838, 3
        %vm4840 = vcmp.lt.s32.totalorder %v4839, 2
        %vm4841 = vcmp.eq.s32.totalorder %v4839, 0
        %v4842 = vxor.u32 %v4836, 2147483648
        %v4843 = vsel %vm4841, %v4835, %v4842
        %vm4844 = vcmp.eq.s32.totalorder %v4839, 2
        %v4845 = vxor.u32 %v4835, 2147483648
        %v4846 = vsel %vm4844, %v4845, %v4836
        %v4847 = vsel %vm4840, %v4843, %v4846
        %v4848 = vsel %vm4837, nan, %v4847
        %v4849 = vand.u32 2147483647, %v4120
        %vm4850 = vcmp.le.f32.partialorder %v4849, 0.7853982
        %vm4851 = vcmp.lt.s32.totalorder %v4120, 0
        %v4852 = vand.u32 %v4120, 2139095040
        %v4853 = vshrl.u32 %v4852, 23
        %v4854 = vsub.s32 %v4853, 127
        %v4855 = vand.u32 2147483647, %v4120
        %v4856 = vand.u32 %v4855, 8388607
        %v4857 = vor.u32 %v4856, 8388608
        %v4858 = vsub.s32 0, %v4857
        %v4859 = vadd.s32 %v4854, 1
        %vm4860 = vcmp.gt.s32.totalorder %v4859, 0
        %v4861 = vsel %vm4860, %v4859, 0
        %v4862 = vshrl.u32 %v4861, 5
        %v4863 = vand.u32 %v4861, 31
        %v4864 = vsub.s32 32, %v4863
        %v4865 = vshrl.u32 683565275, %v4864
        %v4866 = vshll.u32 683565275, %v4863
        %v4867 = vshrl.u32 2475754826, %v4864
        %v4868 = vor.u32 %v4866, %v4867
        %v4869 = vshll.u32 2475754826, %v4863
        %v4870 = vshrl.u32 2131351028, %v4864
        %v4871 = vor.u32 %v4869, %v4870
        %v4872 = vshll.u32 2131351028, %v4863
        %v4873 = vshrl.u32 2102212464, %v4864
        %v4874 = vor.u32 %v4872, %v4873
        %v4875 = vshll.u32 2102212464, %v4863
        %v4876 = vshrl.u32 920167782, %v4864
        %v4877 = vor.u32 %v4875, %v4876
        %v4878 = vshll.u32 920167782, %v4863
        %v4879 = vshrl.u32 1326507024, %v4864
        %v4880 = vor.u32 %v4878, %v4879
        %vm4881 = vcmp.lt.s32.totalorder %v4862, 1
        %vm4882 = vcmp.lt.s32.totalorder %v4862, 2
        %vm4883 = vcmp.lt.s32.totalorder %v4862, 3
        %vm4884 = vcmp.lt.s32.totalorder %v4862, 4
        %v4885 = vsel %vm4881, %v4865, %v4868
        %v4886 = vsel %vm4884, %v4874, 2102212464
        %v4887 = vsel %vm4883, %v4871, %v4886
        %v4888 = vsel %vm4882, %v4885, %v4887
        %v4889 = vsel %vm4881, %v4868, %v4871
        %v4890 = vsel %vm4884, %v4877, 920167782
        %v4891 = vsel %vm4883, %v4874, %v4890
        %v4892 = vsel %vm4882, %v4889, %v4891
        %v4893 = vsel %vm4881, %v4871, %v4874
        %v4894 = vsel %vm4884, %v4880, 1326507024
        %v4895 = vsel %vm4883, %v4877, %v4894
        %v4896 = vsel %vm4882, %v4893, %v4895
        %v4897 = vshll.u32 %v4857, 8
        %v4898 = vmul.u32.u64.compose %v4897, %v4896
        %v4899 = vextract.low.u32 %v4898
        %v4900 = vextract.high.u32 %v4898
        %v4901 = vmul.u32.u64.compose %v4897, %v4892
        %v4902 = vextract.low.u32 %v4901
        %v4903 = vextract.high.u32 %v4901
        %v4904 = vmul.u32 %v4897, %v4888
        %v4905 = vadd.s32 %v4900, %v4902
        %vm4906 = vc.u32 %v4900, %v4902
        %v4907 = vadd.s32 %v4903, 1
        %v4908 = vsel %vm4906, %v4907, %v4903
        %v4909 = vadd.s32 %v4904, %v4908
        %v4910 = vadd.s32 %v4909, 536870912
        %v4911 = vshrl.u32 %v4910, 30
        %v4912 = vshll.u32 %v4911, 30
        %v4913 = vsub.s32 %v4909, %v4912
        %vm4914 = vcmp.lt.s32.totalorder %v4913, 0
        %v4915 = vsub.s32 0, %v4913
        %v4916 = vsel %vm4914, %v4915, %v4913
        %v4917 = vclz %v4916
        %v4918 = vsub.s32 %v4917, 2
        %vm4919 = vcmp.gt.s32.totalorder 0, %v4918
        %v4920 = vsel %vm4919, 0, %v4918
        %v4921 = vsub.s32 32, %v4920
        %v4922 = vshll.u32 %v4913, %v4920
        %v4923 = vshrl.u32 %v4905, %v4921
        %v4924 = vor.u32 %v4922, %v4923
        %v4925 = vsub.s32 4294967266, %v4920
        %v4926 = vadd.s32 %v4925, 127
        %v4927 = vshll.u32 %v4926, 23
        %v4928 = vor.u32 4788187, %v4927
        %v4929 = vand.u32 2147483647, %v4928
        %v4931 = vcvt.s32.f32 %v4924
        %v4932 = vmul.f32 %v4931, %v4929
        %v4933 = vxor.u32 %v4932, 2147483648
        %v4934 = vsel %vm4851, %v4933, %v4932
        %v4935 = vsub.s32 4, %v4911
        %v4936 = vsel %vm4851, %v4935, %v4911
        %v4937 = vsel %vm4850, %v4120, %v4934
        %v4938 = vsel %vm4850, 0, %v4936
        %v4939 = vcosq.f32.pop %v4937
        %v4940 = vsinq.f32.pop %v4937
        %vm4941 = vweird.f32 %v4120
        %v4942 = vadd.s32 %v4938, 3
        %v4943 = vand.u32 %v4942, 3
        %vm4944 = vcmp.lt.s32.totalorder %v4943, 2
        %vm4945 = vcmp.eq.s32.totalorder %v4943, 0
        %v4946 = vxor.u32 %v4940, 2147483648
        %v4947 = vsel %vm4945, %v4939, %v4946
        %vm4948 = vcmp.eq.s32.totalorder %v4943, 2
        %v4949 = vxor.u32 %v4939, 2147483648
        %v4950 = vsel %vm4948, %v4949, %v4940
        %v4951 = vsel %vm4944, %v4947, %v4950
        %v4952 = vsel %vm4941, nan, %v4951
        %v4953 = vand.u32 2147483647, %v4113
        %vm4954 = vcmp.le.f32.partialorder %v4953, 0.7853982
        %vm4955 = vcmp.lt.s32.totalorder %v4113, 0
        %v4956 = vand.u32 %v4113, 2139095040
        %v4957 = vshrl.u32 %v4956, 23
        %v4958 = vsub.s32 %v4957, 127
        %v4959 = vand.u32 2147483647, %v4113
        %v4960 = vand.u32 %v4959, 8388607
        %v4961 = vor.u32 %v4960, 8388608
        %v4962 = vsub.s32 0, %v4961
        %v4963 = vadd.s32 %v4958, 1
        %vm4964 = vcmp.gt.s32.totalorder %v4963, 0
        %v4965 = vsel %vm4964, %v4963, 0
        %v4966 = vshrl.u32 %v4965, 5
        %v4967 = vand.u32 %v4965, 31
        %v4968 = vsub.s32 32, %v4967
        %v4969 = vshrl.u32 683565275, %v4968
        %v4970 = vshll.u32 683565275, %v4967
        %v4971 = vshrl.u32 2475754826, %v4968
        %v4972 = vor.u32 %v4970, %v4971
        %v4973 = vshll.u32 2475754826, %v4967
        %v4974 = vshrl.u32 2131351028, %v4968
        %v4975 = vor.u32 %v4973, %v4974
        %v4976 = vshll.u32 2131351028, %v4967
        %v4977 = vshrl.u32 2102212464, %v4968
        %v4978 = vor.u32 %v4976, %v4977
        %v4979 = vshll.u32 2102212464, %v4967
        %v4980 = vshrl.u32 920167782, %v4968
        %v4981 = vor.u32 %v4979, %v4980
        %v4982 = vshll.u32 920167782, %v4967
        %v4983 = vshrl.u32 1326507024, %v4968
        %v4984 = vor.u32 %v4982, %v4983
        %vm4985 = vcmp.lt.s32.totalorder %v4966, 1
        %vm4986 = vcmp.lt.s32.totalorder %v4966, 2
        %vm4987 = vcmp.lt.s32.totalorder %v4966, 3
        %vm4988 = vcmp.lt.s32.totalorder %v4966, 4
        %v4989 = vsel %vm4985, %v4969, %v4972
        %v4990 = vsel %vm4988, %v4978, 2102212464
        %v4991 = vsel %vm4987, %v4975, %v4990
        %v4992 = vsel %vm4986, %v4989, %v4991
        %v4993 = vsel %vm4985, %v4972, %v4975
        %v4994 = vsel %vm4988, %v4981, 920167782
        %v4995 = vsel %vm4987, %v4978, %v4994
        %v4996 = vsel %vm4986, %v4993, %v4995
        %v4997 = vsel %vm4985, %v4975, %v4978
        %v4998 = vsel %vm4988, %v4984, 1326507024
        %v4999 = vsel %vm4987, %v4981, %v4998
        %v5000 = vsel %vm4986, %v4997, %v4999
        %v5001 = vshll.u32 %v4961, 8
        %v5002 = vmul.u32.u64.compose %v5001, %v5000
        %v5003 = vextract.low.u32 %v5002
        %v5004 = vextract.high.u32 %v5002
        %v5005 = vmul.u32.u64.compose %v5001, %v4996
        %v5006 = vextract.low.u32 %v5005
        %v5007 = vextract.high.u32 %v5005
        %v5008 = vmul.u32 %v5001, %v4992
        %v5009 = vadd.s32 %v5004, %v5006
        %vm5010 = vc.u32 %v5004, %v5006
        %v5011 = vadd.s32 %v5007, 1
        %v5012 = vsel %vm5010, %v5011, %v5007
        %v5013 = vadd.s32 %v5008, %v5012
        %v5014 = vadd.s32 %v5013, 536870912
        %v5015 = vshrl.u32 %v5014, 30
        %v5016 = vshll.u32 %v5015, 30
        %v5017 = vsub.s32 %v5013, %v5016
        %vm5018 = vcmp.lt.s32.totalorder %v5017, 0
        %v5019 = vsub.s32 0, %v5017
        %v5020 = vsel %vm5018, %v5019, %v5017
        %v5021 = vclz %v5020
        %v5022 = vsub.s32 %v5021, 2
        %vm5023 = vcmp.gt.s32.totalorder 0, %v5022
        %v5024 = vsel %vm5023, 0, %v5022
        %v5025 = vsub.s32 32, %v5024
        %v5026 = vshll.u32 %v5017, %v5024
        %v5027 = vshrl.u32 %v5009, %v5025
        %v5028 = vor.u32 %v5026, %v5027
        %v5029 = vsub.s32 4294967266, %v5024
        %v5030 = vadd.s32 %v5029, 127
        %v5031 = vshll.u32 %v5030, 23
        %v5032 = vor.u32 4788187, %v5031
        %v5033 = vand.u32 2147483647, %v5032
        %v5035 = vcvt.s32.f32 %v5028
        %v5036 = vmul.f32 %v5035, %v5033
        %v5037 = vxor.u32 %v5036, 2147483648
        %v5038 = vsel %vm4955, %v5037, %v5036
        %v5039 = vsub.s32 4, %v5015
        %v5040 = vsel %vm4955, %v5039, %v5015
        %v5041 = vsel %vm4954, %v4113, %v5038
        %v5042 = vsel %vm4954, 0, %v5040
        %v5043 = vcosq.f32.pop %v5041
        %v5044 = vsinq.f32.pop %v5041
        %vm5045 = vweird.f32 %v4113
        %v5046 = vand.u32 %v5042, 3
        %vm5047 = vcmp.lt.s32.totalorder %v5046, 2
        %vm5048 = vcmp.eq.s32.totalorder %v5046, 0
        %v5049 = vxor.u32 %v5044, 2147483648
        %v5050 = vsel %vm5048, %v5043, %v5049
        %vm5051 = vcmp.eq.s32.totalorder %v5046, 2
        %v5052 = vxor.u32 %v5043, 2147483648
        %v5053 = vsel %vm5051, %v5052, %v5044
        %v5054 = vsel %vm5047, %v5050, %v5053
        %v5055 = vsel %vm5045, nan, %v5054
        %v5056 = vand.u32 2147483647, %v4114
        %vm5057 = vcmp.le.f32.partialorder %v5056, 0.7853982
        %vm5058 = vcmp.lt.s32.totalorder %v4114, 0
        %v5059 = vand.u32 %v4114, 2139095040
        %v5060 = vshrl.u32 %v5059, 23
        %v5061 = vsub.s32 %v5060, 127
        %v5062 = vand.u32 2147483647, %v4114
        %v5063 = vand.u32 %v5062, 8388607
        %v5064 = vor.u32 %v5063, 8388608
        %v5065 = vsub.s32 0, %v5064
        %v5066 = vadd.s32 %v5061, 1
        %vm5067 = vcmp.gt.s32.totalorder %v5066, 0
        %v5068 = vsel %vm5067, %v5066, 0
        %v5069 = vshrl.u32 %v5068, 5
        %v5070 = vand.u32 %v5068, 31
        %v5071 = vsub.s32 32, %v5070
        %v5072 = vshrl.u32 683565275, %v5071
        %v5073 = vshll.u32 683565275, %v5070
        %v5074 = vshrl.u32 2475754826, %v5071
        %v5075 = vor.u32 %v5073, %v5074
        %v5076 = vshll.u32 2475754826, %v5070
        %v5077 = vshrl.u32 2131351028, %v5071
        %v5078 = vor.u32 %v5076, %v5077
        %v5079 = vshll.u32 2131351028, %v5070
        %v5080 = vshrl.u32 2102212464, %v5071
        %v5081 = vor.u32 %v5079, %v5080
        %v5082 = vshll.u32 2102212464, %v5070
        %v5083 = vshrl.u32 920167782, %v5071
        %v5084 = vor.u32 %v5082, %v5083
        %v5085 = vshll.u32 920167782, %v5070
        %v5086 = vshrl.u32 1326507024, %v5071
        %v5087 = vor.u32 %v5085, %v5086
        %vm5088 = vcmp.lt.s32.totalorder %v5069, 1
        %vm5089 = vcmp.lt.s32.totalorder %v5069, 2
        %vm5090 = vcmp.lt.s32.totalorder %v5069, 3
        %vm5091 = vcmp.lt.s32.totalorder %v5069, 4
        %v5092 = vsel %vm5088, %v5072, %v5075
        %v5093 = vsel %vm5091, %v5081, 2102212464
        %v5094 = vsel %vm5090, %v5078, %v5093
        %v5095 = vsel %vm5089, %v5092, %v5094
        %v5096 = vsel %vm5088, %v5075, %v5078
        %v5097 = vsel %vm5091, %v5084, 920167782
        %v5098 = vsel %vm5090, %v5081, %v5097
        %v5099 = vsel %vm5089, %v5096, %v5098
        %v5100 = vsel %vm5088, %v5078, %v5081
        %v5101 = vsel %vm5091, %v5087, 1326507024
        %v5102 = vsel %vm5090, %v5084, %v5101
        %v5103 = vsel %vm5089, %v5100, %v5102
        %v5104 = vshll.u32 %v5064, 8
        %v5105 = vmul.u32.u64.compose %v5104, %v5103
        %v5106 = vextract.low.u32 %v5105
        %v5107 = vextract.high.u32 %v5105
        %v5108 = vmul.u32.u64.compose %v5104, %v5099
        %v5109 = vextract.low.u32 %v5108
        %v5110 = vextract.high.u32 %v5108
        %v5111 = vmul.u32 %v5104, %v5095
        %v5112 = vadd.s32 %v5107, %v5109
        %vm5113 = vc.u32 %v5107, %v5109
        %v5114 = vadd.s32 %v5110, 1
        %v5115 = vsel %vm5113, %v5114, %v5110
        %v5116 = vadd.s32 %v5111, %v5115
        %v5117 = vadd.s32 %v5116, 536870912
        %v5118 = vshrl.u32 %v5117, 30
        %v5119 = vshll.u32 %v5118, 30
        %v5120 = vsub.s32 %v5116, %v5119
        %vm5121 = vcmp.lt.s32.totalorder %v5120, 0
        %v5122 = vsub.s32 0, %v5120
        %v5123 = vsel %vm5121, %v5122, %v5120
        %v5124 = vclz %v5123
        %v5125 = vsub.s32 %v5124, 2
        %vm5126 = vcmp.gt.s32.totalorder 0, %v5125
        %v5127 = vsel %vm5126, 0, %v5125
        %v5128 = vsub.s32 32, %v5127
        %v5129 = vshll.u32 %v5120, %v5127
        %v5130 = vshrl.u32 %v5112, %v5128
        %v5131 = vor.u32 %v5129, %v5130
        %v5132 = vsub.s32 4294967266, %v5127
        %v5133 = vadd.s32 %v5132, 127
        %v5134 = vshll.u32 %v5133, 23
        %v5135 = vor.u32 4788187, %v5134
        %v5136 = vand.u32 2147483647, %v5135
        %v5138 = vcvt.s32.f32 %v5131
        %v5139 = vmul.f32 %v5138, %v5136
        %v5140 = vxor.u32 %v5139, 2147483648
        %v5141 = vsel %vm5058, %v5140, %v5139
        %v5142 = vsub.s32 4, %v5118
        %v5143 = vsel %vm5058, %v5142, %v5118
        %v5144 = vsel %vm5057, %v4114, %v5141
        %v5145 = vsel %vm5057, 0, %v5143
        %v5146 = vcosq.f32.pop %v5144
        %v5147 = vsinq.f32.pop %v5144
        %vm5148 = vweird.f32 %v4114
        %v5149 = vand.u32 %v5145, 3
        %vm5150 = vcmp.lt.s32.totalorder %v5149, 2
        %vm5151 = vcmp.eq.s32.totalorder %v5149, 0
        %v5152 = vxor.u32 %v5147, 2147483648
        %v5153 = vsel %vm5151, %v5146, %v5152
        %vm5154 = vcmp.eq.s32.totalorder %v5149, 2
        %v5155 = vxor.u32 %v5146, 2147483648
        %v5156 = vsel %vm5154, %v5155, %v5147
        %v5157 = vsel %vm5150, %v5153, %v5156
        %v5158 = vsel %vm5148, nan, %v5157
        %v5159 = vand.u32 2147483647, %v4115
        %vm5160 = vcmp.le.f32.partialorder %v5159, 0.7853982
        %vm5161 = vcmp.lt.s32.totalorder %v4115, 0
        %v5162 = vand.u32 %v4115, 2139095040
        %v5163 = vshrl.u32 %v5162, 23
        %v5164 = vsub.s32 %v5163, 127
        %v5165 = vand.u32 2147483647, %v4115
        %v5166 = vand.u32 %v5165, 8388607
        %v5167 = vor.u32 %v5166, 8388608
        %v5168 = vsub.s32 0, %v5167
        %v5169 = vadd.s32 %v5164, 1
        %vm5170 = vcmp.gt.s32.totalorder %v5169, 0
        %v5171 = vsel %vm5170, %v5169, 0
        %v5172 = vshrl.u32 %v5171, 5
        %v5173 = vand.u32 %v5171, 31
        %v5174 = vsub.s32 32, %v5173
        %v5175 = vshrl.u32 683565275, %v5174
        %v5176 = vshll.u32 683565275, %v5173
        %v5177 = vshrl.u32 2475754826, %v5174
        %v5178 = vor.u32 %v5176, %v5177
        %v5179 = vshll.u32 2475754826, %v5173
        %v5180 = vshrl.u32 2131351028, %v5174
        %v5181 = vor.u32 %v5179, %v5180
        %v5182 = vshll.u32 2131351028, %v5173
        %v5183 = vshrl.u32 2102212464, %v5174
        %v5184 = vor.u32 %v5182, %v5183
        %v5185 = vshll.u32 2102212464, %v5173
        %v5186 = vshrl.u32 920167782, %v5174
        %v5187 = vor.u32 %v5185, %v5186
        %v5188 = vshll.u32 920167782, %v5173
        %v5189 = vshrl.u32 1326507024, %v5174
        %v5190 = vor.u32 %v5188, %v5189
        %vm5191 = vcmp.lt.s32.totalorder %v5172, 1
        %vm5192 = vcmp.lt.s32.totalorder %v5172, 2
        %vm5193 = vcmp.lt.s32.totalorder %v5172, 3
        %vm5194 = vcmp.lt.s32.totalorder %v5172, 4
        %v5195 = vsel %vm5191, %v5175, %v5178
        %v5196 = vsel %vm5194, %v5184, 2102212464
        %v5197 = vsel %vm5193, %v5181, %v5196
        %v5198 = vsel %vm5192, %v5195, %v5197
        %v5199 = vsel %vm5191, %v5178, %v5181
        %v5200 = vsel %vm5194, %v5187, 920167782
        %v5201 = vsel %vm5193, %v5184, %v5200
        %v5202 = vsel %vm5192, %v5199, %v5201
        %v5203 = vsel %vm5191, %v5181, %v5184
        %v5204 = vsel %vm5194, %v5190, 1326507024
        %v5205 = vsel %vm5193, %v5187, %v5204
        %v5206 = vsel %vm5192, %v5203, %v5205
        %v5207 = vshll.u32 %v5167, 8
        %v5208 = vmul.u32.u64.compose %v5207, %v5206
        %v5209 = vextract.low.u32 %v5208
        %v5210 = vextract.high.u32 %v5208
        %v5211 = vmul.u32.u64.compose %v5207, %v5202
        %v5212 = vextract.low.u32 %v5211
        %v5213 = vextract.high.u32 %v5211
        %v5214 = vmul.u32 %v5207, %v5198
        %v5215 = vadd.s32 %v5210, %v5212
        %vm5216 = vc.u32 %v5210, %v5212
        %v5217 = vadd.s32 %v5213, 1
        %v5218 = vsel %vm5216, %v5217, %v5213
        %v5219 = vadd.s32 %v5214, %v5218
        %v5220 = vadd.s32 %v5219, 536870912
        %v5221 = vshrl.u32 %v5220, 30
        %v5222 = vshll.u32 %v5221, 30
        %v5223 = vsub.s32 %v5219, %v5222
        %vm5224 = vcmp.lt.s32.totalorder %v5223, 0
        %v5225 = vsub.s32 0, %v5223
        %v5226 = vsel %vm5224, %v5225, %v5223
        %v5227 = vclz %v5226
        %v5228 = vsub.s32 %v5227, 2
        %vm5229 = vcmp.gt.s32.totalorder 0, %v5228
        %v5230 = vsel %vm5229, 0, %v5228
        %v5231 = vsub.s32 32, %v5230
        %v5232 = vshll.u32 %v5223, %v5230
        %v5233 = vshrl.u32 %v5215, %v5231
        %v5234 = vor.u32 %v5232, %v5233
        %v5235 = vsub.s32 4294967266, %v5230
        %v5236 = vadd.s32 %v5235, 127
        %v5237 = vshll.u32 %v5236, 23
        %v5238 = vor.u32 4788187, %v5237
        %v5239 = vand.u32 2147483647, %v5238
        %v5241 = vcvt.s32.f32 %v5234
        %v5242 = vmul.f32 %v5241, %v5239
        %v5243 = vxor.u32 %v5242, 2147483648
        %v5244 = vsel %vm5161, %v5243, %v5242
        %v5245 = vsub.s32 4, %v5221
        %v5246 = vsel %vm5161, %v5245, %v5221
        %v5247 = vsel %vm5160, %v4115, %v5244
        %v5248 = vsel %vm5160, 0, %v5246
        %v5249 = vcosq.f32.pop %v5247
        %v5250 = vsinq.f32.pop %v5247
        %vm5251 = vweird.f32 %v4115
        %v5252 = vand.u32 %v5248, 3
        %vm5253 = vcmp.lt.s32.totalorder %v5252, 2
        %vm5254 = vcmp.eq.s32.totalorder %v5252, 0
        %v5255 = vxor.u32 %v5250, 2147483648
        %v5256 = vsel %vm5254, %v5249, %v5255
        %vm5257 = vcmp.eq.s32.totalorder %v5252, 2
        %v5258 = vxor.u32 %v5249, 2147483648
        %v5259 = vsel %vm5257, %v5258, %v5250
        %v5260 = vsel %vm5253, %v5256, %v5259
        %v5261 = vsel %vm5251, nan, %v5260
        %v5262 = vand.u32 2147483647, %v4116
        %vm5263 = vcmp.le.f32.partialorder %v5262, 0.7853982
        %vm5264 = vcmp.lt.s32.totalorder %v4116, 0
        %v5265 = vand.u32 %v4116, 2139095040
        %v5266 = vshrl.u32 %v5265, 23
        %v5267 = vsub.s32 %v5266, 127
        %v5268 = vand.u32 2147483647, %v4116
        %v5269 = vand.u32 %v5268, 8388607
        %v5270 = vor.u32 %v5269, 8388608
        %v5271 = vsub.s32 0, %v5270
        %v5272 = vadd.s32 %v5267, 1
        %vm5273 = vcmp.gt.s32.totalorder %v5272, 0
        %v5274 = vsel %vm5273, %v5272, 0
        %v5275 = vshrl.u32 %v5274, 5
        %v5276 = vand.u32 %v5274, 31
        %v5277 = vsub.s32 32, %v5276
        %v5278 = vshrl.u32 683565275, %v5277
        %v5279 = vshll.u32 683565275, %v5276
        %v5280 = vshrl.u32 2475754826, %v5277
        %v5281 = vor.u32 %v5279, %v5280
        %v5282 = vshll.u32 2475754826, %v5276
        %v5283 = vshrl.u32 2131351028, %v5277
        %v5284 = vor.u32 %v5282, %v5283
        %v5285 = vshll.u32 2131351028, %v5276
        %v5286 = vshrl.u32 2102212464, %v5277
        %v5287 = vor.u32 %v5285, %v5286
        %v5288 = vshll.u32 2102212464, %v5276
        %v5289 = vshrl.u32 920167782, %v5277
        %v5290 = vor.u32 %v5288, %v5289
        %v5291 = vshll.u32 920167782, %v5276
        %v5292 = vshrl.u32 1326507024, %v5277
        %v5293 = vor.u32 %v5291, %v5292
        %vm5294 = vcmp.lt.s32.totalorder %v5275, 1
        %vm5295 = vcmp.lt.s32.totalorder %v5275, 2
        %vm5296 = vcmp.lt.s32.totalorder %v5275, 3
        %vm5297 = vcmp.lt.s32.totalorder %v5275, 4
        %v5298 = vsel %vm5294, %v5278, %v5281
        %v5299 = vsel %vm5297, %v5287, 2102212464
        %v5300 = vsel %vm5296, %v5284, %v5299
        %v5301 = vsel %vm5295, %v5298, %v5300
        %v5302 = vsel %vm5294, %v5281, %v5284
        %v5303 = vsel %vm5297, %v5290, 920167782
        %v5304 = vsel %vm5296, %v5287, %v5303
        %v5305 = vsel %vm5295, %v5302, %v5304
        %v5306 = vsel %vm5294, %v5284, %v5287
        %v5307 = vsel %vm5297, %v5293, 1326507024
        %v5308 = vsel %vm5296, %v5290, %v5307
        %v5309 = vsel %vm5295, %v5306, %v5308
        %v5310 = vshll.u32 %v5270, 8
        %v5311 = vmul.u32.u64.compose %v5310, %v5309
        %v5312 = vextract.low.u32 %v5311
        %v5313 = vextract.high.u32 %v5311
        %v5314 = vmul.u32.u64.compose %v5310, %v5305
        %v5315 = vextract.low.u32 %v5314
        %v5316 = vextract.high.u32 %v5314
        %v5317 = vmul.u32 %v5310, %v5301
        %v5318 = vadd.s32 %v5313, %v5315
        %vm5319 = vc.u32 %v5313, %v5315
        %v5320 = vadd.s32 %v5316, 1
        %v5321 = vsel %vm5319, %v5320, %v5316
        %v5322 = vadd.s32 %v5317, %v5321
        %v5323 = vadd.s32 %v5322, 536870912
        %v5324 = vshrl.u32 %v5323, 30
        %v5325 = vshll.u32 %v5324, 30
        %v5326 = vsub.s32 %v5322, %v5325
        %vm5327 = vcmp.lt.s32.totalorder %v5326, 0
        %v5328 = vsub.s32 0, %v5326
        %v5329 = vsel %vm5327, %v5328, %v5326
        %v5330 = vclz %v5329
        %v5331 = vsub.s32 %v5330, 2
        %vm5332 = vcmp.gt.s32.totalorder 0, %v5331
        %v5333 = vsel %vm5332, 0, %v5331
        %v5334 = vsub.s32 32, %v5333
        %v5335 = vshll.u32 %v5326, %v5333
        %v5336 = vshrl.u32 %v5318, %v5334
        %v5337 = vor.u32 %v5335, %v5336
        %v5338 = vsub.s32 4294967266, %v5333
        %v5339 = vadd.s32 %v5338, 127
        %v5340 = vshll.u32 %v5339, 23
        %v5341 = vor.u32 4788187, %v5340
        %v5342 = vand.u32 2147483647, %v5341
        %v5344 = vcvt.s32.f32 %v5337
        %v5345 = vmul.f32 %v5344, %v5342
        %v5346 = vxor.u32 %v5345, 2147483648
        %v5347 = vsel %vm5264, %v5346, %v5345
        %v5348 = vsub.s32 4, %v5324
        %v5349 = vsel %vm5264, %v5348, %v5324
        %v5350 = vsel %vm5263, %v4116, %v5347
        %v5351 = vsel %vm5263, 0, %v5349
        %v5352 = vcosq.f32.pop %v5350
        %v5353 = vsinq.f32.pop %v5350
        %vm5354 = vweird.f32 %v4116
        %v5355 = vand.u32 %v5351, 3
        %vm5356 = vcmp.lt.s32.totalorder %v5355, 2
        %vm5357 = vcmp.eq.s32.totalorder %v5355, 0
        %v5358 = vxor.u32 %v5353, 2147483648
        %v5359 = vsel %vm5357, %v5352, %v5358
        %vm5360 = vcmp.eq.s32.totalorder %v5355, 2
        %v5361 = vxor.u32 %v5352, 2147483648
        %v5362 = vsel %vm5360, %v5361, %v5353
        %v5363 = vsel %vm5356, %v5359, %v5362
        %v5364 = vsel %vm5354, nan, %v5363
        %v5365 = vand.u32 2147483647, %v4117
        %vm5366 = vcmp.le.f32.partialorder %v5365, 0.7853982
        %vm5367 = vcmp.lt.s32.totalorder %v4117, 0
        %v5368 = vand.u32 %v4117, 2139095040
        %v5369 = vshrl.u32 %v5368, 23
        %v5370 = vsub.s32 %v5369, 127
        %v5371 = vand.u32 2147483647, %v4117
        %v5372 = vand.u32 %v5371, 8388607
        %v5373 = vor.u32 %v5372, 8388608
        %v5374 = vsub.s32 0, %v5373
        %v5375 = vadd.s32 %v5370, 1
        %vm5376 = vcmp.gt.s32.totalorder %v5375, 0
        %v5377 = vsel %vm5376, %v5375, 0
        %v5378 = vshrl.u32 %v5377, 5
        %v5379 = vand.u32 %v5377, 31
        %v5380 = vsub.s32 32, %v5379
        %v5381 = vshrl.u32 683565275, %v5380
        %v5382 = vshll.u32 683565275, %v5379
        %v5383 = vshrl.u32 2475754826, %v5380
        %v5384 = vor.u32 %v5382, %v5383
        %v5385 = vshll.u32 2475754826, %v5379
        %v5386 = vshrl.u32 2131351028, %v5380
        %v5387 = vor.u32 %v5385, %v5386
        %v5388 = vshll.u32 2131351028, %v5379
        %v5389 = vshrl.u32 2102212464, %v5380
        %v5390 = vor.u32 %v5388, %v5389
        %v5391 = vshll.u32 2102212464, %v5379
        %v5392 = vshrl.u32 920167782, %v5380
        %v5393 = vor.u32 %v5391, %v5392
        %v5394 = vshll.u32 920167782, %v5379
        %v5395 = vshrl.u32 1326507024, %v5380
        %v5396 = vor.u32 %v5394, %v5395
        %vm5397 = vcmp.lt.s32.totalorder %v5378, 1
        %vm5398 = vcmp.lt.s32.totalorder %v5378, 2
        %vm5399 = vcmp.lt.s32.totalorder %v5378, 3
        %vm5400 = vcmp.lt.s32.totalorder %v5378, 4
        %v5401 = vsel %vm5397, %v5381, %v5384
        %v5402 = vsel %vm5400, %v5390, 2102212464
        %v5403 = vsel %vm5399, %v5387, %v5402
        %v5404 = vsel %vm5398, %v5401, %v5403
        %v5405 = vsel %vm5397, %v5384, %v5387
        %v5406 = vsel %vm5400, %v5393, 920167782
        %v5407 = vsel %vm5399, %v5390, %v5406
        %v5408 = vsel %vm5398, %v5405, %v5407
        %v5409 = vsel %vm5397, %v5387, %v5390
        %v5410 = vsel %vm5400, %v5396, 1326507024
        %v5411 = vsel %vm5399, %v5393, %v5410
        %v5412 = vsel %vm5398, %v5409, %v5411
        %v5413 = vshll.u32 %v5373, 8
        %v5414 = vmul.u32.u64.compose %v5413, %v5412
        %v5415 = vextract.low.u32 %v5414
        %v5416 = vextract.high.u32 %v5414
        %v5417 = vmul.u32.u64.compose %v5413, %v5408
        %v5418 = vextract.low.u32 %v5417
        %v5419 = vextract.high.u32 %v5417
        %v5420 = vmul.u32 %v5413, %v5404
        %v5421 = vadd.s32 %v5416, %v5418
        %vm5422 = vc.u32 %v5416, %v5418
        %v5423 = vadd.s32 %v5419, 1
        %v5424 = vsel %vm5422, %v5423, %v5419
        %v5425 = vadd.s32 %v5420, %v5424
        %v5426 = vadd.s32 %v5425, 536870912
        %v5427 = vshrl.u32 %v5426, 30
        %v5428 = vshll.u32 %v5427, 30
        %v5429 = vsub.s32 %v5425, %v5428
        %vm5430 = vcmp.lt.s32.totalorder %v5429, 0
        %v5431 = vsub.s32 0, %v5429
        %v5432 = vsel %vm5430, %v5431, %v5429
        %v5433 = vclz %v5432
        %v5434 = vsub.s32 %v5433, 2
        %vm5435 = vcmp.gt.s32.totalorder 0, %v5434
        %v5436 = vsel %vm5435, 0, %v5434
        %v5437 = vsub.s32 32, %v5436
        %v5438 = vshll.u32 %v5429, %v5436
        %v5439 = vshrl.u32 %v5421, %v5437
        %v5440 = vor.u32 %v5438, %v5439
        %v5441 = vsub.s32 4294967266, %v5436
        %v5442 = vadd.s32 %v5441, 127
        %v5443 = vshll.u32 %v5442, 23
        %v5444 = vor.u32 4788187, %v5443
        %v5445 = vand.u32 2147483647, %v5444
        %v5447 = vcvt.s32.f32 %v5440
        %v5448 = vmul.f32 %v5447, %v5445
        %v5449 = vxor.u32 %v5448, 2147483648
        %v5450 = vsel %vm5367, %v5449, %v5448
        %v5451 = vsub.s32 4, %v5427
        %v5452 = vsel %vm5367, %v5451, %v5427
        %v5453 = vsel %vm5366, %v4117, %v5450
        %v5454 = vsel %vm5366, 0, %v5452
        %v5455 = vcosq.f32.pop %v5453
        %v5456 = vsinq.f32.pop %v5453
        %vm5457 = vweird.f32 %v4117
        %v5458 = vand.u32 %v5454, 3
        %vm5459 = vcmp.lt.s32.totalorder %v5458, 2
        %vm5460 = vcmp.eq.s32.totalorder %v5458, 0
        %v5461 = vxor.u32 %v5456, 2147483648
        %v5462 = vsel %vm5460, %v5455, %v5461
        %vm5463 = vcmp.eq.s32.totalorder %v5458, 2
        %v5464 = vxor.u32 %v5455, 2147483648
        %v5465 = vsel %vm5463, %v5464, %v5456
        %v5466 = vsel %vm5459, %v5462, %v5465
        %v5467 = vsel %vm5457, nan, %v5466
        %v5468 = vand.u32 2147483647, %v4118
        %vm5469 = vcmp.le.f32.partialorder %v5468, 0.7853982
        %vm5470 = vcmp.lt.s32.totalorder %v4118, 0
        %v5471 = vand.u32 %v4118, 2139095040
        %v5472 = vshrl.u32 %v5471, 23
        %v5473 = vsub.s32 %v5472, 127
        %v5474 = vand.u32 2147483647, %v4118
        %v5475 = vand.u32 %v5474, 8388607
        %v5476 = vor.u32 %v5475, 8388608
        %v5477 = vsub.s32 0, %v5476
        %v5478 = vadd.s32 %v5473, 1
        %vm5479 = vcmp.gt.s32.totalorder %v5478, 0
        %v5480 = vsel %vm5479, %v5478, 0
        %v5481 = vshrl.u32 %v5480, 5
        %v5482 = vand.u32 %v5480, 31
        %v5483 = vsub.s32 32, %v5482
        %v5484 = vshrl.u32 683565275, %v5483
        %v5485 = vshll.u32 683565275, %v5482
        %v5486 = vshrl.u32 2475754826, %v5483
        %v5487 = vor.u32 %v5485, %v5486
        %v5488 = vshll.u32 2475754826, %v5482
        %v5489 = vshrl.u32 2131351028, %v5483
        %v5490 = vor.u32 %v5488, %v5489
        %v5491 = vshll.u32 2131351028, %v5482
        %v5492 = vshrl.u32 2102212464, %v5483
        %v5493 = vor.u32 %v5491, %v5492
        %v5494 = vshll.u32 2102212464, %v5482
        %v5495 = vshrl.u32 920167782, %v5483
        %v5496 = vor.u32 %v5494, %v5495
        %v5497 = vshll.u32 920167782, %v5482
        %v5498 = vshrl.u32 1326507024, %v5483
        %v5499 = vor.u32 %v5497, %v5498
        %vm5500 = vcmp.lt.s32.totalorder %v5481, 1
        %vm5501 = vcmp.lt.s32.totalorder %v5481, 2
        %vm5502 = vcmp.lt.s32.totalorder %v5481, 3
        %vm5503 = vcmp.lt.s32.totalorder %v5481, 4
        %v5504 = vsel %vm5500, %v5484, %v5487
        %v5505 = vsel %vm5503, %v5493, 2102212464
        %v5506 = vsel %vm5502, %v5490, %v5505
        %v5507 = vsel %vm5501, %v5504, %v5506
        %v5508 = vsel %vm5500, %v5487, %v5490
        %v5509 = vsel %vm5503, %v5496, 920167782
        %v5510 = vsel %vm5502, %v5493, %v5509
        %v5511 = vsel %vm5501, %v5508, %v5510
        %v5512 = vsel %vm5500, %v5490, %v5493
        %v5513 = vsel %vm5503, %v5499, 1326507024
        %v5514 = vsel %vm5502, %v5496, %v5513
        %v5515 = vsel %vm5501, %v5512, %v5514
        %v5516 = vshll.u32 %v5476, 8
        %v5517 = vmul.u32.u64.compose %v5516, %v5515
        %v5518 = vextract.low.u32 %v5517
        %v5519 = vextract.high.u32 %v5517
        %v5520 = vmul.u32.u64.compose %v5516, %v5511
        %v5521 = vextract.low.u32 %v5520
        %v5522 = vextract.high.u32 %v5520
        %v5523 = vmul.u32 %v5516, %v5507
        %v5524 = vadd.s32 %v5519, %v5521
        %vm5525 = vc.u32 %v5519, %v5521
        %v5526 = vadd.s32 %v5522, 1
        %v5527 = vsel %vm5525, %v5526, %v5522
        %v5528 = vadd.s32 %v5523, %v5527
        %v5529 = vadd.s32 %v5528, 536870912
        %v5530 = vshrl.u32 %v5529, 30
        %v5531 = vshll.u32 %v5530, 30
        %v5532 = vsub.s32 %v5528, %v5531
        %vm5533 = vcmp.lt.s32.totalorder %v5532, 0
        %v5534 = vsub.s32 0, %v5532
        %v5535 = vsel %vm5533, %v5534, %v5532
        %v5536 = vclz %v5535
        %v5537 = vsub.s32 %v5536, 2
        %vm5538 = vcmp.gt.s32.totalorder 0, %v5537
        %v5539 = vsel %vm5538, 0, %v5537
        %v5540 = vsub.s32 32, %v5539
        %v5541 = vshll.u32 %v5532, %v5539
        %v5542 = vshrl.u32 %v5524, %v5540
        %v5543 = vor.u32 %v5541, %v5542
        %v5544 = vsub.s32 4294967266, %v5539
        %v5545 = vadd.s32 %v5544, 127
        %v5546 = vshll.u32 %v5545, 23
        %v5547 = vor.u32 4788187, %v5546
        %v5548 = vand.u32 2147483647, %v5547
        %v5550 = vcvt.s32.f32 %v5543
        %v5551 = vmul.f32 %v5550, %v5548
        %v5552 = vxor.u32 %v5551, 2147483648
        %v5553 = vsel %vm5470, %v5552, %v5551
        %v5554 = vsub.s32 4, %v5530
        %v5555 = vsel %vm5470, %v5554, %v5530
        %v5556 = vsel %vm5469, %v4118, %v5553
        %v5557 = vsel %vm5469, 0, %v5555
        %v5558 = vcosq.f32.pop %v5556
        %v5559 = vsinq.f32.pop %v5556
        %vm5560 = vweird.f32 %v4118
        %v5561 = vand.u32 %v5557, 3
        %vm5562 = vcmp.lt.s32.totalorder %v5561, 2
        %vm5563 = vcmp.eq.s32.totalorder %v5561, 0
        %v5564 = vxor.u32 %v5559, 2147483648
        %v5565 = vsel %vm5563, %v5558, %v5564
        %vm5566 = vcmp.eq.s32.totalorder %v5561, 2
        %v5567 = vxor.u32 %v5558, 2147483648
        %v5568 = vsel %vm5566, %v5567, %v5559
        %v5569 = vsel %vm5562, %v5565, %v5568
        %v5570 = vsel %vm5560, nan, %v5569
        %v5571 = vand.u32 2147483647, %v4119
        %vm5572 = vcmp.le.f32.partialorder %v5571, 0.7853982
        %vm5573 = vcmp.lt.s32.totalorder %v4119, 0
        %v5574 = vand.u32 %v4119, 2139095040
        %v5575 = vshrl.u32 %v5574, 23
        %v5576 = vsub.s32 %v5575, 127
        %v5577 = vand.u32 2147483647, %v4119
        %v5578 = vand.u32 %v5577, 8388607
        %v5579 = vor.u32 %v5578, 8388608
        %v5580 = vsub.s32 0, %v5579
        %v5581 = vadd.s32 %v5576, 1
        %vm5582 = vcmp.gt.s32.totalorder %v5581, 0
        %v5583 = vsel %vm5582, %v5581, 0
        %v5584 = vshrl.u32 %v5583, 5
        %v5585 = vand.u32 %v5583, 31
        %v5586 = vsub.s32 32, %v5585
        %v5587 = vshrl.u32 683565275, %v5586
        %v5588 = vshll.u32 683565275, %v5585
        %v5589 = vshrl.u32 2475754826, %v5586
        %v5590 = vor.u32 %v5588, %v5589
        %v5591 = vshll.u32 2475754826, %v5585
        %v5592 = vshrl.u32 2131351028, %v5586
        %v5593 = vor.u32 %v5591, %v5592
        %v5594 = vshll.u32 2131351028, %v5585
        %v5595 = vshrl.u32 2102212464, %v5586
        %v5596 = vor.u32 %v5594, %v5595
        %v5597 = vshll.u32 2102212464, %v5585
        %v5598 = vshrl.u32 920167782, %v5586
        %v5599 = vor.u32 %v5597, %v5598
        %v5600 = vshll.u32 920167782, %v5585
        %v5601 = vshrl.u32 1326507024, %v5586
        %v5602 = vor.u32 %v5600, %v5601
        %vm5603 = vcmp.lt.s32.totalorder %v5584, 1
        %vm5604 = vcmp.lt.s32.totalorder %v5584, 2
        %vm5605 = vcmp.lt.s32.totalorder %v5584, 3
        %vm5606 = vcmp.lt.s32.totalorder %v5584, 4
        %v5607 = vsel %vm5603, %v5587, %v5590
        %v5608 = vsel %vm5606, %v5596, 2102212464
        %v5609 = vsel %vm5605, %v5593, %v5608
        %v5610 = vsel %vm5604, %v5607, %v5609
        %v5611 = vsel %vm5603, %v5590, %v5593
        %v5612 = vsel %vm5606, %v5599, 920167782
        %v5613 = vsel %vm5605, %v5596, %v5612
        %v5614 = vsel %vm5604, %v5611, %v5613
        %v5615 = vsel %vm5603, %v5593, %v5596
        %v5616 = vsel %vm5606, %v5602, 1326507024
        %v5617 = vsel %vm5605, %v5599, %v5616
        %v5618 = vsel %vm5604, %v5615, %v5617
        %v5619 = vshll.u32 %v5579, 8
        %v5620 = vmul.u32.u64.compose %v5619, %v5618
        %v5621 = vextract.low.u32 %v5620
        %v5622 = vextract.high.u32 %v5620
        %v5623 = vmul.u32.u64.compose %v5619, %v5614
        %v5624 = vextract.low.u32 %v5623
        %v5625 = vextract.high.u32 %v5623
        %v5626 = vmul.u32 %v5619, %v5610
        %v5627 = vadd.s32 %v5622, %v5624
        %vm5628 = vc.u32 %v5622, %v5624
        %v5629 = vadd.s32 %v5625, 1
        %v5630 = vsel %vm5628, %v5629, %v5625
        %v5631 = vadd.s32 %v5626, %v5630
        %v5632 = vadd.s32 %v5631, 536870912
        %v5633 = vshrl.u32 %v5632, 30
        %v5634 = vshll.u32 %v5633, 30
        %v5635 = vsub.s32 %v5631, %v5634
        %vm5636 = vcmp.lt.s32.totalorder %v5635, 0
        %v5637 = vsub.s32 0, %v5635
        %v5638 = vsel %vm5636, %v5637, %v5635
        %v5639 = vclz %v5638
        %v5640 = vsub.s32 %v5639, 2
        %vm5641 = vcmp.gt.s32.totalorder 0, %v5640
        %v5642 = vsel %vm5641, 0, %v5640
        %v5643 = vsub.s32 32, %v5642
        %v5644 = vshll.u32 %v5635, %v5642
        %v5645 = vshrl.u32 %v5627, %v5643
        %v5646 = vor.u32 %v5644, %v5645
        %v5647 = vsub.s32 4294967266, %v5642
        %v5648 = vadd.s32 %v5647, 127
        %v5649 = vshll.u32 %v5648, 23
        %v5650 = vor.u32 4788187, %v5649
        %v5651 = vand.u32 2147483647, %v5650
        %v5653 = vcvt.s32.f32 %v5646
        %v5654 = vmul.f32 %v5653, %v5651
        %v5655 = vxor.u32 %v5654, 2147483648
        %v5656 = vsel %vm5573, %v5655, %v5654
        %v5657 = vsub.s32 4, %v5633
        %v5658 = vsel %vm5573, %v5657, %v5633
        %v5659 = vsel %vm5572, %v4119, %v5656
        %v5660 = vsel %vm5572, 0, %v5658
        %v5661 = vcosq.f32.pop %v5659
        %v5662 = vsinq.f32.pop %v5659
        %vm5663 = vweird.f32 %v4119
        %v5664 = vand.u32 %v5660, 3
        %vm5665 = vcmp.lt.s32.totalorder %v5664, 2
        %vm5666 = vcmp.eq.s32.totalorder %v5664, 0
        %v5667 = vxor.u32 %v5662, 2147483648
        %v5668 = vsel %vm5666, %v5661, %v5667
        %vm5669 = vcmp.eq.s32.totalorder %v5664, 2
        %v5670 = vxor.u32 %v5661, 2147483648
        %v5671 = vsel %vm5669, %v5670, %v5662
        %v5672 = vsel %vm5665, %v5668, %v5671
        %v5673 = vsel %vm5663, nan, %v5672
        %v5674 = vand.u32 2147483647, %v4120
        %vm5675 = vcmp.le.f32.partialorder %v5674, 0.7853982
        %vm5676 = vcmp.lt.s32.totalorder %v4120, 0
        %v5677 = vand.u32 %v4120, 2139095040
        %v5678 = vshrl.u32 %v5677, 23
        %v5679 = vsub.s32 %v5678, 127
        %v5680 = vand.u32 2147483647, %v4120
        %v5681 = vand.u32 %v5680, 8388607
        %v5682 = vor.u32 %v5681, 8388608
        %v5683 = vsub.s32 0, %v5682
        %v5684 = vadd.s32 %v5679, 1
        %vm5685 = vcmp.gt.s32.totalorder %v5684, 0
        %v5686 = vsel %vm5685, %v5684, 0
        %v5687 = vshrl.u32 %v5686, 5
        %v5688 = vand.u32 %v5686, 31
        %v5689 = vsub.s32 32, %v5688
        %v5690 = vshrl.u32 683565275, %v5689
        %v5691 = vshll.u32 683565275, %v5688
        %v5692 = vshrl.u32 2475754826, %v5689
        %v5693 = vor.u32 %v5691, %v5692
        %v5694 = vshll.u32 2475754826, %v5688
        %v5695 = vshrl.u32 2131351028, %v5689
        %v5696 = vor.u32 %v5694, %v5695
        %v5697 = vshll.u32 2131351028, %v5688
        %v5698 = vshrl.u32 2102212464, %v5689
        %v5699 = vor.u32 %v5697, %v5698
        %v5700 = vshll.u32 2102212464, %v5688
        %v5701 = vshrl.u32 920167782, %v5689
        %v5702 = vor.u32 %v5700, %v5701
        %v5703 = vshll.u32 920167782, %v5688
        %v5704 = vshrl.u32 1326507024, %v5689
        %v5705 = vor.u32 %v5703, %v5704
        %vm5706 = vcmp.lt.s32.totalorder %v5687, 1
        %vm5707 = vcmp.lt.s32.totalorder %v5687, 2
        %vm5708 = vcmp.lt.s32.totalorder %v5687, 3
        %vm5709 = vcmp.lt.s32.totalorder %v5687, 4
        %v5710 = vsel %vm5706, %v5690, %v5693
        %v5711 = vsel %vm5709, %v5699, 2102212464
        %v5712 = vsel %vm5708, %v5696, %v5711
        %v5713 = vsel %vm5707, %v5710, %v5712
        %v5714 = vsel %vm5706, %v5693, %v5696
        %v5715 = vsel %vm5709, %v5702, 920167782
        %v5716 = vsel %vm5708, %v5699, %v5715
        %v5717 = vsel %vm5707, %v5714, %v5716
        %v5718 = vsel %vm5706, %v5696, %v5699
        %v5719 = vsel %vm5709, %v5705, 1326507024
        %v5720 = vsel %vm5708, %v5702, %v5719
        %v5721 = vsel %vm5707, %v5718, %v5720
        %v5722 = vshll.u32 %v5682, 8
        %v5723 = vmul.u32.u64.compose %v5722, %v5721
        %v5724 = vextract.low.u32 %v5723
        %v5725 = vextract.high.u32 %v5723
        %v5726 = vmul.u32.u64.compose %v5722, %v5717
        %v5727 = vextract.low.u32 %v5726
        %v5728 = vextract.high.u32 %v5726
        %v5729 = vmul.u32 %v5722, %v5713
        %v5730 = vadd.s32 %v5725, %v5727
        %vm5731 = vc.u32 %v5725, %v5727
        %v5732 = vadd.s32 %v5728, 1
        %v5733 = vsel %vm5731, %v5732, %v5728
        %v5734 = vadd.s32 %v5729, %v5733
        %v5735 = vadd.s32 %v5734, 536870912
        %v5736 = vshrl.u32 %v5735, 30
        %v5737 = vshll.u32 %v5736, 30
        %v5738 = vsub.s32 %v5734, %v5737
        %vm5739 = vcmp.lt.s32.totalorder %v5738, 0
        %v5740 = vsub.s32 0, %v5738
        %v5741 = vsel %vm5739, %v5740, %v5738
        %v5742 = vclz %v5741
        %v5743 = vsub.s32 %v5742, 2
        %vm5744 = vcmp.gt.s32.totalorder 0, %v5743
        %v5745 = vsel %vm5744, 0, %v5743
        %v5746 = vsub.s32 32, %v5745
        %v5747 = vshll.u32 %v5738, %v5745
        %v5748 = vshrl.u32 %v5730, %v5746
        %v5749 = vor.u32 %v5747, %v5748
        %v5750 = vsub.s32 4294967266, %v5745
        %v5751 = vadd.s32 %v5750, 127
        %v5752 = vshll.u32 %v5751, 23
        %v5753 = vor.u32 4788187, %v5752
        %v5754 = vand.u32 2147483647, %v5753
        %v5756 = vcvt.s32.f32 %v5749
        %v5757 = vmul.f32 %v5756, %v5754
        %v5758 = vxor.u32 %v5757, 2147483648
        %v5759 = vsel %vm5676, %v5758, %v5757
        %v5760 = vsub.s32 4, %v5736
        %v5761 = vsel %vm5676, %v5760, %v5736
        %v5762 = vsel %vm5675, %v4120, %v5759
        %v5763 = vsel %vm5675, 0, %v5761
        %v5764 = vcosq.f32.pop %v5762
        %v5765 = vsinq.f32.pop %v5762
        %vm5766 = vweird.f32 %v4120
        %v5767 = vand.u32 %v5763, 3
        %vm5768 = vcmp.lt.s32.totalorder %v5767, 2
        %vm5769 = vcmp.eq.s32.totalorder %v5767, 0
        %v5770 = vxor.u32 %v5765, 2147483648
        %v5771 = vsel %vm5769, %v5764, %v5770
        %vm5772 = vcmp.eq.s32.totalorder %v5767, 2
        %v5773 = vxor.u32 %v5764, 2147483648
        %v5774 = vsel %vm5772, %v5773, %v5765
        %v5775 = vsel %vm5768, %v5771, %v5774
        %v5776 = vsel %vm5766, nan, %v5775
        %5777 = vst [vmem:[#allocation2 + $0x400] sm:$0xff] %v4224
        %5778 = vst [vmem:[#allocation2 + $0x408] sm:$0xff] %v4328
        %5779 = vst [vmem:[#allocation2 + $0x410] sm:$0xff] %v4432
        %5780 = vst [vmem:[#allocation2 + $0x418] sm:$0xff] %v4536
        %5781 = vst [vmem:[#allocation2 + $0x420] sm:$0xff] %v4640
        %5782 = vst [vmem:[#allocation2 + $0x428] sm:$0xff] %v4744
        %5783 = vst [vmem:[#allocation2 + $0x430] sm:$0xff] %v4848
        %5784 = vst [vmem:[#allocation2 + $0x438] sm:$0xff] %v4952
        %5785 = vst [vmem:[#allocation2 + $0x440] sm:$0xff] %v5055
        %5786 = vst [vmem:[#allocation2 + $0x448] sm:$0xff] %v5158
        %5787 = vst [vmem:[#allocation2 + $0x450] sm:$0xff] %v5261
        %5788 = vst [vmem:[#allocation2 + $0x458] sm:$0xff] %v5364
        %5789 = vst [vmem:[#allocation2 + $0x460] sm:$0xff] %v5467
        %5790 = vst [vmem:[#allocation2 + $0x468] sm:$0xff] %v5570
        %5791 = vst [vmem:[#allocation2 + $0x470] sm:$0xff] %v5673
        %5792 = vst [vmem:[#allocation2 + $0x478] sm:$0xff] %v5776
        %v5793 = vmul.f32 %v4224, 2.0
        %v5794 = vmul.f32 %v4328, 2.0
        %v5795 = vmul.f32 %v4432, 2.0
        %v5796 = vmul.f32 %v4536, 2.0
        %v5797 = vmul.f32 %v4640, 2.0
        %v5798 = vmul.f32 %v4744, 2.0
        %v5799 = vmul.f32 %v4848, 2.0
        %v5800 = vmul.f32 %v4952, 2.0
        %v5801 = vmul.f32 %v5793, %v5055
        %v5802 = vmul.f32 %v5794, %v5158
        %v5803 = vmul.f32 %v5795, %v5261
        %v5804 = vmul.f32 %v5796, %v5364
        %v5805 = vmul.f32 %v5797, %v5467
        %v5806 = vmul.f32 %v5798, %v5570
        %v5807 = vmul.f32 %v5799, %v5673
        %v5808 = vmul.f32 %v5800, %v5776
        %v5809 = vmul.f32 %v5793, %v4224
        %v5810 = vmul.f32 %v5794, %v4328
        %v5811 = vmul.f32 %v5795, %v4432
        %v5812 = vmul.f32 %v5796, %v4536
        %v5813 = vmul.f32 %v5797, %v4640
        %v5814 = vmul.f32 %v5798, %v4744
        %v5815 = vmul.f32 %v5799, %v4848
        %v5816 = vmul.f32 %v5800, %v4952
        %v5817 = vsub.f32 1.0, %v5809
        %v5818 = vsub.f32 1.0, %v5810
        %v5819 = vsub.f32 1.0, %v5811
        %v5820 = vsub.f32 1.0, %v5812
        %v5821 = vsub.f32 1.0, %v5813
        %v5822 = vsub.f32 1.0, %v5814
        %v5823 = vsub.f32 1.0, %v5815
        %v5824 = vsub.f32 1.0, %v5816
        %5825 = vst [vmem:[#allocation2 + $0x480] sm:$0xff] %v5801
        %5826 = vst [vmem:[#allocation2 + $0x488] sm:$0xff] %v5802
        %5827 = vst [vmem:[#allocation2 + $0x490] sm:$0xff] %v5803
        %5828 = vst [vmem:[#allocation2 + $0x498] sm:$0xff] %v5804
        %5829 = vst [vmem:[#allocation2 + $0x4a0] sm:$0xff] %v5805
        %5830 = vst [vmem:[#allocation2 + $0x4a8] sm:$0xff] %v5806
        %5831 = vst [vmem:[#allocation2 + $0x4b0] sm:$0xff] %v5807
        %5832 = vst [vmem:[#allocation2 + $0x4b8] sm:$0xff] %v5808
        %5833 = vst [vmem:[#allocation2 + $0x4c0] sm:$0xff] %v5817
        %5834 = vst [vmem:[#allocation2 + $0x4c8] sm:$0xff] %v5818
        %5835 = vst [vmem:[#allocation2 + $0x4d0] sm:$0xff] %v5819
        %5836 = vst [vmem:[#allocation2 + $0x4d8] sm:$0xff] %v5820
        %5837 = vst [vmem:[#allocation2 + $0x4e0] sm:$0xff] %v5821
        %5838 = vst [vmem:[#allocation2 + $0x4e8] sm:$0xff] %v5822
        %5839 = vst [vmem:[#allocation2 + $0x4f0] sm:$0xff] %v5823
        %5840 = vst [vmem:[#allocation2 + $0x4f8] sm:$0xff] %v5824
        %5841 = vst [vmem:[#allocation2 + $0x500] sm:$0xff] %v465
        %5842 = vst [vmem:[#allocation2 + $0x508] sm:$0xff] %v466
        %5843 = vst [vmem:[#allocation2 + $0x510] sm:$0xff] %v467
        %5844 = vst [vmem:[#allocation2 + $0x518] sm:$0xff] %v468
        %5845 = vst [vmem:[#allocation2 + $0x520] sm:$0xff] %v469
        %5846 = vst [vmem:[#allocation2 + $0x528] sm:$0xff] %v470
        %5847 = vst [vmem:[#allocation2 + $0x530] sm:$0xff] %v471
        %5848 = vst [vmem:[#allocation2 + $0x538] sm:$0xff] %v472
        %5849 = vst [vmem:[#allocation2 + $0x540] sm:$0xff] 0.0
        %5850 = vst [vmem:[#allocation2 + $0x548] sm:$0xff] 0.0
        %5851 = vst [vmem:[#allocation2 + $0x550] sm:$0xff] 0.0
        %5852 = vst [vmem:[#allocation2 + $0x558] sm:$0xff] 0.0
        %5853 = vst [vmem:[#allocation2 + $0x560] sm:$0xff] 0.0
        %5854 = vst [vmem:[#allocation2 + $0x568] sm:$0xff] 0.0
        %5855 = vst [vmem:[#allocation2 + $0x570] sm:$0xff] 0.0
        %5856 = vst [vmem:[#allocation2 + $0x578] sm:$0xff] 0.0
        %v5857 = vld [vmem:[%s1] sm:$0xff]
        %v5858 = vld [vmem:[%s1 + $0x8] sm:$0xff]
        %v5859 = vld [vmem:[%s1 + $0x10] sm:$0xff]
        %v5860 = vld [vmem:[%s1 + $0x18] sm:$0xff]
        %v5861 = vld [vmem:[%s1 + $0x20] sm:$0xff]
        %v5862 = vld [vmem:[%s1 + $0x28] sm:$0xff]
        %v5863 = vld [vmem:[%s1 + $0x30] sm:$0xff]
        %v5864 = vld [vmem:[%s1 + $0x38] sm:$0xff]
        %v5865 = vld [vmem:[%s1 + $0x40] sm:$0xff]
        %v5866 = vld [vmem:[%s1 + $0x48] sm:$0xff]
        %v5867 = vld [vmem:[%s1 + $0x50] sm:$0xff]
        %v5868 = vld [vmem:[%s1 + $0x58] sm:$0xff]
        %v5869 = vld [vmem:[%s1 + $0x60] sm:$0xff]
        %v5870 = vld [vmem:[%s1 + $0x68] sm:$0xff]
        %v5871 = vld [vmem:[%s1 + $0x70] sm:$0xff]
        %v5872 = vld [vmem:[%s1 + $0x78] sm:$0xff]
        %v5873 = vld [vmem:[#allocation2] sm:$0xff]
        %v5874 = vld [vmem:[#allocation2 + $0x8] sm:$0xff]
        %v5875 = vld [vmem:[#allocation2 + $0x10] sm:$0xff]
        %v5876 = vld [vmem:[#allocation2 + $0x18] sm:$0xff]
        %v5877 = vld [vmem:[#allocation2 + $0x20] sm:$0xff]
        %v5878 = vld [vmem:[#allocation2 + $0x28] sm:$0xff]
        %v5879 = vld [vmem:[#allocation2 + $0x30] sm:$0xff]
        %v5880 = vld [vmem:[#allocation2 + $0x38] sm:$0xff]
        %v5881 = vld [vmem:[#allocation2 + $0x40] sm:$0xff]
        %v5882 = vld [vmem:[#allocation2 + $0x48] sm:$0xff]
        %v5883 = vld [vmem:[#allocation2 + $0x50] sm:$0xff]
        %v5884 = vld [vmem:[#allocation2 + $0x58] sm:$0xff]
        %v5885 = vld [vmem:[#allocation2 + $0x60] sm:$0xff]
        %v5886 = vld [vmem:[#allocation2 + $0x68] sm:$0xff]
        %v5887 = vld [vmem:[#allocation2 + $0x70] sm:$0xff]
        %v5888 = vld [vmem:[#allocation2 + $0x78] sm:$0xff]
        %v5889 = vld [vmem:[#allocation2 + $0x80] sm:$0xff]
        %v5890 = vld [vmem:[#allocation2 + $0x88] sm:$0xff]
        %v5891 = vld [vmem:[#allocation2 + $0x90] sm:$0xff]
        %v5892 = vld [vmem:[#allocation2 + $0x98] sm:$0xff]
        %v5893 = vld [vmem:[#allocation2 + $0xa0] sm:$0xff]
        %v5894 = vld [vmem:[#allocation2 + $0xa8] sm:$0xff]
        %v5895 = vld [vmem:[#allocation2 + $0xb0] sm:$0xff]
        %v5896 = vld [vmem:[#allocation2 + $0xb8] sm:$0xff]
        %v5897 = vld [vmem:[#allocation2 + $0xc0] sm:$0xff]
        %v5898 = vld [vmem:[#allocation2 + $0xc8] sm:$0xff]
        %v5899 = vld [vmem:[#allocation2 + $0xd0] sm:$0xff]
        %v5900 = vld [vmem:[#allocation2 + $0xd8] sm:$0xff]
        %v5901 = vld [vmem:[#allocation2 + $0xe0] sm:$0xff]
        %v5902 = vld [vmem:[#allocation2 + $0xe8] sm:$0xff]
        %v5903 = vld [vmem:[#allocation2 + $0xf0] sm:$0xff]
        %v5904 = vld [vmem:[#allocation2 + $0xf8] sm:$0xff]
        %v5905 = vld [vmem:[#allocation2 + $0x100] sm:$0xff]
        %v5906 = vld [vmem:[#allocation2 + $0x108] sm:$0xff]
        %v5907 = vld [vmem:[#allocation2 + $0x110] sm:$0xff]
        %v5908 = vld [vmem:[#allocation2 + $0x118] sm:$0xff]
        %v5909 = vld [vmem:[#allocation2 + $0x120] sm:$0xff]
        %v5910 = vld [vmem:[#allocation2 + $0x128] sm:$0xff]
        %v5911 = vld [vmem:[#allocation2 + $0x130] sm:$0xff]
        %v5912 = vld [vmem:[#allocation2 + $0x138] sm:$0xff]
        %v5913 = vld [vmem:[#allocation2 + $0x140] sm:$0xff]
        %v5914 = vld [vmem:[#allocation2 + $0x148] sm:$0xff]
        %v5915 = vld [vmem:[#allocation2 + $0x150] sm:$0xff]
        %v5916 = vld [vmem:[#allocation2 + $0x158] sm:$0xff]
        %v5917 = vld [vmem:[#allocation2 + $0x160] sm:$0xff]
        %v5918 = vld [vmem:[#allocation2 + $0x168] sm:$0xff]
        %v5919 = vld [vmem:[#allocation2 + $0x170] sm:$0xff]
        %v5920 = vld [vmem:[#allocation2 + $0x178] sm:$0xff]
        %v5921 = vld [vmem:[#allocation2 + $0x180] sm:$0xff]
        %v5922 = vld [vmem:[#allocation2 + $0x188] sm:$0xff]
        %v5923 = vld [vmem:[#allocation2 + $0x190] sm:$0xff]
        %v5924 = vld [vmem:[#allocation2 + $0x198] sm:$0xff]
        %v5925 = vld [vmem:[#allocation2 + $0x1a0] sm:$0xff]
        %v5926 = vld [vmem:[#allocation2 + $0x1a8] sm:$0xff]
        %v5927 = vld [vmem:[#allocation2 + $0x1b0] sm:$0xff]
        %v5928 = vld [vmem:[#allocation2 + $0x1b8] sm:$0xff]
        %v5929 = vld [vmem:[#allocation2 + $0x1c0] sm:$0xff]
        %v5930 = vld [vmem:[#allocation2 + $0x1c8] sm:$0xff]
        %v5931 = vld [vmem:[#allocation2 + $0x1d0] sm:$0xff]
        %v5932 = vld [vmem:[#allocation2 + $0x1d8] sm:$0xff]
        %v5933 = vld [vmem:[#allocation2 + $0x1e0] sm:$0xff]
        %v5934 = vld [vmem:[#allocation2 + $0x1e8] sm:$0xff]
        %v5935 = vld [vmem:[#allocation2 + $0x1f0] sm:$0xff]
        %v5936 = vld [vmem:[#allocation2 + $0x1f8] sm:$0xff]
        %v5937 = vld [vmem:[#allocation2 + $0x200] sm:$0xff]
        %v5938 = vld [vmem:[#allocation2 + $0x208] sm:$0xff]
        %v5939 = vld [vmem:[#allocation2 + $0x210] sm:$0xff]
        %v5940 = vld [vmem:[#allocation2 + $0x218] sm:$0xff]
        %v5941 = vld [vmem:[#allocation2 + $0x220] sm:$0xff]
        %v5942 = vld [vmem:[#allocation2 + $0x228] sm:$0xff]
        %v5943 = vld [vmem:[#allocation2 + $0x230] sm:$0xff]
        %v5944 = vld [vmem:[#allocation2 + $0x238] sm:$0xff]
        %v5945 = vld [vmem:[#allocation2 + $0x240] sm:$0xff]
        %v5946 = vld [vmem:[#allocation2 + $0x248] sm:$0xff]
        %v5947 = vld [vmem:[#allocation2 + $0x250] sm:$0xff]
        %v5948 = vld [vmem:[#allocation2 + $0x258] sm:$0xff]
        %v5949 = vld [vmem:[#allocation2 + $0x260] sm:$0xff]
        %v5950 = vld [vmem:[#allocation2 + $0x268] sm:$0xff]
        %v5951 = vld [vmem:[#allocation2 + $0x270] sm:$0xff]
        %v5952 = vld [vmem:[#allocation2 + $0x278] sm:$0xff]
        %v5953 = vld [vmem:[#allocation2 + $0x280] sm:$0xff]
        %v5954 = vld [vmem:[#allocation2 + $0x288] sm:$0xff]
        %v5955 = vld [vmem:[#allocation2 + $0x290] sm:$0xff]
        %v5956 = vld [vmem:[#allocation2 + $0x298] sm:$0xff]
        %v5957 = vld [vmem:[#allocation2 + $0x2a0] sm:$0xff]
        %v5958 = vld [vmem:[#allocation2 + $0x2a8] sm:$0xff]
        %v5959 = vld [vmem:[#allocation2 + $0x2b0] sm:$0xff]
        %v5960 = vld [vmem:[#allocation2 + $0x2b8] sm:$0xff]
        %v5961 = vld [vmem:[#allocation2 + $0x2c0] sm:$0xff]
        %v5962 = vld [vmem:[#allocation2 + $0x2c8] sm:$0xff]
        %v5963 = vld [vmem:[#allocation2 + $0x2d0] sm:$0xff]
        %v5964 = vld [vmem:[#allocation2 + $0x2d8] sm:$0xff]
        %v5965 = vld [vmem:[#allocation2 + $0x2e0] sm:$0xff]
        %v5966 = vld [vmem:[#allocation2 + $0x2e8] sm:$0xff]
        %v5967 = vld [vmem:[#allocation2 + $0x2f0] sm:$0xff]
        %v5968 = vld [vmem:[#allocation2 + $0x2f8] sm:$0xff]
        %v5969 = vld [vmem:[#allocation2 + $0x300] sm:$0xff]
        %v5970 = vld [vmem:[#allocation2 + $0x308] sm:$0xff]
        %v5971 = vld [vmem:[#allocation2 + $0x310] sm:$0xff]
        %v5972 = vld [vmem:[#allocation2 + $0x318] sm:$0xff]
        %v5973 = vld [vmem:[#allocation2 + $0x320] sm:$0xff]
        %v5974 = vld [vmem:[#allocation2 + $0x328] sm:$0xff]
        %v5975 = vld [vmem:[#allocation2 + $0x330] sm:$0xff]
        %v5976 = vld [vmem:[#allocation2 + $0x338] sm:$0xff]
        %v5977 = vld [vmem:[#allocation2 + $0x340] sm:$0xff]
        %v5978 = vld [vmem:[#allocation2 + $0x348] sm:$0xff]
        %v5979 = vld [vmem:[#allocation2 + $0x350] sm:$0xff]
        %v5980 = vld [vmem:[#allocation2 + $0x358] sm:$0xff]
        %v5981 = vld [vmem:[#allocation2 + $0x360] sm:$0xff]
        %v5982 = vld [vmem:[#allocation2 + $0x368] sm:$0xff]
        %v5983 = vld [vmem:[#allocation2 + $0x370] sm:$0xff]
        %v5984 = vld [vmem:[#allocation2 + $0x378] sm:$0xff]
        %v5985 = vld [vmem:[#allocation2 + $0x380] sm:$0xff]
        %v5986 = vld [vmem:[#allocation2 + $0x388] sm:$0xff]
        %v5987 = vld [vmem:[#allocation2 + $0x390] sm:$0xff]
        %v5988 = vld [vmem:[#allocation2 + $0x398] sm:$0xff]
        %v5989 = vld [vmem:[#allocation2 + $0x3a0] sm:$0xff]
        %v5990 = vld [vmem:[#allocation2 + $0x3a8] sm:$0xff]
        %v5991 = vld [vmem:[#allocation2 + $0x3b0] sm:$0xff]
        %v5992 = vld [vmem:[#allocation2 + $0x3b8] sm:$0xff]
        %v5993 = vld [vmem:[#allocation2 + $0x3c0] sm:$0xff]
        %v5994 = vld [vmem:[#allocation2 + $0x3c8] sm:$0xff]
        %v5995 = vld [vmem:[#allocation2 + $0x3d0] sm:$0xff]
        %v5996 = vld [vmem:[#allocation2 + $0x3d8] sm:$0xff]
        %v5997 = vld [vmem:[#allocation2 + $0x3e0] sm:$0xff]
        %v5998 = vld [vmem:[#allocation2 + $0x3e8] sm:$0xff]
        %v5999 = vld [vmem:[#allocation2 + $0x3f0] sm:$0xff]
        %v6000 = vld [vmem:[#allocation2 + $0x3f8] sm:$0xff]
        %v6001 = vld [vmem:[#allocation2 + $0x400] sm:$0xff]
        %v6002 = vld [vmem:[#allocation2 + $0x408] sm:$0xff]
        %v6003 = vld [vmem:[#allocation2 + $0x410] sm:$0xff]
        %v6004 = vld [vmem:[#allocation2 + $0x418] sm:$0xff]
        %v6005 = vld [vmem:[#allocation2 + $0x420] sm:$0xff]
        %v6006 = vld [vmem:[#allocation2 + $0x428] sm:$0xff]
        %v6007 = vld [vmem:[#allocation2 + $0x430] sm:$0xff]
        %v6008 = vld [vmem:[#allocation2 + $0x438] sm:$0xff]
        %v6009 = vld [vmem:[#allocation2 + $0x440] sm:$0xff]
        %v6010 = vld [vmem:[#allocation2 + $0x448] sm:$0xff]
        %v6011 = vld [vmem:[#allocation2 + $0x450] sm:$0xff]
        %v6012 = vld [vmem:[#allocation2 + $0x458] sm:$0xff]
        %v6013 = vld [vmem:[#allocation2 + $0x460] sm:$0xff]
        %v6014 = vld [vmem:[#allocation2 + $0x468] sm:$0xff]
        %v6015 = vld [vmem:[#allocation2 + $0x470] sm:$0xff]
        %v6016 = vld [vmem:[#allocation2 + $0x478] sm:$0xff]
        %v6017 = vld [vmem:[#allocation2 + $0x480] sm:$0xff]
        %v6018 = vld [vmem:[#allocation2 + $0x488] sm:$0xff]
        %v6019 = vld [vmem:[#allocation2 + $0x490] sm:$0xff]
        %v6020 = vld [vmem:[#allocation2 + $0x498] sm:$0xff]
        %v6021 = vld [vmem:[#allocation2 + $0x4a0] sm:$0xff]
        %v6022 = vld [vmem:[#allocation2 + $0x4a8] sm:$0xff]
        %v6023 = vld [vmem:[#allocation2 + $0x4b0] sm:$0xff]
        %v6024 = vld [vmem:[#allocation2 + $0x4b8] sm:$0xff]
        %v6025 = vld [vmem:[#allocation2 + $0x4c0] sm:$0xff]
        %v6026 = vld [vmem:[#allocation2 + $0x4c8] sm:$0xff]
        %v6027 = vld [vmem:[#allocation2 + $0x4d0] sm:$0xff]
        %v6028 = vld [vmem:[#allocation2 + $0x4d8] sm:$0xff]
        %v6029 = vld [vmem:[#allocation2 + $0x4e0] sm:$0xff]
        %v6030 = vld [vmem:[#allocation2 + $0x4e8] sm:$0xff]
        %v6031 = vld [vmem:[#allocation2 + $0x4f0] sm:$0xff]
        %v6032 = vld [vmem:[#allocation2 + $0x4f8] sm:$0xff]
        %v6033 = vld [vmem:[#allocation2 + $0x500] sm:$0xff]
        %v6034 = vld [vmem:[#allocation2 + $0x508] sm:$0xff]
        %v6035 = vld [vmem:[#allocation2 + $0x510] sm:$0xff]
        %v6036 = vld [vmem:[#allocation2 + $0x518] sm:$0xff]
        %v6037 = vld [vmem:[#allocation2 + $0x520] sm:$0xff]
        %v6038 = vld [vmem:[#allocation2 + $0x528] sm:$0xff]
        %v6039 = vld [vmem:[#allocation2 + $0x530] sm:$0xff]
        %v6040 = vld [vmem:[#allocation2 + $0x538] sm:$0xff]
        %v6041 = vld [vmem:[#allocation2 + $0x540] sm:$0xff]
        %v6042 = vld [vmem:[#allocation2 + $0x548] sm:$0xff]
        %v6043 = vld [vmem:[#allocation2 + $0x550] sm:$0xff]
        %v6044 = vld [vmem:[#allocation2 + $0x558] sm:$0xff]
        %v6045 = vld [vmem:[#allocation2 + $0x560] sm:$0xff]
        %v6046 = vld [vmem:[#allocation2 + $0x568] sm:$0xff]
        %v6047 = vld [vmem:[#allocation2 + $0x570] sm:$0xff]
        %v6048 = vld [vmem:[#allocation2 + $0x578] sm:$0xff]
        %v6049 = vld [vmem:[#allocation4] sm:$0xff]
        %v6050 = vld [vmem:[#allocation4 + $0x8] sm:$0xff]
        %v6051 = vld [vmem:[#allocation4 + $0x10] sm:$0xff]
        %v6052 = vld [vmem:[#allocation4 + $0x18] sm:$0xff]
        %v6053 = vld [vmem:[#allocation4 + $0x20] sm:$0xff]
        %v6054 = vld [vmem:[#allocation4 + $0x28] sm:$0xff]
        %v6055 = vld [vmem:[#allocation4 + $0x30] sm:$0xff]
        %v6056 = vld [vmem:[#allocation4 + $0x38] sm:$0xff]
        %6058 = vset.pattern.permute.xlu0 0
        %6059 = vperm.xlu0 %6058, %v6049
        %v6060 = vpop.permute.xlu0 %6059
        %6063 = vset.pattern.permute.xlu0 0
        %6064 = vperm.xlu0 %6063, %v6050
        %v6065 = vpop.permute.xlu0 %6064
        %6068 = vset.pattern.permute.xlu0 0
        %6069 = vperm.xlu0 %6068, %v6051
        %v6070 = vpop.permute.xlu0 %6069
        %6073 = vset.pattern.permute.xlu0 0
        %6074 = vperm.xlu0 %6073, %v6052
        %v6075 = vpop.permute.xlu0 %6074
        %6078 = vset.pattern.permute.xlu0 0
        %6079 = vperm.xlu0 %6078, %v6053
        %v6080 = vpop.permute.xlu0 %6079
        %6083 = vset.pattern.permute.xlu0 0
        %6084 = vperm.xlu0 %6083, %v6054
        %v6085 = vpop.permute.xlu0 %6084
        %6088 = vset.pattern.permute.xlu0 0
        %6089 = vperm.xlu0 %6088, %v6055
        %v6090 = vpop.permute.xlu0 %6089
        %6093 = vset.pattern.permute.xlu0 0
        %6094 = vperm.xlu0 %6093, %v6056
        %v6095 = vpop.permute.xlu0 %6094
        %vm6097 = vcmask 392192
        %v6099 = vsel %vm6097, %v5858, 0
        %v6102 = vsel %vm6097, %v5860, 0
        %v6105 = vsel %vm6097, %v5862, 0
        %v6108 = vsel %vm6097, %v5864, 0
        %v6111 = vsel %vm6097, %v5866, 0
        %v6114 = vsel %vm6097, %v5868, 0
        %v6117 = vsel %vm6097, %v5870, 0
        %v6120 = vsel %vm6097, %v5872, 0
        %6122 = vmatprep.subr.mxu0 %v5874
        %6123 = vmatpush1.msra.mxu0 %v5873
        %6124 = vmatprep.subr.mxu0 %v5882
        %6125 = vmatpush1.msra.mxu0 %v5881
        %6126 = vmatprep.subr.mxu0 %v5890
        %6127 = vmatpush1.msra.mxu0 %v5889
        %6128 = vmatprep.subr.mxu0 %v5898
        %6129 = vmatpush1.msra.mxu0 %v5897
        %6130 = vmatprep.subr.mxu0 %v5906
        %6131 = vmatpush1.msra.mxu0 %v5905
        %6132 = vmatprep.subr.mxu0 %v5914
        %6133 = vmatpush1.msra.mxu0 %v5913
        %6134 = vmatprep.subr.mxu0 %v5922
        %6135 = vmatpush1.msra.mxu0 %v5921
        %6136 = vmatprep.subr.mxu0 %v5930
        %6137 = vmatpush1.msra.mxu0 %v5929
        %6138 = vmatprep.subr.mxu0 %v5938
        %6139 = vmatpush1.msra.mxu0 %v5937
        %6140 = vmatprep.subr.mxu0 %v5946
        %6141 = vmatpush1.msra.mxu0 %v5945
        %6142 = vmatprep.subr.mxu0 %v5954
        %6143 = vmatpush1.msra.mxu0 %v5953
        %6144 = vmatprep.subr.mxu0 %v5962
        %6145 = vmatpush1.msra.mxu0 %v5961
        %6146 = vmatprep.subr.mxu0 %v5970
        %6147 = vmatpush1.msra.mxu0 %v5969
        %6148 = vmatprep.subr.mxu0 %v5978
        %6149 = vmatpush1.msra.mxu0 %v5977
        %6150 = vmatprep.subr.mxu0 %v5986
        %6151 = vmatpush1.msra.mxu0 %v5985
        %6152 = vmatprep.subr.mxu0 %v5994
        %6153 = vmatpush1.msra.mxu0 %v5993
        %6154 = vmatprep.subr.mxu0 %v6002
        %6155 = vmatpush1.msra.mxu0 %v6001
        %6156 = vmatprep.subr.mxu0 %v6010
        %6157 = vmatpush1.msra.mxu0 %v6009
        %6158 = vmatprep.subr.mxu0 %v6018
        %6159 = vmatpush1.msra.mxu0 %v6017
        %6160 = vmatprep.subr.mxu0 %v6026
        %6161 = vmatpush1.msra.mxu0 %v6025
        %6162 = vmatprep.subr.mxu0 %v6034
        %6163 = vmatpush1.msra.mxu0 %v6033
        %6164 = vmatprep.subr.mxu0 %v6042
        %6165 = vmatpush1.msra.mxu0 %v6041
        %6166 = vmatprep.subr.mxu0 0.0
        %6167 = vmatpush1.msra.mxu0 0.0
        %6168 = vmatprep.subr.mxu0 0.0
        %6169 = vmatpush1.msra.mxu0 0.0
        %6170 = vmatprep.subr.mxu0 0.0
        %6171 = vmatpush1.msra.mxu0 0.0
        %6172 = vmatprep.subr.mxu0 0.0
        %6173 = vmatpush1.msra.mxu0 0.0
        %6174 = vmatprep.subr.mxu0 0.0
        %6175 = vmatpush1.msra.mxu0 0.0
        %6176 = vmatprep.subr.mxu0 0.0
        %6177 = vmatpush1.msra.mxu0 0.0
        %6178 = vmatprep.subr.mxu0 0.0
        %6179 = vmatpush1.msra.mxu0 0.0
        %6180 = vmatprep.subr.mxu0 0.0
        %6181 = vmatpush1.msra.mxu0 0.0
        %6182 = vmatprep.subr.mxu0 0.0
        %6183 = vmatpush1.msra.mxu0 0.0
        %6184 = vmatprep.subr.mxu0 0.0
        %6185 = vmatpush1.msra.mxu0 0.0
        %6186 = vmatprep.mubr.f32.mxu0 %v6099
        %6187 = vmatmul.mubr.f32.gmra.mrb[0].mxu0 %v5857
        %v6188 = vpop.f32.mrb[0].mxu0
        %v6189 = vadd.f32 %v6060, %v6188
        %v6190 = vpop.f32.mrb[0].mxu0
        %v6191 = vadd.f32 %v6060, %v6190
        %6192 = vmatprep.mubr.f32.mxu0 %v6102
        %6193 = vmatmul.mubr.f32.gmra.mrb[0].mxu0 %v5859
        %v6194 = vpop.f32.mrb[0].mxu0
        %v6195 = vadd.f32 %v6065, %v6194
        %v6196 = vpop.f32.mrb[0].mxu0
        %v6197 = vadd.f32 %v6065, %v6196
        %6198 = vmatprep.mubr.f32.mxu0 %v6105
        %6199 = vmatmul.mubr.f32.gmra.mrb[0].mxu0 %v5861
        %v6200 = vpop.f32.mrb[0].mxu0
        %v6201 = vadd.f32 %v6070, %v6200
        %v6202 = vpop.f32.mrb[0].mxu0
        %v6203 = vadd.f32 %v6070, %v6202
        %6204 = vmatprep.mubr.f32.mxu0 %v6108
        %6205 = vmatmul.mubr.f32.gmra.mrb[0].mxu0 %v5863
        %v6206 = vpop.f32.mrb[0].mxu0
        %v6207 = vadd.f32 %v6075, %v6206
        %v6208 = vpop.f32.mrb[0].mxu0
        %v6209 = vadd.f32 %v6075, %v6208
        %6210 = vmatprep.mubr.f32.mxu0 %v6111
        %6211 = vmatmul.mubr.f32.gmra.mrb[0].mxu0 %v5865
        %v6212 = vpop.f32.mrb[0].mxu0
        %v6213 = vadd.f32 %v6080, %v6212
        %v6214 = vpop.f32.mrb[0].mxu0
        %v6215 = vadd.f32 %v6080, %v6214
        %6216 = vmatprep.mubr.f32.mxu0 %v6114
        %6217 = vmatmul.mubr.f32.gmra.mrb[0].mxu0 %v5867
        %v6218 = vpop.f32.mrb[0].mxu0
        %v6219 = vadd.f32 %v6085, %v6218
        %v6220 = vpop.f32.mrb[0].mxu0
        %v6221 = vadd.f32 %v6085, %v6220
        %6222 = vmatprep.mubr.f32.mxu0 %v6117
        %6223 = vmatmul.mubr.f32.gmra.mrb[0].mxu0 %v5869
        %v6224 = vpop.f32.mrb[0].mxu0
        %v6225 = vadd.f32 %v6090, %v6224
        %v6226 = vpop.f32.mrb[0].mxu0
        %v6227 = vadd.f32 %v6090, %v6226
        %6228 = vmatprep.mubr.f32.mxu0 %v6120
        %6229 = vmatmul.mubr.f32.gmra.mrb[0].mxu0 %v5871
        %v6230 = vpop.f32.mrb[0].mxu0
        %v6231 = vadd.f32 %v6095, %v6230
        %v6232 = vpop.f32.mrb[0].mxu0
        %v6233 = vadd.f32 %v6095, %v6232
        %6234 = vdwg.mxu0
        %6235 = vmatprep.subr.mxu0 %v5876
        %6236 = vmatpush1.msra.mxu0 %v5875
        %6237 = vmatprep.subr.mxu0 %v5884
        %6238 = vmatpush1.msra.mxu0 %v5883
        %6239 = vmatprep.subr.mxu0 %v5892
        %6240 = vmatpush1.msra.mxu0 %v5891
        %6241 = vmatprep.subr.mxu0 %v5900
        %6242 = vmatpush1.msra.mxu0 %v5899
        %6243 = vmatprep.subr.mxu0 %v5908
        %6244 = vmatpush1.msra.mxu0 %v5907
        %6245 = vmatprep.subr.mxu0 %v5916
        %6246 = vmatpush1.msra.mxu0 %v5915
        %6247 = vmatprep.subr.mxu0 %v5924
        %6248 = vmatpush1.msra.mxu0 %v5923
        %6249 = vmatprep.subr.mxu0 %v5932
        %6250 = vmatpush1.msra.mxu0 %v5931
        %6251 = vmatprep.subr.mxu0 %v5940
        %6252 = vmatpush1.msra.mxu0 %v5939
        %6253 = vmatprep.subr.mxu0 %v5948
        %6254 = vmatpush1.msra.mxu0 %v5947
        %6255 = vmatprep.subr.mxu0 %v5956
        %6256 = vmatpush1.msra.mxu0 %v5955
        %6257 = vmatprep.subr.mxu0 %v5964
        %6258 = vmatpush1.msra.mxu0 %v5963
        %6259 = vmatprep.subr.mxu0 %v5972
        %6260 = vmatpush1.msra.mxu0 %v5971
        %6261 = vmatprep.subr.mxu0 %v5980
        %6262 = vmatpush1.msra.mxu0 %v5979
        %6263 = vmatprep.subr.mxu0 %v5988
        %6264 = vmatpush1.msra.mxu0 %v5987
        %6265 = vmatprep.subr.mxu0 %v5996
        %6266 = vmatpush1.msra.mxu0 %v5995
        %6267 = vmatprep.subr.mxu0 %v6004
        %6268 = vmatpush1.msra.mxu0 %v6003
        %6269 = vmatprep.subr.mxu0 %v6012
        %6270 = vmatpush1.msra.mxu0 %v6011
        %6271 = vmatprep.subr.mxu0 %v6020
        %6272 = vmatpush1.msra.mxu0 %v6019
        %6273 = vmatprep.subr.mxu0 %v6028
        %6274 = vmatpush1.msra.mxu0 %v6027
        %6275 = vmatprep.subr.mxu0 %v6036
        %6276 = vmatpush1.msra.mxu0 %v6035
        %6277 = vmatprep.subr.mxu0 %v6044
        %6278 = vmatpush1.msra.mxu0 %v6043
        %6279 = vmatprep.subr.mxu0 0.0
        %6280 = vmatpush1.msra.mxu0 0.0
        %6281 = vmatprep.subr.mxu0 0.0
        %6282 = vmatpush1.msra.mxu0 0.0
        %6283 = vmatprep.subr.mxu0 0.0
        %6284 = vmatpush1.msra.mxu0 0.0
        %6285 = vmatprep.subr.mxu0 0.0
        %6286 = vmatpush1.msra.mxu0 0.0
        %6287 = vmatprep.subr.mxu0 0.0
        %6288 = vmatpush1.msra.mxu0 0.0
        %6289 = vmatprep.subr.mxu0 0.0
        %6290 = vmatpush1.msra.mxu0 0.0
        %6291 = vmatprep.subr.mxu0 0.0
        %6292 = vmatpush1.msra.mxu0 0.0
        %6293 = vmatprep.subr.mxu0 0.0
        %6294 = vmatpush1.msra.mxu0 0.0
        %6295 = vmatprep.subr.mxu0 0.0
        %6296 = vmatpush1.msra.mxu0 0.0
        %6297 = vmatprep.subr.mxu0 0.0
        %6298 = vmatpush1.msra.mxu0 0.0
        %6299 = vmatprep.mubr.f32.mxu0 %v6099
        %6300 = vmatmul.mubr.f32.gmra.mrb[0].mxu0 %v5857
        %v6301 = vpop.f32.mrb[0].mxu0
        %v6302 = vadd.f32 %v6060, %v6301
        %v6303 = vpop.f32.mrb[0].mxu0
        %v6304 = vadd.f32 %v6060, %v6303
        %6305 = vmatprep.mubr.f32.mxu0 %v6102
        %6306 = vmatmul.mubr.f32.gmra.mrb[0].mxu0 %v5859
        %v6307 = vpop.f32.mrb[0].mxu0
        %v6308 = vadd.f32 %v6065, %v6307
        %v6309 = vpop.f32.mrb[0].mxu0
        %v6310 = vadd.f32 %v6065, %v6309
        %6311 = vmatprep.mubr.f32.mxu0 %v6105
        %6312 = vmatmul.mubr.f32.gmra.mrb[0].mxu0 %v5861
        %v6313 = vpop.f32.mrb[0].mxu0
        %v6314 = vadd.f32 %v6070, %v6313
        %v6315 = vpop.f32.mrb[0].mxu0
        %v6316 = vadd.f32 %v6070, %v6315
        %6317 = vmatprep.mubr.f32.mxu0 %v6108
        %6318 = vmatmul.mubr.f32.gmra.mrb[0].mxu0 %v5863
        %v6319 = vpop.f32.mrb[0].mxu0
        %v6320 = vadd.f32 %v6075, %v6319
        %v6321 = vpop.f32.mrb[0].mxu0
        %v6322 = vadd.f32 %v6075, %v6321
        %6323 = vmatprep.mubr.f32.mxu0 %v6111
        %6324 = vmatmul.mubr.f32.gmra.mrb[0].mxu0 %v5865
        %v6325 = vpop.f32.mrb[0].mxu0
        %v6326 = vadd.f32 %v6080, %v6325
        %v6327 = vpop.f32.mrb[0].mxu0
        %v6328 = vadd.f32 %v6080, %v6327
        %6329 = vmatprep.mubr.f32.mxu0 %v6114
        %6330 = vmatmul.mubr.f32.gmra.mrb[0].mxu0 %v5867
        %v6331 = vpop.f32.mrb[0].mxu0
        %v6332 = vadd.f32 %v6085, %v6331
        %v6333 = vpop.f32.mrb[0].mxu0
        %v6334 = vadd.f32 %v6085, %v6333
        %6335 = vmatprep.mubr.f32.mxu0 %v6117
        %6336 = vmatmul.mubr.f32.gmra.mrb[0].mxu0 %v5869
        %v6337 = vpop.f32.mrb[0].mxu0
        %v6338 = vadd.f32 %v6090, %v6337
        %v6339 = vpop.f32.mrb[0].mxu0
        %v6340 = vadd.f32 %v6090, %v6339
        %6341 = vmatprep.mubr.f32.mxu0 %v6120
        %6342 = vmatmul.mubr.f32.gmra.mrb[0].mxu0 %v5871
        %v6343 = vpop.f32.mrb[0].mxu0
        %v6344 = vadd.f32 %v6095, %v6343
        %v6345 = vpop.f32.mrb[0].mxu0
        %v6346 = vadd.f32 %v6095, %v6345
        %6347 = vdwg.mxu0
        %6348 = vmatprep.subr.mxu0 %v5878
        %6349 = vmatpush1.msra.mxu0 %v5877
        %6350 = vmatprep.subr.mxu0 %v5886
        %6351 = vmatpush1.msra.mxu0 %v5885
        %6352 = vmatprep.subr.mxu0 %v5894
        %6353 = vmatpush1.msra.mxu0 %v5893
        %6354 = vmatprep.subr.mxu0 %v5902
        %6355 = vmatpush1.msra.mxu0 %v5901
        %6356 = vmatprep.subr.mxu0 %v5910
        %6357 = vmatpush1.msra.mxu0 %v5909
        %6358 = vmatprep.subr.mxu0 %v5918
        %6359 = vmatpush1.msra.mxu0 %v5917
        %6360 = vmatprep.subr.mxu0 %v5926
        %6361 = vmatpush1.msra.mxu0 %v5925
        %6362 = vmatprep.subr.mxu0 %v5934
        %6363 = vmatpush1.msra.mxu0 %v5933
        %6364 = vmatprep.subr.mxu0 %v5942
        %6365 = vmatpush1.msra.mxu0 %v5941
        %6366 = vmatprep.subr.mxu0 %v5950
        %6367 = vmatpush1.msra.mxu0 %v5949
        %6368 = vmatprep.subr.mxu0 %v5958
        %6369 = vmatpush1.msra.mxu0 %v5957
        %6370 = vmatprep.subr.mxu0 %v5966
        %6371 = vmatpush1.msra.mxu0 %v5965
        %6372 = vmatprep.subr.mxu0 %v5974
        %6373 = vmatpush1.msra.mxu0 %v5973
        %6374 = vmatprep.subr.mxu0 %v5982
        %6375 = vmatpush1.msra.mxu0 %v5981
        %6376 = vmatprep.subr.mxu0 %v5990
        %6377 = vmatpush1.msra.mxu0 %v5989
        %6378 = vmatprep.subr.mxu0 %v5998
        %6379 = vmatpush1.msra.mxu0 %v5997
        %6380 = vmatprep.subr.mxu0 %v6006
        %6381 = vmatpush1.msra.mxu0 %v6005
        %6382 = vmatprep.subr.mxu0 %v6014
        %6383 = vmatpush1.msra.mxu0 %v6013
        %6384 = vmatprep.subr.mxu0 %v6022
        %6385 = vmatpush1.msra.mxu0 %v6021
        %6386 = vmatprep.subr.mxu0 %v6030
        %6387 = vmatpush1.msra.mxu0 %v6029
        %6388 = vmatprep.subr.mxu0 %v6038
        %6389 = vmatpush1.msra.mxu0 %v6037
        %6390 = vmatprep.subr.mxu0 %v6046
        %6391 = vmatpush1.msra.mxu0 %v6045
        %6392 = vmatprep.subr.mxu0 0.0
        %6393 = vmatpush1.msra.mxu0 0.0
        %6394 = vmatprep.subr.mxu0 0.0
        %6395 = vmatpush1.msra.mxu0 0.0
        %6396 = vmatprep.subr.mxu0 0.0
        %6397 = vmatpush1.msra.mxu0 0.0
        %6398 = vmatprep.subr.mxu0 0.0
        %6399 = vmatpush1.msra.mxu0 0.0
        %6400 = vmatprep.subr.mxu0 0.0
        %6401 = vmatpush1.msra.mxu0 0.0
        %6402 = vmatprep.subr.mxu0 0.0
        %6403 = vmatpush1.msra.mxu0 0.0
        %6404 = vmatprep.subr.mxu0 0.0
        %6405 = vmatpush1.msra.mxu0 0.0
        %6406 = vmatprep.subr.mxu0 0.0
        %6407 = vmatpush1.msra.mxu0 0.0
        %6408 = vmatprep.subr.mxu0 0.0
        %6409 = vmatpush1.msra.mxu0 0.0
        %6410 = vmatprep.subr.mxu0 0.0
        %6411 = vmatpush1.msra.mxu0 0.0
        %6412 = vmatprep.mubr.f32.mxu0 %v6099
        %6413 = vmatmul.mubr.f32.gmra.mrb[0].mxu0 %v5857
        %v6414 = vpop.f32.mrb[0].mxu0
        %v6415 = vadd.f32 %v6060, %v6414
        %v6416 = vpop.f32.mrb[0].mxu0
        %v6417 = vadd.f32 %v6060, %v6416
        %6418 = vmatprep.mubr.f32.mxu0 %v6102
        %6419 = vmatmul.mubr.f32.gmra.mrb[0].mxu0 %v5859
        %v6420 = vpop.f32.mrb[0].mxu0
        %v6421 = vadd.f32 %v6065, %v6420
        %v6422 = vpop.f32.mrb[0].mxu0
        %v6423 = vadd.f32 %v6065, %v6422
        %6424 = vmatprep.mubr.f32.mxu0 %v6105
        %6425 = vmatmul.mubr.f32.gmra.mrb[0].mxu0 %v5861
        %v6426 = vpop.f32.mrb[0].mxu0
        %v6427 = vadd.f32 %v6070, %v6426
        %v6428 = vpop.f32.mrb[0].mxu0
        %v6429 = vadd.f32 %v6070, %v6428
        %6430 = vmatprep.mubr.f32.mxu0 %v6108
        %6431 = vmatmul.mubr.f32.gmra.mrb[0].mxu0 %v5863
        %v6432 = vpop.f32.mrb[0].mxu0
        %v6433 = vadd.f32 %v6075, %v6432
        %v6434 = vpop.f32.mrb[0].mxu0
        %v6435 = vadd.f32 %v6075, %v6434
        %6436 = vmatprep.mubr.f32.mxu0 %v6111
        %6437 = vmatmul.mubr.f32.gmra.mrb[0].mxu0 %v5865
        %v6438 = vpop.f32.mrb[0].mxu0
        %v6439 = vadd.f32 %v6080, %v6438
        %v6440 = vpop.f32.mrb[0].mxu0
        %v6441 = vadd.f32 %v6080, %v6440
        %6442 = vmatprep.mubr.f32.mxu0 %v6114
        %6443 = vmatmul.mubr.f32.gmra.mrb[0].mxu0 %v5867
        %v6444 = vpop.f32.mrb[0].mxu0
        %v6445 = vadd.f32 %v6085, %v6444
        %v6446 = vpop.f32.mrb[0].mxu0
        %v6447 = vadd.f32 %v6085, %v6446
        %6448 = vmatprep.mubr.f32.mxu0 %v6117
        %6449 = vmatmul.mubr.f32.gmra.mrb[0].mxu0 %v5869
        %v6450 = vpop.f32.mrb[0].mxu0
        %v6451 = vadd.f32 %v6090, %v6450
        %v6452 = vpop.f32.mrb[0].mxu0
        %v6453 = vadd.f32 %v6090, %v6452
        %6454 = vmatprep.mubr.f32.mxu0 %v6120
        %6455 = vmatmul.mubr.f32.gmra.mrb[0].mxu0 %v5871
        %v6456 = vpop.f32.mrb[0].mxu0
        %v6457 = vadd.f32 %v6095, %v6456
        %v6458 = vpop.f32.mrb[0].mxu0
        %v6459 = vadd.f32 %v6095, %v6458
        %6460 = vdwg.mxu0
        %6461 = vmatprep.subr.mxu0 %v5880
        %6462 = vmatpush1.msra.mxu0 %v5879
        %6463 = vmatprep.subr.mxu0 %v5888
        %6464 = vmatpush1.msra.mxu0 %v5887
        %6465 = vmatprep.subr.mxu0 %v5896
        %6466 = vmatpush1.msra.mxu0 %v5895
        %6467 = vmatprep.subr.mxu0 %v5904
        %6468 = vmatpush1.msra.mxu0 %v5903
        %6469 = vmatprep.subr.mxu0 %v5912
        %6470 = vmatpush1.msra.mxu0 %v5911
        %6471 = vmatprep.subr.mxu0 %v5920
        %6472 = vmatpush1.msra.mxu0 %v5919
        %6473 = vmatprep.subr.mxu0 %v5928
        %6474 = vmatpush1.msra.mxu0 %v5927
        %6475 = vmatprep.subr.mxu0 %v5936
        %6476 = vmatpush1.msra.mxu0 %v5935
        %6477 = vmatprep.subr.mxu0 %v5944
        %6478 = vmatpush1.msra.mxu0 %v5943
        %6479 = vmatprep.subr.mxu0 %v5952
        %6480 = vmatpush1.msra.mxu0 %v5951
        %6481 = vmatprep.subr.mxu0 %v5960
        %6482 = vmatpush1.msra.mxu0 %v5959
        %6483 = vmatprep.subr.mxu0 %v5968
        %6484 = vmatpush1.msra.mxu0 %v5967
        %6485 = vmatprep.subr.mxu0 %v5976
        %6486 = vmatpush1.msra.mxu0 %v5975
        %6487 = vmatprep.subr.mxu0 %v5984
        %6488 = vmatpush1.msra.mxu0 %v5983
        %6489 = vmatprep.subr.mxu0 %v5992
        %6490 = vmatpush1.msra.mxu0 %v5991
        %6491 = vmatprep.subr.mxu0 %v6000
        %6492 = vmatpush1.msra.mxu0 %v5999
        %6493 = vmatprep.subr.mxu0 %v6008
        %6494 = vmatpush1.msra.mxu0 %v6007
        %6495 = vmatprep.subr.mxu0 %v6016
        %6496 = vmatpush1.msra.mxu0 %v6015
        %6497 = vmatprep.subr.mxu0 %v6024
        %6498 = vmatpush1.msra.mxu0 %v6023
        %6499 = vmatprep.subr.mxu0 %v6032
        %6500 = vmatpush1.msra.mxu0 %v6031
        %6501 = vmatprep.subr.mxu0 %v6040
        %6502 = vmatpush1.msra.mxu0 %v6039
        %6503 = vmatprep.subr.mxu0 %v6048
        %6504 = vmatpush1.msra.mxu0 %v6047
        %6505 = vmatprep.subr.mxu0 0.0
        %6506 = vmatpush1.msra.mxu0 0.0
        %6507 = vmatprep.subr.mxu0 0.0
        %6508 = vmatpush1.msra.mxu0 0.0
        %6509 = vmatprep.subr.mxu0 0.0
        %6510 = vmatpush1.msra.mxu0 0.0
        %6511 = vmatprep.subr.mxu0 0.0
        %6512 = vmatpush1.msra.mxu0 0.0
        %6513 = vmatprep.subr.mxu0 0.0
        %6514 = vmatpush1.msra.mxu0 0.0
        %6515 = vmatprep.subr.mxu0 0.0
        %6516 = vmatpush1.msra.mxu0 0.0
        %6517 = vmatprep.subr.mxu0 0.0
        %6518 = vmatpush1.msra.mxu0 0.0
        %6519 = vmatprep.subr.mxu0 0.0
        %6520 = vmatpush1.msra.mxu0 0.0
        %6521 = vmatprep.subr.mxu0 0.0
        %6522 = vmatpush1.msra.mxu0 0.0
        %6523 = vmatprep.subr.mxu0 0.0
        %6524 = vmatpush1.msra.mxu0 0.0
        %6525 = vmatprep.mubr.f32.mxu0 %v6099
        %6526 = vmatmul.mubr.f32.gmra.mrb[0].mxu0 %v5857
        %v6527 = vpop.f32.mrb[0].mxu0
        %v6528 = vadd.f32 %v6060, %v6527
        %v6529 = vpop.f32.mrb[0].mxu0
        %v6530 = vadd.f32 %v6060, %v6529
        %6531 = vmatprep.mubr.f32.mxu0 %v6102
        %6532 = vmatmul.mubr.f32.gmra.mrb[0].mxu0 %v5859
        %v6533 = vpop.f32.mrb[0].mxu0
        %v6534 = vadd.f32 %v6065, %v6533
        %v6535 = vpop.f32.mrb[0].mxu0
        %v6536 = vadd.f32 %v6065, %v6535
        %6537 = vmatprep.mubr.f32.mxu0 %v6105
        %6538 = vmatmul.mubr.f32.gmra.mrb[0].mxu0 %v5861
        %v6539 = vpop.f32.mrb[0].mxu0
        %v6540 = vadd.f32 %v6070, %v6539
        %v6541 = vpop.f32.mrb[0].mxu0
        %v6542 = vadd.f32 %v6070, %v6541
        %6543 = vmatprep.mubr.f32.mxu0 %v6108
        %6544 = vmatmul.mubr.f32.gmra.mrb[0].mxu0 %v5863
        %v6545 = vpop.f32.mrb[0].mxu0
        %v6546 = vadd.f32 %v6075, %v6545
        %v6547 = vpop.f32.mrb[0].mxu0
        %v6548 = vadd.f32 %v6075, %v6547
        %6549 = vmatprep.mubr.f32.mxu0 %v6111
        %6550 = vmatmul.mubr.f32.gmra.mrb[0].mxu0 %v5865
        %v6551 = vpop.f32.mrb[0].mxu0
        %v6552 = vadd.f32 %v6080, %v6551
        %v6553 = vpop.f32.mrb[0].mxu0
        %v6554 = vadd.f32 %v6080, %v6553
        %6555 = vmatprep.mubr.f32.mxu0 %v6114
        %6556 = vmatmul.mubr.f32.gmra.mrb[0].mxu0 %v5867
        %v6557 = vpop.f32.mrb[0].mxu0
        %v6558 = vadd.f32 %v6085, %v6557
        %v6559 = vpop.f32.mrb[0].mxu0
        %v6560 = vadd.f32 %v6085, %v6559
        %6561 = vmatprep.mubr.f32.mxu0 %v6117
        %6562 = vmatmul.mubr.f32.gmra.mrb[0].mxu0 %v5869
        %v6563 = vpop.f32.mrb[0].mxu0
        %v6564 = vadd.f32 %v6090, %v6563
        %v6565 = vpop.f32.mrb[0].mxu0
        %v6566 = vadd.f32 %v6090, %v6565
        %6567 = vmatprep.mubr.f32.mxu0 %v6120
        %6568 = vmatmul.mubr.f32.gmra.mrb[0].mxu0 %v5871
        %v6569 = vpop.f32.mrb[0].mxu0
        %v6570 = vadd.f32 %v6095, %v6569
        %v6571 = vpop.f32.mrb[0].mxu0
        %v6572 = vadd.f32 %v6095, %v6571
        %6573 = vdwg.mxu0
        %v6574 = vmax.f32 %v6189, 0.0
        %v6575 = vmax.f32 %v6191, 0.0
        %v6576 = vmax.f32 %v6302, 0.0
        %v6577 = vmax.f32 %v6304, 0.0
        %v6578 = vmax.f32 %v6415, 0.0
        %v6579 = vmax.f32 %v6417, 0.0
        %v6580 = vmax.f32 %v6528, 0.0
        %v6581 = vmax.f32 %v6530, 0.0
        %v6582 = vmax.f32 %v6195, 0.0
        %v6583 = vmax.f32 %v6197, 0.0
        %v6584 = vmax.f32 %v6308, 0.0
        %v6585 = vmax.f32 %v6310, 0.0
        %v6586 = vmax.f32 %v6421, 0.0
        %v6587 = vmax.f32 %v6423, 0.0
        %v6588 = vmax.f32 %v6534, 0.0
        %v6589 = vmax.f32 %v6536, 0.0
        %v6590 = vmax.f32 %v6201, 0.0
        %v6591 = vmax.f32 %v6203, 0.0
        %v6592 = vmax.f32 %v6314, 0.0
        %v6593 = vmax.f32 %v6316, 0.0
        %v6594 = vmax.f32 %v6427, 0.0
        %v6595 = vmax.f32 %v6429, 0.0
        %v6596 = vmax.f32 %v6540, 0.0
        %v6597 = vmax.f32 %v6542, 0.0
        %v6598 = vmax.f32 %v6207, 0.0
        %v6599 = vmax.f32 %v6209, 0.0
        %v6600 = vmax.f32 %v6320, 0.0
        %v6601 = vmax.f32 %v6322, 0.0
        %v6602 = vmax.f32 %v6433, 0.0
        %v6603 = vmax.f32 %v6435, 0.0
        %v6604 = vmax.f32 %v6546, 0.0
        %v6605 = vmax.f32 %v6548, 0.0
        %v6606 = vmax.f32 %v6213, 0.0
        %v6607 = vmax.f32 %v6215, 0.0
        %v6608 = vmax.f32 %v6326, 0.0
        %v6609 = vmax.f32 %v6328, 0.0
        %v6610 = vmax.f32 %v6439, 0.0
        %v6611 = vmax.f32 %v6441, 0.0
        %v6612 = vmax.f32 %v6552, 0.0
        %v6613 = vmax.f32 %v6554, 0.0
        %v6614 = vmax.f32 %v6219, 0.0
        %v6615 = vmax.f32 %v6221, 0.0
        %v6616 = vmax.f32 %v6332, 0.0
        %v6617 = vmax.f32 %v6334, 0.0
        %v6618 = vmax.f32 %v6445, 0.0
        %v6619 = vmax.f32 %v6447, 0.0
        %v6620 = vmax.f32 %v6558, 0.0
        %v6621 = vmax.f32 %v6560, 0.0
        %v6622 = vmax.f32 %v6225, 0.0
        %v6623 = vmax.f32 %v6227, 0.0
        %v6624 = vmax.f32 %v6338, 0.0
        %v6625 = vmax.f32 %v6340, 0.0
        %v6626 = vmax.f32 %v6451, 0.0
        %v6627 = vmax.f32 %v6453, 0.0
        %v6628 = vmax.f32 %v6564, 0.0
        %v6629 = vmax.f32 %v6566, 0.0
        %v6630 = vmax.f32 %v6231, 0.0
        %v6631 = vmax.f32 %v6233, 0.0
        %v6632 = vmax.f32 %v6344, 0.0
        %v6633 = vmax.f32 %v6346, 0.0
        %v6634 = vmax.f32 %v6457, 0.0
        %v6635 = vmax.f32 %v6459, 0.0
        %v6636 = vmax.f32 %v6570, 0.0
        %v6637 = vmax.f32 %v6572, 0.0
        %v6638 = vld [vmem:[%s3] sm:$0xff]
        %v6639 = vld [vmem:[%s3 + $0x8] sm:$0xff]
        %v6640 = vld [vmem:[%s3 + $0x10] sm:$0xff]
        %v6641 = vld [vmem:[%s3 + $0x18] sm:$0xff]
        %v6642 = vld [vmem:[%s3 + $0x20] sm:$0xff]
        %v6643 = vld [vmem:[%s3 + $0x28] sm:$0xff]
        %v6644 = vld [vmem:[%s3 + $0x30] sm:$0xff]
        %v6645 = vld [vmem:[%s3 + $0x38] sm:$0xff]
        %v6646 = vld [vmem:[%s3 + $0x40] sm:$0xff]
        %v6647 = vld [vmem:[%s3 + $0x48] sm:$0xff]
        %v6648 = vld [vmem:[%s4] sm:$0xff]
        %v6649 = vld [vmem:[%s4 + $0x8] sm:$0xff]
        %v6650 = vld [vmem:[%s4 + $0x10] sm:$0xff]
        %v6651 = vld [vmem:[%s4 + $0x18] sm:$0xff]
        %v6652 = vld [vmem:[%s4 + $0x20] sm:$0xff]
        %v6653 = vld [vmem:[%s4 + $0x28] sm:$0xff]
        %v6654 = vld [vmem:[%s4 + $0x30] sm:$0xff]
        %v6655 = vld [vmem:[%s4 + $0x38] sm:$0xff]
        %v6656 = vld [vmem:[%s4 + $0x40] sm:$0xff]
        %v6657 = vld [vmem:[%s4 + $0x48] sm:$0xff]
        %6659 = vset.pattern.permute.xlu0 0
        %6660 = vperm.xlu0 %6659, %v6648
        %v6661 = vpop.permute.xlu0 %6660
        %6664 = vset.pattern.permute.xlu0 0
        %6665 = vperm.xlu0 %6664, %v6649
        %v6666 = vpop.permute.xlu0 %6665
        %6669 = vset.pattern.permute.xlu0 0
        %6670 = vperm.xlu0 %6669, %v6650
        %v6671 = vpop.permute.xlu0 %6670
        %6674 = vset.pattern.permute.xlu0 0
        %6675 = vperm.xlu0 %6674, %v6651
        %v6676 = vpop.permute.xlu0 %6675
        %6679 = vset.pattern.permute.xlu0 0
        %6680 = vperm.xlu0 %6679, %v6652
        %v6681 = vpop.permute.xlu0 %6680
        %6684 = vset.pattern.permute.xlu0 0
        %6685 = vperm.xlu0 %6684, %v6653
        %v6686 = vpop.permute.xlu0 %6685
        %6689 = vset.pattern.permute.xlu0 0
        %6690 = vperm.xlu0 %6689, %v6654
        %v6691 = vpop.permute.xlu0 %6690
        %6694 = vset.pattern.permute.xlu0 0
        %6695 = vperm.xlu0 %6694, %v6655
        %v6696 = vpop.permute.xlu0 %6695
        %6699 = vset.pattern.permute.xlu0 0
        %6700 = vperm.xlu0 %6699, %v6656
        %v6701 = vpop.permute.xlu0 %6700
        %6704 = vset.pattern.permute.xlu0 0
        %6705 = vperm.xlu0 %6704, %v6657
        %v6706 = vpop.permute.xlu0 %6705
        %vm6707 = vcmask 523264
        %v6709 = vsel %vm6707, %v6638, 0
        %v6712 = vsel %vm6707, %v6639, 0
        %v6715 = vsel %vm6707, %v6640, 0
        %v6718 = vsel %vm6707, %v6641, 0
        %v6721 = vsel %vm6707, %v6642, 0
        %v6724 = vsel %vm6707, %v6643, 0
        %v6727 = vsel %vm6707, %v6644, 0
        %v6730 = vsel %vm6707, %v6645, 0
        %v6733 = vsel %vm6707, %v6646, 0
        %v6736 = vsel %vm6707, %v6647, 0
        %6738 = vmatprep.subr.mxu0 %v6575
        %6739 = vmatpush1.msra.mxu0 %v6574
        %6740 = vmatprep.subr.mxu0 %v6583
        %6741 = vmatpush1.msra.mxu0 %v6582
        %6742 = vmatprep.subr.mxu0 %v6591
        %6743 = vmatpush1.msra.mxu0 %v6590
        %6744 = vmatprep.subr.mxu0 %v6599
        %6745 = vmatpush1.msra.mxu0 %v6598
        %6746 = vmatprep.subr.mxu0 %v6607
        %6747 = vmatpush1.msra.mxu0 %v6606
        %6748 = vmatprep.subr.mxu0 %v6615
        %6749 = vmatpush1.msra.mxu0 %v6614
        %6750 = vmatprep.subr.mxu0 %v6623
        %6751 = vmatpush1.msra.mxu0 %v6622
        %6752 = vmatprep.subr.mxu0 %v6631
        %6753 = vmatpush1.msra.mxu0 %v6630
        %6754 = vmatprep.subr.mxu0 0.0
        %6755 = vmatpush1.msra.mxu0 0.0
        %6756 = vmatprep.subr.mxu0 0.0
        %6757 = vmatpush1.msra.mxu0 0.0
        %6758 = vmatprep.subr.mxu0 0.0
        %6759 = vmatpush1.msra.mxu0 0.0
        %6760 = vmatprep.subr.mxu0 0.0
        %6761 = vmatpush1.msra.mxu0 0.0
        %6762 = vmatprep.subr.mxu0 0.0
        %6763 = vmatpush1.msra.mxu0 0.0
        %6764 = vmatprep.subr.mxu0 0.0
        %6765 = vmatpush1.msra.mxu0 0.0
        %6766 = vmatprep.subr.mxu0 0.0
        %6767 = vmatpush1.msra.mxu0 0.0
        %6768 = vmatprep.subr.mxu0 0.0
        %6769 = vmatpush1.msra.mxu0 0.0
        %6770 = vmatprep.subr.mxu0 0.0
        %6771 = vmatpush1.msra.mxu0 0.0
        %6772 = vmatprep.subr.mxu0 0.0
        %6773 = vmatpush1.msra.mxu0 0.0
        %6774 = vmatprep.subr.mxu0 0.0
        %6775 = vmatpush1.msra.mxu0 0.0
        %6776 = vmatprep.subr.mxu0 0.0
        %6777 = vmatpush1.msra.mxu0 0.0
        %6778 = vmatprep.subr.mxu0 0.0
        %6779 = vmatpush1.msra.mxu0 0.0
        %6780 = vmatprep.subr.mxu0 0.0
        %6781 = vmatpush1.msra.mxu0 0.0
        %6782 = vmatprep.subr.mxu0 0.0
        %6783 = vmatpush1.msra.mxu0 0.0
        %6784 = vmatprep.subr.mxu0 0.0
        %6785 = vmatpush1.msra.mxu0 0.0
        %6786 = vmatprep.subr.mxu0 0.0
        %6787 = vmatpush1.msra.mxu0 0.0
        %6788 = vmatprep.subr.mxu0 0.0
        %6789 = vmatpush1.msra.mxu0 0.0
        %6790 = vmatprep.subr.mxu0 0.0
        %6791 = vmatpush1.msra.mxu0 0.0
        %6792 = vmatprep.subr.mxu0 0.0
        %6793 = vmatpush1.msra.mxu0 0.0
        %6794 = vmatprep.subr.mxu0 0.0
        %6795 = vmatpush1.msra.mxu0 0.0
        %6796 = vmatprep.subr.mxu0 0.0
        %6797 = vmatpush1.msra.mxu0 0.0
        %6798 = vmatprep.subr.mxu0 0.0
        %6799 = vmatpush1.msra.mxu0 0.0
        %6800 = vmatprep.subr.mxu0 0.0
        %6801 = vmatpush1.msra.mxu0 0.0
        %6802 = vmatprep.mubr.f32.mxu0 0.0
        %6803 = vmatmul.mubr.f32.gmra.mrb[0].mxu0 %v6709
        %v6804 = vpop.f32.mrb[0].mxu0
        %v6805 = vadd.f32 %v6661, %v6804
        %v6806 = vpop.f32.mrb[0].mxu0
        %v6807 = vadd.f32 %v6661, %v6806
        %6808 = vmatprep.mubr.f32.mxu0 0.0
        %6809 = vmatmul.mubr.f32.gmra.mrb[0].mxu0 %v6712
        %v6810 = vpop.f32.mrb[0].mxu0
        %v6811 = vadd.f32 %v6666, %v6810
        %v6812 = vpop.f32.mrb[0].mxu0
        %v6813 = vadd.f32 %v6666, %v6812
        %6814 = vmatprep.mubr.f32.mxu0 0.0
        %6815 = vmatmul.mubr.f32.gmra.mrb[0].mxu0 %v6715
        %v6816 = vpop.f32.mrb[0].mxu0
        %v6817 = vadd.f32 %v6671, %v6816
        %v6818 = vpop.f32.mrb[0].mxu0
        %v6819 = vadd.f32 %v6671, %v6818
        %6820 = vmatprep.mubr.f32.mxu0 0.0
        %6821 = vmatmul.mubr.f32.gmra.mrb[0].mxu0 %v6718
        %v6822 = vpop.f32.mrb[0].mxu0
        %v6823 = vadd.f32 %v6676, %v6822
        %v6824 = vpop.f32.mrb[0].mxu0
        %v6825 = vadd.f32 %v6676, %v6824
        %6826 = vmatprep.mubr.f32.mxu0 0.0
        %6827 = vmatmul.mubr.f32.gmra.mrb[0].mxu0 %v6721
        %v6828 = vpop.f32.mrb[0].mxu0
        %v6829 = vadd.f32 %v6681, %v6828
        %v6830 = vpop.f32.mrb[0].mxu0
        %v6831 = vadd.f32 %v6681, %v6830
        %6832 = vmatprep.mubr.f32.mxu0 0.0
        %6833 = vmatmul.mubr.f32.gmra.mrb[0].mxu0 %v6724
        %v6834 = vpop.f32.mrb[0].mxu0
        %v6835 = vadd.f32 %v6686, %v6834
        %v6836 = vpop.f32.mrb[0].mxu0
        %v6837 = vadd.f32 %v6686, %v6836
        %6838 = vmatprep.mubr.f32.mxu0 0.0
        %6839 = vmatmul.mubr.f32.gmra.mrb[0].mxu0 %v6727
        %v6840 = vpop.f32.mrb[0].mxu0
        %v6841 = vadd.f32 %v6691, %v6840
        %v6842 = vpop.f32.mrb[0].mxu0
        %v6843 = vadd.f32 %v6691, %v6842
        %6844 = vmatprep.mubr.f32.mxu0 0.0
        %6845 = vmatmul.mubr.f32.gmra.mrb[0].mxu0 %v6730
        %v6846 = vpop.f32.mrb[0].mxu0
        %v6847 = vadd.f32 %v6696, %v6846
        %v6848 = vpop.f32.mrb[0].mxu0
        %v6849 = vadd.f32 %v6696, %v6848
        %6850 = vmatprep.mubr.f32.mxu0 0.0
        %6851 = vmatmul.mubr.f32.gmra.mrb[0].mxu0 %v6733
        %v6852 = vpop.f32.mrb[0].mxu0
        %v6853 = vadd.f32 %v6701, %v6852
        %v6854 = vpop.f32.mrb[0].mxu0
        %v6855 = vadd.f32 %v6701, %v6854
        %6856 = vmatprep.mubr.f32.mxu0 0.0
        %6857 = vmatmul.mubr.f32.gmra.mrb[0].mxu0 %v6736
        %v6858 = vpop.f32.mrb[0].mxu0
        %v6859 = vpop.f32.mrb[0].mxu0
        %6860 = vdwg.mxu0
        %6861 = vmatprep.subr.mxu0 %v6577
        %6862 = vmatpush1.msra.mxu0 %v6576
        %6863 = vmatprep.subr.mxu0 %v6585
        %6864 = vmatpush1.msra.mxu0 %v6584
        %6865 = vmatprep.subr.mxu0 %v6593
        %6866 = vmatpush1.msra.mxu0 %v6592
        %6867 = vmatprep.subr.mxu0 %v6601
        %6868 = vmatpush1.msra.mxu0 %v6600
        %6869 = vmatprep.subr.mxu0 %v6609
        %6870 = vmatpush1.msra.mxu0 %v6608
        %6871 = vmatprep.subr.mxu0 %v6617
        %6872 = vmatpush1.msra.mxu0 %v6616
        %6873 = vmatprep.subr.mxu0 %v6625
        %6874 = vmatpush1.msra.mxu0 %v6624
        %6875 = vmatprep.subr.mxu0 %v6633
        %6876 = vmatpush1.msra.mxu0 %v6632
        %6877 = vmatprep.subr.mxu0 0.0
        %6878 = vmatpush1.msra.mxu0 0.0
        %6879 = vmatprep.subr.mxu0 0.0
        %6880 = vmatpush1.msra.mxu0 0.0
        %6881 = vmatprep.subr.mxu0 0.0
        %6882 = vmatpush1.msra.mxu0 0.0
        %6883 = vmatprep.subr.mxu0 0.0
        %6884 = vmatpush1.msra.mxu0 0.0
        %6885 = vmatprep.subr.mxu0 0.0
        %6886 = vmatpush1.msra.mxu0 0.0
        %6887 = vmatprep.subr.mxu0 0.0
        %6888 = vmatpush1.msra.mxu0 0.0
        %6889 = vmatprep.subr.mxu0 0.0
        %6890 = vmatpush1.msra.mxu0 0.0
        %6891 = vmatprep.subr.mxu0 0.0
        %6892 = vmatpush1.msra.mxu0 0.0
        %6893 = vmatprep.subr.mxu0 0.0
        %6894 = vmatpush1.msra.mxu0 0.0
        %6895 = vmatprep.subr.mxu0 0.0
        %6896 = vmatpush1.msra.mxu0 0.0
        %6897 = vmatprep.subr.mxu0 0.0
        %6898 = vmatpush1.msra.mxu0 0.0
        %6899 = vmatprep.subr.mxu0 0.0
        %6900 = vmatpush1.msra.mxu0 0.0
        %6901 = vmatprep.subr.mxu0 0.0
        %6902 = vmatpush1.msra.mxu0 0.0
        %6903 = vmatprep.subr.mxu0 0.0
        %6904 = vmatpush1.msra.mxu0 0.0
        %6905 = vmatprep.subr.mxu0 0.0
        %6906 = vmatpush1.msra.mxu0 0.0
        %6907 = vmatprep.subr.mxu0 0.0
        %6908 = vmatpush1.msra.mxu0 0.0
        %6909 = vmatprep.subr.mxu0 0.0
        %6910 = vmatpush1.msra.mxu0 0.0
        %6911 = vmatprep.subr.mxu0 0.0
        %6912 = vmatpush1.msra.mxu0 0.0
        %6913 = vmatprep.subr.mxu0 0.0
        %6914 = vmatpush1.msra.mxu0 0.0
        %6915 = vmatprep.subr.mxu0 0.0
        %6916 = vmatpush1.msra.mxu0 0.0
        %6917 = vmatprep.subr.mxu0 0.0
        %6918 = vmatpush1.msra.mxu0 0.0
        %6919 = vmatprep.subr.mxu0 0.0
        %6920 = vmatpush1.msra.mxu0 0.0
        %6921 = vmatprep.subr.mxu0 0.0
        %6922 = vmatpush1.msra.mxu0 0.0
        %6923 = vmatprep.subr.mxu0 0.0
        %6924 = vmatpush1.msra.mxu0 0.0
        %6925 = vmatprep.mubr.f32.mxu0 0.0
        %6926 = vmatmul.mubr.f32.gmra.mrb[0].mxu0 %v6709
        %v6927 = vpop.f32.mrb[0].mxu0
        %v6928 = vadd.f32 %v6661, %v6927
        %v6929 = vpop.f32.mrb[0].mxu0
        %v6930 = vadd.f32 %v6661, %v6929
        %6931 = vmatprep.mubr.f32.mxu0 0.0
        %6932 = vmatmul.mubr.f32.gmra.mrb[0].mxu0 %v6712
        %v6933 = vpop.f32.mrb[0].mxu0
        %v6934 = vadd.f32 %v6666, %v6933
        %v6935 = vpop.f32.mrb[0].mxu0
        %v6936 = vadd.f32 %v6666, %v6935
        %6937 = vmatprep.mubr.f32.mxu0 0.0
        %6938 = vmatmul.mubr.f32.gmra.mrb[0].mxu0 %v6715
        %v6939 = vpop.f32.mrb[0].mxu0
        %v6940 = vadd.f32 %v6671, %v6939
        %v6941 = vpop.f32.mrb[0].mxu0
        %v6942 = vadd.f32 %v6671, %v6941
        %6943 = vmatprep.mubr.f32.mxu0 0.0
        %6944 = vmatmul.mubr.f32.gmra.mrb[0].mxu0 %v6718
        %v6945 = vpop.f32.mrb[0].mxu0
        %v6946 = vadd.f32 %v6676, %v6945
        %v6947 = vpop.f32.mrb[0].mxu0
        %v6948 = vadd.f32 %v6676, %v6947
        %6949 = vmatprep.mubr.f32.mxu0 0.0
        %6950 = vmatmul.mubr.f32.gmra.mrb[0].mxu0 %v6721
        %v6951 = vpop.f32.mrb[0].mxu0
        %v6952 = vadd.f32 %v6681, %v6951
        %v6953 = vpop.f32.mrb[0].mxu0
        %v6954 = vadd.f32 %v6681, %v6953
        %6955 = vmatprep.mubr.f32.mxu0 0.0
        %6956 = vmatmul.mubr.f32.gmra.mrb[0].mxu0 %v6724
        %v6957 = vpop.f32.mrb[0].mxu0
        %v6958 = vadd.f32 %v6686, %v6957
        %v6959 = vpop.f32.mrb[0].mxu0
        %v6960 = vadd.f32 %v6686, %v6959
        %6961 = vmatprep.mubr.f32.mxu0 0.0
        %6962 = vmatmul.mubr.f32.gmra.mrb[0].mxu0 %v6727
        %v6963 = vpop.f32.mrb[0].mxu0
        %v6964 = vadd.f32 %v6691, %v6963
        %v6965 = vpop.f32.mrb[0].mxu0
        %v6966 = vadd.f32 %v6691, %v6965
        %6967 = vmatprep.mubr.f32.mxu0 0.0
        %6968 = vmatmul.mubr.f32.gmra.mrb[0].mxu0 %v6730
        %v6969 = vpop.f32.mrb[0].mxu0
        %v6970 = vadd.f32 %v6696, %v6969
        %v6971 = vpop.f32.mrb[0].mxu0
        %v6972 = vadd.f32 %v6696, %v6971
        %6973 = vmatprep.mubr.f32.mxu0 0.0
        %6974 = vmatmul.mubr.f32.gmra.mrb[0].mxu0 %v6733
        %v6975 = vpop.f32.mrb[0].mxu0
        %v6976 = vadd.f32 %v6701, %v6975
        %v6977 = vpop.f32.mrb[0].mxu0
        %v6978 = vadd.f32 %v6701, %v6977
        %6979 = vmatprep.mubr.f32.mxu0 0.0
        %6980 = vmatmul.mubr.f32.gmra.mrb[0].mxu0 %v6736
        %v6981 = vpop.f32.mrb[0].mxu0
        %v6982 = vpop.f32.mrb[0].mxu0
        %6983 = vdwg.mxu0
        %6984 = vmatprep.subr.mxu0 %v6579
        %6985 = vmatpush1.msra.mxu0 %v6578
        %6986 = vmatprep.subr.mxu0 %v6587
        %6987 = vmatpush1.msra.mxu0 %v6586
        %6988 = vmatprep.subr.mxu0 %v6595
        %6989 = vmatpush1.msra.mxu0 %v6594
        %6990 = vmatprep.subr.mxu0 %v6603
        %6991 = vmatpush1.msra.mxu0 %v6602
        %6992 = vmatprep.subr.mxu0 %v6611
        %6993 = vmatpush1.msra.mxu0 %v6610
        %6994 = vmatprep.subr.mxu0 %v6619
        %6995 = vmatpush1.msra.mxu0 %v6618
        %6996 = vmatprep.subr.mxu0 %v6627
        %6997 = vmatpush1.msra.mxu0 %v6626
        %6998 = vmatprep.subr.mxu0 %v6635
        %6999 = vmatpush1.msra.mxu0 %v6634
        %7000 = vmatprep.subr.mxu0 0.0
        %7001 = vmatpush1.msra.mxu0 0.0
        %7002 = vmatprep.subr.mxu0 0.0
        %7003 = vmatpush1.msra.mxu0 0.0
        %7004 = vmatprep.subr.mxu0 0.0
        %7005 = vmatpush1.msra.mxu0 0.0
        %7006 = vmatprep.subr.mxu0 0.0
        %7007 = vmatpush1.msra.mxu0 0.0
        %7008 = vmatprep.subr.mxu0 0.0
        %7009 = vmatpush1.msra.mxu0 0.0
        %7010 = vmatprep.subr.mxu0 0.0
        %7011 = vmatpush1.msra.mxu0 0.0
        %7012 = vmatprep.subr.mxu0 0.0
        %7013 = vmatpush1.msra.mxu0 0.0
        %7014 = vmatprep.subr.mxu0 0.0
        %7015 = vmatpush1.msra.mxu0 0.0
        %7016 = vmatprep.subr.mxu0 0.0
        %7017 = vmatpush1.msra.mxu0 0.0
        %7018 = vmatprep.subr.mxu0 0.0
        %7019 = vmatpush1.msra.mxu0 0.0
        %7020 = vmatprep.subr.mxu0 0.0
        %7021 = vmatpush1.msra.mxu0 0.0
        %7022 = vmatprep.subr.mxu0 0.0
        %7023 = vmatpush1.msra.mxu0 0.0
        %7024 = vmatprep.subr.mxu0 0.0
        %7025 = vmatpush1.msra.mxu0 0.0
        %7026 = vmatprep.subr.mxu0 0.0
        %7027 = vmatpush1.msra.mxu0 0.0
        %7028 = vmatprep.subr.mxu0 0.0
        %7029 = vmatpush1.msra.mxu0 0.0
        %7030 = vmatprep.subr.mxu0 0.0
        %7031 = vmatpush1.msra.mxu0 0.0
        %7032 = vmatprep.subr.mxu0 0.0
        %7033 = vmatpush1.msra.mxu0 0.0
        %7034 = vmatprep.subr.mxu0 0.0
        %7035 = vmatpush1.msra.mxu0 0.0
        %7036 = vmatprep.subr.mxu0 0.0
        %7037 = vmatpush1.msra.mxu0 0.0
        %7038 = vmatprep.subr.mxu0 0.0
        %7039 = vmatpush1.msra.mxu0 0.0
        %7040 = vmatprep.subr.mxu0 0.0
        %7041 = vmatpush1.msra.mxu0 0.0
        %7042 = vmatprep.subr.mxu0 0.0
        %7043 = vmatpush1.msra.mxu0 0.0
        %7044 = vmatprep.subr.mxu0 0.0
        %7045 = vmatpush1.msra.mxu0 0.0
        %7046 = vmatprep.subr.mxu0 0.0
        %7047 = vmatpush1.msra.mxu0 0.0
        %7048 = vmatprep.mubr.f32.mxu0 0.0
        %7049 = vmatmul.mubr.f32.gmra.mrb[0].mxu0 %v6709
        %v7050 = vpop.f32.mrb[0].mxu0
        %v7051 = vadd.f32 %v6661, %v7050
        %v7052 = vpop.f32.mrb[0].mxu0
        %v7053 = vadd.f32 %v6661, %v7052
        %7054 = vmatprep.mubr.f32.mxu0 0.0
        %7055 = vmatmul.mubr.f32.gmra.mrb[0].mxu0 %v6712
        %v7056 = vpop.f32.mrb[0].mxu0
        %v7057 = vadd.f32 %v6666, %v7056
        %v7058 = vpop.f32.mrb[0].mxu0
        %v7059 = vadd.f32 %v6666, %v7058
        %7060 = vmatprep.mubr.f32.mxu0 0.0
        %7061 = vmatmul.mubr.f32.gmra.mrb[0].mxu0 %v6715
        %v7062 = vpop.f32.mrb[0].mxu0
        %v7063 = vadd.f32 %v6671, %v7062
        %v7064 = vpop.f32.mrb[0].mxu0
        %v7065 = vadd.f32 %v6671, %v7064
        %7066 = vmatprep.mubr.f32.mxu0 0.0
        %7067 = vmatmul.mubr.f32.gmra.mrb[0].mxu0 %v6718
        %v7068 = vpop.f32.mrb[0].mxu0
        %v7069 = vadd.f32 %v6676, %v7068
        %v7070 = vpop.f32.mrb[0].mxu0
        %v7071 = vadd.f32 %v6676, %v7070
        %7072 = vmatprep.mubr.f32.mxu0 0.0
        %7073 = vmatmul.mubr.f32.gmra.mrb[0].mxu0 %v6721
        %v7074 = vpop.f32.mrb[0].mxu0
        %v7075 = vadd.f32 %v6681, %v7074
        %v7076 = vpop.f32.mrb[0].mxu0
        %v7077 = vadd.f32 %v6681, %v7076
        %7078 = vmatprep.mubr.f32.mxu0 0.0
        %7079 = vmatmul.mubr.f32.gmra.mrb[0].mxu0 %v6724
        %v7080 = vpop.f32.mrb[0].mxu0
        %v7081 = vadd.f32 %v6686, %v7080
        %v7082 = vpop.f32.mrb[0].mxu0
        %v7083 = vadd.f32 %v6686, %v7082
        %7084 = vmatprep.mubr.f32.mxu0 0.0
        %7085 = vmatmul.mubr.f32.gmra.mrb[0].mxu0 %v6727
        %v7086 = vpop.f32.mrb[0].mxu0
        %v7087 = vadd.f32 %v6691, %v7086
        %v7088 = vpop.f32.mrb[0].mxu0
        %v7089 = vadd.f32 %v6691, %v7088
        %7090 = vmatprep.mubr.f32.mxu0 0.0
        %7091 = vmatmul.mubr.f32.gmra.mrb[0].mxu0 %v6730
        %v7092 = vpop.f32.mrb[0].mxu0
        %v7093 = vadd.f32 %v6696, %v7092
        %v7094 = vpop.f32.mrb[0].mxu0
        %v7095 = vadd.f32 %v6696, %v7094
        %7096 = vmatprep.mubr.f32.mxu0 0.0
        %7097 = vmatmul.mubr.f32.gmra.mrb[0].mxu0 %v6733
        %v7098 = vpop.f32.mrb[0].mxu0
        %v7099 = vadd.f32 %v6701, %v7098
        %v7100 = vpop.f32.mrb[0].mxu0
        %v7101 = vadd.f32 %v6701, %v7100
        %7102 = vmatprep.mubr.f32.mxu0 0.0
        %7103 = vmatmul.mubr.f32.gmra.mrb[0].mxu0 %v6736
        %v7104 = vpop.f32.mrb[0].mxu0
        %v7105 = vpop.f32.mrb[0].mxu0
        %7106 = vdwg.mxu0
        %7107 = vmatprep.subr.mxu0 %v6581
        %7108 = vmatpush1.msra.mxu0 %v6580
        %7109 = vmatprep.subr.mxu0 %v6589
        %7110 = vmatpush1.msra.mxu0 %v6588
        %7111 = vmatprep.subr.mxu0 %v6597
        %7112 = vmatpush1.msra.mxu0 %v6596
        %7113 = vmatprep.subr.mxu0 %v6605
        %7114 = vmatpush1.msra.mxu0 %v6604
        %7115 = vmatprep.subr.mxu0 %v6613
        %7116 = vmatpush1.msra.mxu0 %v6612
        %7117 = vmatprep.subr.mxu0 %v6621
        %7118 = vmatpush1.msra.mxu0 %v6620
        %7119 = vmatprep.subr.mxu0 %v6629
        %7120 = vmatpush1.msra.mxu0 %v6628
        %7121 = vmatprep.subr.mxu0 %v6637
        %7122 = vmatpush1.msra.mxu0 %v6636
        %7123 = vmatprep.subr.mxu0 0.0
        %7124 = vmatpush1.msra.mxu0 0.0
        %7125 = vmatprep.subr.mxu0 0.0
        %7126 = vmatpush1.msra.mxu0 0.0
        %7127 = vmatprep.subr.mxu0 0.0
        %7128 = vmatpush1.msra.mxu0 0.0
        %7129 = vmatprep.subr.mxu0 0.0
        %7130 = vmatpush1.msra.mxu0 0.0
        %7131 = vmatprep.subr.mxu0 0.0
        %7132 = vmatpush1.msra.mxu0 0.0
        %7133 = vmatprep.subr.mxu0 0.0
        %7134 = vmatpush1.msra.mxu0 0.0
        %7135 = vmatprep.subr.mxu0 0.0
        %7136 = vmatpush1.msra.mxu0 0.0
        %7137 = vmatprep.subr.mxu0 0.0
        %7138 = vmatpush1.msra.mxu0 0.0
        %7139 = vmatprep.subr.mxu0 0.0
        %7140 = vmatpush1.msra.mxu0 0.0
        %7141 = vmatprep.subr.mxu0 0.0
        %7142 = vmatpush1.msra.mxu0 0.0
        %7143 = vmatprep.subr.mxu0 0.0
        %7144 = vmatpush1.msra.mxu0 0.0
        %7145 = vmatprep.subr.mxu0 0.0
        %7146 = vmatpush1.msra.mxu0 0.0
        %7147 = vmatprep.subr.mxu0 0.0
        %7148 = vmatpush1.msra.mxu0 0.0
        %7149 = vmatprep.subr.mxu0 0.0
        %7150 = vmatpush1.msra.mxu0 0.0
        %7151 = vmatprep.subr.mxu0 0.0
        %7152 = vmatpush1.msra.mxu0 0.0
        %7153 = vmatprep.subr.mxu0 0.0
        %7154 = vmatpush1.msra.mxu0 0.0
        %7155 = vmatprep.subr.mxu0 0.0
        %7156 = vmatpush1.msra.mxu0 0.0
        %7157 = vmatprep.subr.mxu0 0.0
        %7158 = vmatpush1.msra.mxu0 0.0
        %7159 = vmatprep.subr.mxu0 0.0
        %7160 = vmatpush1.msra.mxu0 0.0
        %7161 = vmatprep.subr.mxu0 0.0
        %7162 = vmatpush1.msra.mxu0 0.0
        %7163 = vmatprep.subr.mxu0 0.0
        %7164 = vmatpush1.msra.mxu0 0.0
        %7165 = vmatprep.subr.mxu0 0.0
        %7166 = vmatpush1.msra.mxu0 0.0
        %7167 = vmatprep.subr.mxu0 0.0
        %7168 = vmatpush1.msra.mxu0 0.0
        %7169 = vmatprep.subr.mxu0 0.0
        %7170 = vmatpush1.msra.mxu0 0.0
        %7171 = vmatprep.mubr.f32.mxu0 0.0
        %7172 = vmatmul.mubr.f32.gmra.mrb[0].mxu0 %v6709
        %v7173 = vpop.f32.mrb[0].mxu0
        %v7174 = vadd.f32 %v6661, %v7173
        %v7175 = vpop.f32.mrb[0].mxu0
        %v7176 = vadd.f32 %v6661, %v7175
        %7177 = vmatprep.mubr.f32.mxu0 0.0
        %7178 = vmatmul.mubr.f32.gmra.mrb[0].mxu0 %v6712
        %v7179 = vpop.f32.mrb[0].mxu0
        %v7180 = vadd.f32 %v6666, %v7179
        %v7181 = vpop.f32.mrb[0].mxu0
        %v7182 = vadd.f32 %v6666, %v7181
        %7183 = vmatprep.mubr.f32.mxu0 0.0
        %7184 = vmatmul.mubr.f32.gmra.mrb[0].mxu0 %v6715
        %v7185 = vpop.f32.mrb[0].mxu0
        %v7186 = vadd.f32 %v6671, %v7185
        %v7187 = vpop.f32.mrb[0].mxu0
        %v7188 = vadd.f32 %v6671, %v7187
        %7189 = vmatprep.mubr.f32.mxu0 0.0
        %7190 = vmatmul.mubr.f32.gmra.mrb[0].mxu0 %v6718
        %v7191 = vpop.f32.mrb[0].mxu0
        %v7192 = vadd.f32 %v6676, %v7191
        %v7193 = vpop.f32.mrb[0].mxu0
        %v7194 = vadd.f32 %v6676, %v7193
        %7195 = vmatprep.mubr.f32.mxu0 0.0
        %7196 = vmatmul.mubr.f32.gmra.mrb[0].mxu0 %v6721
        %v7197 = vpop.f32.mrb[0].mxu0
        %v7198 = vadd.f32 %v6681, %v7197
        %v7199 = vpop.f32.mrb[0].mxu0
        %v7200 = vadd.f32 %v6681, %v7199
        %7201 = vmatprep.mubr.f32.mxu0 0.0
        %7202 = vmatmul.mubr.f32.gmra.mrb[0].mxu0 %v6724
        %v7203 = vpop.f32.mrb[0].mxu0
        %v7204 = vadd.f32 %v6686, %v7203
        %v7205 = vpop.f32.mrb[0].mxu0
        %v7206 = vadd.f32 %v6686, %v7205
        %7207 = vmatprep.mubr.f32.mxu0 0.0
        %7208 = vmatmul.mubr.f32.gmra.mrb[0].mxu0 %v6727
        %v7209 = vpop.f32.mrb[0].mxu0
        %v7210 = vadd.f32 %v6691, %v7209
        %v7211 = vpop.f32.mrb[0].mxu0
        %v7212 = vadd.f32 %v6691, %v7211
        %7213 = vmatprep.mubr.f32.mxu0 0.0
        %7214 = vmatmul.mubr.f32.gmra.mrb[0].mxu0 %v6730
        %v7215 = vpop.f32.mrb[0].mxu0
        %v7216 = vadd.f32 %v6696, %v7215
        %v7217 = vpop.f32.mrb[0].mxu0
        %v7218 = vadd.f32 %v6696, %v7217
        %7219 = vmatprep.mubr.f32.mxu0 0.0
        %7220 = vmatmul.mubr.f32.gmra.mrb[0].mxu0 %v6733
        %v7221 = vpop.f32.mrb[0].mxu0
        %v7222 = vadd.f32 %v6701, %v7221
        %v7223 = vpop.f32.mrb[0].mxu0
        %v7224 = vadd.f32 %v6701, %v7223
        %7225 = vmatprep.mubr.f32.mxu0 0.0
        %7226 = vmatmul.mubr.f32.gmra.mrb[0].mxu0 %v6736
        %v7227 = vpop.f32.mrb[0].mxu0
        %v7228 = vpop.f32.mrb[0].mxu0
        %7229 = vdwg.mxu0
        %v7230 = vmax.f32 %v6805, 0.0
        %v7231 = vmax.f32 %v6807, 0.0
        %v7232 = vmax.f32 %v6928, 0.0
        %v7233 = vmax.f32 %v6930, 0.0
        %v7234 = vmax.f32 %v7051, 0.0
        %v7235 = vmax.f32 %v7053, 0.0
        %v7236 = vmax.f32 %v7174, 0.0
        %v7237 = vmax.f32 %v7176, 0.0
        %v7238 = vmax.f32 %v6811, 0.0
        %v7239 = vmax.f32 %v6813, 0.0
        %v7240 = vmax.f32 %v6934, 0.0
        %v7241 = vmax.f32 %v6936, 0.0
        %v7242 = vmax.f32 %v7057, 0.0
        %v7243 = vmax.f32 %v7059, 0.0
        %v7244 = vmax.f32 %v7180, 0.0
        %v7245 = vmax.f32 %v7182, 0.0
        %v7246 = vmax.f32 %v6817, 0.0
        %v7247 = vmax.f32 %v6819, 0.0
        %v7248 = vmax.f32 %v6940, 0.0
        %v7249 = vmax.f32 %v6942, 0.0
        %v7250 = vmax.f32 %v7063, 0.0
        %v7251 = vmax.f32 %v7065, 0.0
        %v7252 = vmax.f32 %v7186, 0.0
        %v7253 = vmax.f32 %v7188, 0.0
        %v7254 = vmax.f32 %v6823, 0.0
        %v7255 = vmax.f32 %v6825, 0.0
        %v7256 = vmax.f32 %v6946, 0.0
        %v7257 = vmax.f32 %v6948, 0.0
        %v7258 = vmax.f32 %v7069, 0.0
        %v7259 = vmax.f32 %v7071, 0.0
        %v7260 = vmax.f32 %v7192, 0.0
        %v7261 = vmax.f32 %v7194, 0.0
        %v7262 = vmax.f32 %v6829, 0.0
        %v7263 = vmax.f32 %v6831, 0.0
        %v7264 = vmax.f32 %v6952, 0.0
        %v7265 = vmax.f32 %v6954, 0.0
        %v7266 = vmax.f32 %v7075, 0.0
        %v7267 = vmax.f32 %v7077, 0.0
        %v7268 = vmax.f32 %v7198, 0.0
        %v7269 = vmax.f32 %v7200, 0.0
        %v7270 = vmax.f32 %v6835, 0.0
        %v7271 = vmax.f32 %v6837, 0.0
        %v7272 = vmax.f32 %v6958, 0.0
        %v7273 = vmax.f32 %v6960, 0.0
        %v7274 = vmax.f32 %v7081, 0.0
        %v7275 = vmax.f32 %v7083, 0.0
        %v7276 = vmax.f32 %v7204, 0.0
        %v7277 = vmax.f32 %v7206, 0.0
        %v7278 = vmax.f32 %v6841, 0.0
        %v7279 = vmax.f32 %v6843, 0.0
        %v7280 = vmax.f32 %v6964, 0.0
        %v7281 = vmax.f32 %v6966, 0.0
        %v7282 = vmax.f32 %v7087, 0.0
        %v7283 = vmax.f32 %v7089, 0.0
        %v7284 = vmax.f32 %v7210, 0.0
        %v7285 = vmax.f32 %v7212, 0.0
        %v7286 = vmax.f32 %v6847, 0.0
        %v7287 = vmax.f32 %v6849, 0.0
        %v7288 = vmax.f32 %v6970, 0.0
        %v7289 = vmax.f32 %v6972, 0.0
        %v7290 = vmax.f32 %v7093, 0.0
        %v7291 = vmax.f32 %v7095, 0.0
        %v7292 = vmax.f32 %v7216, 0.0
        %v7293 = vmax.f32 %v7218, 0.0
        %v7294 = vld [vmem:[#allocation6] sm:$0xff]
        %v7295 = vld [vmem:[#allocation6 + $0x8] sm:$0xff]
        %v7296 = vld [vmem:[#allocation6 + $0x10] sm:$0xff]
        %v7297 = vld [vmem:[#allocation6 + $0x18] sm:$0xff]
        %v7298 = vld [vmem:[#allocation6 + $0x20] sm:$0xff]
        %v7299 = vld [vmem:[#allocation6 + $0x28] sm:$0xff]
        %v7300 = vld [vmem:[#allocation6 + $0x30] sm:$0xff]
        %v7301 = vld [vmem:[#allocation6 + $0x38] sm:$0xff]
        %v7302 = vld [vmem:[#allocation8] sm:$0xff]
        %v7303 = vld [vmem:[#allocation8 + $0x8] sm:$0xff]
        %v7304 = vld [vmem:[#allocation8 + $0x10] sm:$0xff]
        %v7305 = vld [vmem:[#allocation8 + $0x18] sm:$0xff]
        %v7306 = vld [vmem:[#allocation8 + $0x20] sm:$0xff]
        %v7307 = vld [vmem:[#allocation8 + $0x28] sm:$0xff]
        %v7308 = vld [vmem:[#allocation8 + $0x30] sm:$0xff]
        %v7309 = vld [vmem:[#allocation8 + $0x38] sm:$0xff]
        %7311 = vset.pattern.permute.xlu0 0
        %7312 = vperm.xlu0 %7311, %v7302
        %v7313 = vpop.permute.xlu0 %7312
        %7316 = vset.pattern.permute.xlu0 0
        %7317 = vperm.xlu0 %7316, %v7303
        %v7318 = vpop.permute.xlu0 %7317
        %7321 = vset.pattern.permute.xlu0 0
        %7322 = vperm.xlu0 %7321, %v7304
        %v7323 = vpop.permute.xlu0 %7322
        %7326 = vset.pattern.permute.xlu0 0
        %7327 = vperm.xlu0 %7326, %v7305
        %v7328 = vpop.permute.xlu0 %7327
        %7331 = vset.pattern.permute.xlu0 0
        %7332 = vperm.xlu0 %7331, %v7306
        %v7333 = vpop.permute.xlu0 %7332
        %7336 = vset.pattern.permute.xlu0 0
        %7337 = vperm.xlu0 %7336, %v7307
        %v7338 = vpop.permute.xlu0 %7337
        %7341 = vset.pattern.permute.xlu0 0
        %7342 = vperm.xlu0 %7341, %v7308
        %v7343 = vpop.permute.xlu0 %7342
        %7346 = vset.pattern.permute.xlu0 0
        %7347 = vperm.xlu0 %7346, %v7309
        %v7348 = vpop.permute.xlu0 %7347
        %v7351 = vsel %vm6707, %v7294, 0
        %v7354 = vsel %vm6707, %v7295, 0
        %v7357 = vsel %vm6707, %v7296, 0
        %v7360 = vsel %vm6707, %v7297, 0
        %v7363 = vsel %vm6707, %v7298, 0
        %v7366 = vsel %vm6707, %v7299, 0
        %v7369 = vsel %vm6707, %v7300, 0
        %v7372 = vsel %vm6707, %v7301, 0
        %7374 = vmatprep.subr.mxu0 %v7231
        %7375 = vmatpush1.msra.mxu0 %v7230
        %7376 = vmatprep.subr.mxu0 %v7239
        %7377 = vmatpush1.msra.mxu0 %v7238
        %7378 = vmatprep.subr.mxu0 %v7247
        %7379 = vmatpush1.msra.mxu0 %v7246
        %7380 = vmatprep.subr.mxu0 %v7255
        %7381 = vmatpush1.msra.mxu0 %v7254
        %7382 = vmatprep.subr.mxu0 %v7263
        %7383 = vmatpush1.msra.mxu0 %v7262
        %7384 = vmatprep.subr.mxu0 %v7271
        %7385 = vmatpush1.msra.mxu0 %v7270
        %7386 = vmatprep.subr.mxu0 %v7279
        %7387 = vmatpush1.msra.mxu0 %v7278
        %7388 = vmatprep.subr.mxu0 %v7287
        %7389 = vmatpush1.msra.mxu0 %v7286
        %7390 = vmatprep.subr.mxu0 0.0
        %7391 = vmatpush1.msra.mxu0 0.0
        %7392 = vmatprep.subr.mxu0 0.0
        %7393 = vmatpush1.msra.mxu0 0.0
        %7394 = vmatprep.subr.mxu0 0.0
        %7395 = vmatpush1.msra.mxu0 0.0
        %7396 = vmatprep.subr.mxu0 0.0
        %7397 = vmatpush1.msra.mxu0 0.0
        %7398 = vmatprep.subr.mxu0 0.0
        %7399 = vmatpush1.msra.mxu0 0.0
        %7400 = vmatprep.subr.mxu0 0.0
        %7401 = vmatpush1.msra.mxu0 0.0
        %7402 = vmatprep.subr.mxu0 0.0
        %7403 = vmatpush1.msra.mxu0 0.0
        %7404 = vmatprep.subr.mxu0 0.0
        %7405 = vmatpush1.msra.mxu0 0.0
        %7406 = vmatprep.subr.mxu0 0.0
        %7407 = vmatpush1.msra.mxu0 0.0
        %7408 = vmatprep.subr.mxu0 0.0
        %7409 = vmatpush1.msra.mxu0 0.0
        %7410 = vmatprep.subr.mxu0 0.0
        %7411 = vmatpush1.msra.mxu0 0.0
        %7412 = vmatprep.subr.mxu0 0.0
        %7413 = vmatpush1.msra.mxu0 0.0
        %7414 = vmatprep.subr.mxu0 0.0
        %7415 = vmatpush1.msra.mxu0 0.0
        %7416 = vmatprep.subr.mxu0 0.0
        %7417 = vmatpush1.msra.mxu0 0.0
        %7418 = vmatprep.subr.mxu0 0.0
        %7419 = vmatpush1.msra.mxu0 0.0
        %7420 = vmatprep.subr.mxu0 0.0
        %7421 = vmatpush1.msra.mxu0 0.0
        %7422 = vmatprep.subr.mxu0 0.0
        %7423 = vmatpush1.msra.mxu0 0.0
        %7424 = vmatprep.subr.mxu0 0.0
        %7425 = vmatpush1.msra.mxu0 0.0
        %7426 = vmatprep.subr.mxu0 0.0
        %7427 = vmatpush1.msra.mxu0 0.0
        %7428 = vmatprep.subr.mxu0 0.0
        %7429 = vmatpush1.msra.mxu0 0.0
        %7430 = vmatprep.subr.mxu0 0.0
        %7431 = vmatpush1.msra.mxu0 0.0
        %7432 = vmatprep.subr.mxu0 0.0
        %7433 = vmatpush1.msra.mxu0 0.0
        %7434 = vmatprep.subr.mxu0 0.0
        %7435 = vmatpush1.msra.mxu0 0.0
        %7436 = vmatprep.subr.mxu0 0.0
        %7437 = vmatpush1.msra.mxu0 0.0
        %7438 = vmatprep.mubr.f32.mxu0 0.0
        %7439 = vmatmul.mubr.f32.gmra.mrb[0].mxu0 %v7351
        %v7440 = vpop.f32.mrb[0].mxu0
        %v7441 = vadd.f32 %v7313, %v7440
        %v7442 = vpop.f32.mrb[0].mxu0
        %v7443 = vadd.f32 %v7313, %v7442
        %7444 = vmatprep.mubr.f32.mxu0 0.0
        %7445 = vmatmul.mubr.f32.gmra.mrb[0].mxu0 %v7354
        %v7446 = vpop.f32.mrb[0].mxu0
        %v7447 = vadd.f32 %v7318, %v7446
        %v7448 = vpop.f32.mrb[0].mxu0
        %v7449 = vadd.f32 %v7318, %v7448
        %7450 = vmatprep.mubr.f32.mxu0 0.0
        %7451 = vmatmul.mubr.f32.gmra.mrb[0].mxu0 %v7357
        %v7452 = vpop.f32.mrb[0].mxu0
        %v7453 = vadd.f32 %v7323, %v7452
        %v7454 = vpop.f32.mrb[0].mxu0
        %v7455 = vadd.f32 %v7323, %v7454
        %7456 = vmatprep.mubr.f32.mxu0 0.0
        %7457 = vmatmul.mubr.f32.gmra.mrb[0].mxu0 %v7360
        %v7458 = vpop.f32.mrb[0].mxu0
        %v7459 = vadd.f32 %v7328, %v7458
        %v7460 = vpop.f32.mrb[0].mxu0
        %v7461 = vadd.f32 %v7328, %v7460
        %7462 = vmatprep.mubr.f32.mxu0 0.0
        %7463 = vmatmul.mubr.f32.gmra.mrb[0].mxu0 %v7363
        %v7464 = vpop.f32.mrb[0].mxu0
        %v7465 = vadd.f32 %v7333, %v7464
        %v7466 = vpop.f32.mrb[0].mxu0
        %v7467 = vadd.f32 %v7333, %v7466
        %7468 = vmatprep.mubr.f32.mxu0 0.0
        %7469 = vmatmul.mubr.f32.gmra.mrb[0].mxu0 %v7366
        %v7470 = vpop.f32.mrb[0].mxu0
        %v7471 = vadd.f32 %v7338, %v7470
        %v7472 = vpop.f32.mrb[0].mxu0
        %v7473 = vadd.f32 %v7338, %v7472
        %7474 = vmatprep.mubr.f32.mxu0 0.0
        %7475 = vmatmul.mubr.f32.gmra.mrb[0].mxu0 %v7369
        %v7476 = vpop.f32.mrb[0].mxu0
        %v7477 = vadd.f32 %v7343, %v7476
        %v7478 = vpop.f32.mrb[0].mxu0
        %v7479 = vadd.f32 %v7343, %v7478
        %7480 = vmatprep.mubr.f32.mxu0 0.0
        %7481 = vmatmul.mubr.f32.gmra.mrb[0].mxu0 %v7372
        %v7482 = vpop.f32.mrb[0].mxu0
        %v7483 = vadd.f32 %v7348, %v7482
        %v7484 = vpop.f32.mrb[0].mxu0
        %v7485 = vadd.f32 %v7348, %v7484
        %7486 = vdwg.mxu0
        %7487 = vmatprep.subr.mxu0 %v7233
        %7488 = vmatpush1.msra.mxu0 %v7232
        %7489 = vmatprep.subr.mxu0 %v7241
        %7490 = vmatpush1.msra.mxu0 %v7240
        %7491 = vmatprep.subr.mxu0 %v7249
        %7492 = vmatpush1.msra.mxu0 %v7248
        %7493 = vmatprep.subr.mxu0 %v7257
        %7494 = vmatpush1.msra.mxu0 %v7256
        %7495 = vmatprep.subr.mxu0 %v7265
        %7496 = vmatpush1.msra.mxu0 %v7264
        %7497 = vmatprep.subr.mxu0 %v7273
        %7498 = vmatpush1.msra.mxu0 %v7272
        %7499 = vmatprep.subr.mxu0 %v7281
        %7500 = vmatpush1.msra.mxu0 %v7280
        %7501 = vmatprep.subr.mxu0 %v7289
        %7502 = vmatpush1.msra.mxu0 %v7288
        %7503 = vmatprep.subr.mxu0 0.0
        %7504 = vmatpush1.msra.mxu0 0.0
        %7505 = vmatprep.subr.mxu0 0.0
        %7506 = vmatpush1.msra.mxu0 0.0
        %7507 = vmatprep.subr.mxu0 0.0
        %7508 = vmatpush1.msra.mxu0 0.0
        %7509 = vmatprep.subr.mxu0 0.0
        %7510 = vmatpush1.msra.mxu0 0.0
        %7511 = vmatprep.subr.mxu0 0.0
        %7512 = vmatpush1.msra.mxu0 0.0
        %7513 = vmatprep.subr.mxu0 0.0
        %7514 = vmatpush1.msra.mxu0 0.0
        %7515 = vmatprep.subr.mxu0 0.0
        %7516 = vmatpush1.msra.mxu0 0.0
        %7517 = vmatprep.subr.mxu0 0.0
        %7518 = vmatpush1.msra.mxu0 0.0
        %7519 = vmatprep.subr.mxu0 0.0
        %7520 = vmatpush1.msra.mxu0 0.0
        %7521 = vmatprep.subr.mxu0 0.0
        %7522 = vmatpush1.msra.mxu0 0.0
        %7523 = vmatprep.subr.mxu0 0.0
        %7524 = vmatpush1.msra.mxu0 0.0
        %7525 = vmatprep.subr.mxu0 0.0
        %7526 = vmatpush1.msra.mxu0 0.0
        %7527 = vmatprep.subr.mxu0 0.0
        %7528 = vmatpush1.msra.mxu0 0.0
        %7529 = vmatprep.subr.mxu0 0.0
        %7530 = vmatpush1.msra.mxu0 0.0
        %7531 = vmatprep.subr.mxu0 0.0
        %7532 = vmatpush1.msra.mxu0 0.0
        %7533 = vmatprep.subr.mxu0 0.0
        %7534 = vmatpush1.msra.mxu0 0.0
        %7535 = vmatprep.subr.mxu0 0.0
        %7536 = vmatpush1.msra.mxu0 0.0
        %7537 = vmatprep.subr.mxu0 0.0
        %7538 = vmatpush1.msra.mxu0 0.0
        %7539 = vmatprep.subr.mxu0 0.0
        %7540 = vmatpush1.msra.mxu0 0.0
        %7541 = vmatprep.subr.mxu0 0.0
        %7542 = vmatpush1.msra.mxu0 0.0
        %7543 = vmatprep.subr.mxu0 0.0
        %7544 = vmatpush1.msra.mxu0 0.0
        %7545 = vmatprep.subr.mxu0 0.0
        %7546 = vmatpush1.msra.mxu0 0.0
        %7547 = vmatprep.subr.mxu0 0.0
        %7548 = vmatpush1.msra.mxu0 0.0
        %7549 = vmatprep.subr.mxu0 0.0
        %7550 = vmatpush1.msra.mxu0 0.0
        %7551 = vmatprep.mubr.f32.mxu0 0.0
        %7552 = vmatmul.mubr.f32.gmra.mrb[0].mxu0 %v7351
        %v7553 = vpop.f32.mrb[0].mxu0
        %v7554 = vadd.f32 %v7313, %v7553
        %v7555 = vpop.f32.mrb[0].mxu0
        %v7556 = vadd.f32 %v7313, %v7555
        %7557 = vmatprep.mubr.f32.mxu0 0.0
        %7558 = vmatmul.mubr.f32.gmra.mrb[0].mxu0 %v7354
        %v7559 = vpop.f32.mrb[0].mxu0
        %v7560 = vadd.f32 %v7318, %v7559
        %v7561 = vpop.f32.mrb[0].mxu0
        %v7562 = vadd.f32 %v7318, %v7561
        %7563 = vmatprep.mubr.f32.mxu0 0.0
        %7564 = vmatmul.mubr.f32.gmra.mrb[0].mxu0 %v7357
        %v7565 = vpop.f32.mrb[0].mxu0
        %v7566 = vadd.f32 %v7323, %v7565
        %v7567 = vpop.f32.mrb[0].mxu0
        %v7568 = vadd.f32 %v7323, %v7567
        %7569 = vmatprep.mubr.f32.mxu0 0.0
        %7570 = vmatmul.mubr.f32.gmra.mrb[0].mxu0 %v7360
        %v7571 = vpop.f32.mrb[0].mxu0
        %v7572 = vadd.f32 %v7328, %v7571
        %v7573 = vpop.f32.mrb[0].mxu0
        %v7574 = vadd.f32 %v7328, %v7573
        %7575 = vmatprep.mubr.f32.mxu0 0.0
        %7576 = vmatmul.mubr.f32.gmra.mrb[0].mxu0 %v7363
        %v7577 = vpop.f32.mrb[0].mxu0
        %v7578 = vadd.f32 %v7333, %v7577
        %v7579 = vpop.f32.mrb[0].mxu0
        %v7580 = vadd.f32 %v7333, %v7579
        %7581 = vmatprep.mubr.f32.mxu0 0.0
        %7582 = vmatmul.mubr.f32.gmra.mrb[0].mxu0 %v7366
        %v7583 = vpop.f32.mrb[0].mxu0
        %v7584 = vadd.f32 %v7338, %v7583
        %v7585 = vpop.f32.mrb[0].mxu0
        %v7586 = vadd.f32 %v7338, %v7585
        %7587 = vmatprep.mubr.f32.mxu0 0.0
        %7588 = vmatmul.mubr.f32.gmra.mrb[0].mxu0 %v7369
        %v7589 = vpop.f32.mrb[0].mxu0
        %v7590 = vadd.f32 %v7343, %v7589
        %v7591 = vpop.f32.mrb[0].mxu0
        %v7592 = vadd.f32 %v7343, %v7591
        %7593 = vmatprep.mubr.f32.mxu0 0.0
        %7594 = vmatmul.mubr.f32.gmra.mrb[0].mxu0 %v7372
        %v7595 = vpop.f32.mrb[0].mxu0
        %v7596 = vadd.f32 %v7348, %v7595
        %v7597 = vpop.f32.mrb[0].mxu0
        %v7598 = vadd.f32 %v7348, %v7597
        %7599 = vdwg.mxu0
        %7600 = vmatprep.subr.mxu0 %v7235
        %7601 = vmatpush1.msra.mxu0 %v7234
        %7602 = vmatprep.subr.mxu0 %v7243
        %7603 = vmatpush1.msra.mxu0 %v7242
        %7604 = vmatprep.subr.mxu0 %v7251
        %7605 = vmatpush1.msra.mxu0 %v7250
        %7606 = vmatprep.subr.mxu0 %v7259
        %7607 = vmatpush1.msra.mxu0 %v7258
        %7608 = vmatprep.subr.mxu0 %v7267
        %7609 = vmatpush1.msra.mxu0 %v7266
        %7610 = vmatprep.subr.mxu0 %v7275
        %7611 = vmatpush1.msra.mxu0 %v7274
        %7612 = vmatprep.subr.mxu0 %v7283
        %7613 = vmatpush1.msra.mxu0 %v7282
        %7614 = vmatprep.subr.mxu0 %v7291
        %7615 = vmatpush1.msra.mxu0 %v7290
        %7616 = vmatprep.subr.mxu0 0.0
        %7617 = vmatpush1.msra.mxu0 0.0
        %7618 = vmatprep.subr.mxu0 0.0
        %7619 = vmatpush1.msra.mxu0 0.0
        %7620 = vmatprep.subr.mxu0 0.0
        %7621 = vmatpush1.msra.mxu0 0.0
        %7622 = vmatprep.subr.mxu0 0.0
        %7623 = vmatpush1.msra.mxu0 0.0
        %7624 = vmatprep.subr.mxu0 0.0
        %7625 = vmatpush1.msra.mxu0 0.0
        %7626 = vmatprep.subr.mxu0 0.0
        %7627 = vmatpush1.msra.mxu0 0.0
        %7628 = vmatprep.subr.mxu0 0.0
        %7629 = vmatpush1.msra.mxu0 0.0
        %7630 = vmatprep.subr.mxu0 0.0
        %7631 = vmatpush1.msra.mxu0 0.0
        %7632 = vmatprep.subr.mxu0 0.0
        %7633 = vmatpush1.msra.mxu0 0.0
        %7634 = vmatprep.subr.mxu0 0.0
        %7635 = vmatpush1.msra.mxu0 0.0
        %7636 = vmatprep.subr.mxu0 0.0
        %7637 = vmatpush1.msra.mxu0 0.0
        %7638 = vmatprep.subr.mxu0 0.0
        %7639 = vmatpush1.msra.mxu0 0.0
        %7640 = vmatprep.subr.mxu0 0.0
        %7641 = vmatpush1.msra.mxu0 0.0
        %7642 = vmatprep.subr.mxu0 0.0
        %7643 = vmatpush1.msra.mxu0 0.0
        %7644 = vmatprep.subr.mxu0 0.0
        %7645 = vmatpush1.msra.mxu0 0.0
        %7646 = vmatprep.subr.mxu0 0.0
        %7647 = vmatpush1.msra.mxu0 0.0
        %7648 = vmatprep.subr.mxu0 0.0
        %7649 = vmatpush1.msra.mxu0 0.0
        %7650 = vmatprep.subr.mxu0 0.0
        %7651 = vmatpush1.msra.mxu0 0.0
        %7652 = vmatprep.subr.mxu0 0.0
        %7653 = vmatpush1.msra.mxu0 0.0
        %7654 = vmatprep.subr.mxu0 0.0
        %7655 = vmatpush1.msra.mxu0 0.0
        %7656 = vmatprep.subr.mxu0 0.0
        %7657 = vmatpush1.msra.mxu0 0.0
        %7658 = vmatprep.subr.mxu0 0.0
        %7659 = vmatpush1.msra.mxu0 0.0
        %7660 = vmatprep.subr.mxu0 0.0
        %7661 = vmatpush1.msra.mxu0 0.0
        %7662 = vmatprep.subr.mxu0 0.0
        %7663 = vmatpush1.msra.mxu0 0.0
        %7664 = vmatprep.mubr.f32.mxu0 0.0
        %7665 = vmatmul.mubr.f32.gmra.mrb[0].mxu0 %v7351
        %v7666 = vpop.f32.mrb[0].mxu0
        %v7667 = vadd.f32 %v7313, %v7666
        %v7668 = vpop.f32.mrb[0].mxu0
        %v7669 = vadd.f32 %v7313, %v7668
        %7670 = vmatprep.mubr.f32.mxu0 0.0
        %7671 = vmatmul.mubr.f32.gmra.mrb[0].mxu0 %v7354
        %v7672 = vpop.f32.mrb[0].mxu0
        %v7673 = vadd.f32 %v7318, %v7672
        %v7674 = vpop.f32.mrb[0].mxu0
        %v7675 = vadd.f32 %v7318, %v7674
        %7676 = vmatprep.mubr.f32.mxu0 0.0
        %7677 = vmatmul.mubr.f32.gmra.mrb[0].mxu0 %v7357
        %v7678 = vpop.f32.mrb[0].mxu0
        %v7679 = vadd.f32 %v7323, %v7678
        %v7680 = vpop.f32.mrb[0].mxu0
        %v7681 = vadd.f32 %v7323, %v7680
        %7682 = vmatprep.mubr.f32.mxu0 0.0
        %7683 = vmatmul.mubr.f32.gmra.mrb[0].mxu0 %v7360
        %v7684 = vpop.f32.mrb[0].mxu0
        %v7685 = vadd.f32 %v7328, %v7684
        %v7686 = vpop.f32.mrb[0].mxu0
        %v7687 = vadd.f32 %v7328, %v7686
        %7688 = vmatprep.mubr.f32.mxu0 0.0
        %7689 = vmatmul.mubr.f32.gmra.mrb[0].mxu0 %v7363
        %v7690 = vpop.f32.mrb[0].mxu0
        %v7691 = vadd.f32 %v7333, %v7690
        %v7692 = vpop.f32.mrb[0].mxu0
        %v7693 = vadd.f32 %v7333, %v7692
        %7694 = vmatprep.mubr.f32.mxu0 0.0
        %7695 = vmatmul.mubr.f32.gmra.mrb[0].mxu0 %v7366
        %v7696 = vpop.f32.mrb[0].mxu0
        %v7697 = vadd.f32 %v7338, %v7696
        %v7698 = vpop.f32.mrb[0].mxu0
        %v7699 = vadd.f32 %v7338, %v7698
        %7700 = vmatprep.mubr.f32.mxu0 0.0
        %7701 = vmatmul.mubr.f32.gmra.mrb[0].mxu0 %v7369
        %v7702 = vpop.f32.mrb[0].mxu0
        %v7703 = vadd.f32 %v7343, %v7702
        %v7704 = vpop.f32.mrb[0].mxu0
        %v7705 = vadd.f32 %v7343, %v7704
        %7706 = vmatprep.mubr.f32.mxu0 0.0
        %7707 = vmatmul.mubr.f32.gmra.mrb[0].mxu0 %v7372
        %v7708 = vpop.f32.mrb[0].mxu0
        %v7709 = vadd.f32 %v7348, %v7708
        %v7710 = vpop.f32.mrb[0].mxu0
        %v7711 = vadd.f32 %v7348, %v7710
        %7712 = vdwg.mxu0
        %7713 = vmatprep.subr.mxu0 %v7237
        %7714 = vmatpush1.msra.mxu0 %v7236
        %7715 = vmatprep.subr.mxu0 %v7245
        %7716 = vmatpush1.msra.mxu0 %v7244
        %7717 = vmatprep.subr.mxu0 %v7253
        %7718 = vmatpush1.msra.mxu0 %v7252
        %7719 = vmatprep.subr.mxu0 %v7261
        %7720 = vmatpush1.msra.mxu0 %v7260
        %7721 = vmatprep.subr.mxu0 %v7269
        %7722 = vmatpush1.msra.mxu0 %v7268
        %7723 = vmatprep.subr.mxu0 %v7277
        %7724 = vmatpush1.msra.mxu0 %v7276
        %7725 = vmatprep.subr.mxu0 %v7285
        %7726 = vmatpush1.msra.mxu0 %v7284
        %7727 = vmatprep.subr.mxu0 %v7293
        %7728 = vmatpush1.msra.mxu0 %v7292
        %7729 = vmatprep.subr.mxu0 0.0
        %7730 = vmatpush1.msra.mxu0 0.0
        %7731 = vmatprep.subr.mxu0 0.0
        %7732 = vmatpush1.msra.mxu0 0.0
        %7733 = vmatprep.subr.mxu0 0.0
        %7734 = vmatpush1.msra.mxu0 0.0
        %7735 = vmatprep.subr.mxu0 0.0
        %7736 = vmatpush1.msra.mxu0 0.0
        %7737 = vmatprep.subr.mxu0 0.0
        %7738 = vmatpush1.msra.mxu0 0.0
        %7739 = vmatprep.subr.mxu0 0.0
        %7740 = vmatpush1.msra.mxu0 0.0
        %7741 = vmatprep.subr.mxu0 0.0
        %7742 = vmatpush1.msra.mxu0 0.0
        %7743 = vmatprep.subr.mxu0 0.0
        %7744 = vmatpush1.msra.mxu0 0.0
        %7745 = vmatprep.subr.mxu0 0.0
        %7746 = vmatpush1.msra.mxu0 0.0
        %7747 = vmatprep.subr.mxu0 0.0
        %7748 = vmatpush1.msra.mxu0 0.0
        %7749 = vmatprep.subr.mxu0 0.0
        %7750 = vmatpush1.msra.mxu0 0.0
        %7751 = vmatprep.subr.mxu0 0.0
        %7752 = vmatpush1.msra.mxu0 0.0
        %7753 = vmatprep.subr.mxu0 0.0
        %7754 = vmatpush1.msra.mxu0 0.0
        %7755 = vmatprep.subr.mxu0 0.0
        %7756 = vmatpush1.msra.mxu0 0.0
        %7757 = vmatprep.subr.mxu0 0.0
        %7758 = vmatpush1.msra.mxu0 0.0
        %7759 = vmatprep.subr.mxu0 0.0
        %7760 = vmatpush1.msra.mxu0 0.0
        %7761 = vmatprep.subr.mxu0 0.0
        %7762 = vmatpush1.msra.mxu0 0.0
        %7763 = vmatprep.subr.mxu0 0.0
        %7764 = vmatpush1.msra.mxu0 0.0
        %7765 = vmatprep.subr.mxu0 0.0
        %7766 = vmatpush1.msra.mxu0 0.0
        %7767 = vmatprep.subr.mxu0 0.0
        %7768 = vmatpush1.msra.mxu0 0.0
        %7769 = vmatprep.subr.mxu0 0.0
        %7770 = vmatpush1.msra.mxu0 0.0
        %7771 = vmatprep.subr.mxu0 0.0
        %7772 = vmatpush1.msra.mxu0 0.0
        %7773 = vmatprep.subr.mxu0 0.0
        %7774 = vmatpush1.msra.mxu0 0.0
        %7775 = vmatprep.subr.mxu0 0.0
        %7776 = vmatpush1.msra.mxu0 0.0
        %7777 = vmatprep.mubr.f32.mxu0 0.0
        %7778 = vmatmul.mubr.f32.gmra.mrb[0].mxu0 %v7351
        %v7779 = vpop.f32.mrb[0].mxu0
        %v7780 = vadd.f32 %v7313, %v7779
        %v7781 = vpop.f32.mrb[0].mxu0
        %v7782 = vadd.f32 %v7313, %v7781
        %7783 = vmatprep.mubr.f32.mxu0 0.0
        %7784 = vmatmul.mubr.f32.gmra.mrb[0].mxu0 %v7354
        %v7785 = vpop.f32.mrb[0].mxu0
        %v7786 = vadd.f32 %v7318, %v7785
        %v7787 = vpop.f32.mrb[0].mxu0
        %v7788 = vadd.f32 %v7318, %v7787
        %7789 = vmatprep.mubr.f32.mxu0 0.0
        %7790 = vmatmul.mubr.f32.gmra.mrb[0].mxu0 %v7357
        %v7791 = vpop.f32.mrb[0].mxu0
        %v7792 = vadd.f32 %v7323, %v7791
        %v7793 = vpop.f32.mrb[0].mxu0
        %v7794 = vadd.f32 %v7323, %v7793
        %7795 = vmatprep.mubr.f32.mxu0 0.0
        %7796 = vmatmul.mubr.f32.gmra.mrb[0].mxu0 %v7360
        %v7797 = vpop.f32.mrb[0].mxu0
        %v7798 = vadd.f32 %v7328, %v7797
        %v7799 = vpop.f32.mrb[0].mxu0
        %v7800 = vadd.f32 %v7328, %v7799
        %7801 = vmatprep.mubr.f32.mxu0 0.0
        %7802 = vmatmul.mubr.f32.gmra.mrb[0].mxu0 %v7363
        %v7803 = vpop.f32.mrb[0].mxu0
        %v7804 = vadd.f32 %v7333, %v7803
        %v7805 = vpop.f32.mrb[0].mxu0
        %v7806 = vadd.f32 %v7333, %v7805
        %7807 = vmatprep.mubr.f32.mxu0 0.0
        %7808 = vmatmul.mubr.f32.gmra.mrb[0].mxu0 %v7366
        %v7809 = vpop.f32.mrb[0].mxu0
        %v7810 = vadd.f32 %v7338, %v7809
        %v7811 = vpop.f32.mrb[0].mxu0
        %v7812 = vadd.f32 %v7338, %v7811
        %7813 = vmatprep.mubr.f32.mxu0 0.0
        %7814 = vmatmul.mubr.f32.gmra.mrb[0].mxu0 %v7369
        %v7815 = vpop.f32.mrb[0].mxu0
        %v7816 = vadd.f32 %v7343, %v7815
        %v7817 = vpop.f32.mrb[0].mxu0
        %v7818 = vadd.f32 %v7343, %v7817
        %7819 = vmatprep.mubr.f32.mxu0 0.0
        %7820 = vmatmul.mubr.f32.gmra.mrb[0].mxu0 %v7372
        %v7821 = vpop.f32.mrb[0].mxu0
        %v7822 = vadd.f32 %v7348, %v7821
        %v7823 = vpop.f32.mrb[0].mxu0
        %v7824 = vadd.f32 %v7348, %v7823
        %7825 = vdwg.mxu0
        %v7826 = vmax.f32 %v7441, 0.0
        %v7827 = vmax.f32 %v7443, 0.0
        %v7828 = vmax.f32 %v7554, 0.0
        %v7829 = vmax.f32 %v7556, 0.0
        %v7830 = vmax.f32 %v7667, 0.0
        %v7831 = vmax.f32 %v7669, 0.0
        %v7832 = vmax.f32 %v7780, 0.0
        %v7833 = vmax.f32 %v7782, 0.0
        %v7834 = vmax.f32 %v7447, 0.0
        %v7835 = vmax.f32 %v7449, 0.0
        %v7836 = vmax.f32 %v7560, 0.0
        %v7837 = vmax.f32 %v7562, 0.0
        %v7838 = vmax.f32 %v7673, 0.0
        %v7839 = vmax.f32 %v7675, 0.0
        %v7840 = vmax.f32 %v7786, 0.0
        %v7841 = vmax.f32 %v7788, 0.0
        %v7842 = vmax.f32 %v7453, 0.0
        %v7843 = vmax.f32 %v7455, 0.0
        %v7844 = vmax.f32 %v7566, 0.0
        %v7845 = vmax.f32 %v7568, 0.0
        %v7846 = vmax.f32 %v7679, 0.0
        %v7847 = vmax.f32 %v7681, 0.0
        %v7848 = vmax.f32 %v7792, 0.0
        %v7849 = vmax.f32 %v7794, 0.0
        %v7850 = vmax.f32 %v7459, 0.0
        %v7851 = vmax.f32 %v7461, 0.0
        %v7852 = vmax.f32 %v7572, 0.0
        %v7853 = vmax.f32 %v7574, 0.0
        %v7854 = vmax.f32 %v7685, 0.0
        %v7855 = vmax.f32 %v7687, 0.0
        %v7856 = vmax.f32 %v7798, 0.0
        %v7857 = vmax.f32 %v7800, 0.0
        %v7858 = vmax.f32 %v7465, 0.0
        %v7859 = vmax.f32 %v7467, 0.0
        %v7860 = vmax.f32 %v7578, 0.0
        %v7861 = vmax.f32 %v7580, 0.0
        %v7862 = vmax.f32 %v7691, 0.0
        %v7863 = vmax.f32 %v7693, 0.0
        %v7864 = vmax.f32 %v7804, 0.0
        %v7865 = vmax.f32 %v7806, 0.0
        %v7866 = vmax.f32 %v7471, 0.0
        %v7867 = vmax.f32 %v7473, 0.0
        %v7868 = vmax.f32 %v7584, 0.0
        %v7869 = vmax.f32 %v7586, 0.0
        %v7870 = vmax.f32 %v7697, 0.0
        %v7871 = vmax.f32 %v7699, 0.0
        %v7872 = vmax.f32 %v7810, 0.0
        %v7873 = vmax.f32 %v7812, 0.0
        %v7874 = vmax.f32 %v7477, 0.0
        %v7875 = vmax.f32 %v7479, 0.0
        %v7876 = vmax.f32 %v7590, 0.0
        %v7877 = vmax.f32 %v7592, 0.0
        %v7878 = vmax.f32 %v7703, 0.0
        %v7879 = vmax.f32 %v7705, 0.0
        %v7880 = vmax.f32 %v7816, 0.0
        %v7881 = vmax.f32 %v7818, 0.0
        %v7882 = vmax.f32 %v7483, 0.0
        %v7883 = vmax.f32 %v7485, 0.0
        %v7884 = vmax.f32 %v7596, 0.0
        %v7885 = vmax.f32 %v7598, 0.0
        %v7886 = vmax.f32 %v7709, 0.0
        %v7887 = vmax.f32 %v7711, 0.0
        %v7888 = vmax.f32 %v7822, 0.0
        %v7889 = vmax.f32 %v7824, 0.0
        %v7890 = vld [vmem:[#allocation9] sm:$0xff]
        %v7891 = vld [vmem:[#allocation9 + $0x8] sm:$0xff]
        %v7892 = vld [vmem:[#allocation9 + $0x10] sm:$0xff]
        %v7893 = vld [vmem:[#allocation9 + $0x18] sm:$0xff]
        %v7894 = vld [vmem:[#allocation9 + $0x20] sm:$0xff]
        %v7895 = vld [vmem:[#allocation9 + $0x28] sm:$0xff]
        %v7896 = vld [vmem:[#allocation9 + $0x30] sm:$0xff]
        %v7897 = vld [vmem:[#allocation9 + $0x38] sm:$0xff]
        %v7898 = vld [vmem:[#allocation11] sm:$0xff]
        %v7899 = vld [vmem:[#allocation11 + $0x8] sm:$0xff]
        %v7900 = vld [vmem:[#allocation11 + $0x10] sm:$0xff]
        %v7901 = vld [vmem:[#allocation11 + $0x18] sm:$0xff]
        %v7902 = vld [vmem:[#allocation11 + $0x20] sm:$0xff]
        %v7903 = vld [vmem:[#allocation11 + $0x28] sm:$0xff]
        %v7904 = vld [vmem:[#allocation11 + $0x30] sm:$0xff]
        %v7905 = vld [vmem:[#allocation11 + $0x38] sm:$0xff]
        %7907 = vset.pattern.permute.xlu0 0
        %7908 = vperm.xlu0 %7907, %v7898
        %v7909 = vpop.permute.xlu0 %7908
        %7912 = vset.pattern.permute.xlu0 0
        %7913 = vperm.xlu0 %7912, %v7899
        %v7914 = vpop.permute.xlu0 %7913
        %7917 = vset.pattern.permute.xlu0 0
        %7918 = vperm.xlu0 %7917, %v7900
        %v7919 = vpop.permute.xlu0 %7918
        %7922 = vset.pattern.permute.xlu0 0
        %7923 = vperm.xlu0 %7922, %v7901
        %v7924 = vpop.permute.xlu0 %7923
        %7927 = vset.pattern.permute.xlu0 0
        %7928 = vperm.xlu0 %7927, %v7902
        %v7929 = vpop.permute.xlu0 %7928
        %7932 = vset.pattern.permute.xlu0 0
        %7933 = vperm.xlu0 %7932, %v7903
        %v7934 = vpop.permute.xlu0 %7933
        %7937 = vset.pattern.permute.xlu0 0
        %7938 = vperm.xlu0 %7937, %v7904
        %v7939 = vpop.permute.xlu0 %7938
        %7942 = vset.pattern.permute.xlu0 0
        %7943 = vperm.xlu0 %7942, %v7905
        %v7944 = vpop.permute.xlu0 %7943
        %v7947 = vsel %vm6707, %v7890, 0
        %v7950 = vsel %vm6707, %v7891, 0
        %v7953 = vsel %vm6707, %v7892, 0
        %v7956 = vsel %vm6707, %v7893, 0
        %v7959 = vsel %vm6707, %v7894, 0
        %v7962 = vsel %vm6707, %v7895, 0
        %v7965 = vsel %vm6707, %v7896, 0
        %v7968 = vsel %vm6707, %v7897, 0
        %7970 = vmatprep.subr.mxu0 %v7827
        %7971 = vmatpush1.msra.mxu0 %v7826
        %7972 = vmatprep.subr.mxu0 %v7835
        %7973 = vmatpush1.msra.mxu0 %v7834
        %7974 = vmatprep.subr.mxu0 %v7843
        %7975 = vmatpush1.msra.mxu0 %v7842
        %7976 = vmatprep.subr.mxu0 %v7851
        %7977 = vmatpush1.msra.mxu0 %v7850
        %7978 = vmatprep.subr.mxu0 %v7859
        %7979 = vmatpush1.msra.mxu0 %v7858
        %7980 = vmatprep.subr.mxu0 %v7867
        %7981 = vmatpush1.msra.mxu0 %v7866
        %7982 = vmatprep.subr.mxu0 %v7875
        %7983 = vmatpush1.msra.mxu0 %v7874
        %7984 = vmatprep.subr.mxu0 %v7883
        %7985 = vmatpush1.msra.mxu0 %v7882
        %7986 = vmatprep.subr.mxu0 0.0
        %7987 = vmatpush1.msra.mxu0 0.0
        %7988 = vmatprep.subr.mxu0 0.0
        %7989 = vmatpush1.msra.mxu0 0.0
        %7990 = vmatprep.subr.mxu0 0.0
        %7991 = vmatpush1.msra.mxu0 0.0
        %7992 = vmatprep.subr.mxu0 0.0
        %7993 = vmatpush1.msra.mxu0 0.0
        %7994 = vmatprep.subr.mxu0 0.0
        %7995 = vmatpush1.msra.mxu0 0.0
        %7996 = vmatprep.subr.mxu0 0.0
        %7997 = vmatpush1.msra.mxu0 0.0
        %7998 = vmatprep.subr.mxu0 0.0
        %7999 = vmatpush1.msra.mxu0 0.0
        %8000 = vmatprep.subr.mxu0 0.0
        %8001 = vmatpush1.msra.mxu0 0.0
        %8002 = vmatprep.subr.mxu0 0.0
        %8003 = vmatpush1.msra.mxu0 0.0
        %8004 = vmatprep.subr.mxu0 0.0
        %8005 = vmatpush1.msra.mxu0 0.0
        %8006 = vmatprep.subr.mxu0 0.0
        %8007 = vmatpush1.msra.mxu0 0.0
        %8008 = vmatprep.subr.mxu0 0.0
        %8009 = vmatpush1.msra.mxu0 0.0
        %8010 = vmatprep.subr.mxu0 0.0
        %8011 = vmatpush1.msra.mxu0 0.0
        %8012 = vmatprep.subr.mxu0 0.0
        %8013 = vmatpush1.msra.mxu0 0.0
        %8014 = vmatprep.subr.mxu0 0.0
        %8015 = vmatpush1.msra.mxu0 0.0
        %8016 = vmatprep.subr.mxu0 0.0
        %8017 = vmatpush1.msra.mxu0 0.0
        %8018 = vmatprep.subr.mxu0 0.0
        %8019 = vmatpush1.msra.mxu0 0.0
        %8020 = vmatprep.subr.mxu0 0.0
        %8021 = vmatpush1.msra.mxu0 0.0
        %8022 = vmatprep.subr.mxu0 0.0
        %8023 = vmatpush1.msra.mxu0 0.0
        %8024 = vmatprep.subr.mxu0 0.0
        %8025 = vmatpush1.msra.mxu0 0.0
        %8026 = vmatprep.subr.mxu0 0.0
        %8027 = vmatpush1.msra.mxu0 0.0
        %8028 = vmatprep.subr.mxu0 0.0
        %8029 = vmatpush1.msra.mxu0 0.0
        %8030 = vmatprep.subr.mxu0 0.0
        %8031 = vmatpush1.msra.mxu0 0.0
        %8032 = vmatprep.subr.mxu0 0.0
        %8033 = vmatpush1.msra.mxu0 0.0
        %8034 = vmatprep.mubr.f32.mxu0 0.0
        %8035 = vmatmul.mubr.f32.gmra.mrb[0].mxu0 %v7947
        %v8036 = vpop.f32.mrb[0].mxu0
        %v8037 = vadd.f32 %v7909, %v8036
        %v8038 = vpop.f32.mrb[0].mxu0
        %v8039 = vadd.f32 %v7909, %v8038
        %8040 = vmatprep.mubr.f32.mxu0 0.0
        %8041 = vmatmul.mubr.f32.gmra.mrb[0].mxu0 %v7950
        %v8042 = vpop.f32.mrb[0].mxu0
        %v8043 = vadd.f32 %v7914, %v8042
        %v8044 = vpop.f32.mrb[0].mxu0
        %v8045 = vadd.f32 %v7914, %v8044
        %8046 = vmatprep.mubr.f32.mxu0 0.0
        %8047 = vmatmul.mubr.f32.gmra.mrb[0].mxu0 %v7953
        %v8048 = vpop.f32.mrb[0].mxu0
        %v8049 = vadd.f32 %v7919, %v8048
        %v8050 = vpop.f32.mrb[0].mxu0
        %v8051 = vadd.f32 %v7919, %v8050
        %8052 = vmatprep.mubr.f32.mxu0 0.0
        %8053 = vmatmul.mubr.f32.gmra.mrb[0].mxu0 %v7956
        %v8054 = vpop.f32.mrb[0].mxu0
        %v8055 = vadd.f32 %v7924, %v8054
        %v8056 = vpop.f32.mrb[0].mxu0
        %v8057 = vadd.f32 %v7924, %v8056
        %8058 = vmatprep.mubr.f32.mxu0 0.0
        %8059 = vmatmul.mubr.f32.gmra.mrb[0].mxu0 %v7959
        %v8060 = vpop.f32.mrb[0].mxu0
        %v8061 = vadd.f32 %v7929, %v8060
        %v8062 = vpop.f32.mrb[0].mxu0
        %v8063 = vadd.f32 %v7929, %v8062
        %8064 = vmatprep.mubr.f32.mxu0 0.0
        %8065 = vmatmul.mubr.f32.gmra.mrb[0].mxu0 %v7962
        %v8066 = vpop.f32.mrb[0].mxu0
        %v8067 = vadd.f32 %v7934, %v8066
        %v8068 = vpop.f32.mrb[0].mxu0
        %v8069 = vadd.f32 %v7934, %v8068
        %8070 = vmatprep.mubr.f32.mxu0 0.0
        %8071 = vmatmul.mubr.f32.gmra.mrb[0].mxu0 %v7965
        %v8072 = vpop.f32.mrb[0].mxu0
        %v8073 = vadd.f32 %v7939, %v8072
        %v8074 = vpop.f32.mrb[0].mxu0
        %v8075 = vadd.f32 %v7939, %v8074
        %8076 = vmatprep.mubr.f32.mxu0 0.0
        %8077 = vmatmul.mubr.f32.gmra.mrb[0].mxu0 %v7968
        %v8078 = vpop.f32.mrb[0].mxu0
        %v8079 = vadd.f32 %v7944, %v8078
        %v8080 = vpop.f32.mrb[0].mxu0
        %v8081 = vadd.f32 %v7944, %v8080
        %8082 = vdwg.mxu0
        %8083 = vmatprep.subr.mxu0 %v7829
        %8084 = vmatpush1.msra.mxu0 %v7828
        %8085 = vmatprep.subr.mxu0 %v7837
        %8086 = vmatpush1.msra.mxu0 %v7836
        %8087 = vmatprep.subr.mxu0 %v7845
        %8088 = vmatpush1.msra.mxu0 %v7844
        %8089 = vmatprep.subr.mxu0 %v7853
        %8090 = vmatpush1.msra.mxu0 %v7852
        %8091 = vmatprep.subr.mxu0 %v7861
        %8092 = vmatpush1.msra.mxu0 %v7860
        %8093 = vmatprep.subr.mxu0 %v7869
        %8094 = vmatpush1.msra.mxu0 %v7868
        %8095 = vmatprep.subr.mxu0 %v7877
        %8096 = vmatpush1.msra.mxu0 %v7876
        %8097 = vmatprep.subr.mxu0 %v7885
        %8098 = vmatpush1.msra.mxu0 %v7884
        %8099 = vmatprep.subr.mxu0 0.0
        %8100 = vmatpush1.msra.mxu0 0.0
        %8101 = vmatprep.subr.mxu0 0.0
        %8102 = vmatpush1.msra.mxu0 0.0
        %8103 = vmatprep.subr.mxu0 0.0
        %8104 = vmatpush1.msra.mxu0 0.0
        %8105 = vmatprep.subr.mxu0 0.0
        %8106 = vmatpush1.msra.mxu0 0.0
        %8107 = vmatprep.subr.mxu0 0.0
        %8108 = vmatpush1.msra.mxu0 0.0
        %8109 = vmatprep.subr.mxu0 0.0
        %8110 = vmatpush1.msra.mxu0 0.0
        %8111 = vmatprep.subr.mxu0 0.0
        %8112 = vmatpush1.msra.mxu0 0.0
        %8113 = vmatprep.subr.mxu0 0.0
        %8114 = vmatpush1.msra.mxu0 0.0
        %8115 = vmatprep.subr.mxu0 0.0
        %8116 = vmatpush1.msra.mxu0 0.0
        %8117 = vmatprep.subr.mxu0 0.0
        %8118 = vmatpush1.msra.mxu0 0.0
        %8119 = vmatprep.subr.mxu0 0.0
        %8120 = vmatpush1.msra.mxu0 0.0
        %8121 = vmatprep.subr.mxu0 0.0
        %8122 = vmatpush1.msra.mxu0 0.0
        %8123 = vmatprep.subr.mxu0 0.0
        %8124 = vmatpush1.msra.mxu0 0.0
        %8125 = vmatprep.subr.mxu0 0.0
        %8126 = vmatpush1.msra.mxu0 0.0
        %8127 = vmatprep.subr.mxu0 0.0
        %8128 = vmatpush1.msra.mxu0 0.0
        %8129 = vmatprep.subr.mxu0 0.0
        %8130 = vmatpush1.msra.mxu0 0.0
        %8131 = vmatprep.subr.mxu0 0.0
        %8132 = vmatpush1.msra.mxu0 0.0
        %8133 = vmatprep.subr.mxu0 0.0
        %8134 = vmatpush1.msra.mxu0 0.0
        %8135 = vmatprep.subr.mxu0 0.0
        %8136 = vmatpush1.msra.mxu0 0.0
        %8137 = vmatprep.subr.mxu0 0.0
        %8138 = vmatpush1.msra.mxu0 0.0
        %8139 = vmatprep.subr.mxu0 0.0
        %8140 = vmatpush1.msra.mxu0 0.0
        %8141 = vmatprep.subr.mxu0 0.0
        %8142 = vmatpush1.msra.mxu0 0.0
        %8143 = vmatprep.subr.mxu0 0.0
        %8144 = vmatpush1.msra.mxu0 0.0
        %8145 = vmatprep.subr.mxu0 0.0
        %8146 = vmatpush1.msra.mxu0 0.0
        %8147 = vmatprep.mubr.f32.mxu0 0.0
        %8148 = vmatmul.mubr.f32.gmra.mrb[0].mxu0 %v7947
        %v8149 = vpop.f32.mrb[0].mxu0
        %v8150 = vadd.f32 %v7909, %v8149
        %v8151 = vpop.f32.mrb[0].mxu0
        %v8152 = vadd.f32 %v7909, %v8151
        %8153 = vmatprep.mubr.f32.mxu0 0.0
        %8154 = vmatmul.mubr.f32.gmra.mrb[0].mxu0 %v7950
        %v8155 = vpop.f32.mrb[0].mxu0
        %v8156 = vadd.f32 %v7914, %v8155
        %v8157 = vpop.f32.mrb[0].mxu0
        %v8158 = vadd.f32 %v7914, %v8157
        %8159 = vmatprep.mubr.f32.mxu0 0.0
        %8160 = vmatmul.mubr.f32.gmra.mrb[0].mxu0 %v7953
        %v8161 = vpop.f32.mrb[0].mxu0
        %v8162 = vadd.f32 %v7919, %v8161
        %v8163 = vpop.f32.mrb[0].mxu0
        %v8164 = vadd.f32 %v7919, %v8163
        %8165 = vmatprep.mubr.f32.mxu0 0.0
        %8166 = vmatmul.mubr.f32.gmra.mrb[0].mxu0 %v7956
        %v8167 = vpop.f32.mrb[0].mxu0
        %v8168 = vadd.f32 %v7924, %v8167
        %v8169 = vpop.f32.mrb[0].mxu0
        %v8170 = vadd.f32 %v7924, %v8169
        %8171 = vmatprep.mubr.f32.mxu0 0.0
        %8172 = vmatmul.mubr.f32.gmra.mrb[0].mxu0 %v7959
        %v8173 = vpop.f32.mrb[0].mxu0
        %v8174 = vadd.f32 %v7929, %v8173
        %v8175 = vpop.f32.mrb[0].mxu0
        %v8176 = vadd.f32 %v7929, %v8175
        %8177 = vmatprep.mubr.f32.mxu0 0.0
        %8178 = vmatmul.mubr.f32.gmra.mrb[0].mxu0 %v7962
        %v8179 = vpop.f32.mrb[0].mxu0
        %v8180 = vadd.f32 %v7934, %v8179
        %v8181 = vpop.f32.mrb[0].mxu0
        %v8182 = vadd.f32 %v7934, %v8181
        %8183 = vmatprep.mubr.f32.mxu0 0.0
        %8184 = vmatmul.mubr.f32.gmra.mrb[0].mxu0 %v7965
        %v8185 = vpop.f32.mrb[0].mxu0
        %v8186 = vadd.f32 %v7939, %v8185
        %v8187 = vpop.f32.mrb[0].mxu0
        %v8188 = vadd.f32 %v7939, %v8187
        %8189 = vmatprep.mubr.f32.mxu0 0.0
        %8190 = vmatmul.mubr.f32.gmra.mrb[0].mxu0 %v7968
        %v8191 = vpop.f32.mrb[0].mxu0
        %v8192 = vadd.f32 %v7944, %v8191
        %v8193 = vpop.f32.mrb[0].mxu0
        %v8194 = vadd.f32 %v7944, %v8193
        %8195 = vdwg.mxu0
        %8196 = vmatprep.subr.mxu0 %v7831
        %8197 = vmatpush1.msra.mxu0 %v7830
        %8198 = vmatprep.subr.mxu0 %v7839
        %8199 = vmatpush1.msra.mxu0 %v7838
        %8200 = vmatprep.subr.mxu0 %v7847
        %8201 = vmatpush1.msra.mxu0 %v7846
        %8202 = vmatprep.subr.mxu0 %v7855
        %8203 = vmatpush1.msra.mxu0 %v7854
        %8204 = vmatprep.subr.mxu0 %v7863
        %8205 = vmatpush1.msra.mxu0 %v7862
        %8206 = vmatprep.subr.mxu0 %v7871
        %8207 = vmatpush1.msra.mxu0 %v7870
        %8208 = vmatprep.subr.mxu0 %v7879
        %8209 = vmatpush1.msra.mxu0 %v7878
        %8210 = vmatprep.subr.mxu0 %v7887
        %8211 = vmatpush1.msra.mxu0 %v7886
        %8212 = vmatprep.subr.mxu0 0.0
        %8213 = vmatpush1.msra.mxu0 0.0
        %8214 = vmatprep.subr.mxu0 0.0
        %8215 = vmatpush1.msra.mxu0 0.0
        %8216 = vmatprep.subr.mxu0 0.0
        %8217 = vmatpush1.msra.mxu0 0.0
        %8218 = vmatprep.subr.mxu0 0.0
        %8219 = vmatpush1.msra.mxu0 0.0
        %8220 = vmatprep.subr.mxu0 0.0
        %8221 = vmatpush1.msra.mxu0 0.0
        %8222 = vmatprep.subr.mxu0 0.0
        %8223 = vmatpush1.msra.mxu0 0.0
        %8224 = vmatprep.subr.mxu0 0.0
        %8225 = vmatpush1.msra.mxu0 0.0
        %8226 = vmatprep.subr.mxu0 0.0
        %8227 = vmatpush1.msra.mxu0 0.0
        %8228 = vmatprep.subr.mxu0 0.0
        %8229 = vmatpush1.msra.mxu0 0.0
        %8230 = vmatprep.subr.mxu0 0.0
        %8231 = vmatpush1.msra.mxu0 0.0
        %8232 = vmatprep.subr.mxu0 0.0
        %8233 = vmatpush1.msra.mxu0 0.0
        %8234 = vmatprep.subr.mxu0 0.0
        %8235 = vmatpush1.msra.mxu0 0.0
        %8236 = vmatprep.subr.mxu0 0.0
        %8237 = vmatpush1.msra.mxu0 0.0
        %8238 = vmatprep.subr.mxu0 0.0
        %8239 = vmatpush1.msra.mxu0 0.0
        %8240 = vmatprep.subr.mxu0 0.0
        %8241 = vmatpush1.msra.mxu0 0.0
        %8242 = vmatprep.subr.mxu0 0.0
        %8243 = vmatpush1.msra.mxu0 0.0
        %8244 = vmatprep.subr.mxu0 0.0
        %8245 = vmatpush1.msra.mxu0 0.0
        %8246 = vmatprep.subr.mxu0 0.0
        %8247 = vmatpush1.msra.mxu0 0.0
        %8248 = vmatprep.subr.mxu0 0.0
        %8249 = vmatpush1.msra.mxu0 0.0
        %8250 = vmatprep.subr.mxu0 0.0
        %8251 = vmatpush1.msra.mxu0 0.0
        %8252 = vmatprep.subr.mxu0 0.0
        %8253 = vmatpush1.msra.mxu0 0.0
        %8254 = vmatprep.subr.mxu0 0.0
        %8255 = vmatpush1.msra.mxu0 0.0
        %8256 = vmatprep.subr.mxu0 0.0
        %8257 = vmatpush1.msra.mxu0 0.0
        %8258 = vmatprep.subr.mxu0 0.0
        %8259 = vmatpush1.msra.mxu0 0.0
        %8260 = vmatprep.mubr.f32.mxu0 0.0
        %8261 = vmatmul.mubr.f32.gmra.mrb[0].mxu0 %v7947
        %v8262 = vpop.f32.mrb[0].mxu0
        %v8263 = vadd.f32 %v7909, %v8262
        %v8264 = vpop.f32.mrb[0].mxu0
        %v8265 = vadd.f32 %v7909, %v8264
        %8266 = vmatprep.mubr.f32.mxu0 0.0
        %8267 = vmatmul.mubr.f32.gmra.mrb[0].mxu0 %v7950
        %v8268 = vpop.f32.mrb[0].mxu0
        %v8269 = vadd.f32 %v7914, %v8268
        %v8270 = vpop.f32.mrb[0].mxu0
        %v8271 = vadd.f32 %v7914, %v8270
        %8272 = vmatprep.mubr.f32.mxu0 0.0
        %8273 = vmatmul.mubr.f32.gmra.mrb[0].mxu0 %v7953
        %v8274 = vpop.f32.mrb[0].mxu0
        %v8275 = vadd.f32 %v7919, %v8274
        %v8276 = vpop.f32.mrb[0].mxu0
        %v8277 = vadd.f32 %v7919, %v8276
        %8278 = vmatprep.mubr.f32.mxu0 0.0
        %8279 = vmatmul.mubr.f32.gmra.mrb[0].mxu0 %v7956
        %v8280 = vpop.f32.mrb[0].mxu0
        %v8281 = vadd.f32 %v7924, %v8280
        %v8282 = vpop.f32.mrb[0].mxu0
        %v8283 = vadd.f32 %v7924, %v8282
        %8284 = vmatprep.mubr.f32.mxu0 0.0
        %8285 = vmatmul.mubr.f32.gmra.mrb[0].mxu0 %v7959
        %v8286 = vpop.f32.mrb[0].mxu0
        %v8287 = vadd.f32 %v7929, %v8286
        %v8288 = vpop.f32.mrb[0].mxu0
        %v8289 = vadd.f32 %v7929, %v8288
        %8290 = vmatprep.mubr.f32.mxu0 0.0
        %8291 = vmatmul.mubr.f32.gmra.mrb[0].mxu0 %v7962
        %v8292 = vpop.f32.mrb[0].mxu0
        %v8293 = vadd.f32 %v7934, %v8292
        %v8294 = vpop.f32.mrb[0].mxu0
        %v8295 = vadd.f32 %v7934, %v8294
        %8296 = vmatprep.mubr.f32.mxu0 0.0
        %8297 = vmatmul.mubr.f32.gmra.mrb[0].mxu0 %v7965
        %v8298 = vpop.f32.mrb[0].mxu0
        %v8299 = vadd.f32 %v7939, %v8298
        %v8300 = vpop.f32.mrb[0].mxu0
        %v8301 = vadd.f32 %v7939, %v8300
        %8302 = vmatprep.mubr.f32.mxu0 0.0
        %8303 = vmatmul.mubr.f32.gmra.mrb[0].mxu0 %v7968
        %v8304 = vpop.f32.mrb[0].mxu0
        %v8305 = vadd.f32 %v7944, %v8304
        %v8306 = vpop.f32.mrb[0].mxu0
        %v8307 = vadd.f32 %v7944, %v8306
        %8308 = vdwg.mxu0
        %8309 = vmatprep.subr.mxu0 %v7833
        %8310 = vmatpush1.msra.mxu0 %v7832
        %8311 = vmatprep.subr.mxu0 %v7841
        %8312 = vmatpush1.msra.mxu0 %v7840
        %8313 = vmatprep.subr.mxu0 %v7849
        %8314 = vmatpush1.msra.mxu0 %v7848
        %8315 = vmatprep.subr.mxu0 %v7857
        %8316 = vmatpush1.msra.mxu0 %v7856
        %8317 = vmatprep.subr.mxu0 %v7865
        %8318 = vmatpush1.msra.mxu0 %v7864
        %8319 = vmatprep.subr.mxu0 %v7873
        %8320 = vmatpush1.msra.mxu0 %v7872
        %8321 = vmatprep.subr.mxu0 %v7881
        %8322 = vmatpush1.msra.mxu0 %v7880
        %8323 = vmatprep.subr.mxu0 %v7889
        %8324 = vmatpush1.msra.mxu0 %v7888
        %8325 = vmatprep.subr.mxu0 0.0
        %8326 = vmatpush1.msra.mxu0 0.0
        %8327 = vmatprep.subr.mxu0 0.0
        %8328 = vmatpush1.msra.mxu0 0.0
        %8329 = vmatprep.subr.mxu0 0.0
        %8330 = vmatpush1.msra.mxu0 0.0
        %8331 = vmatprep.subr.mxu0 0.0
        %8332 = vmatpush1.msra.mxu0 0.0
        %8333 = vmatprep.subr.mxu0 0.0
        %8334 = vmatpush1.msra.mxu0 0.0
        %8335 = vmatprep.subr.mxu0 0.0
        %8336 = vmatpush1.msra.mxu0 0.0
        %8337 = vmatprep.subr.mxu0 0.0
        %8338 = vmatpush1.msra.mxu0 0.0
        %8339 = vmatprep.subr.mxu0 0.0
        %8340 = vmatpush1.msra.mxu0 0.0
        %8341 = vmatprep.subr.mxu0 0.0
        %8342 = vmatpush1.msra.mxu0 0.0
        %8343 = vmatprep.subr.mxu0 0.0
        %8344 = vmatpush1.msra.mxu0 0.0
        %8345 = vmatprep.subr.mxu0 0.0
        %8346 = vmatpush1.msra.mxu0 0.0
        %8347 = vmatprep.subr.mxu0 0.0
        %8348 = vmatpush1.msra.mxu0 0.0
        %8349 = vmatprep.subr.mxu0 0.0
        %8350 = vmatpush1.msra.mxu0 0.0
        %8351 = vmatprep.subr.mxu0 0.0
        %8352 = vmatpush1.msra.mxu0 0.0
        %8353 = vmatprep.subr.mxu0 0.0
        %8354 = vmatpush1.msra.mxu0 0.0
        %8355 = vmatprep.subr.mxu0 0.0
        %8356 = vmatpush1.msra.mxu0 0.0
        %8357 = vmatprep.subr.mxu0 0.0
        %8358 = vmatpush1.msra.mxu0 0.0
        %8359 = vmatprep.subr.mxu0 0.0
        %8360 = vmatpush1.msra.mxu0 0.0
        %8361 = vmatprep.subr.mxu0 0.0
        %8362 = vmatpush1.msra.mxu0 0.0
        %8363 = vmatprep.subr.mxu0 0.0
        %8364 = vmatpush1.msra.mxu0 0.0
        %8365 = vmatprep.subr.mxu0 0.0
        %8366 = vmatpush1.msra.mxu0 0.0
        %8367 = vmatprep.subr.mxu0 0.0
        %8368 = vmatpush1.msra.mxu0 0.0
        %8369 = vmatprep.subr.mxu0 0.0
        %8370 = vmatpush1.msra.mxu0 0.0
        %8371 = vmatprep.subr.mxu0 0.0
        %8372 = vmatpush1.msra.mxu0 0.0
        %8373 = vmatprep.mubr.f32.mxu0 0.0
        %8374 = vmatmul.mubr.f32.gmra.mrb[0].mxu0 %v7947
        %v8375 = vpop.f32.mrb[0].mxu0
        %v8376 = vadd.f32 %v7909, %v8375
        %v8377 = vpop.f32.mrb[0].mxu0
        %v8378 = vadd.f32 %v7909, %v8377
        %8379 = vmatprep.mubr.f32.mxu0 0.0
        %8380 = vmatmul.mubr.f32.gmra.mrb[0].mxu0 %v7950
        %v8381 = vpop.f32.mrb[0].mxu0
        %v8382 = vadd.f32 %v7914, %v8381
        %v8383 = vpop.f32.mrb[0].mxu0
        %v8384 = vadd.f32 %v7914, %v8383
        %8385 = vmatprep.mubr.f32.mxu0 0.0
        %8386 = vmatmul.mubr.f32.gmra.mrb[0].mxu0 %v7953
        %v8387 = vpop.f32.mrb[0].mxu0
        %v8388 = vadd.f32 %v7919, %v8387
        %v8389 = vpop.f32.mrb[0].mxu0
        %v8390 = vadd.f32 %v7919, %v8389
        %8391 = vmatprep.mubr.f32.mxu0 0.0
        %8392 = vmatmul.mubr.f32.gmra.mrb[0].mxu0 %v7956
        %v8393 = vpop.f32.mrb[0].mxu0
        %v8394 = vadd.f32 %v7924, %v8393
        %v8395 = vpop.f32.mrb[0].mxu0
        %v8396 = vadd.f32 %v7924, %v8395
        %8397 = vmatprep.mubr.f32.mxu0 0.0
        %8398 = vmatmul.mubr.f32.gmra.mrb[0].mxu0 %v7959
        %v8399 = vpop.f32.mrb[0].mxu0
        %v8400 = vadd.f32 %v7929, %v8399
        %v8401 = vpop.f32.mrb[0].mxu0
        %v8402 = vadd.f32 %v7929, %v8401
        %8403 = vmatprep.mubr.f32.mxu0 0.0
        %8404 = vmatmul.mubr.f32.gmra.mrb[0].mxu0 %v7962
        %v8405 = vpop.f32.mrb[0].mxu0
        %v8406 = vadd.f32 %v7934, %v8405
        %v8407 = vpop.f32.mrb[0].mxu0
        %v8408 = vadd.f32 %v7934, %v8407
        %8409 = vmatprep.mubr.f32.mxu0 0.0
        %8410 = vmatmul.mubr.f32.gmra.mrb[0].mxu0 %v7965
        %v8411 = vpop.f32.mrb[0].mxu0
        %v8412 = vadd.f32 %v7939, %v8411
        %v8413 = vpop.f32.mrb[0].mxu0
        %v8414 = vadd.f32 %v7939, %v8413
        %8415 = vmatprep.mubr.f32.mxu0 0.0
        %8416 = vmatmul.mubr.f32.gmra.mrb[0].mxu0 %v7968
        %v8417 = vpop.f32.mrb[0].mxu0
        %v8418 = vadd.f32 %v7944, %v8417
        %v8419 = vpop.f32.mrb[0].mxu0
        %v8420 = vadd.f32 %v7944, %v8419
        %8421 = vdwg.mxu0
        %v8422 = vmax.f32 %v8037, 0.0
        %v8423 = vmax.f32 %v8039, 0.0
        %v8424 = vmax.f32 %v8150, 0.0
        %v8425 = vmax.f32 %v8152, 0.0
        %v8426 = vmax.f32 %v8263, 0.0
        %v8427 = vmax.f32 %v8265, 0.0
        %v8428 = vmax.f32 %v8376, 0.0
        %v8429 = vmax.f32 %v8378, 0.0
        %v8430 = vmax.f32 %v8043, 0.0
        %v8431 = vmax.f32 %v8045, 0.0
        %v8432 = vmax.f32 %v8156, 0.0
        %v8433 = vmax.f32 %v8158, 0.0
        %v8434 = vmax.f32 %v8269, 0.0
        %v8435 = vmax.f32 %v8271, 0.0
        %v8436 = vmax.f32 %v8382, 0.0
        %v8437 = vmax.f32 %v8384, 0.0
        %v8438 = vmax.f32 %v8049, 0.0
        %v8439 = vmax.f32 %v8051, 0.0
        %v8440 = vmax.f32 %v8162, 0.0
        %v8441 = vmax.f32 %v8164, 0.0
        %v8442 = vmax.f32 %v8275, 0.0
        %v8443 = vmax.f32 %v8277, 0.0
        %v8444 = vmax.f32 %v8388, 0.0
        %v8445 = vmax.f32 %v8390, 0.0
        %v8446 = vmax.f32 %v8055, 0.0
        %v8447 = vmax.f32 %v8057, 0.0
        %v8448 = vmax.f32 %v8168, 0.0
        %v8449 = vmax.f32 %v8170, 0.0
        %v8450 = vmax.f32 %v8281, 0.0
        %v8451 = vmax.f32 %v8283, 0.0
        %v8452 = vmax.f32 %v8394, 0.0
        %v8453 = vmax.f32 %v8396, 0.0
        %v8454 = vmax.f32 %v8061, 0.0
        %v8455 = vmax.f32 %v8063, 0.0
        %v8456 = vmax.f32 %v8174, 0.0
        %v8457 = vmax.f32 %v8176, 0.0
        %v8458 = vmax.f32 %v8287, 0.0
        %v8459 = vmax.f32 %v8289, 0.0
        %v8460 = vmax.f32 %v8400, 0.0
        %v8461 = vmax.f32 %v8402, 0.0
        %v8462 = vmax.f32 %v8067, 0.0
        %v8463 = vmax.f32 %v8069, 0.0
        %v8464 = vmax.f32 %v8180, 0.0
        %v8465 = vmax.f32 %v8182, 0.0
        %v8466 = vmax.f32 %v8293, 0.0
        %v8467 = vmax.f32 %v8295, 0.0
        %v8468 = vmax.f32 %v8406, 0.0
        %v8469 = vmax.f32 %v8408, 0.0
        %v8470 = vmax.f32 %v8073, 0.0
        %v8471 = vmax.f32 %v8075, 0.0
        %v8472 = vmax.f32 %v8186, 0.0
        %v8473 = vmax.f32 %v8188, 0.0
        %v8474 = vmax.f32 %v8299, 0.0
        %v8475 = vmax.f32 %v8301, 0.0
        %v8476 = vmax.f32 %v8412, 0.0
        %v8477 = vmax.f32 %v8414, 0.0
        %v8478 = vmax.f32 %v8079, 0.0
        %v8479 = vmax.f32 %v8081, 0.0
        %v8480 = vmax.f32 %v8192, 0.0
        %v8481 = vmax.f32 %v8194, 0.0
        %v8482 = vmax.f32 %v8305, 0.0
        %v8483 = vmax.f32 %v8307, 0.0
        %v8484 = vmax.f32 %v8418, 0.0
        %v8485 = vmax.f32 %v8420, 0.0
        %v8486 = vld [vmem:[%s9] sm:$0x1]
        %v8487 = vld [vmem:[#allocation3] sm:$0x1]
        %8489 = vset.pattern.permute.xlu0 0
        %8490 = vperm.xlu0 %8489, %v8487
        %v8491 = vpop.permute.xlu0 %8490
        %v8493 = vlaneseq
        %v8494 = vshrl.u32 %v8493, 7
        %v8495 = vsub.s32 0, %v8494
        %v8496 = vrot.slane %v8491, %v8495
        %v8498 = vsel %vm6707, %v8486, 0
        %8500 = vmatprep.subr.mxu0 %v8423
        %8501 = vmatpush1.msra.mxu0 %v8422
        %8502 = vmatprep.subr.mxu0 %v8431
        %8503 = vmatpush1.msra.mxu0 %v8430
        %8504 = vmatprep.subr.mxu0 %v8439
        %8505 = vmatpush1.msra.mxu0 %v8438
        %8506 = vmatprep.subr.mxu0 %v8447
        %8507 = vmatpush1.msra.mxu0 %v8446
        %8508 = vmatprep.subr.mxu0 %v8455
        %8509 = vmatpush1.msra.mxu0 %v8454
        %8510 = vmatprep.subr.mxu0 %v8463
        %8511 = vmatpush1.msra.mxu0 %v8462
        %8512 = vmatprep.subr.mxu0 %v8471
        %8513 = vmatpush1.msra.mxu0 %v8470
        %8514 = vmatprep.subr.mxu0 %v8479
        %8515 = vmatpush1.msra.mxu0 %v8478
        %8516 = vmatprep.subr.mxu0 0.0
        %8517 = vmatpush1.msra.mxu0 0.0
        %8518 = vmatprep.subr.mxu0 0.0
        %8519 = vmatpush1.msra.mxu0 0.0
        %8520 = vmatprep.subr.mxu0 0.0
        %8521 = vmatpush1.msra.mxu0 0.0
        %8522 = vmatprep.subr.mxu0 0.0
        %8523 = vmatpush1.msra.mxu0 0.0
        %8524 = vmatprep.subr.mxu0 0.0
        %8525 = vmatpush1.msra.mxu0 0.0
        %8526 = vmatprep.subr.mxu0 0.0
        %8527 = vmatpush1.msra.mxu0 0.0
        %8528 = vmatprep.subr.mxu0 0.0
        %8529 = vmatpush1.msra.mxu0 0.0
        %8530 = vmatprep.subr.mxu0 0.0
        %8531 = vmatpush1.msra.mxu0 0.0
        %8532 = vmatprep.subr.mxu0 0.0
        %8533 = vmatpush1.msra.mxu0 0.0
        %8534 = vmatprep.subr.mxu0 0.0
        %8535 = vmatpush1.msra.mxu0 0.0
        %8536 = vmatprep.subr.mxu0 0.0
        %8537 = vmatpush1.msra.mxu0 0.0
        %8538 = vmatprep.subr.mxu0 0.0
        %8539 = vmatpush1.msra.mxu0 0.0
        %8540 = vmatprep.subr.mxu0 0.0
        %8541 = vmatpush1.msra.mxu0 0.0
        %8542 = vmatprep.subr.mxu0 0.0
        %8543 = vmatpush1.msra.mxu0 0.0
        %8544 = vmatprep.subr.mxu0 0.0
        %8545 = vmatpush1.msra.mxu0 0.0
        %8546 = vmatprep.subr.mxu0 0.0
        %8547 = vmatpush1.msra.mxu0 0.0
        %8548 = vmatprep.subr.mxu0 0.0
        %8549 = vmatpush1.msra.mxu0 0.0
        %8550 = vmatprep.subr.mxu0 0.0
        %8551 = vmatpush1.msra.mxu0 0.0
        %8552 = vmatprep.subr.mxu0 0.0
        %8553 = vmatpush1.msra.mxu0 0.0
        %8554 = vmatprep.subr.mxu0 0.0
        %8555 = vmatpush1.msra.mxu0 0.0
        %8556 = vmatprep.subr.mxu0 0.0
        %8557 = vmatpush1.msra.mxu0 0.0
        %8558 = vmatprep.subr.mxu0 0.0
        %8559 = vmatpush1.msra.mxu0 0.0
        %8560 = vmatprep.subr.mxu0 0.0
        %8561 = vmatpush1.msra.mxu0 0.0
        %8562 = vmatprep.subr.mxu0 0.0
        %8563 = vmatpush1.msra.mxu0 0.0
        %8564 = vmatprep.mubr.f32.mxu0 0.0
        %8565 = vmatmul.mubr.f32.gmra.mrb[0].mxu0 %v8498
        %v8566 = vpop.f32.mrb[0].mxu0
        %v8567 = vadd.f32 %v8496, %v8566
        %v8568 = vpop.f32.mrb[0].mxu0
        %v8569 = vadd.f32 %v8496, %v8568
        %8570 = vdwg.mxu0
        %8571 = vmatprep.subr.mxu0 %v8425
        %8572 = vmatpush1.msra.mxu0 %v8424
        %8573 = vmatprep.subr.mxu0 %v8433
        %8574 = vmatpush1.msra.mxu0 %v8432
        %8575 = vmatprep.subr.mxu0 %v8441
        %8576 = vmatpush1.msra.mxu0 %v8440
        %8577 = vmatprep.subr.mxu0 %v8449
        %8578 = vmatpush1.msra.mxu0 %v8448
        %8579 = vmatprep.subr.mxu0 %v8457
        %8580 = vmatpush1.msra.mxu0 %v8456
        %8581 = vmatprep.subr.mxu0 %v8465
        %8582 = vmatpush1.msra.mxu0 %v8464
        %8583 = vmatprep.subr.mxu0 %v8473
        %8584 = vmatpush1.msra.mxu0 %v8472
        %8585 = vmatprep.subr.mxu0 %v8481
        %8586 = vmatpush1.msra.mxu0 %v8480
        %8587 = vmatprep.subr.mxu0 0.0
        %8588 = vmatpush1.msra.mxu0 0.0
        %8589 = vmatprep.subr.mxu0 0.0
        %8590 = vmatpush1.msra.mxu0 0.0
        %8591 = vmatprep.subr.mxu0 0.0
        %8592 = vmatpush1.msra.mxu0 0.0
        %8593 = vmatprep.subr.mxu0 0.0
        %8594 = vmatpush1.msra.mxu0 0.0
        %8595 = vmatprep.subr.mxu0 0.0
        %8596 = vmatpush1.msra.mxu0 0.0
        %8597 = vmatprep.subr.mxu0 0.0
        %8598 = vmatpush1.msra.mxu0 0.0
        %8599 = vmatprep.subr.mxu0 0.0
        %8600 = vmatpush1.msra.mxu0 0.0
        %8601 = vmatprep.subr.mxu0 0.0
        %8602 = vmatpush1.msra.mxu0 0.0
        %8603 = vmatprep.subr.mxu0 0.0
        %8604 = vmatpush1.msra.mxu0 0.0
        %8605 = vmatprep.subr.mxu0 0.0
        %8606 = vmatpush1.msra.mxu0 0.0
        %8607 = vmatprep.subr.mxu0 0.0
        %8608 = vmatpush1.msra.mxu0 0.0
        %8609 = vmatprep.subr.mxu0 0.0
        %8610 = vmatpush1.msra.mxu0 0.0
        %8611 = vmatprep.subr.mxu0 0.0
        %8612 = vmatpush1.msra.mxu0 0.0
        %8613 = vmatprep.subr.mxu0 0.0
        %8614 = vmatpush1.msra.mxu0 0.0
        %8615 = vmatprep.subr.mxu0 0.0
        %8616 = vmatpush1.msra.mxu0 0.0
        %8617 = vmatprep.subr.mxu0 0.0
        %8618 = vmatpush1.msra.mxu0 0.0
        %8619 = vmatprep.subr.mxu0 0.0
        %8620 = vmatpush1.msra.mxu0 0.0
        %8621 = vmatprep.subr.mxu0 0.0
        %8622 = vmatpush1.msra.mxu0 0.0
        %8623 = vmatprep.subr.mxu0 0.0
        %8624 = vmatpush1.msra.mxu0 0.0
        %8625 = vmatprep.subr.mxu0 0.0
        %8626 = vmatpush1.msra.mxu0 0.0
        %8627 = vmatprep.subr.mxu0 0.0
        %8628 = vmatpush1.msra.mxu0 0.0
        %8629 = vmatprep.subr.mxu0 0.0
        %8630 = vmatpush1.msra.mxu0 0.0
        %8631 = vmatprep.subr.mxu0 0.0
        %8632 = vmatpush1.msra.mxu0 0.0
        %8633 = vmatprep.subr.mxu0 0.0
        %8634 = vmatpush1.msra.mxu0 0.0
        %8635 = vmatprep.mubr.f32.mxu0 0.0
        %8636 = vmatmul.mubr.f32.gmra.mrb[0].mxu0 %v8498
        %v8637 = vpop.f32.mrb[0].mxu0
        %v8638 = vadd.f32 %v8496, %v8637
        %v8639 = vpop.f32.mrb[0].mxu0
        %v8640 = vadd.f32 %v8496, %v8639
        %8641 = vdwg.mxu0
        %8642 = vmatprep.subr.mxu0 %v8427
        %8643 = vmatpush1.msra.mxu0 %v8426
        %8644 = vmatprep.subr.mxu0 %v8435
        %8645 = vmatpush1.msra.mxu0 %v8434
        %8646 = vmatprep.subr.mxu0 %v8443
        %8647 = vmatpush1.msra.mxu0 %v8442
        %8648 = vmatprep.subr.mxu0 %v8451
        %8649 = vmatpush1.msra.mxu0 %v8450
        %8650 = vmatprep.subr.mxu0 %v8459
        %8651 = vmatpush1.msra.mxu0 %v8458
        %8652 = vmatprep.subr.mxu0 %v8467
        %8653 = vmatpush1.msra.mxu0 %v8466
        %8654 = vmatprep.subr.mxu0 %v8475
        %8655 = vmatpush1.msra.mxu0 %v8474
        %8656 = vmatprep.subr.mxu0 %v8483
        %8657 = vmatpush1.msra.mxu0 %v8482
        %8658 = vmatprep.subr.mxu0 0.0
        %8659 = vmatpush1.msra.mxu0 0.0
        %8660 = vmatprep.subr.mxu0 0.0
        %8661 = vmatpush1.msra.mxu0 0.0
        %8662 = vmatprep.subr.mxu0 0.0
        %8663 = vmatpush1.msra.mxu0 0.0
        %8664 = vmatprep.subr.mxu0 0.0
        %8665 = vmatpush1.msra.mxu0 0.0
        %8666 = vmatprep.subr.mxu0 0.0
        %8667 = vmatpush1.msra.mxu0 0.0
        %8668 = vmatprep.subr.mxu0 0.0
        %8669 = vmatpush1.msra.mxu0 0.0
        %8670 = vmatprep.subr.mxu0 0.0
        %8671 = vmatpush1.msra.mxu0 0.0
        %8672 = vmatprep.subr.mxu0 0.0
        %8673 = vmatpush1.msra.mxu0 0.0
        %8674 = vmatprep.subr.mxu0 0.0
        %8675 = vmatpush1.msra.mxu0 0.0
        %8676 = vmatprep.subr.mxu0 0.0
        %8677 = vmatpush1.msra.mxu0 0.0
        %8678 = vmatprep.subr.mxu0 0.0
        %8679 = vmatpush1.msra.mxu0 0.0
        %8680 = vmatprep.subr.mxu0 0.0
        %8681 = vmatpush1.msra.mxu0 0.0
        %8682 = vmatprep.subr.mxu0 0.0
        %8683 = vmatpush1.msra.mxu0 0.0
        %8684 = vmatprep.subr.mxu0 0.0
        %8685 = vmatpush1.msra.mxu0 0.0
        %8686 = vmatprep.subr.mxu0 0.0
        %8687 = vmatpush1.msra.mxu0 0.0
        %8688 = vmatprep.subr.mxu0 0.0
        %8689 = vmatpush1.msra.mxu0 0.0
        %8690 = vmatprep.subr.mxu0 0.0
        %8691 = vmatpush1.msra.mxu0 0.0
        %8692 = vmatprep.subr.mxu0 0.0
        %8693 = vmatpush1.msra.mxu0 0.0
        %8694 = vmatprep.subr.mxu0 0.0
        %8695 = vmatpush1.msra.mxu0 0.0
        %8696 = vmatprep.subr.mxu0 0.0
        %8697 = vmatpush1.msra.mxu0 0.0
        %8698 = vmatprep.subr.mxu0 0.0
        %8699 = vmatpush1.msra.mxu0 0.0
        %8700 = vmatprep.subr.mxu0 0.0
        %8701 = vmatpush1.msra.mxu0 0.0
        %8702 = vmatprep.subr.mxu0 0.0
        %8703 = vmatpush1.msra.mxu0 0.0
        %8704 = vmatprep.subr.mxu0 0.0
        %8705 = vmatpush1.msra.mxu0 0.0
        %8706 = vmatprep.mubr.f32.mxu0 0.0
        %8707 = vmatmul.mubr.f32.gmra.mrb[0].mxu0 %v8498
        %v8708 = vpop.f32.mrb[0].mxu0
        %v8709 = vadd.f32 %v8496, %v8708
        %v8710 = vpop.f32.mrb[0].mxu0
        %v8711 = vadd.f32 %v8496, %v8710
        %8712 = vdwg.mxu0
        %8713 = vmatprep.subr.mxu0 %v8429
        %8714 = vmatpush1.msra.mxu0 %v8428
        %8715 = vmatprep.subr.mxu0 %v8437
        %8716 = vmatpush1.msra.mxu0 %v8436
        %8717 = vmatprep.subr.mxu0 %v8445
        %8718 = vmatpush1.msra.mxu0 %v8444
        %8719 = vmatprep.subr.mxu0 %v8453
        %8720 = vmatpush1.msra.mxu0 %v8452
        %8721 = vmatprep.subr.mxu0 %v8461
        %8722 = vmatpush1.msra.mxu0 %v8460
        %8723 = vmatprep.subr.mxu0 %v8469
        %8724 = vmatpush1.msra.mxu0 %v8468
        %8725 = vmatprep.subr.mxu0 %v8477
        %8726 = vmatpush1.msra.mxu0 %v8476
        %8727 = vmatprep.subr.mxu0 %v8485
        %8728 = vmatpush1.msra.mxu0 %v8484
        %8729 = vmatprep.subr.mxu0 0.0
        %8730 = vmatpush1.msra.mxu0 0.0
        %8731 = vmatprep.subr.mxu0 0.0
        %8732 = vmatpush1.msra.mxu0 0.0
        %8733 = vmatprep.subr.mxu0 0.0
        %8734 = vmatpush1.msra.mxu0 0.0
        %8735 = vmatprep.subr.mxu0 0.0
        %8736 = vmatpush1.msra.mxu0 0.0
        %8737 = vmatprep.subr.mxu0 0.0
        %8738 = vmatpush1.msra.mxu0 0.0
        %8739 = vmatprep.subr.mxu0 0.0
        %8740 = vmatpush1.msra.mxu0 0.0
        %8741 = vmatprep.subr.mxu0 0.0
        %8742 = vmatpush1.msra.mxu0 0.0
        %8743 = vmatprep.subr.mxu0 0.0
        %8744 = vmatpush1.msra.mxu0 0.0
        %8745 = vmatprep.subr.mxu0 0.0
        %8746 = vmatpush1.msra.mxu0 0.0
        %8747 = vmatprep.subr.mxu0 0.0
        %8748 = vmatpush1.msra.mxu0 0.0
        %8749 = vmatprep.subr.mxu0 0.0
        %8750 = vmatpush1.msra.mxu0 0.0
        %8751 = vmatprep.subr.mxu0 0.0
        %8752 = vmatpush1.msra.mxu0 0.0
        %8753 = vmatprep.subr.mxu0 0.0
        %8754 = vmatpush1.msra.mxu0 0.0
        %8755 = vmatprep.subr.mxu0 0.0
        %8756 = vmatpush1.msra.mxu0 0.0
        %8757 = vmatprep.subr.mxu0 0.0
        %8758 = vmatpush1.msra.mxu0 0.0
        %8759 = vmatprep.subr.mxu0 0.0
        %8760 = vmatpush1.msra.mxu0 0.0
        %8761 = vmatprep.subr.mxu0 0.0
        %8762 = vmatpush1.msra.mxu0 0.0
        %8763 = vmatprep.subr.mxu0 0.0
        %8764 = vmatpush1.msra.mxu0 0.0
        %8765 = vmatprep.subr.mxu0 0.0
        %8766 = vmatpush1.msra.mxu0 0.0
        %8767 = vmatprep.subr.mxu0 0.0
        %8768 = vmatpush1.msra.mxu0 0.0
        %8769 = vmatprep.subr.mxu0 0.0
        %8770 = vmatpush1.msra.mxu0 0.0
        %8771 = vmatprep.subr.mxu0 0.0
        %8772 = vmatpush1.msra.mxu0 0.0
        %8773 = vmatprep.subr.mxu0 0.0
        %8774 = vmatpush1.msra.mxu0 0.0
        %8775 = vmatprep.subr.mxu0 0.0
        %8776 = vmatpush1.msra.mxu0 0.0
        %8777 = vmatprep.mubr.f32.mxu0 0.0
        %8778 = vmatmul.mubr.f32.gmra.mrb[0].mxu0 %v8498
        %v8779 = vpop.f32.mrb[0].mxu0
        %v8780 = vadd.f32 %v8496, %v8779
        %v8781 = vpop.f32.mrb[0].mxu0
        %v8782 = vadd.f32 %v8496, %v8781
        %8783 = vdwg.mxu0
        %v8792 = vcombine.low %v8567, %v8569
        %v8793 = vcombine.low %v8638, %v8640
        %v8794 = vcombine.low %v8709, %v8711
        %v8795 = vcombine.low %v8780, %v8782
        %v8797 = vunpack.c.l.s4 1966171168
        %v8798 = vunpack.c.0.s8 %v8797
        %v8799 = vlaneseq
        %v8800 = vshrl.u32 %v8799, 7
        %v8801 = vsub.s32 %v8798, %v8800
        %v8802 = vrot.slane %v8792, %v8801
        %v8804 = vunpack.c.l.s4 1966171168
        %v8805 = vunpack.c.0.s8 %v8804
        %v8806 = vlaneseq
        %v8807 = vshrl.u32 %v8806, 7
        %v8808 = vsub.s32 %v8805, %v8807
        %v8809 = vrot.slane %v8793, %v8808
        %v8811 = vunpack.c.l.s4 1966171168
        %v8812 = vunpack.c.0.s8 %v8811
        %v8813 = vlaneseq
        %v8814 = vshrl.u32 %v8813, 7
        %v8815 = vsub.s32 %v8812, %v8814
        %v8816 = vrot.slane %v8794, %v8815
        %v8818 = vunpack.c.l.s4 1966171168
        %v8819 = vunpack.c.0.s8 %v8818
        %v8820 = vlaneseq
        %v8821 = vshrl.u32 %v8820, 7
        %v8822 = vsub.s32 %v8819, %v8821
        %v8823 = vrot.slane %v8795, %v8822
        %v8824 = vcombine.low %v8802, %v8809
        %v8825 = vcombine.low %v8816, %v8823
        %v8827 = vunpack.c.l.s4 1966171168
        %v8828 = vunpack.c.0.s8 %v8827
        %v8829 = vlaneseq
        %v8830 = vshrl.u32 %v8829, 7
        %v8831 = vsub.s32 %v8828, %v8830
        %v8832 = vrot.slane %v8824, %v8831
        %v8834 = vunpack.c.l.s4 1966171168
        %v8835 = vunpack.c.0.s8 %v8834
        %v8836 = vlaneseq
        %v8837 = vshrl.u32 %v8836, 7
        %v8838 = vsub.s32 %v8835, %v8837
        %v8839 = vrot.slane %v8825, %v8838
        %v8840 = vcombine.low %v8832, %v8839
        %8842 = vst [vmem:[%s463] ss:$8 sm:$0xf] %v8840
        %8843 = vst [vmem:[%s463] ss:$8 sm:$0xf0] %v8840
        %v8852 = vrot.slane %v6853, 7
        %v8853 = vrot.slane %v6855, 7
        %v8854 = vrot.slane %v6976, 7
        %v8855 = vrot.slane %v6978, 7
        %v8856 = vrot.slane %v7099, 7
        %v8857 = vrot.slane %v7101, 7
        %v8858 = vrot.slane %v7222, 7
        %v8859 = vrot.slane %v7224, 7
        %8868 = vst [vmem:[%s463] sm:$0x1e] %v8852
        %8869 = vst [vmem:[%s463 + $0x8] sm:$0x1e] %v8853
        %8870 = vst [vmem:[%s463 + $0x10] sm:$0x1e] %v8854
        %8871 = vst [vmem:[%s463 + $0x18] sm:$0x1e] %v8855
        %8872 = vst [vmem:[%s463 + $0x20] sm:$0x1e] %v8856
        %8873 = vst [vmem:[%s463 + $0x28] sm:$0x1e] %v8857
        %8874 = vst [vmem:[%s463 + $0x30] sm:$0x1e] %v8858
        %8875 = vst [vmem:[%s463 + $0x38] sm:$0x1e] %v8859
        %8876 = vst [vmem:[%s463] sm:$0xe0] 0.0
        %8877 = vst [vmem:[%s463 + $0x8] sm:$0xe0] 0.0
        %8878 = vst [vmem:[%s463 + $0x10] sm:$0xe0] 0.0
        %8879 = vst [vmem:[%s463 + $0x18] sm:$0xe0] 0.0
        %8880 = vst [vmem:[%s463 + $0x20] sm:$0xe0] 0.0
        %8881 = vst [vmem:[%s463 + $0x28] sm:$0xe0] 0.0
        %8882 = vst [vmem:[%s463 + $0x30] sm:$0xe0] 0.0
        %8883 = vst [vmem:[%s463 + $0x38] sm:$0xe0] 0.0
        %s8884 = smul.u32 8, %s27
        %p8885 = scmp.lt.s32.totalorder %s8884, 15
        %s8886 = scalar_select %p8885, %s8884, 15
        %s8887 = smul.addr %s8886, 8
        %s8888 = scalar_lea.vmem %s11, %s8887
        // Predicated region
        $region85: #{mlp3d_partguided_forward.1} parent=63 // pred_check
          %p8889 = pneg %p281
        $region86: #{mlp3d_partguided_forward.1} parent=63 // pred_check_branch
          %8891 = sbr.rel (%p8889) target = $region88
        $region87: #{mlp3d_partguided_forward.1} parent=63 // pred_region
          %s8892 = smul.u32 8, %s27
        $region88: #{mlp3d_partguided_forward.1} parent=63 // pred_fallthru
          _
      $region64: #{mlp3d_partguided_forward.1} parent=5 // pred_fallthru
        _
      %p8893 = scmp.le.s32.totalorder 2, %s22
      // Predicated region
      $region89: #{mlp3d_partguided_forward.1} parent=5 // pred_check
        %p8894 = pneg %p8893
      $region90: #{mlp3d_partguided_forward.1} parent=5 // pred_check_branch
        %8896 = sbr.rel (%p8894) target = $region92
      $region91: #{mlp3d_partguided_forward.1} parent=5 // pred_region
        %s8897 = ssub.s32 %s22, 2
        // Predicated region
        $region93: #{mlp3d_partguided_forward.1} parent=91 // pred_check
          %p8898 = pneg %p287
        $region94: #{mlp3d_partguided_forward.1} parent=91 // pred_check_branch
          %8900 = sbr.rel (%p8898) target = $region96
        $region95: #{mlp3d_partguided_forward.1} parent=91 // pred_region
          %s8901 = smul.u32 8, %s28
          %p8902 = scmp.lt.s32.totalorder %s8901, 15
          %s8903 = scalar_select %p8902, %s8901, 15
          %s8904 = smul.addr %s8903, 8
          %s8905 = scalar_lea.vmem %s11, %s8904
        $region96: #{mlp3d_partguided_forward.1} parent=91 // pred_fallthru
          _
      $region92: #{mlp3d_partguided_forward.1} parent=5 // pred_fallthru
        _
    $region6: #{mlp3d_partguided_forward.1} parent=1 // loop_footer
      %s26 = sadd.s32 1, %s22
    $region7: #{mlp3d_partguided_forward.1} parent=1 // loop_footer_branch
      %21 = sbr.rel target = $region3
    $region8: #{mlp3d_partguided_forward.1} parent=1 // loop_exit
      _
    %8906 = vsyncpa [#allocation5], 1
    %s8907 = scalar_lea.sflag [#allocation5], 1
    %8908 = vsyncpa %s8907, 1
    %8909 = vsyncpa [#allocation7], 1
    %8910 = vsyncpa [#allocation10], 1

</llo_original>
